<compile_context>
chip_gen: v5e
topology: v5e:2x2
jax: 0.10.0
libtpu: 0.0.40
codegen_flags: <defaults>
</compile_context>

<pallas_src>
import functools
import math

import jax
import jax.numpy as jnp
from jax.experimental import pallas as pl
from jax.experimental.pallas import tpu as pltpu

LANE = 128      # vreg lane width
SUBLANE = 8     # vreg sublane count (f32)


def _round_up(x, m):
    return ((x + m - 1) // m) * m


# ----------------------------------------------------------------------------
# Fused Pallas kernel: the whole dilated-GRU stack in one pallas_call.
# Activations live as a 2-D (time*Bp, P) slab; folded step t of rate r is the
# contiguous row block [t*r*Bp, (t+1)*r*Bp).
# ----------------------------------------------------------------------------
def _make_fused_kernel(*, L, rates, s_pads, S, Bp, P):
    s_pad_max = s_pads[-1]

    def kernel(*refs):
        x_ref = refs[0]                        # (s_pad_max*Bp, P) f32 padded input
        w_refs = refs[1:1 + 4 * L]             # per layer: wi, wh, b_fold, b_hn
        out_ref = refs[1 + 4 * L]              # (s_pad_max*Bp, P) f32 activation slab
        enc_ref = refs[2 + 4 * L]              # (L*Bp, P) f32 per-layer last step
        gi_ref = refs[3 + 4 * L]               # (s_pad_max*Bp, 3P) f32 scratch

        src = x_ref
        for i in range(L):
            wi_ref, wh_ref, bf_ref, bhn_ref = w_refs[4 * i:4 * i + 4]
            rate = rates[i]
            s_pad = s_pads[i]
            sd = s_pad // rate                 # dilated serial steps
            rb = rate * Bp                     # folded batch rows (multiple of 8)
            n_rows = s_pad * Bp

            # torch semantics: this layer's time padding beyond S is zero input.
            if i > 0 and s_pad > S:
                out_ref[S * Bp:s_pad_max * Bp, :] = jnp.zeros(
                    ((s_pad_max - S) * Bp, P), jnp.float32)

            # (1) Hoisted input projection for ALL timesteps: one big bf16 MXU
            #     matmul, f32 accumulation.  r/z input+hidden biases and the n
            #     input bias are folded into bf_ref here.
            x_all = src[0:n_rows, :].astype(jnp.bfloat16)
            gi = jnp.dot(x_all, wi_ref[...],
                         preferred_element_type=jnp.float32) + bf_ref[...]
            gi_ref[0:n_rows, :] = gi

            # (2) Serial dilated recurrence: hidden state carried in vregs as
            #     the fori_loop carry; one (rb, P) x (P, 3P) dot per step.
            def step(t, h):
                row = pl.multiple_of(t * rb, rb)
                g_i = gi_ref[pl.ds(row, rb)]                       # (rb, 3P)
                g_h = jnp.dot(h.astype(jnp.bfloat16), wh_ref[...],
                              preferred_element_type=jnp.float32)  # (rb, 3P)
                r_g = jax.nn.sigmoid(g_i[:, 0:P] + g_h[:, 0:P])
                z_g = jax.nn.sigmoid(g_i[:, P:2 * P] + g_h[:, P:2 * P])
                n_g = jnp.tanh(g_i[:, 2 * P:3 * P]
                               + r_g * (g_h[:, 2 * P:3 * P] + bhn_ref[...]))
                h_new = n_g + z_g * (h - n_g)                      # f32 update
                out_ref[pl.ds(row, rb)] = h_new
                return h_new

            h0 = jnp.zeros((rb, P), jnp.float32)   # torch init_hidden (zeros)
            jax.lax.fori_loop(0, sd, step, h0,
                              unroll=(True if sd <= 32 else 4))

            # (3) This layer's output at real time step S-1 -> encoder state.
            enc_ref[i * Bp:(i + 1) * Bp, :] = out_ref[(S - 1) * Bp:S * Bp, :]

            src = out_ref                        # feeds the next layer

    return kernel


# ----------------------------------------------------------------------------
# Parameter init (torch-like uniform(-1/sqrt(H), 1/sqrt(H))), packed into the
# lane-padded, gate-concatenated, bias-folded layout used by the fused kernel.
# ----------------------------------------------------------------------------
def init_drnn_params(key, n_input, fw_n_hidden):
    L = len(fw_n_hidden)
    P = max([_round_up(n_input, LANE)] + [_round_up(h, LANE) for h in fw_n_hidden])
    keys = jax.random.split(key, L)
    layers = []
    in_dim = n_input
    for i, hid in enumerate(fw_n_hidden):
        k1, k2, k3, k4 = jax.random.split(keys[i], 4)
        s = 1.0 / math.sqrt(hid)
        wi = jax.random.uniform(k1, (3, in_dim, hid), jnp.float32, -s, s)
        wh = jax.random.uniform(k2, (3, hid, hid), jnp.float32, -s, s)
        bi = jax.random.uniform(k3, (3, hid), jnp.float32, -s, s)
        bh = jax.random.uniform(k4, (3, hid), jnp.float32, -s, s)

        wi_p = jnp.zeros((P, 3 * P), jnp.float32)
        wh_p = jnp.zeros((P, 3 * P), jnp.float32)
        bf_p = jnp.zeros((1, 3 * P), jnp.float32)
        bhn_p = jnp.zeros((1, P), jnp.float32)
        for g in range(3):
            wi_p = wi_p.at[:in_dim, g * P:g * P + hid].set(wi[g])
            wh_p = wh_p.at[:hid, g * P:g * P + hid].set(wh[g])
        bf_p = bf_p.at[0, 0 * P:0 * P + hid].set(bi[0] + bh[0])   # r gate bias
        bf_p = bf_p.at[0, 1 * P:1 * P + hid].set(bi[1] + bh[1])   # z gate bias
        bf_p = bf_p.at[0, 2 * P:2 * P + hid].set(bi[2])           # n input bias
        bhn_p = bhn_p.at[0, :hid].set(bh[2])                      # n hidden bias

        layers.append(dict(
            # padded / folded parameters used by the Pallas kernel (bf16 weights)
            wi=wi_p.astype(jnp.bfloat16), wh=wh_p.astype(jnp.bfloat16),
            bf=bf_p, bhn=bhn_p,
            # raw f32 parameters used only by the pure-JAX reference
            wi_raw=wi, wh_raw=wh, bi_raw=bi, bh_raw=bh,
        ))
        in_dim = hid
    return dict(layers=layers)


# ----------------------------------------------------------------------------
# DRNN forward: pad / layout glue in plain JAX, the whole hot loop in Pallas.
# ----------------------------------------------------------------------------
@functools.partial(jax.jit, static_argnames=("fw_n_hidden",))
def drnn_forward(x, params, *, fw_n_hidden):
    """x: (B, S, D) batch_first.  Returns (outputs (B,S,H_last), encoder_state_fw)."""
    layers = params["layers"]
    L = len(layers)
    assert L == len(fw_n_hidden)
    B, S, D = x.shape
    P = layers[0]["wi"].shape[0]                       # uniform padded feature width
    Bp = _round_up(B, SUBLANE)
    rates = tuple(2 ** i for i in range(L))
    s_pads = tuple(-(-S // r) * r for r in rates)      # torch dilated padding per layer
    s_pad_max = s_pads[-1]
    n_rows_max = s_pad_max * Bp

    # Time-major, zero-padded (time, batch, feature) slab flattened to 2-D rows.
    x_tm = jnp.transpose(x, (1, 0, 2)).astype(jnp.float32)
    x_pad = jnp.zeros((s_pad_max, Bp, P), jnp.float32).at[:S, :B, :D].set(x_tm)
    x2d = x_pad.reshape(n_rows_max, P)

    flat_w = []
    for lp in layers:
        flat_w += [lp["wi"], lp["wh"], lp["bf"], lp["bhn"]]

    kernel = _make_fused_kernel(L=L, rates=rates, s_pads=s_pads, S=S, Bp=Bp, P=P)

    # VMEM budget: x + out + enc + gi scratch + weights, with headroom.
    vmem_bytes = (x2d.size * 4 + n_rows_max * P * 4 + L * Bp * P * 4
                  + n_rows_max * 3 * P * 4
                  + sum(int(w.size) * w.dtype.itemsize for w in flat_w))
    vmem_limit = min(128 << 20, max(2 * vmem_bytes + (4 << 20), 16 << 20))
    # TODO(synk): for large S*B, chunk the time axis and stream x/out via
    #             double-buffered async copies instead of full-resident slabs.

    out2d, enc2d = pl.pallas_call(
        kernel,
        out_shape=(jax.ShapeDtypeStruct((n_rows_max, P), jnp.float32),
                   jax.ShapeDtypeStruct((L * Bp, P), jnp.float32)),
        in_specs=[pl.BlockSpec(memory_space=pltpu.MemorySpace.VMEM)] * (1 + 4 * L),
        out_specs=(pl.BlockSpec(memory_space=pltpu.MemorySpace.VMEM),
                   pl.BlockSpec(memory_space=pltpu.MemorySpace.VMEM)),
        scratch_shapes=[pltpu.VMEM((n_rows_max, 3 * P), jnp.float32)],
        compiler_params=pltpu.CompilerParams(vmem_limit_bytes=int(vmem_limit)),
    )(x2d, *flat_w)

    # Un-pad: rows [0, S*Bp) of the slab are the last layer's outputs.
    out = out2d[:S * Bp].reshape(S, Bp, P)[:, :B, :fw_n_hidden[-1]]
    outputs = jnp.transpose(out, (1, 0, 2))                      # back to batch_first
    enc = enc2d.reshape(L, Bp, P)
    encoder_state_fw = jnp.concatenate(
        [enc[i, :B, :fw_n_hidden[i]] for i in range(L)], axis=1)
    return outputs, encoder_state_fw


# ----------------------------------------------------------------------------
# Pure-JAX f32 reference (unpadded, per-gate weights) for a numerical check.
# ----------------------------------------------------------------------------
def _gru_dilated_ref(x_tm, wi, wh, bi, bh, rate, hid):
    S, B, _ = x_tm.shape
    outs = []
    for t in range(S):
        h_prev = outs[t - rate] if t >= rate else jnp.zeros((B, hid), jnp.float32)
        x_t = x_tm[t]
        r = jax.nn.sigmoid(x_t @ wi[0] + bi[0] + h_prev @ wh[0] + bh[0])
        z = jax.nn.sigmoid(x_t @ wi[1] + bi[1] + h_prev @ wh[1] + bh[1])
        n = jnp.tanh(x_t @ wi[2] + bi[2] + r * (h_prev @ wh[2] + bh[2]))
        outs.append((1.0 - z) * n + z * h_prev)
    return jnp.stack(outs)


def _drnn_forward_ref(x, params):
    x_tm = jnp.transpose(x, (1, 0, 2))
    layer_in, last_states = x_tm, []
    for i, lp in enumerate(params["layers"]):
        hid = lp["wh_raw"].shape[-1]
        out = _gru_dilated_ref(layer_in, lp["wi_raw"], lp["wh_raw"],
                               lp["bi_raw"], lp["bh_raw"], 2 ** i, hid)
        last_states.append(out[-1])
        layer_in = out
    enc = jnp.concatenate(last_states, axis=1)
    return jnp.transpose(layer_in, (1, 0, 2)), enc


if __name__ == "__main__":
    B, S, D = 2, 10, 8
    fw_n_hidden = (32, 16, 8)      # 3 dilated layers -> rates 1, 2, 4 (S=10 exercises padding)
    bw_n_hidden = (32, 16, 8)      # accepted by the torch module but unused in its GRU path

    key = jax.random.PRNGKey(0)
    kx, kp = jax.random.split(key)
    x = jax.random.normal(kx, (B, S, D), jnp.float32)
    params = init_drnn_params(kp, D, fw_n_hidden)

    outputs, enc_state = drnn_forward(x, params, fw_n_hidden=fw_n_hidden)
    jax.block_until_ready((outputs, enc_state))

    assert outputs.shape == (B, S, fw_n_hidden[-1])
    assert enc_state.shape == (B, sum(fw_n_hidden))

    out_ref, enc_ref = _drnn_forward_ref(x, params)
    # Tolerance reflects bf16 MXU operands (weights + matmul inputs cast to bf16,
    # f32 accumulation); gate nonlinearities and the recurrence update stay f32.
    err_o = float(jnp.max(jnp.abs(outputs - out_ref)))
    err_e = float(jnp.max(jnp.abs(enc_state - enc_ref)))
    assert err_o < 5e-2, err_o
    assert err_e < 5e-2, err_e

    print("KERNEL_OK")
</pallas_src>

<mosaic_0001>
module attributes {stable_mosaic.version = 11 : i64} {
  func.func @kernel(%arg0: memref<96x128xf32, #tpu.memory_space<vmem>>, %arg1: memref<128x384xbf16, #tpu.memory_space<vmem>>, %arg2: memref<128x384xbf16, #tpu.memory_space<vmem>>, %arg3: memref<1x384xf32, #tpu.memory_space<vmem>>, %arg4: memref<1x128xf32, #tpu.memory_space<vmem>>, %arg5: memref<128x384xbf16, #tpu.memory_space<vmem>>, %arg6: memref<128x384xbf16, #tpu.memory_space<vmem>>, %arg7: memref<1x384xf32, #tpu.memory_space<vmem>>, %arg8: memref<1x128xf32, #tpu.memory_space<vmem>>, %arg9: memref<128x384xbf16, #tpu.memory_space<vmem>>, %arg10: memref<128x384xbf16, #tpu.memory_space<vmem>>, %arg11: memref<1x384xf32, #tpu.memory_space<vmem>>, %arg12: memref<1x128xf32, #tpu.memory_space<vmem>>, %arg13: memref<96x128xf32, #tpu.memory_space<vmem>>, %arg14: memref<24x128xf32, #tpu.memory_space<vmem>>, %arg15: memref<96x384xf32, #tpu.memory_space<vmem>>) attributes {dimension_semantics = [], scalar_prefetch = 0 : i64, scratch_operands = 1 : i64, tpu.core_type = #tpu.core_type<tc>} {
    %c0 = arith.constant 0 : index
    %c0_0 = arith.constant 0 : index
    %0 = vector.load %arg0[%c0, %c0_0] : memref<96x128xf32, #tpu.memory_space<vmem>>, vector<80x128xf32>
    %1 = arith.truncf %0 : vector<80x128xf32> to vector<80x128xbf16>
    %c0_1 = arith.constant 0 : index
    %c0_2 = arith.constant 0 : index
    %2 = vector.load %arg1[%c0_1, %c0_2] : memref<128x384xbf16, #tpu.memory_space<vmem>>, vector<128x384xbf16>
    %cst = arith.constant dense<0.000000e+00> : vector<80x384xf32>
    %3 = tpu.matmul %1, %2, %cst {dimension_numbers = #tpu.dot_dimension_numbers<[1], [0], [0], [1], [0, 0, 1, 1], [], []>} : vector<80x128xbf16>, vector<128x384xbf16>, vector<80x384xf32> -> vector<80x384xf32>
    %c0_3 = arith.constant 0 : index
    %c0_4 = arith.constant 0 : index
    %4 = vector.load %arg3[%c0_3, %c0_4] : memref<1x384xf32, #tpu.memory_space<vmem>>, vector<1x384xf32>
    %5 = vector.broadcast %4 : vector<1x384xf32> to vector<80x384xf32>
    %6 = arith.addf %3, %5 : vector<80x384xf32>
    %c0_5 = arith.constant 0 : index
    %c0_6 = arith.constant 0 : index
    %7 = vector.load %arg15[%c0_5, %c0_6] : memref<96x384xf32, #tpu.memory_space<vmem>>, vector<80x384xf32>
    tpu.vector_store %arg15[%c0_5, %c0_6], %6 {strides = array<i32>} : memref<96x384xf32, #tpu.memory_space<vmem>>, vector<80x384xf32>,
    %cst_7 = arith.constant 0.000000e+00 : f32
    %8 = vector.broadcast %cst_7 : f32 to vector<8x128xf32>
    %c0_i32 = arith.constant 0 : i32
    %c8_i32 = arith.constant 8 : i32
    %9 = arith.muli %c0_i32, %c8_i32 : i32
    %10 = tpu.assume_multiple %9, 8 : i32
    %11 = arith.index_cast %10 : i32 to index
    %c0_8 = arith.constant 0 : index
    %12 = vector.load %arg15[%11, %c0_8] : memref<96x384xf32, #tpu.memory_space<vmem>>, vector<8x384xf32>
    %13 = arith.truncf %8 : vector<8x128xf32> to vector<8x128xbf16>
    %c0_9 = arith.constant 0 : index
    %c0_10 = arith.constant 0 : index
    %14 = vector.load %arg2[%c0_9, %c0_10] : memref<128x384xbf16, #tpu.memory_space<vmem>>, vector<128x384xbf16>
    %cst_11 = arith.constant dense<0.000000e+00> : vector<8x384xf32>
    %15 = tpu.matmul %13, %14, %cst_11 {dimension_numbers = #tpu.dot_dimension_numbers<[1], [0], [0], [1], [0, 0, 1, 1], [], []>} : vector<8x128xbf16>, vector<128x384xbf16>, vector<8x384xf32> -> vector<8x384xf32>
    %16 = vector.extract_strided_slice %12 {offsets = [0, 0], sizes = [8, 128], strides = [1, 1]} : vector<8x384xf32> to vector<8x128xf32>
    %17 = vector.extract_strided_slice %15 {offsets = [0, 0], sizes = [8, 128], strides = [1, 1]} : vector<8x384xf32> to vector<8x128xf32>
    %18 = arith.addf %16, %17 : vector<8x128xf32>
    %19 = arith.negf %18 : vector<8x128xf32>
    %20 = math.exp %19 : vector<8x128xf32>
    %cst_12 = arith.constant 1.000000e+00 : f32
    %21 = vector.broadcast %cst_12 : f32 to vector<8x128xf32>
    %22 = arith.addf %21, %20 : vector<8x128xf32>
    %23 = arith.divf %21, %22 : vector<8x128xf32>
    %24 = vector.extract_strided_slice %12 {offsets = [0, 128], sizes = [8, 128], strides = [1, 1]} : vector<8x384xf32> to vector<8x128xf32>
    %25 = vector.extract_strided_slice %15 {offsets = [0, 128], sizes = [8, 128], strides = [1, 1]} : vector<8x384xf32> to vector<8x128xf32>
    %26 = arith.addf %24, %25 : vector<8x128xf32>
    %27 = arith.negf %26 : vector<8x128xf32>
    %28 = math.exp %27 : vector<8x128xf32>
    %cst_13 = arith.constant 1.000000e+00 : f32
    %29 = vector.broadcast %cst_13 : f32 to vector<8x128xf32>
    %30 = arith.addf %29, %28 : vector<8x128xf32>
    %31 = arith.divf %29, %30 : vector<8x128xf32>
    %32 = vector.extract_strided_slice %12 {offsets = [0, 256], sizes = [8, 128], strides = [1, 1]} : vector<8x384xf32> to vector<8x128xf32>
    %33 = vector.extract_strided_slice %15 {offsets = [0, 256], sizes = [8, 128], strides = [1, 1]} : vector<8x384xf32> to vector<8x128xf32>
    %c0_14 = arith.constant 0 : index
    %c0_15 = arith.constant 0 : index
    %34 = vector.load %arg4[%c0_14, %c0_15] : memref<1x128xf32, #tpu.memory_space<vmem>>, vector<1x128xf32>
    %35 = vector.broadcast %34 : vector<1x128xf32> to vector<8x128xf32>
    %36 = arith.addf %33, %35 : vector<8x128xf32>
    %37 = arith.mulf %23, %36 : vector<8x128xf32>
    %38 = arith.addf %32, %37 : vector<8x128xf32>
    %39 = math.tanh %38 : vector<8x128xf32>
    %40 = arith.subf %8, %39 : vector<8x128xf32>
    %41 = arith.mulf %31, %40 : vector<8x128xf32>
    %42 = arith.addf %39, %41 : vector<8x128xf32>
    %43 = arith.index_cast %10 : i32 to index
    %c0_16 = arith.constant 0 : index
    %44 = vector.load %arg13[%43, %c0_16] : memref<96x128xf32, #tpu.memory_space<vmem>>, vector<8x128xf32>
    tpu.vector_store %arg13[%43, %c0_16], %42 {strides = array<i32>} : memref<96x128xf32, #tpu.memory_space<vmem>>, vector<8x128xf32>,
    %c1_i32 = arith.constant 1 : i32
    %c8_i32_17 = arith.constant 8 : i32
    %45 = arith.muli %c1_i32, %c8_i32_17 : i32
    %46 = tpu.assume_multiple %45, 8 : i32
    %47 = arith.index_cast %46 : i32 to index
    %c0_18 = arith.constant 0 : index
    %48 = vector.load %arg15[%47, %c0_18] : memref<96x384xf32, #tpu.memory_space<vmem>>, vector<8x384xf32>
    %49 = arith.truncf %42 : vector<8x128xf32> to vector<8x128xbf16>
    %c0_19 = arith.constant 0 : index
    %c0_20 = arith.constant 0 : index
    %50 = vector.load %arg2[%c0_19, %c0_20] : memref<128x384xbf16, #tpu.memory_space<vmem>>, vector<128x384xbf16>
    %cst_21 = arith.constant dense<0.000000e+00> : vector<8x384xf32>
    %51 = tpu.matmul %49, %50, %cst_21 {dimension_numbers = #tpu.dot_dimension_numbers<[1], [0], [0], [1], [0, 0, 1, 1], [], []>} : vector<8x128xbf16>, vector<128x384xbf16>, vector<8x384xf32> -> vector<8x384xf32>
    %52 = vector.extract_strided_slice %48 {offsets = [0, 0], sizes = [8, 128], strides = [1, 1]} : vector<8x384xf32> to vector<8x128xf32>
    %53 = vector.extract_strided_slice %51 {offsets = [0, 0], sizes = [8, 128], strides = [1, 1]} : vector<8x384xf32> to vector<8x128xf32>
    %54 = arith.addf %52, %53 : vector<8x128xf32>
    %55 = arith.negf %54 : vector<8x128xf32>
    %56 = math.exp %55 : vector<8x128xf32>
    %cst_22 = arith.constant 1.000000e+00 : f32
    %57 = vector.broadcast %cst_22 : f32 to vector<8x128xf32>
    %58 = arith.addf %57, %56 : vector<8x128xf32>
    %59 = arith.divf %57, %58 : vector<8x128xf32>
    %60 = vector.extract_strided_slice %48 {offsets = [0, 128], sizes = [8, 128], strides = [1, 1]} : vector<8x384xf32> to vector<8x128xf32>
    %61 = vector.extract_strided_slice %51 {offsets = [0, 128], sizes = [8, 128], strides = [1, 1]} : vector<8x384xf32> to vector<8x128xf32>
    %62 = arith.addf %60, %61 : vector<8x128xf32>
    %63 = arith.negf %62 : vector<8x128xf32>
    %64 = math.exp %63 : vector<8x128xf32>
    %cst_23 = arith.constant 1.000000e+00 : f32
    %65 = vector.broadcast %cst_23 : f32 to vector<8x128xf32>
    %66 = arith.addf %65, %64 : vector<8x128xf32>
    %67 = arith.divf %65, %66 : vector<8x128xf32>
    %68 = vector.extract_strided_slice %48 {offsets = [0, 256], sizes = [8, 128], strides = [1, 1]} : vector<8x384xf32> to vector<8x128xf32>
    %69 = vector.extract_strided_slice %51 {offsets = [0, 256], sizes = [8, 128], strides = [1, 1]} : vector<8x384xf32> to vector<8x128xf32>
    %c0_24 = arith.constant 0 : index
    %c0_25 = arith.constant 0 : index
    %70 = vector.load %arg4[%c0_24, %c0_25] : memref<1x128xf32, #tpu.memory_space<vmem>>, vector<1x128xf32>
    %71 = vector.broadcast %70 : vector<1x128xf32> to vector<8x128xf32>
    %72 = arith.addf %69, %71 : vector<8x128xf32>
    %73 = arith.mulf %59, %72 : vector<8x128xf32>
    %74 = arith.addf %68, %73 : vector<8x128xf32>
    %75 = math.tanh %74 : vector<8x128xf32>
    %76 = arith.subf %42, %75 : vector<8x128xf32>
    %77 = arith.mulf %67, %76 : vector<8x128xf32>
    %78 = arith.addf %75, %77 : vector<8x128xf32>
    %79 = arith.index_cast %46 : i32 to index
    %c0_26 = arith.constant 0 : index
    %80 = vector.load %arg13[%79, %c0_26] : memref<96x128xf32, #tpu.memory_space<vmem>>, vector<8x128xf32>
    tpu.vector_store %arg13[%79, %c0_26], %78 {strides = array<i32>} : memref<96x128xf32, #tpu.memory_space<vmem>>, vector<8x128xf32>,
    %c2_i32 = arith.constant 2 : i32
    %c8_i32_27 = arith.constant 8 : i32
    %81 = arith.muli %c2_i32, %c8_i32_27 : i32
    %82 = tpu.assume_multiple %81, 8 : i32
    %83 = arith.index_cast %82 : i32 to index
    %c0_28 = arith.constant 0 : index
    %84 = vector.load %arg15[%83, %c0_28] : memref<96x384xf32, #tpu.memory_space<vmem>>, vector<8x384xf32>
    %85 = arith.truncf %78 : vector<8x128xf32> to vector<8x128xbf16>
    %c0_29 = arith.constant 0 : index
    %c0_30 = arith.constant 0 : index
    %86 = vector.load %arg2[%c0_29, %c0_30] : memref<128x384xbf16, #tpu.memory_space<vmem>>, vector<128x384xbf16>
    %cst_31 = arith.constant dense<0.000000e+00> : vector<8x384xf32>
    %87 = tpu.matmul %85, %86, %cst_31 {dimension_numbers = #tpu.dot_dimension_numbers<[1], [0], [0], [1], [0, 0, 1, 1], [], []>} : vector<8x128xbf16>, vector<128x384xbf16>, vector<8x384xf32> -> vector<8x384xf32>
    %88 = vector.extract_strided_slice %84 {offsets = [0, 0], sizes = [8, 128], strides = [1, 1]} : vector<8x384xf32> to vector<8x128xf32>
    %89 = vector.extract_strided_slice %87 {offsets = [0, 0], sizes = [8, 128], strides = [1, 1]} : vector<8x384xf32> to vector<8x128xf32>
    %90 = arith.addf %88, %89 : vector<8x128xf32>
    %91 = arith.negf %90 : vector<8x128xf32>
    %92 = math.exp %91 : vector<8x128xf32>
    %cst_32 = arith.constant 1.000000e+00 : f32
    %93 = vector.broadcast %cst_32 : f32 to vector<8x128xf32>
    %94 = arith.addf %93, %92 : vector<8x128xf32>
    %95 = arith.divf %93, %94 : vector<8x128xf32>
    %96 = vector.extract_strided_slice %84 {offsets = [0, 128], sizes = [8, 128], strides = [1, 1]} : vector<8x384xf32> to vector<8x128xf32>
    %97 = vector.extract_strided_slice %87 {offsets = [0, 128], sizes = [8, 128], strides = [1, 1]} : vector<8x384xf32> to vector<8x128xf32>
    %98 = arith.addf %96, %97 : vector<8x128xf32>
    %99 = arith.negf %98 : vector<8x128xf32>
    %100 = math.exp %99 : vector<8x128xf32>
    %cst_33 = arith.constant 1.000000e+00 : f32
    %101 = vector.broadcast %cst_33 : f32 to vector<8x128xf32>
    %102 = arith.addf %101, %100 : vector<8x128xf32>
    %103 = arith.divf %101, %102 : vector<8x128xf32>
    %104 = vector.extract_strided_slice %84 {offsets = [0, 256], sizes = [8, 128], strides = [1, 1]} : vector<8x384xf32> to vector<8x128xf32>
    %105 = vector.extract_strided_slice %87 {offsets = [0, 256], sizes = [8, 128], strides = [1, 1]} : vector<8x384xf32> to vector<8x128xf32>
    %c0_34 = arith.constant 0 : index
    %c0_35 = arith.constant 0 : index
    %106 = vector.load %arg4[%c0_34, %c0_35] : memref<1x128xf32, #tpu.memory_space<vmem>>, vector<1x128xf32>
    %107 = vector.broadcast %106 : vector<1x128xf32> to vector<8x128xf32>
    %108 = arith.addf %105, %107 : vector<8x128xf32>
    %109 = arith.mulf %95, %108 : vector<8x128xf32>
    %110 = arith.addf %104, %109 : vector<8x128xf32>
    %111 = math.tanh %110 : vector<8x128xf32>
    %112 = arith.subf %78, %111 : vector<8x128xf32>
    %113 = arith.mulf %103, %112 : vector<8x128xf32>
    %114 = arith.addf %111, %113 : vector<8x128xf32>
    %115 = arith.index_cast %82 : i32 to index
    %c0_36 = arith.constant 0 : index
    %116 = vector.load %arg13[%115, %c0_36] : memref<96x128xf32, #tpu.memory_space<vmem>>, vector<8x128xf32>
    tpu.vector_store %arg13[%115, %c0_36], %114 {strides = array<i32>} : memref<96x128xf32, #tpu.memory_space<vmem>>, vector<8x128xf32>,
    %c3_i32 = arith.constant 3 : i32
    %c8_i32_37 = arith.constant 8 : i32
    %117 = arith.muli %c3_i32, %c8_i32_37 : i32
    %118 = tpu.assume_multiple %117, 8 : i32
    %119 = arith.index_cast %118 : i32 to index
    %c0_38 = arith.constant 0 : index
    %120 = vector.load %arg15[%119, %c0_38] : memref<96x384xf32, #tpu.memory_space<vmem>>, vector<8x384xf32>
    %121 = arith.truncf %114 : vector<8x128xf32> to vector<8x128xbf16>
    %c0_39 = arith.constant 0 : index
    %c0_40 = arith.constant 0 : index
    %122 = vector.load %arg2[%c0_39, %c0_40] : memref<128x384xbf16, #tpu.memory_space<vmem>>, vector<128x384xbf16>
    %cst_41 = arith.constant dense<0.000000e+00> : vector<8x384xf32>
    %123 = tpu.matmul %121, %122, %cst_41 {dimension_numbers = #tpu.dot_dimension_numbers<[1], [0], [0], [1], [0, 0, 1, 1], [], []>} : vector<8x128xbf16>, vector<128x384xbf16>, vector<8x384xf32> -> vector<8x384xf32>
    %124 = vector.extract_strided_slice %120 {offsets = [0, 0], sizes = [8, 128], strides = [1, 1]} : vector<8x384xf32> to vector<8x128xf32>
    %125 = vector.extract_strided_slice %123 {offsets = [0, 0], sizes = [8, 128], strides = [1, 1]} : vector<8x384xf32> to vector<8x128xf32>
    %126 = arith.addf %124, %125 : vector<8x128xf32>
    %127 = arith.negf %126 : vector<8x128xf32>
    %128 = math.exp %127 : vector<8x128xf32>
    %cst_42 = arith.constant 1.000000e+00 : f32
    %129 = vector.broadcast %cst_42 : f32 to vector<8x128xf32>
    %130 = arith.addf %129, %128 : vector<8x128xf32>
    %131 = arith.divf %129, %130 : vector<8x128xf32>
    %132 = vector.extract_strided_slice %120 {offsets = [0, 128], sizes = [8, 128], strides = [1, 1]} : vector<8x384xf32> to vector<8x128xf32>
    %133 = vector.extract_strided_slice %123 {offsets = [0, 128], sizes = [8, 128], strides = [1, 1]} : vector<8x384xf32> to vector<8x128xf32>
    %134 = arith.addf %132, %133 : vector<8x128xf32>
    %135 = arith.negf %134 : vector<8x128xf32>
    %136 = math.exp %135 : vector<8x128xf32>
    %cst_43 = arith.constant 1.000000e+00 : f32
    %137 = vector.broadcast %cst_43 : f32 to vector<8x128xf32>
    %138 = arith.addf %137, %136 : vector<8x128xf32>
    %139 = arith.divf %137, %138 : vector<8x128xf32>
    %140 = vector.extract_strided_slice %120 {offsets = [0, 256], sizes = [8, 128], strides = [1, 1]} : vector<8x384xf32> to vector<8x128xf32>
    %141 = vector.extract_strided_slice %123 {offsets = [0, 256], sizes = [8, 128], strides = [1, 1]} : vector<8x384xf32> to vector<8x128xf32>
    %c0_44 = arith.constant 0 : index
    %c0_45 = arith.constant 0 : index
    %142 = vector.load %arg4[%c0_44, %c0_45] : memref<1x128xf32, #tpu.memory_space<vmem>>, vector<1x128xf32>
    %143 = vector.broadcast %142 : vector<1x128xf32> to vector<8x128xf32>
    %144 = arith.addf %141, %143 : vector<8x128xf32>
    %145 = arith.mulf %131, %144 : vector<8x128xf32>
    %146 = arith.addf %140, %145 : vector<8x128xf32>
    %147 = math.tanh %146 : vector<8x128xf32>
    %148 = arith.subf %114, %147 : vector<8x128xf32>
    %149 = arith.mulf %139, %148 : vector<8x128xf32>
    %150 = arith.addf %147, %149 : vector<8x128xf32>
    %151 = arith.index_cast %118 : i32 to index
    %c0_46 = arith.constant 0 : index
    %152 = vector.load %arg13[%151, %c0_46] : memref<96x128xf32, #tpu.memory_space<vmem>>, vector<8x128xf32>
    tpu.vector_store %arg13[%151, %c0_46], %150 {strides = array<i32>} : memref<96x128xf32, #tpu.memory_space<vmem>>, vector<8x128xf32>,
    %c4_i32 = arith.constant 4 : i32
    %c8_i32_47 = arith.constant 8 : i32
    %153 = arith.muli %c4_i32, %c8_i32_47 : i32
    %154 = tpu.assume_multiple %153, 8 : i32
    %155 = arith.index_cast %154 : i32 to index
    %c0_48 = arith.constant 0 : index
    %156 = vector.load %arg15[%155, %c0_48] : memref<96x384xf32, #tpu.memory_space<vmem>>, vector<8x384xf32>
    %157 = arith.truncf %150 : vector<8x128xf32> to vector<8x128xbf16>
    %c0_49 = arith.constant 0 : index
    %c0_50 = arith.constant 0 : index
    %158 = vector.load %arg2[%c0_49, %c0_50] : memref<128x384xbf16, #tpu.memory_space<vmem>>, vector<128x384xbf16>
    %cst_51 = arith.constant dense<0.000000e+00> : vector<8x384xf32>
    %159 = tpu.matmul %157, %158, %cst_51 {dimension_numbers = #tpu.dot_dimension_numbers<[1], [0], [0], [1], [0, 0, 1, 1], [], []>} : vector<8x128xbf16>, vector<128x384xbf16>, vector<8x384xf32> -> vector<8x384xf32>
    %160 = vector.extract_strided_slice %156 {offsets = [0, 0], sizes = [8, 128], strides = [1, 1]} : vector<8x384xf32> to vector<8x128xf32>
    %161 = vector.extract_strided_slice %159 {offsets = [0, 0], sizes = [8, 128], strides = [1, 1]} : vector<8x384xf32> to vector<8x128xf32>
    %162 = arith.addf %160, %161 : vector<8x128xf32>
    %163 = arith.negf %162 : vector<8x128xf32>
    %164 = math.exp %163 : vector<8x128xf32>
    %cst_52 = arith.constant 1.000000e+00 : f32
    %165 = vector.broadcast %cst_52 : f32 to vector<8x128xf32>
    %166 = arith.addf %165, %164 : vector<8x128xf32>
    %167 = arith.divf %165, %166 : vector<8x128xf32>
    %168 = vector.extract_strided_slice %156 {offsets = [0, 128], sizes = [8, 128], strides = [1, 1]} : vector<8x384xf32> to vector<8x128xf32>
    %169 = vector.extract_strided_slice %159 {offsets = [0, 128], sizes = [8, 128], strides = [1, 1]} : vector<8x384xf32> to vector<8x128xf32>
    %170 = arith.addf %168, %169 : vector<8x128xf32>
    %171 = arith.negf %170 : vector<8x128xf32>
    %172 = math.exp %171 : vector<8x128xf32>
    %cst_53 = arith.constant 1.000000e+00 : f32
    %173 = vector.broadcast %cst_53 : f32 to vector<8x128xf32>
    %174 = arith.addf %173, %172 : vector<8x128xf32>
    %175 = arith.divf %173, %174 : vector<8x128xf32>
    %176 = vector.extract_strided_slice %156 {offsets = [0, 256], sizes = [8, 128], strides = [1, 1]} : vector<8x384xf32> to vector<8x128xf32>
    %177 = vector.extract_strided_slice %159 {offsets = [0, 256], sizes = [8, 128], strides = [1, 1]} : vector<8x384xf32> to vector<8x128xf32>
    %c0_54 = arith.constant 0 : index
    %c0_55 = arith.constant 0 : index
    %178 = vector.load %arg4[%c0_54, %c0_55] : memref<1x128xf32, #tpu.memory_space<vmem>>, vector<1x128xf32>
    %179 = vector.broadcast %178 : vector<1x128xf32> to vector<8x128xf32>
    %180 = arith.addf %177, %179 : vector<8x128xf32>
    %181 = arith.mulf %167, %180 : vector<8x128xf32>
    %182 = arith.addf %176, %181 : vector<8x128xf32>
    %183 = math.tanh %182 : vector<8x128xf32>
    %184 = arith.subf %150, %183 : vector<8x128xf32>
    %185 = arith.mulf %175, %184 : vector<8x128xf32>
    %186 = arith.addf %183, %185 : vector<8x128xf32>
    %187 = arith.index_cast %154 : i32 to index
    %c0_56 = arith.constant 0 : index
    %188 = vector.load %arg13[%187, %c0_56] : memref<96x128xf32, #tpu.memory_space<vmem>>, vector<8x128xf32>
    tpu.vector_store %arg13[%187, %c0_56], %186 {strides = array<i32>} : memref<96x128xf32, #tpu.memory_space<vmem>>, vector<8x128xf32>,
    %c5_i32 = arith.constant 5 : i32
    %c8_i32_57 = arith.constant 8 : i32
    %189 = arith.muli %c5_i32, %c8_i32_57 : i32
    %190 = tpu.assume_multiple %189, 8 : i32
    %191 = arith.index_cast %190 : i32 to index
    %c0_58 = arith.constant 0 : index
    %192 = vector.load %arg15[%191, %c0_58] : memref<96x384xf32, #tpu.memory_space<vmem>>, vector<8x384xf32>
    %193 = arith.truncf %186 : vector<8x128xf32> to vector<8x128xbf16>
    %c0_59 = arith.constant 0 : index
    %c0_60 = arith.constant 0 : index
    %194 = vector.load %arg2[%c0_59, %c0_60] : memref<128x384xbf16, #tpu.memory_space<vmem>>, vector<128x384xbf16>
    %cst_61 = arith.constant dense<0.000000e+00> : vector<8x384xf32>
    %195 = tpu.matmul %193, %194, %cst_61 {dimension_numbers = #tpu.dot_dimension_numbers<[1], [0], [0], [1], [0, 0, 1, 1], [], []>} : vector<8x128xbf16>, vector<128x384xbf16>, vector<8x384xf32> -> vector<8x384xf32>
    %196 = vector.extract_strided_slice %192 {offsets = [0, 0], sizes = [8, 128], strides = [1, 1]} : vector<8x384xf32> to vector<8x128xf32>
    %197 = vector.extract_strided_slice %195 {offsets = [0, 0], sizes = [8, 128], strides = [1, 1]} : vector<8x384xf32> to vector<8x128xf32>
    %198 = arith.addf %196, %197 : vector<8x128xf32>
    %199 = arith.negf %198 : vector<8x128xf32>
    %200 = math.exp %199 : vector<8x128xf32>
    %cst_62 = arith.constant 1.000000e+00 : f32
    %201 = vector.broadcast %cst_62 : f32 to vector<8x128xf32>
    %202 = arith.addf %201, %200 : vector<8x128xf32>
    %203 = arith.divf %201, %202 : vector<8x128xf32>
    %204 = vector.extract_strided_slice %192 {offsets = [0, 128], sizes = [8, 128], strides = [1, 1]} : vector<8x384xf32> to vector<8x128xf32>
    %205 = vector.extract_strided_slice %195 {offsets = [0, 128], sizes = [8, 128], strides = [1, 1]} : vector<8x384xf32> to vector<8x128xf32>
    %206 = arith.addf %204, %205 : vector<8x128xf32>
    %207 = arith.negf %206 : vector<8x128xf32>
    %208 = math.exp %207 : vector<8x128xf32>
    %cst_63 = arith.constant 1.000000e+00 : f32
    %209 = vector.broadcast %cst_63 : f32 to vector<8x128xf32>
    %210 = arith.addf %209, %208 : vector<8x128xf32>
    %211 = arith.divf %209, %210 : vector<8x128xf32>
    %212 = vector.extract_strided_slice %192 {offsets = [0, 256], sizes = [8, 128], strides = [1, 1]} : vector<8x384xf32> to vector<8x128xf32>
    %213 = vector.extract_strided_slice %195 {offsets = [0, 256], sizes = [8, 128], strides = [1, 1]} : vector<8x384xf32> to vector<8x128xf32>
    %c0_64 = arith.constant 0 : index
    %c0_65 = arith.constant 0 : index
    %214 = vector.load %arg4[%c0_64, %c0_65] : memref<1x128xf32, #tpu.memory_space<vmem>>, vector<1x128xf32>
    %215 = vector.broadcast %214 : vector<1x128xf32> to vector<8x128xf32>
    %216 = arith.addf %213, %215 : vector<8x128xf32>
    %217 = arith.mulf %203, %216 : vector<8x128xf32>
    %218 = arith.addf %212, %217 : vector<8x128xf32>
    %219 = math.tanh %218 : vector<8x128xf32>
    %220 = arith.subf %186, %219 : vector<8x128xf32>
    %221 = arith.mulf %211, %220 : vector<8x128xf32>
    %222 = arith.addf %219, %221 : vector<8x128xf32>
    %223 = arith.index_cast %190 : i32 to index
    %c0_66 = arith.constant 0 : index
    %224 = vector.load %arg13[%223, %c0_66] : memref<96x128xf32, #tpu.memory_space<vmem>>, vector<8x128xf32>
    tpu.vector_store %arg13[%223, %c0_66], %222 {strides = array<i32>} : memref<96x128xf32, #tpu.memory_space<vmem>>, vector<8x128xf32>,
    %c6_i32 = arith.constant 6 : i32
    %c8_i32_67 = arith.constant 8 : i32
    %225 = arith.muli %c6_i32, %c8_i32_67 : i32
    %226 = tpu.assume_multiple %225, 8 : i32
    %227 = arith.index_cast %226 : i32 to index
    %c0_68 = arith.constant 0 : index
    %228 = vector.load %arg15[%227, %c0_68] : memref<96x384xf32, #tpu.memory_space<vmem>>, vector<8x384xf32>
    %229 = arith.truncf %222 : vector<8x128xf32> to vector<8x128xbf16>
    %c0_69 = arith.constant 0 : index
    %c0_70 = arith.constant 0 : index
    %230 = vector.load %arg2[%c0_69, %c0_70] : memref<128x384xbf16, #tpu.memory_space<vmem>>, vector<128x384xbf16>
    %cst_71 = arith.constant dense<0.000000e+00> : vector<8x384xf32>
    %231 = tpu.matmul %229, %230, %cst_71 {dimension_numbers = #tpu.dot_dimension_numbers<[1], [0], [0], [1], [0, 0, 1, 1], [], []>} : vector<8x128xbf16>, vector<128x384xbf16>, vector<8x384xf32> -> vector<8x384xf32>
    %232 = vector.extract_strided_slice %228 {offsets = [0, 0], sizes = [8, 128], strides = [1, 1]} : vector<8x384xf32> to vector<8x128xf32>
    %233 = vector.extract_strided_slice %231 {offsets = [0, 0], sizes = [8, 128], strides = [1, 1]} : vector<8x384xf32> to vector<8x128xf32>
    %234 = arith.addf %232, %233 : vector<8x128xf32>
    %235 = arith.negf %234 : vector<8x128xf32>
    %236 = math.exp %235 : vector<8x128xf32>
    %cst_72 = arith.constant 1.000000e+00 : f32
    %237 = vector.broadcast %cst_72 : f32 to vector<8x128xf32>
    %238 = arith.addf %237, %236 : vector<8x128xf32>
    %239 = arith.divf %237, %238 : vector<8x128xf32>
    %240 = vector.extract_strided_slice %228 {offsets = [0, 128], sizes = [8, 128], strides = [1, 1]} : vector<8x384xf32> to vector<8x128xf32>
    %241 = vector.extract_strided_slice %231 {offsets = [0, 128], sizes = [8, 128], strides = [1, 1]} : vector<8x384xf32> to vector<8x128xf32>
    %242 = arith.addf %240, %241 : vector<8x128xf32>
    %243 = arith.negf %242 : vector<8x128xf32>
    %244 = math.exp %243 : vector<8x128xf32>
    %cst_73 = arith.constant 1.000000e+00 : f32
    %245 = vector.broadcast %cst_73 : f32 to vector<8x128xf32>
    %246 = arith.addf %245, %244 : vector<8x128xf32>
    %247 = arith.divf %245, %246 : vector<8x128xf32>
    %248 = vector.extract_strided_slice %228 {offsets = [0, 256], sizes = [8, 128], strides = [1, 1]} : vector<8x384xf32> to vector<8x128xf32>
    %249 = vector.extract_strided_slice %231 {offsets = [0, 256], sizes = [8, 128], strides = [1, 1]} : vector<8x384xf32> to vector<8x128xf32>
    %c0_74 = arith.constant 0 : index
    %c0_75 = arith.constant 0 : index
    %250 = vector.load %arg4[%c0_74, %c0_75] : memref<1x128xf32, #tpu.memory_space<vmem>>, vector<1x128xf32>
    %251 = vector.broadcast %250 : vector<1x128xf32> to vector<8x128xf32>
    %252 = arith.addf %249, %251 : vector<8x128xf32>
    %253 = arith.mulf %239, %252 : vector<8x128xf32>
    %254 = arith.addf %248, %253 : vector<8x128xf32>
    %255 = math.tanh %254 : vector<8x128xf32>
    %256 = arith.subf %222, %255 : vector<8x128xf32>
    %257 = arith.mulf %247, %256 : vector<8x128xf32>
    %258 = arith.addf %255, %257 : vector<8x128xf32>
    %259 = arith.index_cast %226 : i32 to index
    %c0_76 = arith.constant 0 : index
    %260 = vector.load %arg13[%259, %c0_76] : memref<96x128xf32, #tpu.memory_space<vmem>>, vector<8x128xf32>
    tpu.vector_store %arg13[%259, %c0_76], %258 {strides = array<i32>} : memref<96x128xf32, #tpu.memory_space<vmem>>, vector<8x128xf32>,
    %c7_i32 = arith.constant 7 : i32
    %c8_i32_77 = arith.constant 8 : i32
    %261 = arith.muli %c7_i32, %c8_i32_77 : i32
    %262 = tpu.assume_multiple %261, 8 : i32
    %263 = arith.index_cast %262 : i32 to index
    %c0_78 = arith.constant 0 : index
    %264 = vector.load %arg15[%263, %c0_78] : memref<96x384xf32, #tpu.memory_space<vmem>>, vector<8x384xf32>
    %265 = arith.truncf %258 : vector<8x128xf32> to vector<8x128xbf16>
    %c0_79 = arith.constant 0 : index
    %c0_80 = arith.constant 0 : index
    %266 = vector.load %arg2[%c0_79, %c0_80] : memref<128x384xbf16, #tpu.memory_space<vmem>>, vector<128x384xbf16>
    %cst_81 = arith.constant dense<0.000000e+00> : vector<8x384xf32>
    %267 = tpu.matmul %265, %266, %cst_81 {dimension_numbers = #tpu.dot_dimension_numbers<[1], [0], [0], [1], [0, 0, 1, 1], [], []>} : vector<8x128xbf16>, vector<128x384xbf16>, vector<8x384xf32> -> vector<8x384xf32>
    %268 = vector.extract_strided_slice %264 {offsets = [0, 0], sizes = [8, 128], strides = [1, 1]} : vector<8x384xf32> to vector<8x128xf32>
    %269 = vector.extract_strided_slice %267 {offsets = [0, 0], sizes = [8, 128], strides = [1, 1]} : vector<8x384xf32> to vector<8x128xf32>
    %270 = arith.addf %268, %269 : vector<8x128xf32>
    %271 = arith.negf %270 : vector<8x128xf32>
    %272 = math.exp %271 : vector<8x128xf32>
    %cst_82 = arith.constant 1.000000e+00 : f32
    %273 = vector.broadcast %cst_82 : f32 to vector<8x128xf32>
    %274 = arith.addf %273, %272 : vector<8x128xf32>
    %275 = arith.divf %273, %274 : vector<8x128xf32>
    %276 = vector.extract_strided_slice %264 {offsets = [0, 128], sizes = [8, 128], strides = [1, 1]} : vector<8x384xf32> to vector<8x128xf32>
    %277 = vector.extract_strided_slice %267 {offsets = [0, 128], sizes = [8, 128], strides = [1, 1]} : vector<8x384xf32> to vector<8x128xf32>
    %278 = arith.addf %276, %277 : vector<8x128xf32>
    %279 = arith.negf %278 : vector<8x128xf32>
    %280 = math.exp %279 : vector<8x128xf32>
    %cst_83 = arith.constant 1.000000e+00 : f32
    %281 = vector.broadcast %cst_83 : f32 to vector<8x128xf32>
    %282 = arith.addf %281, %280 : vector<8x128xf32>
    %283 = arith.divf %281, %282 : vector<8x128xf32>
    %284 = vector.extract_strided_slice %264 {offsets = [0, 256], sizes = [8, 128], strides = [1, 1]} : vector<8x384xf32> to vector<8x128xf32>
    %285 = vector.extract_strided_slice %267 {offsets = [0, 256], sizes = [8, 128], strides = [1, 1]} : vector<8x384xf32> to vector<8x128xf32>
    %c0_84 = arith.constant 0 : index
    %c0_85 = arith.constant 0 : index
    %286 = vector.load %arg4[%c0_84, %c0_85] : memref<1x128xf32, #tpu.memory_space<vmem>>, vector<1x128xf32>
    %287 = vector.broadcast %286 : vector<1x128xf32> to vector<8x128xf32>
    %288 = arith.addf %285, %287 : vector<8x128xf32>
    %289 = arith.mulf %275, %288 : vector<8x128xf32>
    %290 = arith.addf %284, %289 : vector<8x128xf32>
    %291 = math.tanh %290 : vector<8x128xf32>
    %292 = arith.subf %258, %291 : vector<8x128xf32>
    %293 = arith.mulf %283, %292 : vector<8x128xf32>
    %294 = arith.addf %291, %293 : vector<8x128xf32>
    %295 = arith.index_cast %262 : i32 to index
    %c0_86 = arith.constant 0 : index
    %296 = vector.load %arg13[%295, %c0_86] : memref<96x128xf32, #tpu.memory_space<vmem>>, vector<8x128xf32>
    tpu.vector_store %arg13[%295, %c0_86], %294 {strides = array<i32>} : memref<96x128xf32, #tpu.memory_space<vmem>>, vector<8x128xf32>,
    %c8_i32_87 = arith.constant 8 : i32
    %c8_i32_88 = arith.constant 8 : i32
    %297 = arith.muli %c8_i32_87, %c8_i32_88 : i32
    %298 = tpu.assume_multiple %297, 8 : i32
    %299 = arith.index_cast %298 : i32 to index
    %c0_89 = arith.constant 0 : index
    %300 = vector.load %arg15[%299, %c0_89] : memref<96x384xf32, #tpu.memory_space<vmem>>, vector<8x384xf32>
    %301 = arith.truncf %294 : vector<8x128xf32> to vector<8x128xbf16>
    %c0_90 = arith.constant 0 : index
    %c0_91 = arith.constant 0 : index
    %302 = vector.load %arg2[%c0_90, %c0_91] : memref<128x384xbf16, #tpu.memory_space<vmem>>, vector<128x384xbf16>
    %cst_92 = arith.constant dense<0.000000e+00> : vector<8x384xf32>
    %303 = tpu.matmul %301, %302, %cst_92 {dimension_numbers = #tpu.dot_dimension_numbers<[1], [0], [0], [1], [0, 0, 1, 1], [], []>} : vector<8x128xbf16>, vector<128x384xbf16>, vector<8x384xf32> -> vector<8x384xf32>
    %304 = vector.extract_strided_slice %300 {offsets = [0, 0], sizes = [8, 128], strides = [1, 1]} : vector<8x384xf32> to vector<8x128xf32>
    %305 = vector.extract_strided_slice %303 {offsets = [0, 0], sizes = [8, 128], strides = [1, 1]} : vector<8x384xf32> to vector<8x128xf32>
    %306 = arith.addf %304, %305 : vector<8x128xf32>
    %307 = arith.negf %306 : vector<8x128xf32>
    %308 = math.exp %307 : vector<8x128xf32>
    %cst_93 = arith.constant 1.000000e+00 : f32
    %309 = vector.broadcast %cst_93 : f32 to vector<8x128xf32>
    %310 = arith.addf %309, %308 : vector<8x128xf32>
    %311 = arith.divf %309, %310 : vector<8x128xf32>
    %312 = vector.extract_strided_slice %300 {offsets = [0, 128], sizes = [8, 128], strides = [1, 1]} : vector<8x384xf32> to vector<8x128xf32>
    %313 = vector.extract_strided_slice %303 {offsets = [0, 128], sizes = [8, 128], strides = [1, 1]} : vector<8x384xf32> to vector<8x128xf32>
    %314 = arith.addf %312, %313 : vector<8x128xf32>
    %315 = arith.negf %314 : vector<8x128xf32>
    %316 = math.exp %315 : vector<8x128xf32>
    %cst_94 = arith.constant 1.000000e+00 : f32
    %317 = vector.broadcast %cst_94 : f32 to vector<8x128xf32>
    %318 = arith.addf %317, %316 : vector<8x128xf32>
    %319 = arith.divf %317, %318 : vector<8x128xf32>
    %320 = vector.extract_strided_slice %300 {offsets = [0, 256], sizes = [8, 128], strides = [1, 1]} : vector<8x384xf32> to vector<8x128xf32>
    %321 = vector.extract_strided_slice %303 {offsets = [0, 256], sizes = [8, 128], strides = [1, 1]} : vector<8x384xf32> to vector<8x128xf32>
    %c0_95 = arith.constant 0 : index
    %c0_96 = arith.constant 0 : index
    %322 = vector.load %arg4[%c0_95, %c0_96] : memref<1x128xf32, #tpu.memory_space<vmem>>, vector<1x128xf32>
    %323 = vector.broadcast %322 : vector<1x128xf32> to vector<8x128xf32>
    %324 = arith.addf %321, %323 : vector<8x128xf32>
    %325 = arith.mulf %311, %324 : vector<8x128xf32>
    %326 = arith.addf %320, %325 : vector<8x128xf32>
    %327 = math.tanh %326 : vector<8x128xf32>
    %328 = arith.subf %294, %327 : vector<8x128xf32>
    %329 = arith.mulf %319, %328 : vector<8x128xf32>
    %330 = arith.addf %327, %329 : vector<8x128xf32>
    %331 = arith.index_cast %298 : i32 to index
    %c0_97 = arith.constant 0 : index
    %332 = vector.load %arg13[%331, %c0_97] : memref<96x128xf32, #tpu.memory_space<vmem>>, vector<8x128xf32>
    tpu.vector_store %arg13[%331, %c0_97], %330 {strides = array<i32>} : memref<96x128xf32, #tpu.memory_space<vmem>>, vector<8x128xf32>,
    %c9_i32 = arith.constant 9 : i32
    %c8_i32_98 = arith.constant 8 : i32
    %333 = arith.muli %c9_i32, %c8_i32_98 : i32
    %334 = tpu.assume_multiple %333, 8 : i32
    %335 = arith.index_cast %334 : i32 to index
    %c0_99 = arith.constant 0 : index
    %336 = vector.load %arg15[%335, %c0_99] : memref<96x384xf32, #tpu.memory_space<vmem>>, vector<8x384xf32>
    %337 = arith.truncf %330 : vector<8x128xf32> to vector<8x128xbf16>
    %c0_100 = arith.constant 0 : index
    %c0_101 = arith.constant 0 : index
    %338 = vector.load %arg2[%c0_100, %c0_101] : memref<128x384xbf16, #tpu.memory_space<vmem>>, vector<128x384xbf16>
    %cst_102 = arith.constant dense<0.000000e+00> : vector<8x384xf32>
    %339 = tpu.matmul %337, %338, %cst_102 {dimension_numbers = #tpu.dot_dimension_numbers<[1], [0], [0], [1], [0, 0, 1, 1], [], []>} : vector<8x128xbf16>, vector<128x384xbf16>, vector<8x384xf32> -> vector<8x384xf32>
    %340 = vector.extract_strided_slice %336 {offsets = [0, 0], sizes = [8, 128], strides = [1, 1]} : vector<8x384xf32> to vector<8x128xf32>
    %341 = vector.extract_strided_slice %339 {offsets = [0, 0], sizes = [8, 128], strides = [1, 1]} : vector<8x384xf32> to vector<8x128xf32>
    %342 = arith.addf %340, %341 : vector<8x128xf32>
    %343 = arith.negf %342 : vector<8x128xf32>
    %344 = math.exp %343 : vector<8x128xf32>
    %cst_103 = arith.constant 1.000000e+00 : f32
    %345 = vector.broadcast %cst_103 : f32 to vector<8x128xf32>
    %346 = arith.addf %345, %344 : vector<8x128xf32>
    %347 = arith.divf %345, %346 : vector<8x128xf32>
    %348 = vector.extract_strided_slice %336 {offsets = [0, 128], sizes = [8, 128], strides = [1, 1]} : vector<8x384xf32> to vector<8x128xf32>
    %349 = vector.extract_strided_slice %339 {offsets = [0, 128], sizes = [8, 128], strides = [1, 1]} : vector<8x384xf32> to vector<8x128xf32>
    %350 = arith.addf %348, %349 : vector<8x128xf32>
    %351 = arith.negf %350 : vector<8x128xf32>
    %352 = math.exp %351 : vector<8x128xf32>
    %cst_104 = arith.constant 1.000000e+00 : f32
    %353 = vector.broadcast %cst_104 : f32 to vector<8x128xf32>
    %354 = arith.addf %353, %352 : vector<8x128xf32>
    %355 = arith.divf %353, %354 : vector<8x128xf32>
    %356 = vector.extract_strided_slice %336 {offsets = [0, 256], sizes = [8, 128], strides = [1, 1]} : vector<8x384xf32> to vector<8x128xf32>
    %357 = vector.extract_strided_slice %339 {offsets = [0, 256], sizes = [8, 128], strides = [1, 1]} : vector<8x384xf32> to vector<8x128xf32>
    %c0_105 = arith.constant 0 : index
    %c0_106 = arith.constant 0 : index
    %358 = vector.load %arg4[%c0_105, %c0_106] : memref<1x128xf32, #tpu.memory_space<vmem>>, vector<1x128xf32>
    %359 = vector.broadcast %358 : vector<1x128xf32> to vector<8x128xf32>
    %360 = arith.addf %357, %359 : vector<8x128xf32>
    %361 = arith.mulf %347, %360 : vector<8x128xf32>
    %362 = arith.addf %356, %361 : vector<8x128xf32>
    %363 = math.tanh %362 : vector<8x128xf32>
    %364 = arith.subf %330, %363 : vector<8x128xf32>
    %365 = arith.mulf %355, %364 : vector<8x128xf32>
    %366 = arith.addf %363, %365 : vector<8x128xf32>
    %367 = arith.index_cast %334 : i32 to index
    %c0_107 = arith.constant 0 : index
    %368 = vector.load %arg13[%367, %c0_107] : memref<96x128xf32, #tpu.memory_space<vmem>>, vector<8x128xf32>
    tpu.vector_store %arg13[%367, %c0_107], %366 {strides = array<i32>} : memref<96x128xf32, #tpu.memory_space<vmem>>, vector<8x128xf32>,
    %c10_i32 = arith.constant 10 : i32
    %c72 = arith.constant 72 : index
    %c0_108 = arith.constant 0 : index
    %369 = vector.load %arg13[%c72, %c0_108] : memref<96x128xf32, #tpu.memory_space<vmem>>, vector<8x128xf32>
    %c0_109 = arith.constant 0 : index
    %c0_110 = arith.constant 0 : index
    %370 = vector.load %arg14[%c0_109, %c0_110] : memref<24x128xf32, #tpu.memory_space<vmem>>, vector<8x128xf32>
    tpu.vector_store %arg14[%c0_109, %c0_110], %369 {strides = array<i32>} : memref<24x128xf32, #tpu.memory_space<vmem>>, vector<8x128xf32>,
    %c0_111 = arith.constant 0 : index
    %c0_112 = arith.constant 0 : index
    %371 = vector.load %arg13[%c0_111, %c0_112] : memref<96x128xf32, #tpu.memory_space<vmem>>, vector<80x128xf32>
    %372 = arith.truncf %371 : vector<80x128xf32> to vector<80x128xbf16>
    %c0_113 = arith.constant 0 : index
    %c0_114 = arith.constant 0 : index
    %373 = vector.load %arg5[%c0_113, %c0_114] : memref<128x384xbf16, #tpu.memory_space<vmem>>, vector<128x384xbf16>
    %cst_115 = arith.constant dense<0.000000e+00> : vector<80x384xf32>
    %374 = tpu.matmul %372, %373, %cst_115 {dimension_numbers = #tpu.dot_dimension_numbers<[1], [0], [0], [1], [0, 0, 1, 1], [], []>} : vector<80x128xbf16>, vector<128x384xbf16>, vector<80x384xf32> -> vector<80x384xf32>
    %c0_116 = arith.constant 0 : index
    %c0_117 = arith.constant 0 : index
    %375 = vector.load %arg7[%c0_116, %c0_117] : memref<1x384xf32, #tpu.memory_space<vmem>>, vector<1x384xf32>
    %376 = vector.broadcast %375 : vector<1x384xf32> to vector<80x384xf32>
    %377 = arith.addf %374, %376 : vector<80x384xf32>
    %c0_118 = arith.constant 0 : index
    %c0_119 = arith.constant 0 : index
    %378 = vector.load %arg15[%c0_118, %c0_119] : memref<96x384xf32, #tpu.memory_space<vmem>>, vector<80x384xf32>
    tpu.vector_store %arg15[%c0_118, %c0_119], %377 {strides = array<i32>} : memref<96x384xf32, #tpu.memory_space<vmem>>, vector<80x384xf32>,
    %cst_120 = arith.constant 0.000000e+00 : f32
    %379 = vector.broadcast %cst_120 : f32 to vector<16x128xf32>
    %c0_i32_121 = arith.constant 0 : i32
    %c16_i32 = arith.constant 16 : i32
    %380 = arith.muli %c0_i32_121, %c16_i32 : i32
    %381 = tpu.assume_multiple %380, 16 : i32
    %382 = arith.index_cast %381 : i32 to index
    %c0_122 = arith.constant 0 : index
    %383 = vector.load %arg15[%382, %c0_122] : memref<96x384xf32, #tpu.memory_space<vmem>>, vector<16x384xf32>
    %384 = arith.truncf %379 : vector<16x128xf32> to vector<16x128xbf16>
    %c0_123 = arith.constant 0 : index
    %c0_124 = arith.constant 0 : index
    %385 = vector.load %arg6[%c0_123, %c0_124] : memref<128x384xbf16, #tpu.memory_space<vmem>>, vector<128x384xbf16>
    %cst_125 = arith.constant dense<0.000000e+00> : vector<16x384xf32>
    %386 = tpu.matmul %384, %385, %cst_125 {dimension_numbers = #tpu.dot_dimension_numbers<[1], [0], [0], [1], [0, 0, 1, 1], [], []>} : vector<16x128xbf16>, vector<128x384xbf16>, vector<16x384xf32> -> vector<16x384xf32>
    %387 = vector.extract_strided_slice %383 {offsets = [0, 0], sizes = [16, 128], strides = [1, 1]} : vector<16x384xf32> to vector<16x128xf32>
    %388 = vector.extract_strided_slice %386 {offsets = [0, 0], sizes = [16, 128], strides = [1, 1]} : vector<16x384xf32> to vector<16x128xf32>
    %389 = arith.addf %387, %388 : vector<16x128xf32>
    %390 = arith.negf %389 : vector<16x128xf32>
    %391 = math.exp %390 : vector<16x128xf32>
    %cst_126 = arith.constant 1.000000e+00 : f32
    %392 = vector.broadcast %cst_126 : f32 to vector<16x128xf32>
    %393 = arith.addf %392, %391 : vector<16x128xf32>
    %394 = arith.divf %392, %393 : vector<16x128xf32>
    %395 = vector.extract_strided_slice %383 {offsets = [0, 128], sizes = [16, 128], strides = [1, 1]} : vector<16x384xf32> to vector<16x128xf32>
    %396 = vector.extract_strided_slice %386 {offsets = [0, 128], sizes = [16, 128], strides = [1, 1]} : vector<16x384xf32> to vector<16x128xf32>
    %397 = arith.addf %395, %396 : vector<16x128xf32>
    %398 = arith.negf %397 : vector<16x128xf32>
    %399 = math.exp %398 : vector<16x128xf32>
    %cst_127 = arith.constant 1.000000e+00 : f32
    %400 = vector.broadcast %cst_127 : f32 to vector<16x128xf32>
    %401 = arith.addf %400, %399 : vector<16x128xf32>
    %402 = arith.divf %400, %401 : vector<16x128xf32>
    %403 = vector.extract_strided_slice %383 {offsets = [0, 256], sizes = [16, 128], strides = [1, 1]} : vector<16x384xf32> to vector<16x128xf32>
    %404 = vector.extract_strided_slice %386 {offsets = [0, 256], sizes = [16, 128], strides = [1, 1]} : vector<16x384xf32> to vector<16x128xf32>
    %c0_128 = arith.constant 0 : index
    %c0_129 = arith.constant 0 : index
    %405 = vector.load %arg8[%c0_128, %c0_129] : memref<1x128xf32, #tpu.memory_space<vmem>>, vector<1x128xf32>
    %406 = vector.broadcast %405 : vector<1x128xf32> to vector<16x128xf32>
    %407 = arith.addf %404, %406 : vector<16x128xf32>
    %408 = arith.mulf %394, %407 : vector<16x128xf32>
    %409 = arith.addf %403, %408 : vector<16x128xf32>
    %410 = math.tanh %409 : vector<16x128xf32>
    %411 = arith.subf %379, %410 : vector<16x128xf32>
    %412 = arith.mulf %402, %411 : vector<16x128xf32>
    %413 = arith.addf %410, %412 : vector<16x128xf32>
    %414 = arith.index_cast %381 : i32 to index
    %c0_130 = arith.constant 0 : index
    %415 = vector.load %arg13[%414, %c0_130] : memref<96x128xf32, #tpu.memory_space<vmem>>, vector<16x128xf32>
    tpu.vector_store %arg13[%414, %c0_130], %413 {strides = array<i32>} : memref<96x128xf32, #tpu.memory_space<vmem>>, vector<16x128xf32>,
    %c1_i32_131 = arith.constant 1 : i32
    %c16_i32_132 = arith.constant 16 : i32
    %416 = arith.muli %c1_i32_131, %c16_i32_132 : i32
    %417 = tpu.assume_multiple %416, 16 : i32
    %418 = arith.index_cast %417 : i32 to index
    %c0_133 = arith.constant 0 : index
    %419 = vector.load %arg15[%418, %c0_133] : memref<96x384xf32, #tpu.memory_space<vmem>>, vector<16x384xf32>
    %420 = arith.truncf %413 : vector<16x128xf32> to vector<16x128xbf16>
    %c0_134 = arith.constant 0 : index
    %c0_135 = arith.constant 0 : index
    %421 = vector.load %arg6[%c0_134, %c0_135] : memref<128x384xbf16, #tpu.memory_space<vmem>>, vector<128x384xbf16>
    %cst_136 = arith.constant dense<0.000000e+00> : vector<16x384xf32>
    %422 = tpu.matmul %420, %421, %cst_136 {dimension_numbers = #tpu.dot_dimension_numbers<[1], [0], [0], [1], [0, 0, 1, 1], [], []>} : vector<16x128xbf16>, vector<128x384xbf16>, vector<16x384xf32> -> vector<16x384xf32>
    %423 = vector.extract_strided_slice %419 {offsets = [0, 0], sizes = [16, 128], strides = [1, 1]} : vector<16x384xf32> to vector<16x128xf32>
    %424 = vector.extract_strided_slice %422 {offsets = [0, 0], sizes = [16, 128], strides = [1, 1]} : vector<16x384xf32> to vector<16x128xf32>
    %425 = arith.addf %423, %424 : vector<16x128xf32>
    %426 = arith.negf %425 : vector<16x128xf32>
    %427 = math.exp %426 : vector<16x128xf32>
    %cst_137 = arith.constant 1.000000e+00 : f32
    %428 = vector.broadcast %cst_137 : f32 to vector<16x128xf32>
    %429 = arith.addf %428, %427 : vector<16x128xf32>
    %430 = arith.divf %428, %429 : vector<16x128xf32>
    %431 = vector.extract_strided_slice %419 {offsets = [0, 128], sizes = [16, 128], strides = [1, 1]} : vector<16x384xf32> to vector<16x128xf32>
    %432 = vector.extract_strided_slice %422 {offsets = [0, 128], sizes = [16, 128], strides = [1, 1]} : vector<16x384xf32> to vector<16x128xf32>
    %433 = arith.addf %431, %432 : vector<16x128xf32>
    %434 = arith.negf %433 : vector<16x128xf32>
    %435 = math.exp %434 : vector<16x128xf32>
    %cst_138 = arith.constant 1.000000e+00 : f32
    %436 = vector.broadcast %cst_138 : f32 to vector<16x128xf32>
    %437 = arith.addf %436, %435 : vector<16x128xf32>
    %438 = arith.divf %436, %437 : vector<16x128xf32>
    %439 = vector.extract_strided_slice %419 {offsets = [0, 256], sizes = [16, 128], strides = [1, 1]} : vector<16x384xf32> to vector<16x128xf32>
    %440 = vector.extract_strided_slice %422 {offsets = [0, 256], sizes = [16, 128], strides = [1, 1]} : vector<16x384xf32> to vector<16x128xf32>
    %c0_139 = arith.constant 0 : index
    %c0_140 = arith.constant 0 : index
    %441 = vector.load %arg8[%c0_139, %c0_140] : memref<1x128xf32, #tpu.memory_space<vmem>>, vector<1x128xf32>
    %442 = vector.broadcast %441 : vector<1x128xf32> to vector<16x128xf32>
    %443 = arith.addf %440, %442 : vector<16x128xf32>
    %444 = arith.mulf %430, %443 : vector<16x128xf32>
    %445 = arith.addf %439, %444 : vector<16x128xf32>
    %446 = math.tanh %445 : vector<16x128xf32>
    %447 = arith.subf %413, %446 : vector<16x128xf32>
    %448 = arith.mulf %438, %447 : vector<16x128xf32>
    %449 = arith.addf %446, %448 : vector<16x128xf32>
    %450 = arith.index_cast %417 : i32 to index
    %c0_141 = arith.constant 0 : index
    %451 = vector.load %arg13[%450, %c0_141] : memref<96x128xf32, #tpu.memory_space<vmem>>, vector<16x128xf32>
    tpu.vector_store %arg13[%450, %c0_141], %449 {strides = array<i32>} : memref<96x128xf32, #tpu.memory_space<vmem>>, vector<16x128xf32>,
    %c2_i32_142 = arith.constant 2 : i32
    %c16_i32_143 = arith.constant 16 : i32
    %452 = arith.muli %c2_i32_142, %c16_i32_143 : i32
    %453 = tpu.assume_multiple %452, 16 : i32
    %454 = arith.index_cast %453 : i32 to index
    %c0_144 = arith.constant 0 : index
    %455 = vector.load %arg15[%454, %c0_144] : memref<96x384xf32, #tpu.memory_space<vmem>>, vector<16x384xf32>
    %456 = arith.truncf %449 : vector<16x128xf32> to vector<16x128xbf16>
    %c0_145 = arith.constant 0 : index
    %c0_146 = arith.constant 0 : index
    %457 = vector.load %arg6[%c0_145, %c0_146] : memref<128x384xbf16, #tpu.memory_space<vmem>>, vector<128x384xbf16>
    %cst_147 = arith.constant dense<0.000000e+00> : vector<16x384xf32>
    %458 = tpu.matmul %456, %457, %cst_147 {dimension_numbers = #tpu.dot_dimension_numbers<[1], [0], [0], [1], [0, 0, 1, 1], [], []>} : vector<16x128xbf16>, vector<128x384xbf16>, vector<16x384xf32> -> vector<16x384xf32>
    %459 = vector.extract_strided_slice %455 {offsets = [0, 0], sizes = [16, 128], strides = [1, 1]} : vector<16x384xf32> to vector<16x128xf32>
    %460 = vector.extract_strided_slice %458 {offsets = [0, 0], sizes = [16, 128], strides = [1, 1]} : vector<16x384xf32> to vector<16x128xf32>
    %461 = arith.addf %459, %460 : vector<16x128xf32>
    %462 = arith.negf %461 : vector<16x128xf32>
    %463 = math.exp %462 : vector<16x128xf32>
    %cst_148 = arith.constant 1.000000e+00 : f32
    %464 = vector.broadcast %cst_148 : f32 to vector<16x128xf32>
    %465 = arith.addf %464, %463 : vector<16x128xf32>
    %466 = arith.divf %464, %465 : vector<16x128xf32>
    %467 = vector.extract_strided_slice %455 {offsets = [0, 128], sizes = [16, 128], strides = [1, 1]} : vector<16x384xf32> to vector<16x128xf32>
    %468 = vector.extract_strided_slice %458 {offsets = [0, 128], sizes = [16, 128], strides = [1, 1]} : vector<16x384xf32> to vector<16x128xf32>
    %469 = arith.addf %467, %468 : vector<16x128xf32>
    %470 = arith.negf %469 : vector<16x128xf32>
    %471 = math.exp %470 : vector<16x128xf32>
    %cst_149 = arith.constant 1.000000e+00 : f32
    %472 = vector.broadcast %cst_149 : f32 to vector<16x128xf32>
    %473 = arith.addf %472, %471 : vector<16x128xf32>
    %474 = arith.divf %472, %473 : vector<16x128xf32>
    %475 = vector.extract_strided_slice %455 {offsets = [0, 256], sizes = [16, 128], strides = [1, 1]} : vector<16x384xf32> to vector<16x128xf32>
    %476 = vector.extract_strided_slice %458 {offsets = [0, 256], sizes = [16, 128], strides = [1, 1]} : vector<16x384xf32> to vector<16x128xf32>
    %c0_150 = arith.constant 0 : index
    %c0_151 = arith.constant 0 : index
    %477 = vector.load %arg8[%c0_150, %c0_151] : memref<1x128xf32, #tpu.memory_space<vmem>>, vector<1x128xf32>
    %478 = vector.broadcast %477 : vector<1x128xf32> to vector<16x128xf32>
    %479 = arith.addf %476, %478 : vector<16x128xf32>
    %480 = arith.mulf %466, %479 : vector<16x128xf32>
    %481 = arith.addf %475, %480 : vector<16x128xf32>
    %482 = math.tanh %481 : vector<16x128xf32>
    %483 = arith.subf %449, %482 : vector<16x128xf32>
    %484 = arith.mulf %474, %483 : vector<16x128xf32>
    %485 = arith.addf %482, %484 : vector<16x128xf32>
    %486 = arith.index_cast %453 : i32 to index
    %c0_152 = arith.constant 0 : index
    %487 = vector.load %arg13[%486, %c0_152] : memref<96x128xf32, #tpu.memory_space<vmem>>, vector<16x128xf32>
    tpu.vector_store %arg13[%486, %c0_152], %485 {strides = array<i32>} : memref<96x128xf32, #tpu.memory_space<vmem>>, vector<16x128xf32>,
    %c3_i32_153 = arith.constant 3 : i32
    %c16_i32_154 = arith.constant 16 : i32
    %488 = arith.muli %c3_i32_153, %c16_i32_154 : i32
    %489 = tpu.assume_multiple %488, 16 : i32
    %490 = arith.index_cast %489 : i32 to index
    %c0_155 = arith.constant 0 : index
    %491 = vector.load %arg15[%490, %c0_155] : memref<96x384xf32, #tpu.memory_space<vmem>>, vector<16x384xf32>
    %492 = arith.truncf %485 : vector<16x128xf32> to vector<16x128xbf16>
    %c0_156 = arith.constant 0 : index
    %c0_157 = arith.constant 0 : index
    %493 = vector.load %arg6[%c0_156, %c0_157] : memref<128x384xbf16, #tpu.memory_space<vmem>>, vector<128x384xbf16>
    %cst_158 = arith.constant dense<0.000000e+00> : vector<16x384xf32>
    %494 = tpu.matmul %492, %493, %cst_158 {dimension_numbers = #tpu.dot_dimension_numbers<[1], [0], [0], [1], [0, 0, 1, 1], [], []>} : vector<16x128xbf16>, vector<128x384xbf16>, vector<16x384xf32> -> vector<16x384xf32>
    %495 = vector.extract_strided_slice %491 {offsets = [0, 0], sizes = [16, 128], strides = [1, 1]} : vector<16x384xf32> to vector<16x128xf32>
    %496 = vector.extract_strided_slice %494 {offsets = [0, 0], sizes = [16, 128], strides = [1, 1]} : vector<16x384xf32> to vector<16x128xf32>
    %497 = arith.addf %495, %496 : vector<16x128xf32>
    %498 = arith.negf %497 : vector<16x128xf32>
    %499 = math.exp %498 : vector<16x128xf32>
    %cst_159 = arith.constant 1.000000e+00 : f32
    %500 = vector.broadcast %cst_159 : f32 to vector<16x128xf32>
    %501 = arith.addf %500, %499 : vector<16x128xf32>
    %502 = arith.divf %500, %501 : vector<16x128xf32>
    %503 = vector.extract_strided_slice %491 {offsets = [0, 128], sizes = [16, 128], strides = [1, 1]} : vector<16x384xf32> to vector<16x128xf32>
    %504 = vector.extract_strided_slice %494 {offsets = [0, 128], sizes = [16, 128], strides = [1, 1]} : vector<16x384xf32> to vector<16x128xf32>
    %505 = arith.addf %503, %504 : vector<16x128xf32>
    %506 = arith.negf %505 : vector<16x128xf32>
    %507 = math.exp %506 : vector<16x128xf32>
    %cst_160 = arith.constant 1.000000e+00 : f32
    %508 = vector.broadcast %cst_160 : f32 to vector<16x128xf32>
    %509 = arith.addf %508, %507 : vector<16x128xf32>
    %510 = arith.divf %508, %509 : vector<16x128xf32>
    %511 = vector.extract_strided_slice %491 {offsets = [0, 256], sizes = [16, 128], strides = [1, 1]} : vector<16x384xf32> to vector<16x128xf32>
    %512 = vector.extract_strided_slice %494 {offsets = [0, 256], sizes = [16, 128], strides = [1, 1]} : vector<16x384xf32> to vector<16x128xf32>
    %c0_161 = arith.constant 0 : index
    %c0_162 = arith.constant 0 : index
    %513 = vector.load %arg8[%c0_161, %c0_162] : memref<1x128xf32, #tpu.memory_space<vmem>>, vector<1x128xf32>
    %514 = vector.broadcast %513 : vector<1x128xf32> to vector<16x128xf32>
    %515 = arith.addf %512, %514 : vector<16x128xf32>
    %516 = arith.mulf %502, %515 : vector<16x128xf32>
    %517 = arith.addf %511, %516 : vector<16x128xf32>
    %518 = math.tanh %517 : vector<16x128xf32>
    %519 = arith.subf %485, %518 : vector<16x128xf32>
    %520 = arith.mulf %510, %519 : vector<16x128xf32>
    %521 = arith.addf %518, %520 : vector<16x128xf32>
    %522 = arith.index_cast %489 : i32 to index
    %c0_163 = arith.constant 0 : index
    %523 = vector.load %arg13[%522, %c0_163] : memref<96x128xf32, #tpu.memory_space<vmem>>, vector<16x128xf32>
    tpu.vector_store %arg13[%522, %c0_163], %521 {strides = array<i32>} : memref<96x128xf32, #tpu.memory_space<vmem>>, vector<16x128xf32>,
    %c4_i32_164 = arith.constant 4 : i32
    %c16_i32_165 = arith.constant 16 : i32
    %524 = arith.muli %c4_i32_164, %c16_i32_165 : i32
    %525 = tpu.assume_multiple %524, 16 : i32
    %526 = arith.index_cast %525 : i32 to index
    %c0_166 = arith.constant 0 : index
    %527 = vector.load %arg15[%526, %c0_166] : memref<96x384xf32, #tpu.memory_space<vmem>>, vector<16x384xf32>
    %528 = arith.truncf %521 : vector<16x128xf32> to vector<16x128xbf16>
    %c0_167 = arith.constant 0 : index
    %c0_168 = arith.constant 0 : index
    %529 = vector.load %arg6[%c0_167, %c0_168] : memref<128x384xbf16, #tpu.memory_space<vmem>>, vector<128x384xbf16>
    %cst_169 = arith.constant dense<0.000000e+00> : vector<16x384xf32>
    %530 = tpu.matmul %528, %529, %cst_169 {dimension_numbers = #tpu.dot_dimension_numbers<[1], [0], [0], [1], [0, 0, 1, 1], [], []>} : vector<16x128xbf16>, vector<128x384xbf16>, vector<16x384xf32> -> vector<16x384xf32>
    %531 = vector.extract_strided_slice %527 {offsets = [0, 0], sizes = [16, 128], strides = [1, 1]} : vector<16x384xf32> to vector<16x128xf32>
    %532 = vector.extract_strided_slice %530 {offsets = [0, 0], sizes = [16, 128], strides = [1, 1]} : vector<16x384xf32> to vector<16x128xf32>
    %533 = arith.addf %531, %532 : vector<16x128xf32>
    %534 = arith.negf %533 : vector<16x128xf32>
    %535 = math.exp %534 : vector<16x128xf32>
    %cst_170 = arith.constant 1.000000e+00 : f32
    %536 = vector.broadcast %cst_170 : f32 to vector<16x128xf32>
    %537 = arith.addf %536, %535 : vector<16x128xf32>
    %538 = arith.divf %536, %537 : vector<16x128xf32>
    %539 = vector.extract_strided_slice %527 {offsets = [0, 128], sizes = [16, 128], strides = [1, 1]} : vector<16x384xf32> to vector<16x128xf32>
    %540 = vector.extract_strided_slice %530 {offsets = [0, 128], sizes = [16, 128], strides = [1, 1]} : vector<16x384xf32> to vector<16x128xf32>
    %541 = arith.addf %539, %540 : vector<16x128xf32>
    %542 = arith.negf %541 : vector<16x128xf32>
    %543 = math.exp %542 : vector<16x128xf32>
    %cst_171 = arith.constant 1.000000e+00 : f32
    %544 = vector.broadcast %cst_171 : f32 to vector<16x128xf32>
    %545 = arith.addf %544, %543 : vector<16x128xf32>
    %546 = arith.divf %544, %545 : vector<16x128xf32>
    %547 = vector.extract_strided_slice %527 {offsets = [0, 256], sizes = [16, 128], strides = [1, 1]} : vector<16x384xf32> to vector<16x128xf32>
    %548 = vector.extract_strided_slice %530 {offsets = [0, 256], sizes = [16, 128], strides = [1, 1]} : vector<16x384xf32> to vector<16x128xf32>
    %c0_172 = arith.constant 0 : index
    %c0_173 = arith.constant 0 : index
    %549 = vector.load %arg8[%c0_172, %c0_173] : memref<1x128xf32, #tpu.memory_space<vmem>>, vector<1x128xf32>
    %550 = vector.broadcast %549 : vector<1x128xf32> to vector<16x128xf32>
    %551 = arith.addf %548, %550 : vector<16x128xf32>
    %552 = arith.mulf %538, %551 : vector<16x128xf32>
    %553 = arith.addf %547, %552 : vector<16x128xf32>
    %554 = math.tanh %553 : vector<16x128xf32>
    %555 = arith.subf %521, %554 : vector<16x128xf32>
    %556 = arith.mulf %546, %555 : vector<16x128xf32>
    %557 = arith.addf %554, %556 : vector<16x128xf32>
    %558 = arith.index_cast %525 : i32 to index
    %c0_174 = arith.constant 0 : index
    %559 = vector.load %arg13[%558, %c0_174] : memref<96x128xf32, #tpu.memory_space<vmem>>, vector<16x128xf32>
    tpu.vector_store %arg13[%558, %c0_174], %557 {strides = array<i32>} : memref<96x128xf32, #tpu.memory_space<vmem>>, vector<16x128xf32>,
    %c5_i32_175 = arith.constant 5 : i32
    %c72_176 = arith.constant 72 : index
    %c0_177 = arith.constant 0 : index
    %560 = vector.load %arg13[%c72_176, %c0_177] : memref<96x128xf32, #tpu.memory_space<vmem>>, vector<8x128xf32>
    %c8 = arith.constant 8 : index
    %c0_178 = arith.constant 0 : index
    %561 = vector.load %arg14[%c8, %c0_178] : memref<24x128xf32, #tpu.memory_space<vmem>>, vector<8x128xf32>
    tpu.vector_store %arg14[%c8, %c0_178], %560 {strides = array<i32>} : memref<24x128xf32, #tpu.memory_space<vmem>>, vector<8x128xf32>,
    %cst_179 = arith.constant 0.000000e+00 : f32
    %562 = vector.broadcast %cst_179 : f32 to vector<16x128xf32>
    %c80 = arith.constant 80 : index
    %c0_180 = arith.constant 0 : index
    %563 = vector.load %arg13[%c80, %c0_180] : memref<96x128xf32, #tpu.memory_space<vmem>>, vector<16x128xf32>
    tpu.vector_store %arg13[%c80, %c0_180], %562 {strides = array<i32>} : memref<96x128xf32, #tpu.memory_space<vmem>>, vector<16x128xf32>,
    %c0_181 = arith.constant 0 : index
    %c0_182 = arith.constant 0 : index
    %564 = vector.load %arg13[%c0_181, %c0_182] : memref<96x128xf32, #tpu.memory_space<vmem>>, vector<96x128xf32>
    %565 = arith.truncf %564 : vector<96x128xf32> to vector<96x128xbf16>
    %c0_183 = arith.constant 0 : index
    %c0_184 = arith.constant 0 : index
    %566 = vector.load %arg9[%c0_183, %c0_184] : memref<128x384xbf16, #tpu.memory_space<vmem>>, vector<128x384xbf16>
    %cst_185 = arith.constant dense<0.000000e+00> : vector<96x384xf32>
    %567 = tpu.matmul %565, %566, %cst_185 {dimension_numbers = #tpu.dot_dimension_numbers<[1], [0], [0], [1], [0, 0, 1, 1], [], []>} : vector<96x128xbf16>, vector<128x384xbf16>, vector<96x384xf32> -> vector<96x384xf32>
    %c0_186 = arith.constant 0 : index
    %c0_187 = arith.constant 0 : index
    %568 = vector.load %arg11[%c0_186, %c0_187] : memref<1x384xf32, #tpu.memory_space<vmem>>, vector<1x384xf32>
    %569 = vector.broadcast %568 : vector<1x384xf32> to vector<96x384xf32>
    %570 = arith.addf %567, %569 : vector<96x384xf32>
    %c0_188 = arith.constant 0 : index
    %c0_189 = arith.constant 0 : index
    %571 = vector.load %arg15[%c0_188, %c0_189] : memref<96x384xf32, #tpu.memory_space<vmem>>, vector<96x384xf32>
    tpu.vector_store %arg15[%c0_188, %c0_189], %570 {strides = array<i32>} : memref<96x384xf32, #tpu.memory_space<vmem>>, vector<96x384xf32>,
    %cst_190 = arith.constant 0.000000e+00 : f32
    %572 = vector.broadcast %cst_190 : f32 to vector<32x128xf32>
    %c0_i32_191 = arith.constant 0 : i32
    %c32_i32 = arith.constant 32 : i32
    %573 = arith.muli %c0_i32_191, %c32_i32 : i32
    %574 = tpu.assume_multiple %573, 32 : i32
    %575 = arith.index_cast %574 : i32 to index
    %c0_192 = arith.constant 0 : index
    %576 = vector.load %arg15[%575, %c0_192] : memref<96x384xf32, #tpu.memory_space<vmem>>, vector<32x384xf32>
    %577 = arith.truncf %572 : vector<32x128xf32> to vector<32x128xbf16>
    %c0_193 = arith.constant 0 : index
    %c0_194 = arith.constant 0 : index
    %578 = vector.load %arg10[%c0_193, %c0_194] : memref<128x384xbf16, #tpu.memory_space<vmem>>, vector<128x384xbf16>
    %cst_195 = arith.constant dense<0.000000e+00> : vector<32x384xf32>
    %579 = tpu.matmul %577, %578, %cst_195 {dimension_numbers = #tpu.dot_dimension_numbers<[1], [0], [0], [1], [0, 0, 1, 1], [], []>} : vector<32x128xbf16>, vector<128x384xbf16>, vector<32x384xf32> -> vector<32x384xf32>
    %580 = vector.extract_strided_slice %576 {offsets = [0, 0], sizes = [32, 128], strides = [1, 1]} : vector<32x384xf32> to vector<32x128xf32>
    %581 = vector.extract_strided_slice %579 {offsets = [0, 0], sizes = [32, 128], strides = [1, 1]} : vector<32x384xf32> to vector<32x128xf32>
    %582 = arith.addf %580, %581 : vector<32x128xf32>
    %583 = arith.negf %582 : vector<32x128xf32>
    %584 = math.exp %583 : vector<32x128xf32>
    %cst_196 = arith.constant 1.000000e+00 : f32
    %585 = vector.broadcast %cst_196 : f32 to vector<32x128xf32>
    %586 = arith.addf %585, %584 : vector<32x128xf32>
    %587 = arith.divf %585, %586 : vector<32x128xf32>
    %588 = vector.extract_strided_slice %576 {offsets = [0, 128], sizes = [32, 128], strides = [1, 1]} : vector<32x384xf32> to vector<32x128xf32>
    %589 = vector.extract_strided_slice %579 {offsets = [0, 128], sizes = [32, 128], strides = [1, 1]} : vector<32x384xf32> to vector<32x128xf32>
    %590 = arith.addf %588, %589 : vector<32x128xf32>
    %591 = arith.negf %590 : vector<32x128xf32>
    %592 = math.exp %591 : vector<32x128xf32>
    %cst_197 = arith.constant 1.000000e+00 : f32
    %593 = vector.broadcast %cst_197 : f32 to vector<32x128xf32>
    %594 = arith.addf %593, %592 : vector<32x128xf32>
    %595 = arith.divf %593, %594 : vector<32x128xf32>
    %596 = vector.extract_strided_slice %576 {offsets = [0, 256], sizes = [32, 128], strides = [1, 1]} : vector<32x384xf32> to vector<32x128xf32>
    %597 = vector.extract_strided_slice %579 {offsets = [0, 256], sizes = [32, 128], strides = [1, 1]} : vector<32x384xf32> to vector<32x128xf32>
    %c0_198 = arith.constant 0 : index
    %c0_199 = arith.constant 0 : index
    %598 = vector.load %arg12[%c0_198, %c0_199] : memref<1x128xf32, #tpu.memory_space<vmem>>, vector<1x128xf32>
    %599 = vector.broadcast %598 : vector<1x128xf32> to vector<32x128xf32>
    %600 = arith.addf %597, %599 : vector<32x128xf32>
    %601 = arith.mulf %587, %600 : vector<32x128xf32>
    %602 = arith.addf %596, %601 : vector<32x128xf32>
    %603 = math.tanh %602 : vector<32x128xf32>
    %604 = arith.subf %572, %603 : vector<32x128xf32>
    %605 = arith.mulf %595, %604 : vector<32x128xf32>
    %606 = arith.addf %603, %605 : vector<32x128xf32>
    %607 = arith.index_cast %574 : i32 to index
    %c0_200 = arith.constant 0 : index
    %608 = vector.load %arg13[%607, %c0_200] : memref<96x128xf32, #tpu.memory_space<vmem>>, vector<32x128xf32>
    tpu.vector_store %arg13[%607, %c0_200], %606 {strides = array<i32>} : memref<96x128xf32, #tpu.memory_space<vmem>>, vector<32x128xf32>,
    %c1_i32_201 = arith.constant 1 : i32
    %c32_i32_202 = arith.constant 32 : i32
    %609 = arith.muli %c1_i32_201, %c32_i32_202 : i32
    %610 = tpu.assume_multiple %609, 32 : i32
    %611 = arith.index_cast %610 : i32 to index
    %c0_203 = arith.constant 0 : index
    %612 = vector.load %arg15[%611, %c0_203] : memref<96x384xf32, #tpu.memory_space<vmem>>, vector<32x384xf32>
    %613 = arith.truncf %606 : vector<32x128xf32> to vector<32x128xbf16>
    %c0_204 = arith.constant 0 : index
    %c0_205 = arith.constant 0 : index
    %614 = vector.load %arg10[%c0_204, %c0_205] : memref<128x384xbf16, #tpu.memory_space<vmem>>, vector<128x384xbf16>
    %cst_206 = arith.constant dense<0.000000e+00> : vector<32x384xf32>
    %615 = tpu.matmul %613, %614, %cst_206 {dimension_numbers = #tpu.dot_dimension_numbers<[1], [0], [0], [1], [0, 0, 1, 1], [], []>} : vector<32x128xbf16>, vector<128x384xbf16>, vector<32x384xf32> -> vector<32x384xf32>
    %616 = vector.extract_strided_slice %612 {offsets = [0, 0], sizes = [32, 128], strides = [1, 1]} : vector<32x384xf32> to vector<32x128xf32>
    %617 = vector.extract_strided_slice %615 {offsets = [0, 0], sizes = [32, 128], strides = [1, 1]} : vector<32x384xf32> to vector<32x128xf32>
    %618 = arith.addf %616, %617 : vector<32x128xf32>
    %619 = arith.negf %618 : vector<32x128xf32>
    %620 = math.exp %619 : vector<32x128xf32>
    %cst_207 = arith.constant 1.000000e+00 : f32
    %621 = vector.broadcast %cst_207 : f32 to vector<32x128xf32>
    %622 = arith.addf %621, %620 : vector<32x128xf32>
    %623 = arith.divf %621, %622 : vector<32x128xf32>
    %624 = vector.extract_strided_slice %612 {offsets = [0, 128], sizes = [32, 128], strides = [1, 1]} : vector<32x384xf32> to vector<32x128xf32>
    %625 = vector.extract_strided_slice %615 {offsets = [0, 128], sizes = [32, 128], strides = [1, 1]} : vector<32x384xf32> to vector<32x128xf32>
    %626 = arith.addf %624, %625 : vector<32x128xf32>
    %627 = arith.negf %626 : vector<32x128xf32>
    %628 = math.exp %627 : vector<32x128xf32>
    %cst_208 = arith.constant 1.000000e+00 : f32
    %629 = vector.broadcast %cst_208 : f32 to vector<32x128xf32>
    %630 = arith.addf %629, %628 : vector<32x128xf32>
    %631 = arith.divf %629, %630 : vector<32x128xf32>
    %632 = vector.extract_strided_slice %612 {offsets = [0, 256], sizes = [32, 128], strides = [1, 1]} : vector<32x384xf32> to vector<32x128xf32>
    %633 = vector.extract_strided_slice %615 {offsets = [0, 256], sizes = [32, 128], strides = [1, 1]} : vector<32x384xf32> to vector<32x128xf32>
    %c0_209 = arith.constant 0 : index
    %c0_210 = arith.constant 0 : index
    %634 = vector.load %arg12[%c0_209, %c0_210] : memref<1x128xf32, #tpu.memory_space<vmem>>, vector<1x128xf32>
    %635 = vector.broadcast %634 : vector<1x128xf32> to vector<32x128xf32>
    %636 = arith.addf %633, %635 : vector<32x128xf32>
    %637 = arith.mulf %623, %636 : vector<32x128xf32>
    %638 = arith.addf %632, %637 : vector<32x128xf32>
    %639 = math.tanh %638 : vector<32x128xf32>
    %640 = arith.subf %606, %639 : vector<32x128xf32>
    %641 = arith.mulf %631, %640 : vector<32x128xf32>
    %642 = arith.addf %639, %641 : vector<32x128xf32>
    %643 = arith.index_cast %610 : i32 to index
    %c0_211 = arith.constant 0 : index
    %644 = vector.load %arg13[%643, %c0_211] : memref<96x128xf32, #tpu.memory_space<vmem>>, vector<32x128xf32>
    tpu.vector_store %arg13[%643, %c0_211], %642 {strides = array<i32>} : memref<96x128xf32, #tpu.memory_space<vmem>>, vector<32x128xf32>,
    %c2_i32_212 = arith.constant 2 : i32
    %c32_i32_213 = arith.constant 32 : i32
    %645 = arith.muli %c2_i32_212, %c32_i32_213 : i32
    %646 = tpu.assume_multiple %645, 32 : i32
    %647 = arith.index_cast %646 : i32 to index
    %c0_214 = arith.constant 0 : index
    %648 = vector.load %arg15[%647, %c0_214] : memref<96x384xf32, #tpu.memory_space<vmem>>, vector<32x384xf32>
    %649 = arith.truncf %642 : vector<32x128xf32> to vector<32x128xbf16>
    %c0_215 = arith.constant 0 : index
    %c0_216 = arith.constant 0 : index
    %650 = vector.load %arg10[%c0_215, %c0_216] : memref<128x384xbf16, #tpu.memory_space<vmem>>, vector<128x384xbf16>
    %cst_217 = arith.constant dense<0.000000e+00> : vector<32x384xf32>
    %651 = tpu.matmul %649, %650, %cst_217 {dimension_numbers = #tpu.dot_dimension_numbers<[1], [0], [0], [1], [0, 0, 1, 1], [], []>} : vector<32x128xbf16>, vector<128x384xbf16>, vector<32x384xf32> -> vector<32x384xf32>
    %652 = vector.extract_strided_slice %648 {offsets = [0, 0], sizes = [32, 128], strides = [1, 1]} : vector<32x384xf32> to vector<32x128xf32>
    %653 = vector.extract_strided_slice %651 {offsets = [0, 0], sizes = [32, 128], strides = [1, 1]} : vector<32x384xf32> to vector<32x128xf32>
    %654 = arith.addf %652, %653 : vector<32x128xf32>
    %655 = arith.negf %654 : vector<32x128xf32>
    %656 = math.exp %655 : vector<32x128xf32>
    %cst_218 = arith.constant 1.000000e+00 : f32
    %657 = vector.broadcast %cst_218 : f32 to vector<32x128xf32>
    %658 = arith.addf %657, %656 : vector<32x128xf32>
    %659 = arith.divf %657, %658 : vector<32x128xf32>
    %660 = vector.extract_strided_slice %648 {offsets = [0, 128], sizes = [32, 128], strides = [1, 1]} : vector<32x384xf32> to vector<32x128xf32>
    %661 = vector.extract_strided_slice %651 {offsets = [0, 128], sizes = [32, 128], strides = [1, 1]} : vector<32x384xf32> to vector<32x128xf32>
    %662 = arith.addf %660, %661 : vector<32x128xf32>
    %663 = arith.negf %662 : vector<32x128xf32>
    %664 = math.exp %663 : vector<32x128xf32>
    %cst_219 = arith.constant 1.000000e+00 : f32
    %665 = vector.broadcast %cst_219 : f32 to vector<32x128xf32>
    %666 = arith.addf %665, %664 : vector<32x128xf32>
    %667 = arith.divf %665, %666 : vector<32x128xf32>
    %668 = vector.extract_strided_slice %648 {offsets = [0, 256], sizes = [32, 128], strides = [1, 1]} : vector<32x384xf32> to vector<32x128xf32>
    %669 = vector.extract_strided_slice %651 {offsets = [0, 256], sizes = [32, 128], strides = [1, 1]} : vector<32x384xf32> to vector<32x128xf32>
    %c0_220 = arith.constant 0 : index
    %c0_221 = arith.constant 0 : index
    %670 = vector.load %arg12[%c0_220, %c0_221] : memref<1x128xf32, #tpu.memory_space<vmem>>, vector<1x128xf32>
    %671 = vector.broadcast %670 : vector<1x128xf32> to vector<32x128xf32>
    %672 = arith.addf %669, %671 : vector<32x128xf32>
    %673 = arith.mulf %659, %672 : vector<32x128xf32>
    %674 = arith.addf %668, %673 : vector<32x128xf32>
    %675 = math.tanh %674 : vector<32x128xf32>
    %676 = arith.subf %642, %675 : vector<32x128xf32>
    %677 = arith.mulf %667, %676 : vector<32x128xf32>
    %678 = arith.addf %675, %677 : vector<32x128xf32>
    %679 = arith.index_cast %646 : i32 to index
    %c0_222 = arith.constant 0 : index
    %680 = vector.load %arg13[%679, %c0_222] : memref<96x128xf32, #tpu.memory_space<vmem>>, vector<32x128xf32>
    tpu.vector_store %arg13[%679, %c0_222], %678 {strides = array<i32>} : memref<96x128xf32, #tpu.memory_space<vmem>>, vector<32x128xf32>,
    %c3_i32_223 = arith.constant 3 : i32
    %c72_224 = arith.constant 72 : index
    %c0_225 = arith.constant 0 : index
    %681 = vector.load %arg13[%c72_224, %c0_225] : memref<96x128xf32, #tpu.memory_space<vmem>>, vector<8x128xf32>
    %c16 = arith.constant 16 : index
    %c0_226 = arith.constant 0 : index
    %682 = vector.load %arg14[%c16, %c0_226] : memref<24x128xf32, #tpu.memory_space<vmem>>, vector<8x128xf32>
    tpu.vector_store %arg14[%c16, %c0_226], %681 {strides = array<i32>} : memref<24x128xf32, #tpu.memory_space<vmem>>, vector<8x128xf32>,
    return
  }
}

</mosaic_0001>

<llo_original>
// kernel: drnn_forward.1
$region0: #{drnn_forward.1}
  #allocation0 [shape = 'u32[]', space=smem, size = 0x4, offset = 0x4, fixed_abs, tag = 'smem constant byte address 0x4 - core index']
  #allocation1 [shape = 'u32[72,128]{1,0:T(1,128)}', space=vmem, size = 0x9000, scoped, tag = 'internal scratch']
  #allocation2 [shape = 'f32[96,384]{1,0:T(8,128)}', space=vmem, size = 0x24000, scoped, tag = 'scratch operand']
  %s0 = inlined_call_operand.vmem [shape: f32[96,128], index: 0, kind: input, shape index: {}]
  %s1 = inlined_call_operand.hbm [shape: bf16[128,384], index: 1, kind: input, shape index: {}]
  %s2 = inlined_call_operand.hbm [shape: bf16[128,384], index: 2, kind: input, shape index: {}]
  %s3 = inlined_call_operand.vmem [shape: f32[1,384], index: 3, kind: input, shape index: {}]
  %s4 = inlined_call_operand.vmem [shape: f32[1,128], index: 4, kind: input, shape index: {}]
  %s5 = inlined_call_operand.hbm [shape: bf16[128,384], index: 5, kind: input, shape index: {}]
  %s6 = inlined_call_operand.hbm [shape: bf16[128,384], index: 6, kind: input, shape index: {}]
  %s7 = inlined_call_operand.vmem [shape: f32[1,384], index: 7, kind: input, shape index: {}]
  %s8 = inlined_call_operand.vmem [shape: f32[1,128], index: 8, kind: input, shape index: {}]
  %s9 = inlined_call_operand.hbm [shape: bf16[128,384], index: 9, kind: input, shape index: {}]
  %s10 = inlined_call_operand.hbm [shape: bf16[128,384], index: 10, kind: input, shape index: {}]
  %s11 = inlined_call_operand.vmem [shape: f32[1,384], index: 11, kind: input, shape index: {}]
  %s12 = inlined_call_operand.vmem [shape: f32[1,128], index: 12, kind: input, shape index: {}]
  %s13 = inlined_call_operand.vmem [shape: f32[96,128], index: 13, kind: output, shape index: {0}]
  %s14 = inlined_call_operand.vmem [shape: f32[24,128], index: 14, kind: output, shape index: {1}]
  %15 = xla_tuple %s13, %s14
  %s16 = sld [smem:[#allocation0]]
  $region94: #{drnn_forward.1} parent=0
    _
  %s18 = ssub.s32 1, %s16
  %s19 = scalar_select 0, %s18, %s16
  $region1: #{drnn_forward.1} parent=0
    #allocation3 [shape = 'u8[98304]{0}', space=vmem, size = 0x18000, scoped, tag = 'input window, operand 1, single buffered']
    #allocation4 [shape = 's32[1]{0}', space=sflag, size = 0x4, scoped, tag = 'scoped memory for drnn_forward.1']
    #allocation5 [shape = 'u8[98304]{0}', space=vmem, size = 0x18000, scoped, tag = 'input window, operand 2, single buffered']
    #allocation6 [shape = 's32[1]{0}', space=sflag, size = 0x4, scoped, tag = 'scoped memory for drnn_forward.1']
    #allocation7 [shape = 'u8[98304]{0}', space=vmem, size = 0x18000, scoped, tag = 'input window, operand 5, single buffered']
    #allocation8 [shape = 'u8[98304]{0}', space=vmem, size = 0x18000, scoped, tag = 'input window, operand 6, single buffered']
    #allocation9 [shape = 's32[1]{0}', space=sflag, size = 0x4, scoped, tag = 'scoped memory for drnn_forward.1']
    #allocation10 [shape = 'u8[98304]{0}', space=vmem, size = 0x18000, scoped, tag = 'input window, operand 9, single buffered']
    #allocation11 [shape = 'u8[98304]{0}', space=vmem, size = 0x18000, scoped, tag = 'input window, operand 10, single buffered']
    #allocation12 [shape = 's32[1]{0}', space=sflag, size = 0x4, scoped, tag = 'scoped memory for drnn_forward.1']
    %20 = vsyncpa [#allocation4], 0
    %21 = vsyncpa [#allocation6], 0
    %22 = vsyncpa [#allocation9], 0
    %23 = vsyncpa [#allocation12], 0
    // Predicated region
    $region2: #{drnn_forward.1} parent=1 // pred_check
      _
    $region3: #{drnn_forward.1} parent=1 // pred_check_branch
      %25 = sbr.rel (0) target = $region5
    $region4: #{drnn_forward.1} parent=1 // pred_region
      _
    $region5: #{drnn_forward.1} parent=1 // pred_fallthru
      _
    // Predicated region
    $region6: #{drnn_forward.1} parent=1 // pred_check
      _
    $region7: #{drnn_forward.1} parent=1 // pred_check_branch
      %27 = sbr.rel (0) target = $region9
    $region8: #{drnn_forward.1} parent=1 // pred_region
      %29 = vsyncadd [#allocation4], 0
      %s30 = sshll.u32 %s1, 4
      %s31 = int_to_ptr.hbm [resolvable:$true] %s30
      %s32 = sshll.u32 [#allocation3], 4
      %s33 = int_to_ptr.vmem [resolvable:$true] %s32
      %38 = dma.hbm_to_vmem [thread:$0]  %s31, 3072, %s33, [#allocation4], 192, 192, 12
    $region9: #{drnn_forward.1} parent=1 // pred_fallthru
      _
    // Predicated region
    $region10: #{drnn_forward.1} parent=1 // pred_check
      _
    $region11: #{drnn_forward.1} parent=1 // pred_check_branch
      %40 = sbr.rel (0) target = $region13
    $region12: #{drnn_forward.1} parent=1 // pred_region
      %42 = vsyncadd [#allocation6], 0
      %s43 = sshll.u32 %s2, 4
      %s44 = int_to_ptr.hbm [resolvable:$true] %s43
      %s45 = sshll.u32 [#allocation5], 4
      %s46 = int_to_ptr.vmem [resolvable:$true] %s45
      %51 = dma.hbm_to_vmem [thread:$0]  %s44, 3072, %s46, [#allocation6], 192, 192, 12
    $region13: #{drnn_forward.1} parent=1 // pred_fallthru
      _
    // Predicated region
    $region14: #{drnn_forward.1} parent=1 // pred_check
      _
    $region15: #{drnn_forward.1} parent=1 // pred_check_branch
      %53 = sbr.rel (0) target = $region17
    $region16: #{drnn_forward.1} parent=1 // pred_region
      _
    $region17: #{drnn_forward.1} parent=1 // pred_fallthru
      _
    // Predicated region
    $region18: #{drnn_forward.1} parent=1 // pred_check
      _
    $region19: #{drnn_forward.1} parent=1 // pred_check_branch
      %55 = sbr.rel (0) target = $region21
    $region20: #{drnn_forward.1} parent=1 // pred_region
      _
    $region21: #{drnn_forward.1} parent=1 // pred_fallthru
      _
    // Predicated region
    $region22: #{drnn_forward.1} parent=1 // pred_check
      _
    $region23: #{drnn_forward.1} parent=1 // pred_check_branch
      %57 = sbr.rel (0) target = $region25
    $region24: #{drnn_forward.1} parent=1 // pred_region
      %59 = vsyncadd [#allocation6], 0
      %s60 = sshll.u32 %s5, 4
      %s61 = int_to_ptr.hbm [resolvable:$true] %s60
      %s62 = sshll.u32 [#allocation7], 4
      %s63 = int_to_ptr.vmem [resolvable:$true] %s62
      %68 = dma.hbm_to_vmem [thread:$0]  %s61, 3072, %s63, [#allocation6], 192, 192, 12
    $region25: #{drnn_forward.1} parent=1 // pred_fallthru
      _
    // Predicated region
    $region26: #{drnn_forward.1} parent=1 // pred_check
      _
    $region27: #{drnn_forward.1} parent=1 // pred_check_branch
      %70 = sbr.rel (0) target = $region29
    $region28: #{drnn_forward.1} parent=1 // pred_region
      %72 = vsyncadd [#allocation9], 0
      %s73 = sshll.u32 %s6, 4
      %s74 = int_to_ptr.hbm [resolvable:$true] %s73
      %s75 = sshll.u32 [#allocation8], 4
      %s76 = int_to_ptr.vmem [resolvable:$true] %s75
      %81 = dma.hbm_to_vmem [thread:$0]  %s74, 3072, %s76, [#allocation9], 192, 192, 12
    $region29: #{drnn_forward.1} parent=1 // pred_fallthru
      _
    // Predicated region
    $region30: #{drnn_forward.1} parent=1 // pred_check
      _
    $region31: #{drnn_forward.1} parent=1 // pred_check_branch
      %83 = sbr.rel (0) target = $region33
    $region32: #{drnn_forward.1} parent=1 // pred_region
      _
    $region33: #{drnn_forward.1} parent=1 // pred_fallthru
      _
    // Predicated region
    $region34: #{drnn_forward.1} parent=1 // pred_check
      _
    $region35: #{drnn_forward.1} parent=1 // pred_check_branch
      %85 = sbr.rel (0) target = $region37
    $region36: #{drnn_forward.1} parent=1 // pred_region
      _
    $region37: #{drnn_forward.1} parent=1 // pred_fallthru
      _
    // Predicated region
    $region38: #{drnn_forward.1} parent=1 // pred_check
      _
    $region39: #{drnn_forward.1} parent=1 // pred_check_branch
      %87 = sbr.rel (0) target = $region41
    $region40: #{drnn_forward.1} parent=1 // pred_region
      %89 = vsyncadd [#allocation9], 0
      %s90 = sshll.u32 %s9, 4
      %s91 = int_to_ptr.hbm [resolvable:$true] %s90
      %s92 = sshll.u32 [#allocation10], 4
      %s93 = int_to_ptr.vmem [resolvable:$true] %s92
      %98 = dma.hbm_to_vmem [thread:$0]  %s91, 3072, %s93, [#allocation9], 192, 192, 12
    $region41: #{drnn_forward.1} parent=1 // pred_fallthru
      _
    // Predicated region
    $region42: #{drnn_forward.1} parent=1 // pred_check
      _
    $region43: #{drnn_forward.1} parent=1 // pred_check_branch
      %100 = sbr.rel (0) target = $region45
    $region44: #{drnn_forward.1} parent=1 // pred_region
      %102 = vsyncadd [#allocation12], 0
      %s103 = sshll.u32 %s10, 4
      %s104 = int_to_ptr.hbm [resolvable:$true] %s103
      %s105 = sshll.u32 [#allocation11], 4
      %s106 = int_to_ptr.vmem [resolvable:$true] %s105
      %111 = dma.hbm_to_vmem [thread:$0]  %s104, 3072, %s106, [#allocation12], 192, 192, 12
    $region45: #{drnn_forward.1} parent=1 // pred_fallthru
      _
    // Predicated region
    $region46: #{drnn_forward.1} parent=1 // pred_check
      _
    $region47: #{drnn_forward.1} parent=1 // pred_check_branch
      %113 = sbr.rel (0) target = $region49
    $region48: #{drnn_forward.1} parent=1 // pred_region
      _
    $region49: #{drnn_forward.1} parent=1 // pred_fallthru
      _
    // Predicated region
    $region50: #{drnn_forward.1} parent=1 // pred_check
      _
    $region51: #{drnn_forward.1} parent=1 // pred_check_branch
      %115 = sbr.rel (0) target = $region53
    $region52: #{drnn_forward.1} parent=1 // pred_region
      _
    $region53: #{drnn_forward.1} parent=1 // pred_fallthru
      _
    // Predicated region
    $region54: #{drnn_forward.1} parent=1 // pred_check
      _
    $region55: #{drnn_forward.1} parent=1 // pred_check_branch
      %117 = sbr.rel (0) target = $region57
    $region56: #{drnn_forward.1} parent=1 // pred_region
      %119 = dma.done [#allocation4], 3072
    $region57: #{drnn_forward.1} parent=1 // pred_fallthru
      _
    // Predicated region
    $region58: #{drnn_forward.1} parent=1 // pred_check
      _
    $region59: #{drnn_forward.1} parent=1 // pred_check_branch
      %121 = sbr.rel (0) target = $region61
    $region60: #{drnn_forward.1} parent=1 // pred_region
      %123 = dma.done [#allocation6], 3072
    $region61: #{drnn_forward.1} parent=1 // pred_fallthru
      _
    // Predicated region
    $region62: #{drnn_forward.1} parent=1 // pred_check
      _
    $region63: #{drnn_forward.1} parent=1 // pred_check_branch
      %125 = sbr.rel (0) target = $region65
    $region64: #{drnn_forward.1} parent=1 // pred_region
      %127 = dma.done [#allocation6], 3072
    $region65: #{drnn_forward.1} parent=1 // pred_fallthru
      _
    // Predicated region
    $region66: #{drnn_forward.1} parent=1 // pred_check
      _
    $region67: #{drnn_forward.1} parent=1 // pred_check_branch
      %129 = sbr.rel (0) target = $region69
    $region68: #{drnn_forward.1} parent=1 // pred_region
      %131 = dma.done [#allocation9], 3072
    $region69: #{drnn_forward.1} parent=1 // pred_fallthru
      _
    // Predicated region
    $region70: #{drnn_forward.1} parent=1 // pred_check
      _
    $region71: #{drnn_forward.1} parent=1 // pred_check_branch
      %133 = sbr.rel (0) target = $region73
    $region72: #{drnn_forward.1} parent=1 // pred_region
      %135 = dma.done [#allocation9], 3072
    $region73: #{drnn_forward.1} parent=1 // pred_fallthru
      _
    // Predicated region
    $region74: #{drnn_forward.1} parent=1 // pred_check
      _
    $region75: #{drnn_forward.1} parent=1 // pred_check_branch
      %137 = sbr.rel (0) target = $region77
    $region76: #{drnn_forward.1} parent=1 // pred_region
      %139 = dma.done [#allocation12], 3072
    $region77: #{drnn_forward.1} parent=1 // pred_fallthru
      _
    %v141 = vld [vmem:[%s0] sm:$0xff]
    %v142 = vld [vmem:[%s0 + $0x8] sm:$0xff]
    %v143 = vld [vmem:[%s0 + $0x10] sm:$0xff]
    %v144 = vld [vmem:[%s0 + $0x18] sm:$0xff]
    %v145 = vld [vmem:[%s0 + $0x20] sm:$0xff]
    %v146 = vld [vmem:[%s0 + $0x28] sm:$0xff]
    %v147 = vld [vmem:[%s0 + $0x30] sm:$0xff]
    %v148 = vld [vmem:[%s0 + $0x38] sm:$0xff]
    %v149 = vld [vmem:[%s0 + $0x40] sm:$0xff]
    %v150 = vld [vmem:[%s0 + $0x48] sm:$0xff]
    %v151 = vpack.c.bf16 %v142, %v141
    %v152 = vpack.c.bf16 %v144, %v143
    %v153 = vpack.c.bf16 %v146, %v145
    %v154 = vpack.c.bf16 %v148, %v147
    %v155 = vpack.c.bf16 %v150, %v149
    %v156 = vld [vmem:[#allocation3] sm:$0xff]
    %v157 = vld [vmem:[#allocation3 + $0x8] sm:$0xf]
    %v158 = vld [vmem:[#allocation3 + $0xc] sm:$0xff]
    %v159 = vld [vmem:[#allocation3 + $0x14] sm:$0xf]
    %v160 = vld [vmem:[#allocation3 + $0x18] sm:$0xff]
    %v161 = vld [vmem:[#allocation3 + $0x20] sm:$0xf]
    %v162 = vld [vmem:[#allocation3 + $0x24] sm:$0xff]
    %v163 = vld [vmem:[#allocation3 + $0x2c] sm:$0xf]
    %v164 = vld [vmem:[#allocation3 + $0x30] sm:$0xff]
    %v165 = vld [vmem:[#allocation3 + $0x38] sm:$0xf]
    %v166 = vld [vmem:[#allocation3 + $0x3c] sm:$0xff]
    %v167 = vld [vmem:[#allocation3 + $0x44] sm:$0xf]
    %v168 = vld [vmem:[#allocation3 + $0x48] sm:$0xff]
    %v169 = vld [vmem:[#allocation3 + $0x50] sm:$0xf]
    %v170 = vld [vmem:[#allocation3 + $0x54] sm:$0xff]
    %v171 = vld [vmem:[#allocation3 + $0x5c] sm:$0xf]
    %v172 = vld [vmem:[#allocation3 + $0x60] sm:$0xff]
    %v173 = vld [vmem:[#allocation3 + $0x68] sm:$0xf]
    %v174 = vld [vmem:[#allocation3 + $0x6c] sm:$0xff]
    %v175 = vld [vmem:[#allocation3 + $0x74] sm:$0xf]
    %v176 = vld [vmem:[#allocation3 + $0x78] sm:$0xff]
    %v177 = vld [vmem:[#allocation3 + $0x80] sm:$0xf]
    %v178 = vld [vmem:[#allocation3 + $0x84] sm:$0xff]
    %v179 = vld [vmem:[#allocation3 + $0x8c] sm:$0xf]
    %v180 = vld [vmem:[#allocation3 + $0x90] sm:$0xff]
    %v181 = vld [vmem:[#allocation3 + $0x98] sm:$0xf]
    %v182 = vld [vmem:[#allocation3 + $0x9c] sm:$0xff]
    %v183 = vld [vmem:[#allocation3 + $0xa4] sm:$0xf]
    %v184 = vld [vmem:[#allocation3 + $0xa8] sm:$0xff]
    %v185 = vld [vmem:[#allocation3 + $0xb0] sm:$0xf]
    %v186 = vld [vmem:[#allocation3 + $0xb4] sm:$0xff]
    %v187 = vld [vmem:[#allocation3 + $0xbc] sm:$0xf]
    %v188 = vld [vmem:[%s3] sm:$0x7]
    %v190 = vperm.slane %v188, 0
    %v191 = vperm.slane %v188, 1
    %v192 = vperm.slane %v188, 2
    %v228 = vunpack.c.l.b16 %v156
    %v229 = vunpack.c.h.b16 %v156
    %v230 = vunpack.c.l.b16 %v157
    %v231 = vunpack.c.l.b16 %v158
    %v232 = vunpack.c.h.b16 %v158
    %v233 = vunpack.c.l.b16 %v159
    %v234 = vunpack.c.l.b16 %v160
    %v235 = vunpack.c.h.b16 %v160
    %v236 = vunpack.c.l.b16 %v161
    %v237 = vunpack.c.l.b16 %v162
    %v238 = vunpack.c.h.b16 %v162
    %v239 = vunpack.c.l.b16 %v163
    %v240 = vunpack.c.l.b16 %v164
    %v241 = vunpack.c.h.b16 %v164
    %v242 = vunpack.c.l.b16 %v165
    %v243 = vunpack.c.l.b16 %v166
    %v244 = vunpack.c.h.b16 %v166
    %v245 = vunpack.c.l.b16 %v167
    %v246 = vunpack.c.l.b16 %v168
    %v247 = vunpack.c.h.b16 %v168
    %v248 = vunpack.c.l.b16 %v169
    %v249 = vunpack.c.l.b16 %v170
    %v250 = vunpack.c.h.b16 %v170
    %v251 = vunpack.c.l.b16 %v171
    %v252 = vunpack.c.l.b16 %v172
    %v253 = vunpack.c.h.b16 %v172
    %v254 = vunpack.c.l.b16 %v173
    %v255 = vunpack.c.l.b16 %v174
    %v256 = vunpack.c.h.b16 %v174
    %v257 = vunpack.c.l.b16 %v175
    %v258 = vunpack.c.l.b16 %v176
    %v259 = vunpack.c.h.b16 %v176
    %v260 = vunpack.c.l.b16 %v177
    %v261 = vunpack.c.l.b16 %v178
    %v262 = vunpack.c.h.b16 %v178
    %v263 = vunpack.c.l.b16 %v179
    %v264 = vunpack.c.l.b16 %v180
    %v265 = vunpack.c.h.b16 %v180
    %v266 = vunpack.c.l.b16 %v181
    %v267 = vunpack.c.l.b16 %v182
    %v268 = vunpack.c.h.b16 %v182
    %v269 = vunpack.c.l.b16 %v183
    %v270 = vunpack.c.l.b16 %v184
    %v271 = vunpack.c.h.b16 %v184
    %v272 = vunpack.c.l.b16 %v185
    %v273 = vunpack.c.l.b16 %v186
    %v274 = vunpack.c.h.b16 %v186
    %v275 = vunpack.c.l.b16 %v187
    %v276 = vpack.c.b16 %v231, %v228
    %v277 = vpack.c.b16 %v232, %v229
    %v278 = vpack.c.b16 %v233, %v230
    %v279 = vpack.c.b16 %v237, %v234
    %v280 = vpack.c.b16 %v238, %v235
    %v281 = vpack.c.b16 %v239, %v236
    %v282 = vpack.c.b16 %v243, %v240
    %v283 = vpack.c.b16 %v244, %v241
    %v284 = vpack.c.b16 %v245, %v242
    %v285 = vpack.c.b16 %v249, %v246
    %v286 = vpack.c.b16 %v250, %v247
    %v287 = vpack.c.b16 %v251, %v248
    %v288 = vpack.c.b16 %v255, %v252
    %v289 = vpack.c.b16 %v256, %v253
    %v290 = vpack.c.b16 %v257, %v254
    %v291 = vpack.c.b16 %v261, %v258
    %v292 = vpack.c.b16 %v262, %v259
    %v293 = vpack.c.b16 %v263, %v260
    %v294 = vpack.c.b16 %v267, %v264
    %v295 = vpack.c.b16 %v268, %v265
    %v296 = vpack.c.b16 %v269, %v266
    %v297 = vpack.c.b16 %v273, %v270
    %v298 = vpack.c.b16 %v274, %v271
    %v299 = vpack.c.b16 %v275, %v272
    %324 = vmatpush.bf16.msra.mxu0 %v297
    %325 = vmatpush.bf16.msra.mxu0 %v294
    %326 = vmatpush.bf16.msra.mxu0 %v291
    %327 = vmatpush.bf16.msra.mxu0 %v288
    %328 = vmatpush.bf16.msra.mxu0 %v285
    %329 = vmatpush.bf16.msra.mxu0 %v282
    %330 = vmatpush.bf16.msra.mxu0 %v279
    %331 = vmatpush.bf16.msra.mxu0 %v276
    %332 = vmatmul.bf16.gmra.mxu0 %v151
    %v333 = vpop.f32.mrf.mxu0
    %v334 = vadd.f32 %v190, %v333
    %v335 = vpop.f32.mrf.mxu0
    %v336 = vadd.f32 %v190, %v335
    %337 = vmatmul.bf16.gmra.mxu0 %v152
    %v338 = vpop.f32.mrf.mxu0
    %v339 = vadd.f32 %v190, %v338
    %v340 = vpop.f32.mrf.mxu0
    %v341 = vadd.f32 %v190, %v340
    %342 = vmatmul.bf16.gmra.mxu0 %v153
    %v343 = vpop.f32.mrf.mxu0
    %v344 = vadd.f32 %v190, %v343
    %v345 = vpop.f32.mrf.mxu0
    %v346 = vadd.f32 %v190, %v345
    %347 = vmatmul.bf16.gmra.mxu0 %v154
    %v348 = vpop.f32.mrf.mxu0
    %v349 = vadd.f32 %v190, %v348
    %v350 = vpop.f32.mrf.mxu0
    %v351 = vadd.f32 %v190, %v350
    %352 = vmatmul.bf16.gmra.mxu0 %v155
    %v353 = vpop.f32.mrf.mxu0
    %v354 = vadd.f32 %v190, %v353
    %v355 = vpop.f32.mrf.mxu0
    %v356 = vadd.f32 %v190, %v355
    %357 = vdwg.mxu0
    %358 = vmatpush.bf16.msra.mxu0 %v298
    %359 = vmatpush.bf16.msra.mxu0 %v295
    %360 = vmatpush.bf16.msra.mxu0 %v292
    %361 = vmatpush.bf16.msra.mxu0 %v289
    %362 = vmatpush.bf16.msra.mxu0 %v286
    %363 = vmatpush.bf16.msra.mxu0 %v283
    %364 = vmatpush.bf16.msra.mxu0 %v280
    %365 = vmatpush.bf16.msra.mxu0 %v277
    %366 = vmatmul.bf16.gmra.mxu0 %v151
    %v367 = vpop.f32.mrf.mxu0
    %v368 = vadd.f32 %v191, %v367
    %v369 = vpop.f32.mrf.mxu0
    %v370 = vadd.f32 %v191, %v369
    %371 = vmatmul.bf16.gmra.mxu0 %v152
    %v372 = vpop.f32.mrf.mxu0
    %v373 = vadd.f32 %v191, %v372
    %v374 = vpop.f32.mrf.mxu0
    %v375 = vadd.f32 %v191, %v374
    %376 = vmatmul.bf16.gmra.mxu0 %v153
    %v377 = vpop.f32.mrf.mxu0
    %v378 = vadd.f32 %v191, %v377
    %v379 = vpop.f32.mrf.mxu0
    %v380 = vadd.f32 %v191, %v379
    %381 = vmatmul.bf16.gmra.mxu0 %v154
    %v382 = vpop.f32.mrf.mxu0
    %v383 = vadd.f32 %v191, %v382
    %v384 = vpop.f32.mrf.mxu0
    %v385 = vadd.f32 %v191, %v384
    %386 = vmatmul.bf16.gmra.mxu0 %v155
    %v387 = vpop.f32.mrf.mxu0
    %v388 = vadd.f32 %v191, %v387
    %v389 = vpop.f32.mrf.mxu0
    %v390 = vadd.f32 %v191, %v389
    %391 = vdwg.mxu0
    %392 = vmatpush.bf16.msra.mxu0 %v299
    %393 = vmatpush.bf16.msra.mxu0 %v296
    %394 = vmatpush.bf16.msra.mxu0 %v293
    %395 = vmatpush.bf16.msra.mxu0 %v290
    %396 = vmatpush.bf16.msra.mxu0 %v287
    %397 = vmatpush.bf16.msra.mxu0 %v284
    %398 = vmatpush.bf16.msra.mxu0 %v281
    %399 = vmatpush.bf16.msra.mxu0 %v278
    %400 = vmatmul.bf16.gmra.mxu0 %v151
    %v401 = vpop.f32.mrf.mxu0
    %v402 = vadd.f32 %v192, %v401
    %v403 = vpop.f32.mrf.mxu0
    %v404 = vadd.f32 %v192, %v403
    %405 = vmatmul.bf16.gmra.mxu0 %v152
    %v406 = vpop.f32.mrf.mxu0
    %v407 = vadd.f32 %v192, %v406
    %v408 = vpop.f32.mrf.mxu0
    %v409 = vadd.f32 %v192, %v408
    %410 = vmatmul.bf16.gmra.mxu0 %v153
    %v411 = vpop.f32.mrf.mxu0
    %v412 = vadd.f32 %v192, %v411
    %v413 = vpop.f32.mrf.mxu0
    %v414 = vadd.f32 %v192, %v413
    %415 = vmatmul.bf16.gmra.mxu0 %v154
    %v416 = vpop.f32.mrf.mxu0
    %v417 = vadd.f32 %v192, %v416
    %v418 = vpop.f32.mrf.mxu0
    %v419 = vadd.f32 %v192, %v418
    %420 = vmatmul.bf16.gmra.mxu0 %v155
    %v421 = vpop.f32.mrf.mxu0
    %v422 = vadd.f32 %v192, %v421
    %v423 = vpop.f32.mrf.mxu0
    %v424 = vadd.f32 %v192, %v423
    %425 = vdwg.mxu0
    %426 = vst [vmem:[#allocation2] sm:$0xff] %v334
    %427 = vst [vmem:[#allocation2 + $0x8] sm:$0xff] %v368
    %428 = vst [vmem:[#allocation2 + $0x10] sm:$0xff] %v402
    %429 = vst [vmem:[#allocation2 + $0x18] sm:$0xff] %v336
    %430 = vst [vmem:[#allocation2 + $0x20] sm:$0xff] %v370
    %431 = vst [vmem:[#allocation2 + $0x28] sm:$0xff] %v404
    %432 = vst [vmem:[#allocation2 + $0x30] sm:$0xff] %v339
    %433 = vst [vmem:[#allocation2 + $0x38] sm:$0xff] %v373
    %434 = vst [vmem:[#allocation2 + $0x40] sm:$0xff] %v407
    %435 = vst [vmem:[#allocation2 + $0x48] sm:$0xff] %v341
    %436 = vst [vmem:[#allocation2 + $0x50] sm:$0xff] %v375
    %437 = vst [vmem:[#allocation2 + $0x58] sm:$0xff] %v409
    %438 = vst [vmem:[#allocation2 + $0x60] sm:$0xff] %v344
    %439 = vst [vmem:[#allocation2 + $0x68] sm:$0xff] %v378
    %440 = vst [vmem:[#allocation2 + $0x70] sm:$0xff] %v412
    %441 = vst [vmem:[#allocation2 + $0x78] sm:$0xff] %v346
    %442 = vst [vmem:[#allocation2 + $0x80] sm:$0xff] %v380
    %443 = vst [vmem:[#allocation2 + $0x88] sm:$0xff] %v414
    %444 = vst [vmem:[#allocation2 + $0x90] sm:$0xff] %v349
    %445 = vst [vmem:[#allocation2 + $0x98] sm:$0xff] %v383
    %446 = vst [vmem:[#allocation2 + $0xa0] sm:$0xff] %v417
    %447 = vst [vmem:[#allocation2 + $0xa8] sm:$0xff] %v351
    %448 = vst [vmem:[#allocation2 + $0xb0] sm:$0xff] %v385
    %449 = vst [vmem:[#allocation2 + $0xb8] sm:$0xff] %v419
    %450 = vst [vmem:[#allocation2 + $0xc0] sm:$0xff] %v354
    %451 = vst [vmem:[#allocation2 + $0xc8] sm:$0xff] %v388
    %452 = vst [vmem:[#allocation2 + $0xd0] sm:$0xff] %v422
    %453 = vst [vmem:[#allocation2 + $0xd8] sm:$0xff] %v356
    %454 = vst [vmem:[#allocation2 + $0xe0] sm:$0xff] %v390
    %455 = vst [vmem:[#allocation2 + $0xe8] sm:$0xff] %v424
    %s456 = smul.u32 0, 3
    %s457 = smul.addr %s456, 8
    %s458 = scalar_lea.vmem [#allocation2], %s457
    %v459 = vld [vmem:[%s458] sm:$0xff]
    %v460 = vld [vmem:[%s458 + $0x8] sm:$0xff]
    %v461 = vld [vmem:[%s458 + $0x10] sm:$0xff]
    %v462 = vld [vmem:[#allocation5] sm:$0xff]
    %v463 = vld [vmem:[#allocation5 + $0x8] sm:$0xf]
    %v464 = vld [vmem:[#allocation5 + $0xc] sm:$0xff]
    %v465 = vld [vmem:[#allocation5 + $0x14] sm:$0xf]
    %v466 = vld [vmem:[#allocation5 + $0x18] sm:$0xff]
    %v467 = vld [vmem:[#allocation5 + $0x20] sm:$0xf]
    %v468 = vld [vmem:[#allocation5 + $0x24] sm:$0xff]
    %v469 = vld [vmem:[#allocation5 + $0x2c] sm:$0xf]
    %v470 = vld [vmem:[#allocation5 + $0x30] sm:$0xff]
    %v471 = vld [vmem:[#allocation5 + $0x38] sm:$0xf]
    %v472 = vld [vmem:[#allocation5 + $0x3c] sm:$0xff]
    %v473 = vld [vmem:[#allocation5 + $0x44] sm:$0xf]
    %v474 = vld [vmem:[#allocation5 + $0x48] sm:$0xff]
    %v475 = vld [vmem:[#allocation5 + $0x50] sm:$0xf]
    %v476 = vld [vmem:[#allocation5 + $0x54] sm:$0xff]
    %v477 = vld [vmem:[#allocation5 + $0x5c] sm:$0xf]
    %v478 = vld [vmem:[#allocation5 + $0x60] sm:$0xff]
    %v479 = vld [vmem:[#allocation5 + $0x68] sm:$0xf]
    %v480 = vld [vmem:[#allocation5 + $0x6c] sm:$0xff]
    %v481 = vld [vmem:[#allocation5 + $0x74] sm:$0xf]
    %v482 = vld [vmem:[#allocation5 + $0x78] sm:$0xff]
    %v483 = vld [vmem:[#allocation5 + $0x80] sm:$0xf]
    %v484 = vld [vmem:[#allocation5 + $0x84] sm:$0xff]
    %v485 = vld [vmem:[#allocation5 + $0x8c] sm:$0xf]
    %v486 = vld [vmem:[#allocation5 + $0x90] sm:$0xff]
    %v487 = vld [vmem:[#allocation5 + $0x98] sm:$0xf]
    %v488 = vld [vmem:[#allocation5 + $0x9c] sm:$0xff]
    %v489 = vld [vmem:[#allocation5 + $0xa4] sm:$0xf]
    %v490 = vld [vmem:[#allocation5 + $0xa8] sm:$0xff]
    %v491 = vld [vmem:[#allocation5 + $0xb0] sm:$0xf]
    %v492 = vld [vmem:[#allocation5 + $0xb4] sm:$0xff]
    %v493 = vld [vmem:[#allocation5 + $0xbc] sm:$0xf]
    %v526 = vunpack.c.l.b16 %v462
    %v527 = vunpack.c.h.b16 %v462
    %v528 = vunpack.c.l.b16 %v463
    %v529 = vunpack.c.l.b16 %v464
    %v530 = vunpack.c.h.b16 %v464
    %v531 = vunpack.c.l.b16 %v465
    %v532 = vunpack.c.l.b16 %v466
    %v533 = vunpack.c.h.b16 %v466
    %v534 = vunpack.c.l.b16 %v467
    %v535 = vunpack.c.l.b16 %v468
    %v536 = vunpack.c.h.b16 %v468
    %v537 = vunpack.c.l.b16 %v469
    %v538 = vunpack.c.l.b16 %v470
    %v539 = vunpack.c.h.b16 %v470
    %v540 = vunpack.c.l.b16 %v471
    %v541 = vunpack.c.l.b16 %v472
    %v542 = vunpack.c.h.b16 %v472
    %v543 = vunpack.c.l.b16 %v473
    %v544 = vunpack.c.l.b16 %v474
    %v545 = vunpack.c.h.b16 %v474
    %v546 = vunpack.c.l.b16 %v475
    %v547 = vunpack.c.l.b16 %v476
    %v548 = vunpack.c.h.b16 %v476
    %v549 = vunpack.c.l.b16 %v477
    %v550 = vunpack.c.l.b16 %v478
    %v551 = vunpack.c.h.b16 %v478
    %v552 = vunpack.c.l.b16 %v479
    %v553 = vunpack.c.l.b16 %v480
    %v554 = vunpack.c.h.b16 %v480
    %v555 = vunpack.c.l.b16 %v481
    %v556 = vunpack.c.l.b16 %v482
    %v557 = vunpack.c.h.b16 %v482
    %v558 = vunpack.c.l.b16 %v483
    %v559 = vunpack.c.l.b16 %v484
    %v560 = vunpack.c.h.b16 %v484
    %v561 = vunpack.c.l.b16 %v485
    %v562 = vunpack.c.l.b16 %v486
    %v563 = vunpack.c.h.b16 %v486
    %v564 = vunpack.c.l.b16 %v487
    %v565 = vunpack.c.l.b16 %v488
    %v566 = vunpack.c.h.b16 %v488
    %v567 = vunpack.c.l.b16 %v489
    %v568 = vunpack.c.l.b16 %v490
    %v569 = vunpack.c.h.b16 %v490
    %v570 = vunpack.c.l.b16 %v491
    %v571 = vunpack.c.l.b16 %v492
    %v572 = vunpack.c.h.b16 %v492
    %v573 = vunpack.c.l.b16 %v493
    %v574 = vpack.c.b16 %v529, %v526
    %v575 = vpack.c.b16 %v530, %v527
    %v576 = vpack.c.b16 %v531, %v528
    %v577 = vpack.c.b16 %v535, %v532
    %v578 = vpack.c.b16 %v536, %v533
    %v579 = vpack.c.b16 %v537, %v534
    %v580 = vpack.c.b16 %v541, %v538
    %v581 = vpack.c.b16 %v542, %v539
    %v582 = vpack.c.b16 %v543, %v540
    %v583 = vpack.c.b16 %v547, %v544
    %v584 = vpack.c.b16 %v548, %v545
    %v585 = vpack.c.b16 %v549, %v546
    %v586 = vpack.c.b16 %v553, %v550
    %v587 = vpack.c.b16 %v554, %v551
    %v588 = vpack.c.b16 %v555, %v552
    %v589 = vpack.c.b16 %v559, %v556
    %v590 = vpack.c.b16 %v560, %v557
    %v591 = vpack.c.b16 %v561, %v558
    %v592 = vpack.c.b16 %v565, %v562
    %v593 = vpack.c.b16 %v566, %v563
    %v594 = vpack.c.b16 %v567, %v564
    %v595 = vpack.c.b16 %v571, %v568
    %v596 = vpack.c.b16 %v572, %v569
    %v597 = vpack.c.b16 %v573, %v570
    %622 = vmatpush.bf16.msra.mxu0 %v595
    %623 = vmatpush.bf16.msra.mxu0 %v592
    %624 = vmatpush.bf16.msra.mxu0 %v589
    %625 = vmatpush.bf16.msra.mxu0 %v586
    %626 = vmatpush.bf16.msra.mxu0 %v583
    %627 = vmatpush.bf16.msra.mxu0 %v580
    %628 = vmatpush.bf16.msra.mxu0 %v577
    %629 = vmatpush.bf16.msra.mxu0 %v574
    %630 = vmatmul.bf16.gmra.mxu0 0
    %v631 = vpop.f32.mrf.mxu0
    %v632 = vadd.f32 0.0, %v631
    %v633 = vpop.f32.mrf.mxu0
    %634 = vdwg.mxu0
    %635 = vmatpush.bf16.msra.mxu0 %v596
    %636 = vmatpush.bf16.msra.mxu0 %v593
    %637 = vmatpush.bf16.msra.mxu0 %v590
    %638 = vmatpush.bf16.msra.mxu0 %v587
    %639 = vmatpush.bf16.msra.mxu0 %v584
    %640 = vmatpush.bf16.msra.mxu0 %v581
    %641 = vmatpush.bf16.msra.mxu0 %v578
    %642 = vmatpush.bf16.msra.mxu0 %v575
    %643 = vmatmul.bf16.gmra.mxu0 0
    %v644 = vpop.f32.mrf.mxu0
    %v645 = vadd.f32 0.0, %v644
    %v646 = vpop.f32.mrf.mxu0
    %647 = vdwg.mxu0
    %648 = vmatpush.bf16.msra.mxu0 %v597
    %649 = vmatpush.bf16.msra.mxu0 %v594
    %650 = vmatpush.bf16.msra.mxu0 %v591
    %651 = vmatpush.bf16.msra.mxu0 %v588
    %652 = vmatpush.bf16.msra.mxu0 %v585
    %653 = vmatpush.bf16.msra.mxu0 %v582
    %654 = vmatpush.bf16.msra.mxu0 %v579
    %655 = vmatpush.bf16.msra.mxu0 %v576
    %656 = vmatmul.bf16.gmra.mxu0 0
    %v657 = vpop.f32.mrf.mxu0
    %v658 = vadd.f32 0.0, %v657
    %v659 = vpop.f32.mrf.mxu0
    %660 = vdwg.mxu0
    %v661 = vadd.f32 %v459, %v632
    %v662 = vxor.u32 %v661, 2147483648
    %v663 = vmul.f32 %v662, 1.442695
    %v664 = vpow.pop %v663
    %v665 = vadd.f32 %v664, 1.0
    %v666 = vrcp.pop %v665
    %v667 = vmul.f32 %v665, %v666
    %v668 = vsub.f32 1.0, %v667
    %v669 = vmul.f32 %v666, %v668
    %v670 = vadd.f32 %v666, %v669
    %vm671 = vweird.f32 %v665
    %vm672 = vweird.f32 %v666
    %vm673 = vmor %vm671, %vm672
    %v674 = vsel %vm673, %v666, %v670
    %v675 = vand.u32 2147483647, %v665
    %vm676 = vcmp.eq.f32.partialorder %v675, 8.507059e+37
    %v677 = vand.u32 %v665, 2147483648
    %v678 = vor.u32 1.1754944e-38, %v677
    %v679 = vsel %vm676, %v678, %v674
    %v680 = vmul.f32 1.0, %v679
    %v681 = vadd.f32 %v460, %v645
    %v682 = vxor.u32 %v681, 2147483648
    %v683 = vmul.f32 %v682, 1.442695
    %v684 = vpow.pop %v683
    %v685 = vadd.f32 %v684, 1.0
    %v686 = vrcp.pop %v685
    %v687 = vmul.f32 %v685, %v686
    %v688 = vsub.f32 1.0, %v687
    %v689 = vmul.f32 %v686, %v688
    %v690 = vadd.f32 %v686, %v689
    %vm691 = vweird.f32 %v685
    %vm692 = vweird.f32 %v686
    %vm693 = vmor %vm691, %vm692
    %v694 = vsel %vm693, %v686, %v690
    %v695 = vand.u32 2147483647, %v685
    %vm696 = vcmp.eq.f32.partialorder %v695, 8.507059e+37
    %v697 = vand.u32 %v685, 2147483648
    %v698 = vor.u32 1.1754944e-38, %v697
    %v699 = vsel %vm696, %v698, %v694
    %v700 = vmul.f32 1.0, %v699
    %v701 = vld [vmem:[%s4] sm:$0x1]
    %v703 = vperm.slane %v701, 0
    %v705 = vadd.f32 %v658, %v703
    %v706 = vmul.f32 %v680, %v705
    %v707 = vadd.f32 %v461, %v706
    %v708 = vtanh.pop %v707
    %v709 = vsub.f32 0.0, %v708
    %v710 = vmul.f32 %v700, %v709
    %v711 = vadd.f32 %v708, %v710
    %712 = vst [vmem:[%s13] sm:$0xff] %v711
    %s713 = smul.u32 1, 3
    %s714 = smul.addr %s713, 8
    %s715 = scalar_lea.vmem [#allocation2], %s714
    %v716 = vld [vmem:[%s715] sm:$0xff]
    %v717 = vld [vmem:[%s715 + $0x8] sm:$0xff]
    %v718 = vld [vmem:[%s715 + $0x10] sm:$0xff]
    %v719 = vpack.c.bf16 %v711, %v711
    %v720 = vld [vmem:[#allocation5] sm:$0xff]
    %v721 = vld [vmem:[#allocation5 + $0x8] sm:$0xf]
    %v722 = vld [vmem:[#allocation5 + $0xc] sm:$0xff]
    %v723 = vld [vmem:[#allocation5 + $0x14] sm:$0xf]
    %v724 = vld [vmem:[#allocation5 + $0x18] sm:$0xff]
    %v725 = vld [vmem:[#allocation5 + $0x20] sm:$0xf]
    %v726 = vld [vmem:[#allocation5 + $0x24] sm:$0xff]
    %v727 = vld [vmem:[#allocation5 + $0x2c] sm:$0xf]
    %v728 = vld [vmem:[#allocation5 + $0x30] sm:$0xff]
    %v729 = vld [vmem:[#allocation5 + $0x38] sm:$0xf]
    %v730 = vld [vmem:[#allocation5 + $0x3c] sm:$0xff]
    %v731 = vld [vmem:[#allocation5 + $0x44] sm:$0xf]
    %v732 = vld [vmem:[#allocation5 + $0x48] sm:$0xff]
    %v733 = vld [vmem:[#allocation5 + $0x50] sm:$0xf]
    %v734 = vld [vmem:[#allocation5 + $0x54] sm:$0xff]
    %v735 = vld [vmem:[#allocation5 + $0x5c] sm:$0xf]
    %v736 = vld [vmem:[#allocation5 + $0x60] sm:$0xff]
    %v737 = vld [vmem:[#allocation5 + $0x68] sm:$0xf]
    %v738 = vld [vmem:[#allocation5 + $0x6c] sm:$0xff]
    %v739 = vld [vmem:[#allocation5 + $0x74] sm:$0xf]
    %v740 = vld [vmem:[#allocation5 + $0x78] sm:$0xff]
    %v741 = vld [vmem:[#allocation5 + $0x80] sm:$0xf]
    %v742 = vld [vmem:[#allocation5 + $0x84] sm:$0xff]
    %v743 = vld [vmem:[#allocation5 + $0x8c] sm:$0xf]
    %v744 = vld [vmem:[#allocation5 + $0x90] sm:$0xff]
    %v745 = vld [vmem:[#allocation5 + $0x98] sm:$0xf]
    %v746 = vld [vmem:[#allocation5 + $0x9c] sm:$0xff]
    %v747 = vld [vmem:[#allocation5 + $0xa4] sm:$0xf]
    %v748 = vld [vmem:[#allocation5 + $0xa8] sm:$0xff]
    %v749 = vld [vmem:[#allocation5 + $0xb0] sm:$0xf]
    %v750 = vld [vmem:[#allocation5 + $0xb4] sm:$0xff]
    %v751 = vld [vmem:[#allocation5 + $0xbc] sm:$0xf]
    %v784 = vunpack.c.l.b16 %v720
    %v785 = vunpack.c.h.b16 %v720
    %v786 = vunpack.c.l.b16 %v721
    %v787 = vunpack.c.l.b16 %v722
    %v788 = vunpack.c.h.b16 %v722
    %v789 = vunpack.c.l.b16 %v723
    %v790 = vunpack.c.l.b16 %v724
    %v791 = vunpack.c.h.b16 %v724
    %v792 = vunpack.c.l.b16 %v725
    %v793 = vunpack.c.l.b16 %v726
    %v794 = vunpack.c.h.b16 %v726
    %v795 = vunpack.c.l.b16 %v727
    %v796 = vunpack.c.l.b16 %v728
    %v797 = vunpack.c.h.b16 %v728
    %v798 = vunpack.c.l.b16 %v729
    %v799 = vunpack.c.l.b16 %v730
    %v800 = vunpack.c.h.b16 %v730
    %v801 = vunpack.c.l.b16 %v731
    %v802 = vunpack.c.l.b16 %v732
    %v803 = vunpack.c.h.b16 %v732
    %v804 = vunpack.c.l.b16 %v733
    %v805 = vunpack.c.l.b16 %v734
    %v806 = vunpack.c.h.b16 %v734
    %v807 = vunpack.c.l.b16 %v735
    %v808 = vunpack.c.l.b16 %v736
    %v809 = vunpack.c.h.b16 %v736
    %v810 = vunpack.c.l.b16 %v737
    %v811 = vunpack.c.l.b16 %v738
    %v812 = vunpack.c.h.b16 %v738
    %v813 = vunpack.c.l.b16 %v739
    %v814 = vunpack.c.l.b16 %v740
    %v815 = vunpack.c.h.b16 %v740
    %v816 = vunpack.c.l.b16 %v741
    %v817 = vunpack.c.l.b16 %v742
    %v818 = vunpack.c.h.b16 %v742
    %v819 = vunpack.c.l.b16 %v743
    %v820 = vunpack.c.l.b16 %v744
    %v821 = vunpack.c.h.b16 %v744
    %v822 = vunpack.c.l.b16 %v745
    %v823 = vunpack.c.l.b16 %v746
    %v824 = vunpack.c.h.b16 %v746
    %v825 = vunpack.c.l.b16 %v747
    %v826 = vunpack.c.l.b16 %v748
    %v827 = vunpack.c.h.b16 %v748
    %v828 = vunpack.c.l.b16 %v749
    %v829 = vunpack.c.l.b16 %v750
    %v830 = vunpack.c.h.b16 %v750
    %v831 = vunpack.c.l.b16 %v751
    %v832 = vpack.c.b16 %v787, %v784
    %v833 = vpack.c.b16 %v788, %v785
    %v834 = vpack.c.b16 %v789, %v786
    %v835 = vpack.c.b16 %v793, %v790
    %v836 = vpack.c.b16 %v794, %v791
    %v837 = vpack.c.b16 %v795, %v792
    %v838 = vpack.c.b16 %v799, %v796
    %v839 = vpack.c.b16 %v800, %v797
    %v840 = vpack.c.b16 %v801, %v798
    %v841 = vpack.c.b16 %v805, %v802
    %v842 = vpack.c.b16 %v806, %v803
    %v843 = vpack.c.b16 %v807, %v804
    %v844 = vpack.c.b16 %v811, %v808
    %v845 = vpack.c.b16 %v812, %v809
    %v846 = vpack.c.b16 %v813, %v810
    %v847 = vpack.c.b16 %v817, %v814
    %v848 = vpack.c.b16 %v818, %v815
    %v849 = vpack.c.b16 %v819, %v816
    %v850 = vpack.c.b16 %v823, %v820
    %v851 = vpack.c.b16 %v824, %v821
    %v852 = vpack.c.b16 %v825, %v822
    %v853 = vpack.c.b16 %v829, %v826
    %v854 = vpack.c.b16 %v830, %v827
    %v855 = vpack.c.b16 %v831, %v828
    %880 = vmatpush.bf16.msra.mxu0 %v853
    %881 = vmatpush.bf16.msra.mxu0 %v850
    %882 = vmatpush.bf16.msra.mxu0 %v847
    %883 = vmatpush.bf16.msra.mxu0 %v844
    %884 = vmatpush.bf16.msra.mxu0 %v841
    %885 = vmatpush.bf16.msra.mxu0 %v838
    %886 = vmatpush.bf16.msra.mxu0 %v835
    %887 = vmatpush.bf16.msra.mxu0 %v832
    %888 = vmatmul.bf16.gmra.mxu0 %v719
    %v889 = vpop.f32.mrf.mxu0
    %v890 = vadd.f32 0.0, %v889
    %v891 = vpop.f32.mrf.mxu0
    %892 = vdwg.mxu0
    %893 = vmatpush.bf16.msra.mxu0 %v854
    %894 = vmatpush.bf16.msra.mxu0 %v851
    %895 = vmatpush.bf16.msra.mxu0 %v848
    %896 = vmatpush.bf16.msra.mxu0 %v845
    %897 = vmatpush.bf16.msra.mxu0 %v842
    %898 = vmatpush.bf16.msra.mxu0 %v839
    %899 = vmatpush.bf16.msra.mxu0 %v836
    %900 = vmatpush.bf16.msra.mxu0 %v833
    %901 = vmatmul.bf16.gmra.mxu0 %v719
    %v902 = vpop.f32.mrf.mxu0
    %v903 = vadd.f32 0.0, %v902
    %v904 = vpop.f32.mrf.mxu0
    %905 = vdwg.mxu0
    %906 = vmatpush.bf16.msra.mxu0 %v855
    %907 = vmatpush.bf16.msra.mxu0 %v852
    %908 = vmatpush.bf16.msra.mxu0 %v849
    %909 = vmatpush.bf16.msra.mxu0 %v846
    %910 = vmatpush.bf16.msra.mxu0 %v843
    %911 = vmatpush.bf16.msra.mxu0 %v840
    %912 = vmatpush.bf16.msra.mxu0 %v837
    %913 = vmatpush.bf16.msra.mxu0 %v834
    %914 = vmatmul.bf16.gmra.mxu0 %v719
    %v915 = vpop.f32.mrf.mxu0
    %v916 = vadd.f32 0.0, %v915
    %v917 = vpop.f32.mrf.mxu0
    %918 = vdwg.mxu0
    %v919 = vadd.f32 %v716, %v890
    %v920 = vxor.u32 %v919, 2147483648
    %v921 = vmul.f32 %v920, 1.442695
    %v922 = vpow.pop %v921
    %v923 = vadd.f32 %v922, 1.0
    %v924 = vrcp.pop %v923
    %v925 = vmul.f32 %v923, %v924
    %v926 = vsub.f32 1.0, %v925
    %v927 = vmul.f32 %v924, %v926
    %v928 = vadd.f32 %v924, %v927
    %vm929 = vweird.f32 %v923
    %vm930 = vweird.f32 %v924
    %vm931 = vmor %vm929, %vm930
    %v932 = vsel %vm931, %v924, %v928
    %v933 = vand.u32 2147483647, %v923
    %vm934 = vcmp.eq.f32.partialorder %v933, 8.507059e+37
    %v935 = vand.u32 %v923, 2147483648
    %v936 = vor.u32 1.1754944e-38, %v935
    %v937 = vsel %vm934, %v936, %v932
    %v938 = vmul.f32 1.0, %v937
    %v939 = vadd.f32 %v717, %v903
    %v940 = vxor.u32 %v939, 2147483648
    %v941 = vmul.f32 %v940, 1.442695
    %v942 = vpow.pop %v941
    %v943 = vadd.f32 %v942, 1.0
    %v944 = vrcp.pop %v943
    %v945 = vmul.f32 %v943, %v944
    %v946 = vsub.f32 1.0, %v945
    %v947 = vmul.f32 %v944, %v946
    %v948 = vadd.f32 %v944, %v947
    %vm949 = vweird.f32 %v943
    %vm950 = vweird.f32 %v944
    %vm951 = vmor %vm949, %vm950
    %v952 = vsel %vm951, %v944, %v948
    %v953 = vand.u32 2147483647, %v943
    %vm954 = vcmp.eq.f32.partialorder %v953, 8.507059e+37
    %v955 = vand.u32 %v943, 2147483648
    %v956 = vor.u32 1.1754944e-38, %v955
    %v957 = vsel %vm954, %v956, %v952
    %v958 = vmul.f32 1.0, %v957
    %v959 = vld [vmem:[%s4] sm:$0x1]
    %v961 = vperm.slane %v959, 0
    %v963 = vadd.f32 %v916, %v961
    %v964 = vmul.f32 %v938, %v963
    %v965 = vadd.f32 %v718, %v964
    %v966 = vtanh.pop %v965
    %v967 = vsub.f32 %v711, %v966
    %v968 = vmul.f32 %v958, %v967
    %v969 = vadd.f32 %v966, %v968
    %s970 = scalar_lea.vmem %s13, 8
    %971 = vst [vmem:[%s970] sm:$0xff] %v969
    %s972 = smul.u32 2, 3
    %s973 = smul.addr %s972, 8
    %s974 = scalar_lea.vmem [#allocation2], %s973
    %v975 = vld [vmem:[%s974] sm:$0xff]
    %v976 = vld [vmem:[%s974 + $0x8] sm:$0xff]
    %v977 = vld [vmem:[%s974 + $0x10] sm:$0xff]
    %v978 = vpack.c.bf16 %v969, %v969
    %v979 = vld [vmem:[#allocation5] sm:$0xff]
    %v980 = vld [vmem:[#allocation5 + $0x8] sm:$0xf]
    %v981 = vld [vmem:[#allocation5 + $0xc] sm:$0xff]
    %v982 = vld [vmem:[#allocation5 + $0x14] sm:$0xf]
    %v983 = vld [vmem:[#allocation5 + $0x18] sm:$0xff]
    %v984 = vld [vmem:[#allocation5 + $0x20] sm:$0xf]
    %v985 = vld [vmem:[#allocation5 + $0x24] sm:$0xff]
    %v986 = vld [vmem:[#allocation5 + $0x2c] sm:$0xf]
    %v987 = vld [vmem:[#allocation5 + $0x30] sm:$0xff]
    %v988 = vld [vmem:[#allocation5 + $0x38] sm:$0xf]
    %v989 = vld [vmem:[#allocation5 + $0x3c] sm:$0xff]
    %v990 = vld [vmem:[#allocation5 + $0x44] sm:$0xf]
    %v991 = vld [vmem:[#allocation5 + $0x48] sm:$0xff]
    %v992 = vld [vmem:[#allocation5 + $0x50] sm:$0xf]
    %v993 = vld [vmem:[#allocation5 + $0x54] sm:$0xff]
    %v994 = vld [vmem:[#allocation5 + $0x5c] sm:$0xf]
    %v995 = vld [vmem:[#allocation5 + $0x60] sm:$0xff]
    %v996 = vld [vmem:[#allocation5 + $0x68] sm:$0xf]
    %v997 = vld [vmem:[#allocation5 + $0x6c] sm:$0xff]
    %v998 = vld [vmem:[#allocation5 + $0x74] sm:$0xf]
    %v999 = vld [vmem:[#allocation5 + $0x78] sm:$0xff]
    %v1000 = vld [vmem:[#allocation5 + $0x80] sm:$0xf]
    %v1001 = vld [vmem:[#allocation5 + $0x84] sm:$0xff]
    %v1002 = vld [vmem:[#allocation5 + $0x8c] sm:$0xf]
    %v1003 = vld [vmem:[#allocation5 + $0x90] sm:$0xff]
    %v1004 = vld [vmem:[#allocation5 + $0x98] sm:$0xf]
    %v1005 = vld [vmem:[#allocation5 + $0x9c] sm:$0xff]
    %v1006 = vld [vmem:[#allocation5 + $0xa4] sm:$0xf]
    %v1007 = vld [vmem:[#allocation5 + $0xa8] sm:$0xff]
    %v1008 = vld [vmem:[#allocation5 + $0xb0] sm:$0xf]
    %v1009 = vld [vmem:[#allocation5 + $0xb4] sm:$0xff]
    %v1010 = vld [vmem:[#allocation5 + $0xbc] sm:$0xf]
    %v1043 = vunpack.c.l.b16 %v979
    %v1044 = vunpack.c.h.b16 %v979
    %v1045 = vunpack.c.l.b16 %v980
    %v1046 = vunpack.c.l.b16 %v981
    %v1047 = vunpack.c.h.b16 %v981
    %v1048 = vunpack.c.l.b16 %v982
    %v1049 = vunpack.c.l.b16 %v983
    %v1050 = vunpack.c.h.b16 %v983
    %v1051 = vunpack.c.l.b16 %v984
    %v1052 = vunpack.c.l.b16 %v985
    %v1053 = vunpack.c.h.b16 %v985
    %v1054 = vunpack.c.l.b16 %v986
    %v1055 = vunpack.c.l.b16 %v987
    %v1056 = vunpack.c.h.b16 %v987
    %v1057 = vunpack.c.l.b16 %v988
    %v1058 = vunpack.c.l.b16 %v989
    %v1059 = vunpack.c.h.b16 %v989
    %v1060 = vunpack.c.l.b16 %v990
    %v1061 = vunpack.c.l.b16 %v991
    %v1062 = vunpack.c.h.b16 %v991
    %v1063 = vunpack.c.l.b16 %v992
    %v1064 = vunpack.c.l.b16 %v993
    %v1065 = vunpack.c.h.b16 %v993
    %v1066 = vunpack.c.l.b16 %v994
    %v1067 = vunpack.c.l.b16 %v995
    %v1068 = vunpack.c.h.b16 %v995
    %v1069 = vunpack.c.l.b16 %v996
    %v1070 = vunpack.c.l.b16 %v997
    %v1071 = vunpack.c.h.b16 %v997
    %v1072 = vunpack.c.l.b16 %v998
    %v1073 = vunpack.c.l.b16 %v999
    %v1074 = vunpack.c.h.b16 %v999
    %v1075 = vunpack.c.l.b16 %v1000
    %v1076 = vunpack.c.l.b16 %v1001
    %v1077 = vunpack.c.h.b16 %v1001
    %v1078 = vunpack.c.l.b16 %v1002
    %v1079 = vunpack.c.l.b16 %v1003
    %v1080 = vunpack.c.h.b16 %v1003
    %v1081 = vunpack.c.l.b16 %v1004
    %v1082 = vunpack.c.l.b16 %v1005
    %v1083 = vunpack.c.h.b16 %v1005
    %v1084 = vunpack.c.l.b16 %v1006
    %v1085 = vunpack.c.l.b16 %v1007
    %v1086 = vunpack.c.h.b16 %v1007
    %v1087 = vunpack.c.l.b16 %v1008
    %v1088 = vunpack.c.l.b16 %v1009
    %v1089 = vunpack.c.h.b16 %v1009
    %v1090 = vunpack.c.l.b16 %v1010
    %v1091 = vpack.c.b16 %v1046, %v1043
    %v1092 = vpack.c.b16 %v1047, %v1044
    %v1093 = vpack.c.b16 %v1048, %v1045
    %v1094 = vpack.c.b16 %v1052, %v1049
    %v1095 = vpack.c.b16 %v1053, %v1050
    %v1096 = vpack.c.b16 %v1054, %v1051
    %v1097 = vpack.c.b16 %v1058, %v1055
    %v1098 = vpack.c.b16 %v1059, %v1056
    %v1099 = vpack.c.b16 %v1060, %v1057
    %v1100 = vpack.c.b16 %v1064, %v1061
    %v1101 = vpack.c.b16 %v1065, %v1062
    %v1102 = vpack.c.b16 %v1066, %v1063
    %v1103 = vpack.c.b16 %v1070, %v1067
    %v1104 = vpack.c.b16 %v1071, %v1068
    %v1105 = vpack.c.b16 %v1072, %v1069
    %v1106 = vpack.c.b16 %v1076, %v1073
    %v1107 = vpack.c.b16 %v1077, %v1074
    %v1108 = vpack.c.b16 %v1078, %v1075
    %v1109 = vpack.c.b16 %v1082, %v1079
    %v1110 = vpack.c.b16 %v1083, %v1080
    %v1111 = vpack.c.b16 %v1084, %v1081
    %v1112 = vpack.c.b16 %v1088, %v1085
    %v1113 = vpack.c.b16 %v1089, %v1086
    %v1114 = vpack.c.b16 %v1090, %v1087
    %1139 = vmatpush.bf16.msra.mxu0 %v1112
    %1140 = vmatpush.bf16.msra.mxu0 %v1109
    %1141 = vmatpush.bf16.msra.mxu0 %v1106
    %1142 = vmatpush.bf16.msra.mxu0 %v1103
    %1143 = vmatpush.bf16.msra.mxu0 %v1100
    %1144 = vmatpush.bf16.msra.mxu0 %v1097
    %1145 = vmatpush.bf16.msra.mxu0 %v1094
    %1146 = vmatpush.bf16.msra.mxu0 %v1091
    %1147 = vmatmul.bf16.gmra.mxu0 %v978
    %v1148 = vpop.f32.mrf.mxu0
    %v1149 = vadd.f32 0.0, %v1148
    %v1150 = vpop.f32.mrf.mxu0
    %1151 = vdwg.mxu0
    %1152 = vmatpush.bf16.msra.mxu0 %v1113
    %1153 = vmatpush.bf16.msra.mxu0 %v1110
    %1154 = vmatpush.bf16.msra.mxu0 %v1107
    %1155 = vmatpush.bf16.msra.mxu0 %v1104
    %1156 = vmatpush.bf16.msra.mxu0 %v1101
    %1157 = vmatpush.bf16.msra.mxu0 %v1098
    %1158 = vmatpush.bf16.msra.mxu0 %v1095
    %1159 = vmatpush.bf16.msra.mxu0 %v1092
    %1160 = vmatmul.bf16.gmra.mxu0 %v978
    %v1161 = vpop.f32.mrf.mxu0
    %v1162 = vadd.f32 0.0, %v1161
    %v1163 = vpop.f32.mrf.mxu0
    %1164 = vdwg.mxu0
    %1165 = vmatpush.bf16.msra.mxu0 %v1114
    %1166 = vmatpush.bf16.msra.mxu0 %v1111
    %1167 = vmatpush.bf16.msra.mxu0 %v1108
    %1168 = vmatpush.bf16.msra.mxu0 %v1105
    %1169 = vmatpush.bf16.msra.mxu0 %v1102
    %1170 = vmatpush.bf16.msra.mxu0 %v1099
    %1171 = vmatpush.bf16.msra.mxu0 %v1096
    %1172 = vmatpush.bf16.msra.mxu0 %v1093
    %1173 = vmatmul.bf16.gmra.mxu0 %v978
    %v1174 = vpop.f32.mrf.mxu0
    %v1175 = vadd.f32 0.0, %v1174
    %v1176 = vpop.f32.mrf.mxu0
    %1177 = vdwg.mxu0
    %v1178 = vadd.f32 %v975, %v1149
    %v1179 = vxor.u32 %v1178, 2147483648
    %v1180 = vmul.f32 %v1179, 1.442695
    %v1181 = vpow.pop %v1180
    %v1182 = vadd.f32 %v1181, 1.0
    %v1183 = vrcp.pop %v1182
    %v1184 = vmul.f32 %v1182, %v1183
    %v1185 = vsub.f32 1.0, %v1184
    %v1186 = vmul.f32 %v1183, %v1185
    %v1187 = vadd.f32 %v1183, %v1186
    %vm1188 = vweird.f32 %v1182
    %vm1189 = vweird.f32 %v1183
    %vm1190 = vmor %vm1188, %vm1189
    %v1191 = vsel %vm1190, %v1183, %v1187
    %v1192 = vand.u32 2147483647, %v1182
    %vm1193 = vcmp.eq.f32.partialorder %v1192, 8.507059e+37
    %v1194 = vand.u32 %v1182, 2147483648
    %v1195 = vor.u32 1.1754944e-38, %v1194
    %v1196 = vsel %vm1193, %v1195, %v1191
    %v1197 = vmul.f32 1.0, %v1196
    %v1198 = vadd.f32 %v976, %v1162
    %v1199 = vxor.u32 %v1198, 2147483648
    %v1200 = vmul.f32 %v1199, 1.442695
    %v1201 = vpow.pop %v1200
    %v1202 = vadd.f32 %v1201, 1.0
    %v1203 = vrcp.pop %v1202
    %v1204 = vmul.f32 %v1202, %v1203
    %v1205 = vsub.f32 1.0, %v1204
    %v1206 = vmul.f32 %v1203, %v1205
    %v1207 = vadd.f32 %v1203, %v1206
    %vm1208 = vweird.f32 %v1202
    %vm1209 = vweird.f32 %v1203
    %vm1210 = vmor %vm1208, %vm1209
    %v1211 = vsel %vm1210, %v1203, %v1207
    %v1212 = vand.u32 2147483647, %v1202
    %vm1213 = vcmp.eq.f32.partialorder %v1212, 8.507059e+37
    %v1214 = vand.u32 %v1202, 2147483648
    %v1215 = vor.u32 1.1754944e-38, %v1214
    %v1216 = vsel %vm1213, %v1215, %v1211
    %v1217 = vmul.f32 1.0, %v1216
    %v1218 = vld [vmem:[%s4] sm:$0x1]
    %v1220 = vperm.slane %v1218, 0
    %v1222 = vadd.f32 %v1175, %v1220
    %v1223 = vmul.f32 %v1197, %v1222
    %v1224 = vadd.f32 %v977, %v1223
    %v1225 = vtanh.pop %v1224
    %v1226 = vsub.f32 %v969, %v1225
    %v1227 = vmul.f32 %v1217, %v1226
    %v1228 = vadd.f32 %v1225, %v1227
    %s1229 = scalar_lea.vmem %s13, 16
    %1230 = vst [vmem:[%s1229] sm:$0xff] %v1228
    %s1231 = smul.u32 3, 3
    %s1232 = smul.addr %s1231, 8
    %s1233 = scalar_lea.vmem [#allocation2], %s1232
    %v1234 = vld [vmem:[%s1233] sm:$0xff]
    %v1235 = vld [vmem:[%s1233 + $0x8] sm:$0xff]
    %v1236 = vld [vmem:[%s1233 + $0x10] sm:$0xff]
    %v1237 = vpack.c.bf16 %v1228, %v1228
    %v1238 = vld [vmem:[#allocation5] sm:$0xff]
    %v1239 = vld [vmem:[#allocation5 + $0x8] sm:$0xf]
    %v1240 = vld [vmem:[#allocation5 + $0xc] sm:$0xff]
    %v1241 = vld [vmem:[#allocation5 + $0x14] sm:$0xf]
    %v1242 = vld [vmem:[#allocation5 + $0x18] sm:$0xff]
    %v1243 = vld [vmem:[#allocation5 + $0x20] sm:$0xf]
    %v1244 = vld [vmem:[#allocation5 + $0x24] sm:$0xff]
    %v1245 = vld [vmem:[#allocation5 + $0x2c] sm:$0xf]
    %v1246 = vld [vmem:[#allocation5 + $0x30] sm:$0xff]
    %v1247 = vld [vmem:[#allocation5 + $0x38] sm:$0xf]
    %v1248 = vld [vmem:[#allocation5 + $0x3c] sm:$0xff]
    %v1249 = vld [vmem:[#allocation5 + $0x44] sm:$0xf]
    %v1250 = vld [vmem:[#allocation5 + $0x48] sm:$0xff]
    %v1251 = vld [vmem:[#allocation5 + $0x50] sm:$0xf]
    %v1252 = vld [vmem:[#allocation5 + $0x54] sm:$0xff]
    %v1253 = vld [vmem:[#allocation5 + $0x5c] sm:$0xf]
    %v1254 = vld [vmem:[#allocation5 + $0x60] sm:$0xff]
    %v1255 = vld [vmem:[#allocation5 + $0x68] sm:$0xf]
    %v1256 = vld [vmem:[#allocation5 + $0x6c] sm:$0xff]
    %v1257 = vld [vmem:[#allocation5 + $0x74] sm:$0xf]
    %v1258 = vld [vmem:[#allocation5 + $0x78] sm:$0xff]
    %v1259 = vld [vmem:[#allocation5 + $0x80] sm:$0xf]
    %v1260 = vld [vmem:[#allocation5 + $0x84] sm:$0xff]
    %v1261 = vld [vmem:[#allocation5 + $0x8c] sm:$0xf]
    %v1262 = vld [vmem:[#allocation5 + $0x90] sm:$0xff]
    %v1263 = vld [vmem:[#allocation5 + $0x98] sm:$0xf]
    %v1264 = vld [vmem:[#allocation5 + $0x9c] sm:$0xff]
    %v1265 = vld [vmem:[#allocation5 + $0xa4] sm:$0xf]
    %v1266 = vld [vmem:[#allocation5 + $0xa8] sm:$0xff]
    %v1267 = vld [vmem:[#allocation5 + $0xb0] sm:$0xf]
    %v1268 = vld [vmem:[#allocation5 + $0xb4] sm:$0xff]
    %v1269 = vld [vmem:[#allocation5 + $0xbc] sm:$0xf]
    %v1302 = vunpack.c.l.b16 %v1238
    %v1303 = vunpack.c.h.b16 %v1238
    %v1304 = vunpack.c.l.b16 %v1239
    %v1305 = vunpack.c.l.b16 %v1240
    %v1306 = vunpack.c.h.b16 %v1240
    %v1307 = vunpack.c.l.b16 %v1241
    %v1308 = vunpack.c.l.b16 %v1242
    %v1309 = vunpack.c.h.b16 %v1242
    %v1310 = vunpack.c.l.b16 %v1243
    %v1311 = vunpack.c.l.b16 %v1244
    %v1312 = vunpack.c.h.b16 %v1244
    %v1313 = vunpack.c.l.b16 %v1245
    %v1314 = vunpack.c.l.b16 %v1246
    %v1315 = vunpack.c.h.b16 %v1246
    %v1316 = vunpack.c.l.b16 %v1247
    %v1317 = vunpack.c.l.b16 %v1248
    %v1318 = vunpack.c.h.b16 %v1248
    %v1319 = vunpack.c.l.b16 %v1249
    %v1320 = vunpack.c.l.b16 %v1250
    %v1321 = vunpack.c.h.b16 %v1250
    %v1322 = vunpack.c.l.b16 %v1251
    %v1323 = vunpack.c.l.b16 %v1252
    %v1324 = vunpack.c.h.b16 %v1252
    %v1325 = vunpack.c.l.b16 %v1253
    %v1326 = vunpack.c.l.b16 %v1254
    %v1327 = vunpack.c.h.b16 %v1254
    %v1328 = vunpack.c.l.b16 %v1255
    %v1329 = vunpack.c.l.b16 %v1256
    %v1330 = vunpack.c.h.b16 %v1256
    %v1331 = vunpack.c.l.b16 %v1257
    %v1332 = vunpack.c.l.b16 %v1258
    %v1333 = vunpack.c.h.b16 %v1258
    %v1334 = vunpack.c.l.b16 %v1259
    %v1335 = vunpack.c.l.b16 %v1260
    %v1336 = vunpack.c.h.b16 %v1260
    %v1337 = vunpack.c.l.b16 %v1261
    %v1338 = vunpack.c.l.b16 %v1262
    %v1339 = vunpack.c.h.b16 %v1262
    %v1340 = vunpack.c.l.b16 %v1263
    %v1341 = vunpack.c.l.b16 %v1264
    %v1342 = vunpack.c.h.b16 %v1264
    %v1343 = vunpack.c.l.b16 %v1265
    %v1344 = vunpack.c.l.b16 %v1266
    %v1345 = vunpack.c.h.b16 %v1266
    %v1346 = vunpack.c.l.b16 %v1267
    %v1347 = vunpack.c.l.b16 %v1268
    %v1348 = vunpack.c.h.b16 %v1268
    %v1349 = vunpack.c.l.b16 %v1269
    %v1350 = vpack.c.b16 %v1305, %v1302
    %v1351 = vpack.c.b16 %v1306, %v1303
    %v1352 = vpack.c.b16 %v1307, %v1304
    %v1353 = vpack.c.b16 %v1311, %v1308
    %v1354 = vpack.c.b16 %v1312, %v1309
    %v1355 = vpack.c.b16 %v1313, %v1310
    %v1356 = vpack.c.b16 %v1317, %v1314
    %v1357 = vpack.c.b16 %v1318, %v1315
    %v1358 = vpack.c.b16 %v1319, %v1316
    %v1359 = vpack.c.b16 %v1323, %v1320
    %v1360 = vpack.c.b16 %v1324, %v1321
    %v1361 = vpack.c.b16 %v1325, %v1322
    %v1362 = vpack.c.b16 %v1329, %v1326
    %v1363 = vpack.c.b16 %v1330, %v1327
    %v1364 = vpack.c.b16 %v1331, %v1328
    %v1365 = vpack.c.b16 %v1335, %v1332
    %v1366 = vpack.c.b16 %v1336, %v1333
    %v1367 = vpack.c.b16 %v1337, %v1334
    %v1368 = vpack.c.b16 %v1341, %v1338
    %v1369 = vpack.c.b16 %v1342, %v1339
    %v1370 = vpack.c.b16 %v1343, %v1340
    %v1371 = vpack.c.b16 %v1347, %v1344
    %v1372 = vpack.c.b16 %v1348, %v1345
    %v1373 = vpack.c.b16 %v1349, %v1346
    %1398 = vmatpush.bf16.msra.mxu0 %v1371
    %1399 = vmatpush.bf16.msra.mxu0 %v1368
    %1400 = vmatpush.bf16.msra.mxu0 %v1365
    %1401 = vmatpush.bf16.msra.mxu0 %v1362
    %1402 = vmatpush.bf16.msra.mxu0 %v1359
    %1403 = vmatpush.bf16.msra.mxu0 %v1356
    %1404 = vmatpush.bf16.msra.mxu0 %v1353
    %1405 = vmatpush.bf16.msra.mxu0 %v1350
    %1406 = vmatmul.bf16.gmra.mxu0 %v1237
    %v1407 = vpop.f32.mrf.mxu0
    %v1408 = vadd.f32 0.0, %v1407
    %v1409 = vpop.f32.mrf.mxu0
    %1410 = vdwg.mxu0
    %1411 = vmatpush.bf16.msra.mxu0 %v1372
    %1412 = vmatpush.bf16.msra.mxu0 %v1369
    %1413 = vmatpush.bf16.msra.mxu0 %v1366
    %1414 = vmatpush.bf16.msra.mxu0 %v1363
    %1415 = vmatpush.bf16.msra.mxu0 %v1360
    %1416 = vmatpush.bf16.msra.mxu0 %v1357
    %1417 = vmatpush.bf16.msra.mxu0 %v1354
    %1418 = vmatpush.bf16.msra.mxu0 %v1351
    %1419 = vmatmul.bf16.gmra.mxu0 %v1237
    %v1420 = vpop.f32.mrf.mxu0
    %v1421 = vadd.f32 0.0, %v1420
    %v1422 = vpop.f32.mrf.mxu0
    %1423 = vdwg.mxu0
    %1424 = vmatpush.bf16.msra.mxu0 %v1373
    %1425 = vmatpush.bf16.msra.mxu0 %v1370
    %1426 = vmatpush.bf16.msra.mxu0 %v1367
    %1427 = vmatpush.bf16.msra.mxu0 %v1364
    %1428 = vmatpush.bf16.msra.mxu0 %v1361
    %1429 = vmatpush.bf16.msra.mxu0 %v1358
    %1430 = vmatpush.bf16.msra.mxu0 %v1355
    %1431 = vmatpush.bf16.msra.mxu0 %v1352
    %1432 = vmatmul.bf16.gmra.mxu0 %v1237
    %v1433 = vpop.f32.mrf.mxu0
    %v1434 = vadd.f32 0.0, %v1433
    %v1435 = vpop.f32.mrf.mxu0
    %1436 = vdwg.mxu0
    %v1437 = vadd.f32 %v1234, %v1408
    %v1438 = vxor.u32 %v1437, 2147483648
    %v1439 = vmul.f32 %v1438, 1.442695
    %v1440 = vpow.pop %v1439
    %v1441 = vadd.f32 %v1440, 1.0
    %v1442 = vrcp.pop %v1441
    %v1443 = vmul.f32 %v1441, %v1442
    %v1444 = vsub.f32 1.0, %v1443
    %v1445 = vmul.f32 %v1442, %v1444
    %v1446 = vadd.f32 %v1442, %v1445
    %vm1447 = vweird.f32 %v1441
    %vm1448 = vweird.f32 %v1442
    %vm1449 = vmor %vm1447, %vm1448
    %v1450 = vsel %vm1449, %v1442, %v1446
    %v1451 = vand.u32 2147483647, %v1441
    %vm1452 = vcmp.eq.f32.partialorder %v1451, 8.507059e+37
    %v1453 = vand.u32 %v1441, 2147483648
    %v1454 = vor.u32 1.1754944e-38, %v1453
    %v1455 = vsel %vm1452, %v1454, %v1450
    %v1456 = vmul.f32 1.0, %v1455
    %v1457 = vadd.f32 %v1235, %v1421
    %v1458 = vxor.u32 %v1457, 2147483648
    %v1459 = vmul.f32 %v1458, 1.442695
    %v1460 = vpow.pop %v1459
    %v1461 = vadd.f32 %v1460, 1.0
    %v1462 = vrcp.pop %v1461
    %v1463 = vmul.f32 %v1461, %v1462
    %v1464 = vsub.f32 1.0, %v1463
    %v1465 = vmul.f32 %v1462, %v1464
    %v1466 = vadd.f32 %v1462, %v1465
    %vm1467 = vweird.f32 %v1461
    %vm1468 = vweird.f32 %v1462
    %vm1469 = vmor %vm1467, %vm1468
    %v1470 = vsel %vm1469, %v1462, %v1466
    %v1471 = vand.u32 2147483647, %v1461
    %vm1472 = vcmp.eq.f32.partialorder %v1471, 8.507059e+37
    %v1473 = vand.u32 %v1461, 2147483648
    %v1474 = vor.u32 1.1754944e-38, %v1473
    %v1475 = vsel %vm1472, %v1474, %v1470
    %v1476 = vmul.f32 1.0, %v1475
    %v1477 = vld [vmem:[%s4] sm:$0x1]
    %v1479 = vperm.slane %v1477, 0
    %v1481 = vadd.f32 %v1434, %v1479
    %v1482 = vmul.f32 %v1456, %v1481
    %v1483 = vadd.f32 %v1236, %v1482
    %v1484 = vtanh.pop %v1483
    %v1485 = vsub.f32 %v1228, %v1484
    %v1486 = vmul.f32 %v1476, %v1485
    %v1487 = vadd.f32 %v1484, %v1486
    %s1488 = scalar_lea.vmem %s13, 24
    %1489 = vst [vmem:[%s1488] sm:$0xff] %v1487
    %s1490 = smul.u32 4, 3
    %s1491 = smul.addr %s1490, 8
    %s1492 = scalar_lea.vmem [#allocation2], %s1491
    %v1493 = vld [vmem:[%s1492] sm:$0xff]
    %v1494 = vld [vmem:[%s1492 + $0x8] sm:$0xff]
    %v1495 = vld [vmem:[%s1492 + $0x10] sm:$0xff]
    %v1496 = vpack.c.bf16 %v1487, %v1487
    %v1497 = vld [vmem:[#allocation5] sm:$0xff]
    %v1498 = vld [vmem:[#allocation5 + $0x8] sm:$0xf]
    %v1499 = vld [vmem:[#allocation5 + $0xc] sm:$0xff]
    %v1500 = vld [vmem:[#allocation5 + $0x14] sm:$0xf]
    %v1501 = vld [vmem:[#allocation5 + $0x18] sm:$0xff]
    %v1502 = vld [vmem:[#allocation5 + $0x20] sm:$0xf]
    %v1503 = vld [vmem:[#allocation5 + $0x24] sm:$0xff]
    %v1504 = vld [vmem:[#allocation5 + $0x2c] sm:$0xf]
    %v1505 = vld [vmem:[#allocation5 + $0x30] sm:$0xff]
    %v1506 = vld [vmem:[#allocation5 + $0x38] sm:$0xf]
    %v1507 = vld [vmem:[#allocation5 + $0x3c] sm:$0xff]
    %v1508 = vld [vmem:[#allocation5 + $0x44] sm:$0xf]
    %v1509 = vld [vmem:[#allocation5 + $0x48] sm:$0xff]
    %v1510 = vld [vmem:[#allocation5 + $0x50] sm:$0xf]
    %v1511 = vld [vmem:[#allocation5 + $0x54] sm:$0xff]
    %v1512 = vld [vmem:[#allocation5 + $0x5c] sm:$0xf]
    %v1513 = vld [vmem:[#allocation5 + $0x60] sm:$0xff]
    %v1514 = vld [vmem:[#allocation5 + $0x68] sm:$0xf]
    %v1515 = vld [vmem:[#allocation5 + $0x6c] sm:$0xff]
    %v1516 = vld [vmem:[#allocation5 + $0x74] sm:$0xf]
    %v1517 = vld [vmem:[#allocation5 + $0x78] sm:$0xff]
    %v1518 = vld [vmem:[#allocation5 + $0x80] sm:$0xf]
    %v1519 = vld [vmem:[#allocation5 + $0x84] sm:$0xff]
    %v1520 = vld [vmem:[#allocation5 + $0x8c] sm:$0xf]
    %v1521 = vld [vmem:[#allocation5 + $0x90] sm:$0xff]
    %v1522 = vld [vmem:[#allocation5 + $0x98] sm:$0xf]
    %v1523 = vld [vmem:[#allocation5 + $0x9c] sm:$0xff]
    %v1524 = vld [vmem:[#allocation5 + $0xa4] sm:$0xf]
    %v1525 = vld [vmem:[#allocation5 + $0xa8] sm:$0xff]
    %v1526 = vld [vmem:[#allocation5 + $0xb0] sm:$0xf]
    %v1527 = vld [vmem:[#allocation5 + $0xb4] sm:$0xff]
    %v1528 = vld [vmem:[#allocation5 + $0xbc] sm:$0xf]
    %v1561 = vunpack.c.l.b16 %v1497
    %v1562 = vunpack.c.h.b16 %v1497
    %v1563 = vunpack.c.l.b16 %v1498
    %v1564 = vunpack.c.l.b16 %v1499
    %v1565 = vunpack.c.h.b16 %v1499
    %v1566 = vunpack.c.l.b16 %v1500
    %v1567 = vunpack.c.l.b16 %v1501
    %v1568 = vunpack.c.h.b16 %v1501
    %v1569 = vunpack.c.l.b16 %v1502
    %v1570 = vunpack.c.l.b16 %v1503
    %v1571 = vunpack.c.h.b16 %v1503
    %v1572 = vunpack.c.l.b16 %v1504
    %v1573 = vunpack.c.l.b16 %v1505
    %v1574 = vunpack.c.h.b16 %v1505
    %v1575 = vunpack.c.l.b16 %v1506
    %v1576 = vunpack.c.l.b16 %v1507
    %v1577 = vunpack.c.h.b16 %v1507
    %v1578 = vunpack.c.l.b16 %v1508
    %v1579 = vunpack.c.l.b16 %v1509
    %v1580 = vunpack.c.h.b16 %v1509
    %v1581 = vunpack.c.l.b16 %v1510
    %v1582 = vunpack.c.l.b16 %v1511
    %v1583 = vunpack.c.h.b16 %v1511
    %v1584 = vunpack.c.l.b16 %v1512
    %v1585 = vunpack.c.l.b16 %v1513
    %v1586 = vunpack.c.h.b16 %v1513
    %v1587 = vunpack.c.l.b16 %v1514
    %v1588 = vunpack.c.l.b16 %v1515
    %v1589 = vunpack.c.h.b16 %v1515
    %v1590 = vunpack.c.l.b16 %v1516
    %v1591 = vunpack.c.l.b16 %v1517
    %v1592 = vunpack.c.h.b16 %v1517
    %v1593 = vunpack.c.l.b16 %v1518
    %v1594 = vunpack.c.l.b16 %v1519
    %v1595 = vunpack.c.h.b16 %v1519
    %v1596 = vunpack.c.l.b16 %v1520
    %v1597 = vunpack.c.l.b16 %v1521
    %v1598 = vunpack.c.h.b16 %v1521
    %v1599 = vunpack.c.l.b16 %v1522
    %v1600 = vunpack.c.l.b16 %v1523
    %v1601 = vunpack.c.h.b16 %v1523
    %v1602 = vunpack.c.l.b16 %v1524
    %v1603 = vunpack.c.l.b16 %v1525
    %v1604 = vunpack.c.h.b16 %v1525
    %v1605 = vunpack.c.l.b16 %v1526
    %v1606 = vunpack.c.l.b16 %v1527
    %v1607 = vunpack.c.h.b16 %v1527
    %v1608 = vunpack.c.l.b16 %v1528
    %v1609 = vpack.c.b16 %v1564, %v1561
    %v1610 = vpack.c.b16 %v1565, %v1562
    %v1611 = vpack.c.b16 %v1566, %v1563
    %v1612 = vpack.c.b16 %v1570, %v1567
    %v1613 = vpack.c.b16 %v1571, %v1568
    %v1614 = vpack.c.b16 %v1572, %v1569
    %v1615 = vpack.c.b16 %v1576, %v1573
    %v1616 = vpack.c.b16 %v1577, %v1574
    %v1617 = vpack.c.b16 %v1578, %v1575
    %v1618 = vpack.c.b16 %v1582, %v1579
    %v1619 = vpack.c.b16 %v1583, %v1580
    %v1620 = vpack.c.b16 %v1584, %v1581
    %v1621 = vpack.c.b16 %v1588, %v1585
    %v1622 = vpack.c.b16 %v1589, %v1586
    %v1623 = vpack.c.b16 %v1590, %v1587
    %v1624 = vpack.c.b16 %v1594, %v1591
    %v1625 = vpack.c.b16 %v1595, %v1592
    %v1626 = vpack.c.b16 %v1596, %v1593
    %v1627 = vpack.c.b16 %v1600, %v1597
    %v1628 = vpack.c.b16 %v1601, %v1598
    %v1629 = vpack.c.b16 %v1602, %v1599
    %v1630 = vpack.c.b16 %v1606, %v1603
    %v1631 = vpack.c.b16 %v1607, %v1604
    %v1632 = vpack.c.b16 %v1608, %v1605
    %1657 = vmatpush.bf16.msra.mxu0 %v1630
    %1658 = vmatpush.bf16.msra.mxu0 %v1627
    %1659 = vmatpush.bf16.msra.mxu0 %v1624
    %1660 = vmatpush.bf16.msra.mxu0 %v1621
    %1661 = vmatpush.bf16.msra.mxu0 %v1618
    %1662 = vmatpush.bf16.msra.mxu0 %v1615
    %1663 = vmatpush.bf16.msra.mxu0 %v1612
    %1664 = vmatpush.bf16.msra.mxu0 %v1609
    %1665 = vmatmul.bf16.gmra.mxu0 %v1496
    %v1666 = vpop.f32.mrf.mxu0
    %v1667 = vadd.f32 0.0, %v1666
    %v1668 = vpop.f32.mrf.mxu0
    %1669 = vdwg.mxu0
    %1670 = vmatpush.bf16.msra.mxu0 %v1631
    %1671 = vmatpush.bf16.msra.mxu0 %v1628
    %1672 = vmatpush.bf16.msra.mxu0 %v1625
    %1673 = vmatpush.bf16.msra.mxu0 %v1622
    %1674 = vmatpush.bf16.msra.mxu0 %v1619
    %1675 = vmatpush.bf16.msra.mxu0 %v1616
    %1676 = vmatpush.bf16.msra.mxu0 %v1613
    %1677 = vmatpush.bf16.msra.mxu0 %v1610
    %1678 = vmatmul.bf16.gmra.mxu0 %v1496
    %v1679 = vpop.f32.mrf.mxu0
    %v1680 = vadd.f32 0.0, %v1679
    %v1681 = vpop.f32.mrf.mxu0
    %1682 = vdwg.mxu0
    %1683 = vmatpush.bf16.msra.mxu0 %v1632
    %1684 = vmatpush.bf16.msra.mxu0 %v1629
    %1685 = vmatpush.bf16.msra.mxu0 %v1626
    %1686 = vmatpush.bf16.msra.mxu0 %v1623
    %1687 = vmatpush.bf16.msra.mxu0 %v1620
    %1688 = vmatpush.bf16.msra.mxu0 %v1617
    %1689 = vmatpush.bf16.msra.mxu0 %v1614
    %1690 = vmatpush.bf16.msra.mxu0 %v1611
    %1691 = vmatmul.bf16.gmra.mxu0 %v1496
    %v1692 = vpop.f32.mrf.mxu0
    %v1693 = vadd.f32 0.0, %v1692
    %v1694 = vpop.f32.mrf.mxu0
    %1695 = vdwg.mxu0
    %v1696 = vadd.f32 %v1493, %v1667
    %v1697 = vxor.u32 %v1696, 2147483648
    %v1698 = vmul.f32 %v1697, 1.442695
    %v1699 = vpow.pop %v1698
    %v1700 = vadd.f32 %v1699, 1.0
    %v1701 = vrcp.pop %v1700
    %v1702 = vmul.f32 %v1700, %v1701
    %v1703 = vsub.f32 1.0, %v1702
    %v1704 = vmul.f32 %v1701, %v1703
    %v1705 = vadd.f32 %v1701, %v1704
    %vm1706 = vweird.f32 %v1700
    %vm1707 = vweird.f32 %v1701
    %vm1708 = vmor %vm1706, %vm1707
    %v1709 = vsel %vm1708, %v1701, %v1705
    %v1710 = vand.u32 2147483647, %v1700
    %vm1711 = vcmp.eq.f32.partialorder %v1710, 8.507059e+37
    %v1712 = vand.u32 %v1700, 2147483648
    %v1713 = vor.u32 1.1754944e-38, %v1712
    %v1714 = vsel %vm1711, %v1713, %v1709
    %v1715 = vmul.f32 1.0, %v1714
    %v1716 = vadd.f32 %v1494, %v1680
    %v1717 = vxor.u32 %v1716, 2147483648
    %v1718 = vmul.f32 %v1717, 1.442695
    %v1719 = vpow.pop %v1718
    %v1720 = vadd.f32 %v1719, 1.0
    %v1721 = vrcp.pop %v1720
    %v1722 = vmul.f32 %v1720, %v1721
    %v1723 = vsub.f32 1.0, %v1722
    %v1724 = vmul.f32 %v1721, %v1723
    %v1725 = vadd.f32 %v1721, %v1724
    %vm1726 = vweird.f32 %v1720
    %vm1727 = vweird.f32 %v1721
    %vm1728 = vmor %vm1726, %vm1727
    %v1729 = vsel %vm1728, %v1721, %v1725
    %v1730 = vand.u32 2147483647, %v1720
    %vm1731 = vcmp.eq.f32.partialorder %v1730, 8.507059e+37
    %v1732 = vand.u32 %v1720, 2147483648
    %v1733 = vor.u32 1.1754944e-38, %v1732
    %v1734 = vsel %vm1731, %v1733, %v1729
    %v1735 = vmul.f32 1.0, %v1734
    %v1736 = vld [vmem:[%s4] sm:$0x1]
    %v1738 = vperm.slane %v1736, 0
    %v1740 = vadd.f32 %v1693, %v1738
    %v1741 = vmul.f32 %v1715, %v1740
    %v1742 = vadd.f32 %v1495, %v1741
    %v1743 = vtanh.pop %v1742
    %v1744 = vsub.f32 %v1487, %v1743
    %v1745 = vmul.f32 %v1735, %v1744
    %v1746 = vadd.f32 %v1743, %v1745
    %s1747 = scalar_lea.vmem %s13, 32
    %1748 = vst [vmem:[%s1747] sm:$0xff] %v1746
    %s1749 = smul.u32 5, 3
    %s1750 = smul.addr %s1749, 8
    %s1751 = scalar_lea.vmem [#allocation2], %s1750
    %v1752 = vld [vmem:[%s1751] sm:$0xff]
    %v1753 = vld [vmem:[%s1751 + $0x8] sm:$0xff]
    %v1754 = vld [vmem:[%s1751 + $0x10] sm:$0xff]
    %v1755 = vpack.c.bf16 %v1746, %v1746
    %v1756 = vld [vmem:[#allocation5] sm:$0xff]
    %v1757 = vld [vmem:[#allocation5 + $0x8] sm:$0xf]
    %v1758 = vld [vmem:[#allocation5 + $0xc] sm:$0xff]
    %v1759 = vld [vmem:[#allocation5 + $0x14] sm:$0xf]
    %v1760 = vld [vmem:[#allocation5 + $0x18] sm:$0xff]
    %v1761 = vld [vmem:[#allocation5 + $0x20] sm:$0xf]
    %v1762 = vld [vmem:[#allocation5 + $0x24] sm:$0xff]
    %v1763 = vld [vmem:[#allocation5 + $0x2c] sm:$0xf]
    %v1764 = vld [vmem:[#allocation5 + $0x30] sm:$0xff]
    %v1765 = vld [vmem:[#allocation5 + $0x38] sm:$0xf]
    %v1766 = vld [vmem:[#allocation5 + $0x3c] sm:$0xff]
    %v1767 = vld [vmem:[#allocation5 + $0x44] sm:$0xf]
    %v1768 = vld [vmem:[#allocation5 + $0x48] sm:$0xff]
    %v1769 = vld [vmem:[#allocation5 + $0x50] sm:$0xf]
    %v1770 = vld [vmem:[#allocation5 + $0x54] sm:$0xff]
    %v1771 = vld [vmem:[#allocation5 + $0x5c] sm:$0xf]
    %v1772 = vld [vmem:[#allocation5 + $0x60] sm:$0xff]
    %v1773 = vld [vmem:[#allocation5 + $0x68] sm:$0xf]
    %v1774 = vld [vmem:[#allocation5 + $0x6c] sm:$0xff]
    %v1775 = vld [vmem:[#allocation5 + $0x74] sm:$0xf]
    %v1776 = vld [vmem:[#allocation5 + $0x78] sm:$0xff]
    %v1777 = vld [vmem:[#allocation5 + $0x80] sm:$0xf]
    %v1778 = vld [vmem:[#allocation5 + $0x84] sm:$0xff]
    %v1779 = vld [vmem:[#allocation5 + $0x8c] sm:$0xf]
    %v1780 = vld [vmem:[#allocation5 + $0x90] sm:$0xff]
    %v1781 = vld [vmem:[#allocation5 + $0x98] sm:$0xf]
    %v1782 = vld [vmem:[#allocation5 + $0x9c] sm:$0xff]
    %v1783 = vld [vmem:[#allocation5 + $0xa4] sm:$0xf]
    %v1784 = vld [vmem:[#allocation5 + $0xa8] sm:$0xff]
    %v1785 = vld [vmem:[#allocation5 + $0xb0] sm:$0xf]
    %v1786 = vld [vmem:[#allocation5 + $0xb4] sm:$0xff]
    %v1787 = vld [vmem:[#allocation5 + $0xbc] sm:$0xf]
    %v1820 = vunpack.c.l.b16 %v1756
    %v1821 = vunpack.c.h.b16 %v1756
    %v1822 = vunpack.c.l.b16 %v1757
    %v1823 = vunpack.c.l.b16 %v1758
    %v1824 = vunpack.c.h.b16 %v1758
    %v1825 = vunpack.c.l.b16 %v1759
    %v1826 = vunpack.c.l.b16 %v1760
    %v1827 = vunpack.c.h.b16 %v1760
    %v1828 = vunpack.c.l.b16 %v1761
    %v1829 = vunpack.c.l.b16 %v1762
    %v1830 = vunpack.c.h.b16 %v1762
    %v1831 = vunpack.c.l.b16 %v1763
    %v1832 = vunpack.c.l.b16 %v1764
    %v1833 = vunpack.c.h.b16 %v1764
    %v1834 = vunpack.c.l.b16 %v1765
    %v1835 = vunpack.c.l.b16 %v1766
    %v1836 = vunpack.c.h.b16 %v1766
    %v1837 = vunpack.c.l.b16 %v1767
    %v1838 = vunpack.c.l.b16 %v1768
    %v1839 = vunpack.c.h.b16 %v1768
    %v1840 = vunpack.c.l.b16 %v1769
    %v1841 = vunpack.c.l.b16 %v1770
    %v1842 = vunpack.c.h.b16 %v1770
    %v1843 = vunpack.c.l.b16 %v1771
    %v1844 = vunpack.c.l.b16 %v1772
    %v1845 = vunpack.c.h.b16 %v1772
    %v1846 = vunpack.c.l.b16 %v1773
    %v1847 = vunpack.c.l.b16 %v1774
    %v1848 = vunpack.c.h.b16 %v1774
    %v1849 = vunpack.c.l.b16 %v1775
    %v1850 = vunpack.c.l.b16 %v1776
    %v1851 = vunpack.c.h.b16 %v1776
    %v1852 = vunpack.c.l.b16 %v1777
    %v1853 = vunpack.c.l.b16 %v1778
    %v1854 = vunpack.c.h.b16 %v1778
    %v1855 = vunpack.c.l.b16 %v1779
    %v1856 = vunpack.c.l.b16 %v1780
    %v1857 = vunpack.c.h.b16 %v1780
    %v1858 = vunpack.c.l.b16 %v1781
    %v1859 = vunpack.c.l.b16 %v1782
    %v1860 = vunpack.c.h.b16 %v1782
    %v1861 = vunpack.c.l.b16 %v1783
    %v1862 = vunpack.c.l.b16 %v1784
    %v1863 = vunpack.c.h.b16 %v1784
    %v1864 = vunpack.c.l.b16 %v1785
    %v1865 = vunpack.c.l.b16 %v1786
    %v1866 = vunpack.c.h.b16 %v1786
    %v1867 = vunpack.c.l.b16 %v1787
    %v1868 = vpack.c.b16 %v1823, %v1820
    %v1869 = vpack.c.b16 %v1824, %v1821
    %v1870 = vpack.c.b16 %v1825, %v1822
    %v1871 = vpack.c.b16 %v1829, %v1826
    %v1872 = vpack.c.b16 %v1830, %v1827
    %v1873 = vpack.c.b16 %v1831, %v1828
    %v1874 = vpack.c.b16 %v1835, %v1832
    %v1875 = vpack.c.b16 %v1836, %v1833
    %v1876 = vpack.c.b16 %v1837, %v1834
    %v1877 = vpack.c.b16 %v1841, %v1838
    %v1878 = vpack.c.b16 %v1842, %v1839
    %v1879 = vpack.c.b16 %v1843, %v1840
    %v1880 = vpack.c.b16 %v1847, %v1844
    %v1881 = vpack.c.b16 %v1848, %v1845
    %v1882 = vpack.c.b16 %v1849, %v1846
    %v1883 = vpack.c.b16 %v1853, %v1850
    %v1884 = vpack.c.b16 %v1854, %v1851
    %v1885 = vpack.c.b16 %v1855, %v1852
    %v1886 = vpack.c.b16 %v1859, %v1856
    %v1887 = vpack.c.b16 %v1860, %v1857
    %v1888 = vpack.c.b16 %v1861, %v1858
    %v1889 = vpack.c.b16 %v1865, %v1862
    %v1890 = vpack.c.b16 %v1866, %v1863
    %v1891 = vpack.c.b16 %v1867, %v1864
    %1916 = vmatpush.bf16.msra.mxu0 %v1889
    %1917 = vmatpush.bf16.msra.mxu0 %v1886
    %1918 = vmatpush.bf16.msra.mxu0 %v1883
    %1919 = vmatpush.bf16.msra.mxu0 %v1880
    %1920 = vmatpush.bf16.msra.mxu0 %v1877
    %1921 = vmatpush.bf16.msra.mxu0 %v1874
    %1922 = vmatpush.bf16.msra.mxu0 %v1871
    %1923 = vmatpush.bf16.msra.mxu0 %v1868
    %1924 = vmatmul.bf16.gmra.mxu0 %v1755
    %v1925 = vpop.f32.mrf.mxu0
    %v1926 = vadd.f32 0.0, %v1925
    %v1927 = vpop.f32.mrf.mxu0
    %1928 = vdwg.mxu0
    %1929 = vmatpush.bf16.msra.mxu0 %v1890
    %1930 = vmatpush.bf16.msra.mxu0 %v1887
    %1931 = vmatpush.bf16.msra.mxu0 %v1884
    %1932 = vmatpush.bf16.msra.mxu0 %v1881
    %1933 = vmatpush.bf16.msra.mxu0 %v1878
    %1934 = vmatpush.bf16.msra.mxu0 %v1875
    %1935 = vmatpush.bf16.msra.mxu0 %v1872
    %1936 = vmatpush.bf16.msra.mxu0 %v1869
    %1937 = vmatmul.bf16.gmra.mxu0 %v1755
    %v1938 = vpop.f32.mrf.mxu0
    %v1939 = vadd.f32 0.0, %v1938
    %v1940 = vpop.f32.mrf.mxu0
    %1941 = vdwg.mxu0
    %1942 = vmatpush.bf16.msra.mxu0 %v1891
    %1943 = vmatpush.bf16.msra.mxu0 %v1888
    %1944 = vmatpush.bf16.msra.mxu0 %v1885
    %1945 = vmatpush.bf16.msra.mxu0 %v1882
    %1946 = vmatpush.bf16.msra.mxu0 %v1879
    %1947 = vmatpush.bf16.msra.mxu0 %v1876
    %1948 = vmatpush.bf16.msra.mxu0 %v1873
    %1949 = vmatpush.bf16.msra.mxu0 %v1870
    %1950 = vmatmul.bf16.gmra.mxu0 %v1755
    %v1951 = vpop.f32.mrf.mxu0
    %v1952 = vadd.f32 0.0, %v1951
    %v1953 = vpop.f32.mrf.mxu0
    %1954 = vdwg.mxu0
    %v1955 = vadd.f32 %v1752, %v1926
    %v1956 = vxor.u32 %v1955, 2147483648
    %v1957 = vmul.f32 %v1956, 1.442695
    %v1958 = vpow.pop %v1957
    %v1959 = vadd.f32 %v1958, 1.0
    %v1960 = vrcp.pop %v1959
    %v1961 = vmul.f32 %v1959, %v1960
    %v1962 = vsub.f32 1.0, %v1961
    %v1963 = vmul.f32 %v1960, %v1962
    %v1964 = vadd.f32 %v1960, %v1963
    %vm1965 = vweird.f32 %v1959
    %vm1966 = vweird.f32 %v1960
    %vm1967 = vmor %vm1965, %vm1966
    %v1968 = vsel %vm1967, %v1960, %v1964
    %v1969 = vand.u32 2147483647, %v1959
    %vm1970 = vcmp.eq.f32.partialorder %v1969, 8.507059e+37
    %v1971 = vand.u32 %v1959, 2147483648
    %v1972 = vor.u32 1.1754944e-38, %v1971
    %v1973 = vsel %vm1970, %v1972, %v1968
    %v1974 = vmul.f32 1.0, %v1973
    %v1975 = vadd.f32 %v1753, %v1939
    %v1976 = vxor.u32 %v1975, 2147483648
    %v1977 = vmul.f32 %v1976, 1.442695
    %v1978 = vpow.pop %v1977
    %v1979 = vadd.f32 %v1978, 1.0
    %v1980 = vrcp.pop %v1979
    %v1981 = vmul.f32 %v1979, %v1980
    %v1982 = vsub.f32 1.0, %v1981
    %v1983 = vmul.f32 %v1980, %v1982
    %v1984 = vadd.f32 %v1980, %v1983
    %vm1985 = vweird.f32 %v1979
    %vm1986 = vweird.f32 %v1980
    %vm1987 = vmor %vm1985, %vm1986
    %v1988 = vsel %vm1987, %v1980, %v1984
    %v1989 = vand.u32 2147483647, %v1979
    %vm1990 = vcmp.eq.f32.partialorder %v1989, 8.507059e+37
    %v1991 = vand.u32 %v1979, 2147483648
    %v1992 = vor.u32 1.1754944e-38, %v1991
    %v1993 = vsel %vm1990, %v1992, %v1988
    %v1994 = vmul.f32 1.0, %v1993
    %v1995 = vld [vmem:[%s4] sm:$0x1]
    %v1997 = vperm.slane %v1995, 0
    %v1999 = vadd.f32 %v1952, %v1997
    %v2000 = vmul.f32 %v1974, %v1999
    %v2001 = vadd.f32 %v1754, %v2000
    %v2002 = vtanh.pop %v2001
    %v2003 = vsub.f32 %v1746, %v2002
    %v2004 = vmul.f32 %v1994, %v2003
    %v2005 = vadd.f32 %v2002, %v2004
    %s2006 = scalar_lea.vmem %s13, 40
    %2007 = vst [vmem:[%s2006] sm:$0xff] %v2005
    %s2008 = smul.u32 6, 3
    %s2009 = smul.addr %s2008, 8
    %s2010 = scalar_lea.vmem [#allocation2], %s2009
    %v2011 = vld [vmem:[%s2010] sm:$0xff]
    %v2012 = vld [vmem:[%s2010 + $0x8] sm:$0xff]
    %v2013 = vld [vmem:[%s2010 + $0x10] sm:$0xff]
    %v2014 = vpack.c.bf16 %v2005, %v2005
    %v2015 = vld [vmem:[#allocation5] sm:$0xff]
    %v2016 = vld [vmem:[#allocation5 + $0x8] sm:$0xf]
    %v2017 = vld [vmem:[#allocation5 + $0xc] sm:$0xff]
    %v2018 = vld [vmem:[#allocation5 + $0x14] sm:$0xf]
    %v2019 = vld [vmem:[#allocation5 + $0x18] sm:$0xff]
    %v2020 = vld [vmem:[#allocation5 + $0x20] sm:$0xf]
    %v2021 = vld [vmem:[#allocation5 + $0x24] sm:$0xff]
    %v2022 = vld [vmem:[#allocation5 + $0x2c] sm:$0xf]
    %v2023 = vld [vmem:[#allocation5 + $0x30] sm:$0xff]
    %v2024 = vld [vmem:[#allocation5 + $0x38] sm:$0xf]
    %v2025 = vld [vmem:[#allocation5 + $0x3c] sm:$0xff]
    %v2026 = vld [vmem:[#allocation5 + $0x44] sm:$0xf]
    %v2027 = vld [vmem:[#allocation5 + $0x48] sm:$0xff]
    %v2028 = vld [vmem:[#allocation5 + $0x50] sm:$0xf]
    %v2029 = vld [vmem:[#allocation5 + $0x54] sm:$0xff]
    %v2030 = vld [vmem:[#allocation5 + $0x5c] sm:$0xf]
    %v2031 = vld [vmem:[#allocation5 + $0x60] sm:$0xff]
    %v2032 = vld [vmem:[#allocation5 + $0x68] sm:$0xf]
    %v2033 = vld [vmem:[#allocation5 + $0x6c] sm:$0xff]
    %v2034 = vld [vmem:[#allocation5 + $0x74] sm:$0xf]
    %v2035 = vld [vmem:[#allocation5 + $0x78] sm:$0xff]
    %v2036 = vld [vmem:[#allocation5 + $0x80] sm:$0xf]
    %v2037 = vld [vmem:[#allocation5 + $0x84] sm:$0xff]
    %v2038 = vld [vmem:[#allocation5 + $0x8c] sm:$0xf]
    %v2039 = vld [vmem:[#allocation5 + $0x90] sm:$0xff]
    %v2040 = vld [vmem:[#allocation5 + $0x98] sm:$0xf]
    %v2041 = vld [vmem:[#allocation5 + $0x9c] sm:$0xff]
    %v2042 = vld [vmem:[#allocation5 + $0xa4] sm:$0xf]
    %v2043 = vld [vmem:[#allocation5 + $0xa8] sm:$0xff]
    %v2044 = vld [vmem:[#allocation5 + $0xb0] sm:$0xf]
    %v2045 = vld [vmem:[#allocation5 + $0xb4] sm:$0xff]
    %v2046 = vld [vmem:[#allocation5 + $0xbc] sm:$0xf]
    %v2079 = vunpack.c.l.b16 %v2015
    %v2080 = vunpack.c.h.b16 %v2015
    %v2081 = vunpack.c.l.b16 %v2016
    %v2082 = vunpack.c.l.b16 %v2017
    %v2083 = vunpack.c.h.b16 %v2017
    %v2084 = vunpack.c.l.b16 %v2018
    %v2085 = vunpack.c.l.b16 %v2019
    %v2086 = vunpack.c.h.b16 %v2019
    %v2087 = vunpack.c.l.b16 %v2020
    %v2088 = vunpack.c.l.b16 %v2021
    %v2089 = vunpack.c.h.b16 %v2021
    %v2090 = vunpack.c.l.b16 %v2022
    %v2091 = vunpack.c.l.b16 %v2023
    %v2092 = vunpack.c.h.b16 %v2023
    %v2093 = vunpack.c.l.b16 %v2024
    %v2094 = vunpack.c.l.b16 %v2025
    %v2095 = vunpack.c.h.b16 %v2025
    %v2096 = vunpack.c.l.b16 %v2026
    %v2097 = vunpack.c.l.b16 %v2027
    %v2098 = vunpack.c.h.b16 %v2027
    %v2099 = vunpack.c.l.b16 %v2028
    %v2100 = vunpack.c.l.b16 %v2029
    %v2101 = vunpack.c.h.b16 %v2029
    %v2102 = vunpack.c.l.b16 %v2030
    %v2103 = vunpack.c.l.b16 %v2031
    %v2104 = vunpack.c.h.b16 %v2031
    %v2105 = vunpack.c.l.b16 %v2032
    %v2106 = vunpack.c.l.b16 %v2033
    %v2107 = vunpack.c.h.b16 %v2033
    %v2108 = vunpack.c.l.b16 %v2034
    %v2109 = vunpack.c.l.b16 %v2035
    %v2110 = vunpack.c.h.b16 %v2035
    %v2111 = vunpack.c.l.b16 %v2036
    %v2112 = vunpack.c.l.b16 %v2037
    %v2113 = vunpack.c.h.b16 %v2037
    %v2114 = vunpack.c.l.b16 %v2038
    %v2115 = vunpack.c.l.b16 %v2039
    %v2116 = vunpack.c.h.b16 %v2039
    %v2117 = vunpack.c.l.b16 %v2040
    %v2118 = vunpack.c.l.b16 %v2041
    %v2119 = vunpack.c.h.b16 %v2041
    %v2120 = vunpack.c.l.b16 %v2042
    %v2121 = vunpack.c.l.b16 %v2043
    %v2122 = vunpack.c.h.b16 %v2043
    %v2123 = vunpack.c.l.b16 %v2044
    %v2124 = vunpack.c.l.b16 %v2045
    %v2125 = vunpack.c.h.b16 %v2045
    %v2126 = vunpack.c.l.b16 %v2046
    %v2127 = vpack.c.b16 %v2082, %v2079
    %v2128 = vpack.c.b16 %v2083, %v2080
    %v2129 = vpack.c.b16 %v2084, %v2081
    %v2130 = vpack.c.b16 %v2088, %v2085
    %v2131 = vpack.c.b16 %v2089, %v2086
    %v2132 = vpack.c.b16 %v2090, %v2087
    %v2133 = vpack.c.b16 %v2094, %v2091
    %v2134 = vpack.c.b16 %v2095, %v2092
    %v2135 = vpack.c.b16 %v2096, %v2093
    %v2136 = vpack.c.b16 %v2100, %v2097
    %v2137 = vpack.c.b16 %v2101, %v2098
    %v2138 = vpack.c.b16 %v2102, %v2099
    %v2139 = vpack.c.b16 %v2106, %v2103
    %v2140 = vpack.c.b16 %v2107, %v2104
    %v2141 = vpack.c.b16 %v2108, %v2105
    %v2142 = vpack.c.b16 %v2112, %v2109
    %v2143 = vpack.c.b16 %v2113, %v2110
    %v2144 = vpack.c.b16 %v2114, %v2111
    %v2145 = vpack.c.b16 %v2118, %v2115
    %v2146 = vpack.c.b16 %v2119, %v2116
    %v2147 = vpack.c.b16 %v2120, %v2117
    %v2148 = vpack.c.b16 %v2124, %v2121
    %v2149 = vpack.c.b16 %v2125, %v2122
    %v2150 = vpack.c.b16 %v2126, %v2123
    %2175 = vmatpush.bf16.msra.mxu0 %v2148
    %2176 = vmatpush.bf16.msra.mxu0 %v2145
    %2177 = vmatpush.bf16.msra.mxu0 %v2142
    %2178 = vmatpush.bf16.msra.mxu0 %v2139
    %2179 = vmatpush.bf16.msra.mxu0 %v2136
    %2180 = vmatpush.bf16.msra.mxu0 %v2133
    %2181 = vmatpush.bf16.msra.mxu0 %v2130
    %2182 = vmatpush.bf16.msra.mxu0 %v2127
    %2183 = vmatmul.bf16.gmra.mxu0 %v2014
    %v2184 = vpop.f32.mrf.mxu0
    %v2185 = vadd.f32 0.0, %v2184
    %v2186 = vpop.f32.mrf.mxu0
    %2187 = vdwg.mxu0
    %2188 = vmatpush.bf16.msra.mxu0 %v2149
    %2189 = vmatpush.bf16.msra.mxu0 %v2146
    %2190 = vmatpush.bf16.msra.mxu0 %v2143
    %2191 = vmatpush.bf16.msra.mxu0 %v2140
    %2192 = vmatpush.bf16.msra.mxu0 %v2137
    %2193 = vmatpush.bf16.msra.mxu0 %v2134
    %2194 = vmatpush.bf16.msra.mxu0 %v2131
    %2195 = vmatpush.bf16.msra.mxu0 %v2128
    %2196 = vmatmul.bf16.gmra.mxu0 %v2014
    %v2197 = vpop.f32.mrf.mxu0
    %v2198 = vadd.f32 0.0, %v2197
    %v2199 = vpop.f32.mrf.mxu0
    %2200 = vdwg.mxu0
    %2201 = vmatpush.bf16.msra.mxu0 %v2150
    %2202 = vmatpush.bf16.msra.mxu0 %v2147
    %2203 = vmatpush.bf16.msra.mxu0 %v2144
    %2204 = vmatpush.bf16.msra.mxu0 %v2141
    %2205 = vmatpush.bf16.msra.mxu0 %v2138
    %2206 = vmatpush.bf16.msra.mxu0 %v2135
    %2207 = vmatpush.bf16.msra.mxu0 %v2132
    %2208 = vmatpush.bf16.msra.mxu0 %v2129
    %2209 = vmatmul.bf16.gmra.mxu0 %v2014
    %v2210 = vpop.f32.mrf.mxu0
    %v2211 = vadd.f32 0.0, %v2210
    %v2212 = vpop.f32.mrf.mxu0
    %2213 = vdwg.mxu0
    %v2214 = vadd.f32 %v2011, %v2185
    %v2215 = vxor.u32 %v2214, 2147483648
    %v2216 = vmul.f32 %v2215, 1.442695
    %v2217 = vpow.pop %v2216
    %v2218 = vadd.f32 %v2217, 1.0
    %v2219 = vrcp.pop %v2218
    %v2220 = vmul.f32 %v2218, %v2219
    %v2221 = vsub.f32 1.0, %v2220
    %v2222 = vmul.f32 %v2219, %v2221
    %v2223 = vadd.f32 %v2219, %v2222
    %vm2224 = vweird.f32 %v2218
    %vm2225 = vweird.f32 %v2219
    %vm2226 = vmor %vm2224, %vm2225
    %v2227 = vsel %vm2226, %v2219, %v2223
    %v2228 = vand.u32 2147483647, %v2218
    %vm2229 = vcmp.eq.f32.partialorder %v2228, 8.507059e+37
    %v2230 = vand.u32 %v2218, 2147483648
    %v2231 = vor.u32 1.1754944e-38, %v2230
    %v2232 = vsel %vm2229, %v2231, %v2227
    %v2233 = vmul.f32 1.0, %v2232
    %v2234 = vadd.f32 %v2012, %v2198
    %v2235 = vxor.u32 %v2234, 2147483648
    %v2236 = vmul.f32 %v2235, 1.442695
    %v2237 = vpow.pop %v2236
    %v2238 = vadd.f32 %v2237, 1.0
    %v2239 = vrcp.pop %v2238
    %v2240 = vmul.f32 %v2238, %v2239
    %v2241 = vsub.f32 1.0, %v2240
    %v2242 = vmul.f32 %v2239, %v2241
    %v2243 = vadd.f32 %v2239, %v2242
    %vm2244 = vweird.f32 %v2238
    %vm2245 = vweird.f32 %v2239
    %vm2246 = vmor %vm2244, %vm2245
    %v2247 = vsel %vm2246, %v2239, %v2243
    %v2248 = vand.u32 2147483647, %v2238
    %vm2249 = vcmp.eq.f32.partialorder %v2248, 8.507059e+37
    %v2250 = vand.u32 %v2238, 2147483648
    %v2251 = vor.u32 1.1754944e-38, %v2250
    %v2252 = vsel %vm2249, %v2251, %v2247
    %v2253 = vmul.f32 1.0, %v2252
    %v2254 = vld [vmem:[%s4] sm:$0x1]
    %v2256 = vperm.slane %v2254, 0
    %v2258 = vadd.f32 %v2211, %v2256
    %v2259 = vmul.f32 %v2233, %v2258
    %v2260 = vadd.f32 %v2013, %v2259
    %v2261 = vtanh.pop %v2260
    %v2262 = vsub.f32 %v2005, %v2261
    %v2263 = vmul.f32 %v2253, %v2262
    %v2264 = vadd.f32 %v2261, %v2263
    %s2265 = scalar_lea.vmem %s13, 48
    %2266 = vst [vmem:[%s2265] sm:$0xff] %v2264
    %s2267 = smul.u32 7, 3
    %s2268 = smul.addr %s2267, 8
    %s2269 = scalar_lea.vmem [#allocation2], %s2268
    %v2270 = vld [vmem:[%s2269] sm:$0xff]
    %v2271 = vld [vmem:[%s2269 + $0x8] sm:$0xff]
    %v2272 = vld [vmem:[%s2269 + $0x10] sm:$0xff]
    %v2273 = vpack.c.bf16 %v2264, %v2264
    %v2274 = vld [vmem:[#allocation5] sm:$0xff]
    %v2275 = vld [vmem:[#allocation5 + $0x8] sm:$0xf]
    %v2276 = vld [vmem:[#allocation5 + $0xc] sm:$0xff]
    %v2277 = vld [vmem:[#allocation5 + $0x14] sm:$0xf]
    %v2278 = vld [vmem:[#allocation5 + $0x18] sm:$0xff]
    %v2279 = vld [vmem:[#allocation5 + $0x20] sm:$0xf]
    %v2280 = vld [vmem:[#allocation5 + $0x24] sm:$0xff]
    %v2281 = vld [vmem:[#allocation5 + $0x2c] sm:$0xf]
    %v2282 = vld [vmem:[#allocation5 + $0x30] sm:$0xff]
    %v2283 = vld [vmem:[#allocation5 + $0x38] sm:$0xf]
    %v2284 = vld [vmem:[#allocation5 + $0x3c] sm:$0xff]
    %v2285 = vld [vmem:[#allocation5 + $0x44] sm:$0xf]
    %v2286 = vld [vmem:[#allocation5 + $0x48] sm:$0xff]
    %v2287 = vld [vmem:[#allocation5 + $0x50] sm:$0xf]
    %v2288 = vld [vmem:[#allocation5 + $0x54] sm:$0xff]
    %v2289 = vld [vmem:[#allocation5 + $0x5c] sm:$0xf]
    %v2290 = vld [vmem:[#allocation5 + $0x60] sm:$0xff]
    %v2291 = vld [vmem:[#allocation5 + $0x68] sm:$0xf]
    %v2292 = vld [vmem:[#allocation5 + $0x6c] sm:$0xff]
    %v2293 = vld [vmem:[#allocation5 + $0x74] sm:$0xf]
    %v2294 = vld [vmem:[#allocation5 + $0x78] sm:$0xff]
    %v2295 = vld [vmem:[#allocation5 + $0x80] sm:$0xf]
    %v2296 = vld [vmem:[#allocation5 + $0x84] sm:$0xff]
    %v2297 = vld [vmem:[#allocation5 + $0x8c] sm:$0xf]
    %v2298 = vld [vmem:[#allocation5 + $0x90] sm:$0xff]
    %v2299 = vld [vmem:[#allocation5 + $0x98] sm:$0xf]
    %v2300 = vld [vmem:[#allocation5 + $0x9c] sm:$0xff]
    %v2301 = vld [vmem:[#allocation5 + $0xa4] sm:$0xf]
    %v2302 = vld [vmem:[#allocation5 + $0xa8] sm:$0xff]
    %v2303 = vld [vmem:[#allocation5 + $0xb0] sm:$0xf]
    %v2304 = vld [vmem:[#allocation5 + $0xb4] sm:$0xff]
    %v2305 = vld [vmem:[#allocation5 + $0xbc] sm:$0xf]
    %v2338 = vunpack.c.l.b16 %v2274
    %v2339 = vunpack.c.h.b16 %v2274
    %v2340 = vunpack.c.l.b16 %v2275
    %v2341 = vunpack.c.l.b16 %v2276
    %v2342 = vunpack.c.h.b16 %v2276
    %v2343 = vunpack.c.l.b16 %v2277
    %v2344 = vunpack.c.l.b16 %v2278
    %v2345 = vunpack.c.h.b16 %v2278
    %v2346 = vunpack.c.l.b16 %v2279
    %v2347 = vunpack.c.l.b16 %v2280
    %v2348 = vunpack.c.h.b16 %v2280
    %v2349 = vunpack.c.l.b16 %v2281
    %v2350 = vunpack.c.l.b16 %v2282
    %v2351 = vunpack.c.h.b16 %v2282
    %v2352 = vunpack.c.l.b16 %v2283
    %v2353 = vunpack.c.l.b16 %v2284
    %v2354 = vunpack.c.h.b16 %v2284
    %v2355 = vunpack.c.l.b16 %v2285
    %v2356 = vunpack.c.l.b16 %v2286
    %v2357 = vunpack.c.h.b16 %v2286
    %v2358 = vunpack.c.l.b16 %v2287
    %v2359 = vunpack.c.l.b16 %v2288
    %v2360 = vunpack.c.h.b16 %v2288
    %v2361 = vunpack.c.l.b16 %v2289
    %v2362 = vunpack.c.l.b16 %v2290
    %v2363 = vunpack.c.h.b16 %v2290
    %v2364 = vunpack.c.l.b16 %v2291
    %v2365 = vunpack.c.l.b16 %v2292
    %v2366 = vunpack.c.h.b16 %v2292
    %v2367 = vunpack.c.l.b16 %v2293
    %v2368 = vunpack.c.l.b16 %v2294
    %v2369 = vunpack.c.h.b16 %v2294
    %v2370 = vunpack.c.l.b16 %v2295
    %v2371 = vunpack.c.l.b16 %v2296
    %v2372 = vunpack.c.h.b16 %v2296
    %v2373 = vunpack.c.l.b16 %v2297
    %v2374 = vunpack.c.l.b16 %v2298
    %v2375 = vunpack.c.h.b16 %v2298
    %v2376 = vunpack.c.l.b16 %v2299
    %v2377 = vunpack.c.l.b16 %v2300
    %v2378 = vunpack.c.h.b16 %v2300
    %v2379 = vunpack.c.l.b16 %v2301
    %v2380 = vunpack.c.l.b16 %v2302
    %v2381 = vunpack.c.h.b16 %v2302
    %v2382 = vunpack.c.l.b16 %v2303
    %v2383 = vunpack.c.l.b16 %v2304
    %v2384 = vunpack.c.h.b16 %v2304
    %v2385 = vunpack.c.l.b16 %v2305
    %v2386 = vpack.c.b16 %v2341, %v2338
    %v2387 = vpack.c.b16 %v2342, %v2339
    %v2388 = vpack.c.b16 %v2343, %v2340
    %v2389 = vpack.c.b16 %v2347, %v2344
    %v2390 = vpack.c.b16 %v2348, %v2345
    %v2391 = vpack.c.b16 %v2349, %v2346
    %v2392 = vpack.c.b16 %v2353, %v2350
    %v2393 = vpack.c.b16 %v2354, %v2351
    %v2394 = vpack.c.b16 %v2355, %v2352
    %v2395 = vpack.c.b16 %v2359, %v2356
    %v2396 = vpack.c.b16 %v2360, %v2357
    %v2397 = vpack.c.b16 %v2361, %v2358
    %v2398 = vpack.c.b16 %v2365, %v2362
    %v2399 = vpack.c.b16 %v2366, %v2363
    %v2400 = vpack.c.b16 %v2367, %v2364
    %v2401 = vpack.c.b16 %v2371, %v2368
    %v2402 = vpack.c.b16 %v2372, %v2369
    %v2403 = vpack.c.b16 %v2373, %v2370
    %v2404 = vpack.c.b16 %v2377, %v2374
    %v2405 = vpack.c.b16 %v2378, %v2375
    %v2406 = vpack.c.b16 %v2379, %v2376
    %v2407 = vpack.c.b16 %v2383, %v2380
    %v2408 = vpack.c.b16 %v2384, %v2381
    %v2409 = vpack.c.b16 %v2385, %v2382
    %2434 = vmatpush.bf16.msra.mxu0 %v2407
    %2435 = vmatpush.bf16.msra.mxu0 %v2404
    %2436 = vmatpush.bf16.msra.mxu0 %v2401
    %2437 = vmatpush.bf16.msra.mxu0 %v2398
    %2438 = vmatpush.bf16.msra.mxu0 %v2395
    %2439 = vmatpush.bf16.msra.mxu0 %v2392
    %2440 = vmatpush.bf16.msra.mxu0 %v2389
    %2441 = vmatpush.bf16.msra.mxu0 %v2386
    %2442 = vmatmul.bf16.gmra.mxu0 %v2273
    %v2443 = vpop.f32.mrf.mxu0
    %v2444 = vadd.f32 0.0, %v2443
    %v2445 = vpop.f32.mrf.mxu0
    %2446 = vdwg.mxu0
    %2447 = vmatpush.bf16.msra.mxu0 %v2408
    %2448 = vmatpush.bf16.msra.mxu0 %v2405
    %2449 = vmatpush.bf16.msra.mxu0 %v2402
    %2450 = vmatpush.bf16.msra.mxu0 %v2399
    %2451 = vmatpush.bf16.msra.mxu0 %v2396
    %2452 = vmatpush.bf16.msra.mxu0 %v2393
    %2453 = vmatpush.bf16.msra.mxu0 %v2390
    %2454 = vmatpush.bf16.msra.mxu0 %v2387
    %2455 = vmatmul.bf16.gmra.mxu0 %v2273
    %v2456 = vpop.f32.mrf.mxu0
    %v2457 = vadd.f32 0.0, %v2456
    %v2458 = vpop.f32.mrf.mxu0
    %2459 = vdwg.mxu0
    %2460 = vmatpush.bf16.msra.mxu0 %v2409
    %2461 = vmatpush.bf16.msra.mxu0 %v2406
    %2462 = vmatpush.bf16.msra.mxu0 %v2403
    %2463 = vmatpush.bf16.msra.mxu0 %v2400
    %2464 = vmatpush.bf16.msra.mxu0 %v2397
    %2465 = vmatpush.bf16.msra.mxu0 %v2394
    %2466 = vmatpush.bf16.msra.mxu0 %v2391
    %2467 = vmatpush.bf16.msra.mxu0 %v2388
    %2468 = vmatmul.bf16.gmra.mxu0 %v2273
    %v2469 = vpop.f32.mrf.mxu0
    %v2470 = vadd.f32 0.0, %v2469
    %v2471 = vpop.f32.mrf.mxu0
    %2472 = vdwg.mxu0
    %v2473 = vadd.f32 %v2270, %v2444
    %v2474 = vxor.u32 %v2473, 2147483648
    %v2475 = vmul.f32 %v2474, 1.442695
    %v2476 = vpow.pop %v2475
    %v2477 = vadd.f32 %v2476, 1.0
    %v2478 = vrcp.pop %v2477
    %v2479 = vmul.f32 %v2477, %v2478
    %v2480 = vsub.f32 1.0, %v2479
    %v2481 = vmul.f32 %v2478, %v2480
    %v2482 = vadd.f32 %v2478, %v2481
    %vm2483 = vweird.f32 %v2477
    %vm2484 = vweird.f32 %v2478
    %vm2485 = vmor %vm2483, %vm2484
    %v2486 = vsel %vm2485, %v2478, %v2482
    %v2487 = vand.u32 2147483647, %v2477
    %vm2488 = vcmp.eq.f32.partialorder %v2487, 8.507059e+37
    %v2489 = vand.u32 %v2477, 2147483648
    %v2490 = vor.u32 1.1754944e-38, %v2489
    %v2491 = vsel %vm2488, %v2490, %v2486
    %v2492 = vmul.f32 1.0, %v2491
    %v2493 = vadd.f32 %v2271, %v2457
    %v2494 = vxor.u32 %v2493, 2147483648
    %v2495 = vmul.f32 %v2494, 1.442695
    %v2496 = vpow.pop %v2495
    %v2497 = vadd.f32 %v2496, 1.0
    %v2498 = vrcp.pop %v2497
    %v2499 = vmul.f32 %v2497, %v2498
    %v2500 = vsub.f32 1.0, %v2499
    %v2501 = vmul.f32 %v2498, %v2500
    %v2502 = vadd.f32 %v2498, %v2501
    %vm2503 = vweird.f32 %v2497
    %vm2504 = vweird.f32 %v2498
    %vm2505 = vmor %vm2503, %vm2504
    %v2506 = vsel %vm2505, %v2498, %v2502
    %v2507 = vand.u32 2147483647, %v2497
    %vm2508 = vcmp.eq.f32.partialorder %v2507, 8.507059e+37
    %v2509 = vand.u32 %v2497, 2147483648
    %v2510 = vor.u32 1.1754944e-38, %v2509
    %v2511 = vsel %vm2508, %v2510, %v2506
    %v2512 = vmul.f32 1.0, %v2511
    %v2513 = vld [vmem:[%s4] sm:$0x1]
    %v2515 = vperm.slane %v2513, 0
    %v2517 = vadd.f32 %v2470, %v2515
    %v2518 = vmul.f32 %v2492, %v2517
    %v2519 = vadd.f32 %v2272, %v2518
    %v2520 = vtanh.pop %v2519
    %v2521 = vsub.f32 %v2264, %v2520
    %v2522 = vmul.f32 %v2512, %v2521
    %v2523 = vadd.f32 %v2520, %v2522
    %s2524 = scalar_lea.vmem %s13, 56
    %2525 = vst [vmem:[%s2524] sm:$0xff] %v2523
    %s2526 = smul.u32 8, 3
    %s2527 = smul.addr %s2526, 8
    %s2528 = scalar_lea.vmem [#allocation2], %s2527
    %v2529 = vld [vmem:[%s2528] sm:$0xff]
    %v2530 = vld [vmem:[%s2528 + $0x8] sm:$0xff]
    %v2531 = vld [vmem:[%s2528 + $0x10] sm:$0xff]
    %v2532 = vpack.c.bf16 %v2523, %v2523
    %v2533 = vld [vmem:[#allocation5] sm:$0xff]
    %v2534 = vld [vmem:[#allocation5 + $0x8] sm:$0xf]
    %v2535 = vld [vmem:[#allocation5 + $0xc] sm:$0xff]
    %v2536 = vld [vmem:[#allocation5 + $0x14] sm:$0xf]
    %v2537 = vld [vmem:[#allocation5 + $0x18] sm:$0xff]
    %v2538 = vld [vmem:[#allocation5 + $0x20] sm:$0xf]
    %v2539 = vld [vmem:[#allocation5 + $0x24] sm:$0xff]
    %v2540 = vld [vmem:[#allocation5 + $0x2c] sm:$0xf]
    %v2541 = vld [vmem:[#allocation5 + $0x30] sm:$0xff]
    %v2542 = vld [vmem:[#allocation5 + $0x38] sm:$0xf]
    %v2543 = vld [vmem:[#allocation5 + $0x3c] sm:$0xff]
    %v2544 = vld [vmem:[#allocation5 + $0x44] sm:$0xf]
    %v2545 = vld [vmem:[#allocation5 + $0x48] sm:$0xff]
    %v2546 = vld [vmem:[#allocation5 + $0x50] sm:$0xf]
    %v2547 = vld [vmem:[#allocation5 + $0x54] sm:$0xff]
    %v2548 = vld [vmem:[#allocation5 + $0x5c] sm:$0xf]
    %v2549 = vld [vmem:[#allocation5 + $0x60] sm:$0xff]
    %v2550 = vld [vmem:[#allocation5 + $0x68] sm:$0xf]
    %v2551 = vld [vmem:[#allocation5 + $0x6c] sm:$0xff]
    %v2552 = vld [vmem:[#allocation5 + $0x74] sm:$0xf]
    %v2553 = vld [vmem:[#allocation5 + $0x78] sm:$0xff]
    %v2554 = vld [vmem:[#allocation5 + $0x80] sm:$0xf]
    %v2555 = vld [vmem:[#allocation5 + $0x84] sm:$0xff]
    %v2556 = vld [vmem:[#allocation5 + $0x8c] sm:$0xf]
    %v2557 = vld [vmem:[#allocation5 + $0x90] sm:$0xff]
    %v2558 = vld [vmem:[#allocation5 + $0x98] sm:$0xf]
    %v2559 = vld [vmem:[#allocation5 + $0x9c] sm:$0xff]
    %v2560 = vld [vmem:[#allocation5 + $0xa4] sm:$0xf]
    %v2561 = vld [vmem:[#allocation5 + $0xa8] sm:$0xff]
    %v2562 = vld [vmem:[#allocation5 + $0xb0] sm:$0xf]
    %v2563 = vld [vmem:[#allocation5 + $0xb4] sm:$0xff]
    %v2564 = vld [vmem:[#allocation5 + $0xbc] sm:$0xf]
    %v2597 = vunpack.c.l.b16 %v2533
    %v2598 = vunpack.c.h.b16 %v2533
    %v2599 = vunpack.c.l.b16 %v2534
    %v2600 = vunpack.c.l.b16 %v2535
    %v2601 = vunpack.c.h.b16 %v2535
    %v2602 = vunpack.c.l.b16 %v2536
    %v2603 = vunpack.c.l.b16 %v2537
    %v2604 = vunpack.c.h.b16 %v2537
    %v2605 = vunpack.c.l.b16 %v2538
    %v2606 = vunpack.c.l.b16 %v2539
    %v2607 = vunpack.c.h.b16 %v2539
    %v2608 = vunpack.c.l.b16 %v2540
    %v2609 = vunpack.c.l.b16 %v2541
    %v2610 = vunpack.c.h.b16 %v2541
    %v2611 = vunpack.c.l.b16 %v2542
    %v2612 = vunpack.c.l.b16 %v2543
    %v2613 = vunpack.c.h.b16 %v2543
    %v2614 = vunpack.c.l.b16 %v2544
    %v2615 = vunpack.c.l.b16 %v2545
    %v2616 = vunpack.c.h.b16 %v2545
    %v2617 = vunpack.c.l.b16 %v2546
    %v2618 = vunpack.c.l.b16 %v2547
    %v2619 = vunpack.c.h.b16 %v2547
    %v2620 = vunpack.c.l.b16 %v2548
    %v2621 = vunpack.c.l.b16 %v2549
    %v2622 = vunpack.c.h.b16 %v2549
    %v2623 = vunpack.c.l.b16 %v2550
    %v2624 = vunpack.c.l.b16 %v2551
    %v2625 = vunpack.c.h.b16 %v2551
    %v2626 = vunpack.c.l.b16 %v2552
    %v2627 = vunpack.c.l.b16 %v2553
    %v2628 = vunpack.c.h.b16 %v2553
    %v2629 = vunpack.c.l.b16 %v2554
    %v2630 = vunpack.c.l.b16 %v2555
    %v2631 = vunpack.c.h.b16 %v2555
    %v2632 = vunpack.c.l.b16 %v2556
    %v2633 = vunpack.c.l.b16 %v2557
    %v2634 = vunpack.c.h.b16 %v2557
    %v2635 = vunpack.c.l.b16 %v2558
    %v2636 = vunpack.c.l.b16 %v2559
    %v2637 = vunpack.c.h.b16 %v2559
    %v2638 = vunpack.c.l.b16 %v2560
    %v2639 = vunpack.c.l.b16 %v2561
    %v2640 = vunpack.c.h.b16 %v2561
    %v2641 = vunpack.c.l.b16 %v2562
    %v2642 = vunpack.c.l.b16 %v2563
    %v2643 = vunpack.c.h.b16 %v2563
    %v2644 = vunpack.c.l.b16 %v2564
    %v2645 = vpack.c.b16 %v2600, %v2597
    %v2646 = vpack.c.b16 %v2601, %v2598
    %v2647 = vpack.c.b16 %v2602, %v2599
    %v2648 = vpack.c.b16 %v2606, %v2603
    %v2649 = vpack.c.b16 %v2607, %v2604
    %v2650 = vpack.c.b16 %v2608, %v2605
    %v2651 = vpack.c.b16 %v2612, %v2609
    %v2652 = vpack.c.b16 %v2613, %v2610
    %v2653 = vpack.c.b16 %v2614, %v2611
    %v2654 = vpack.c.b16 %v2618, %v2615
    %v2655 = vpack.c.b16 %v2619, %v2616
    %v2656 = vpack.c.b16 %v2620, %v2617
    %v2657 = vpack.c.b16 %v2624, %v2621
    %v2658 = vpack.c.b16 %v2625, %v2622
    %v2659 = vpack.c.b16 %v2626, %v2623
    %v2660 = vpack.c.b16 %v2630, %v2627
    %v2661 = vpack.c.b16 %v2631, %v2628
    %v2662 = vpack.c.b16 %v2632, %v2629
    %v2663 = vpack.c.b16 %v2636, %v2633
    %v2664 = vpack.c.b16 %v2637, %v2634
    %v2665 = vpack.c.b16 %v2638, %v2635
    %v2666 = vpack.c.b16 %v2642, %v2639
    %v2667 = vpack.c.b16 %v2643, %v2640
    %v2668 = vpack.c.b16 %v2644, %v2641
    %2693 = vmatpush.bf16.msra.mxu0 %v2666
    %2694 = vmatpush.bf16.msra.mxu0 %v2663
    %2695 = vmatpush.bf16.msra.mxu0 %v2660
    %2696 = vmatpush.bf16.msra.mxu0 %v2657
    %2697 = vmatpush.bf16.msra.mxu0 %v2654
    %2698 = vmatpush.bf16.msra.mxu0 %v2651
    %2699 = vmatpush.bf16.msra.mxu0 %v2648
    %2700 = vmatpush.bf16.msra.mxu0 %v2645
    %2701 = vmatmul.bf16.gmra.mxu0 %v2532
    %v2702 = vpop.f32.mrf.mxu0
    %v2703 = vadd.f32 0.0, %v2702
    %v2704 = vpop.f32.mrf.mxu0
    %2705 = vdwg.mxu0
    %2706 = vmatpush.bf16.msra.mxu0 %v2667
    %2707 = vmatpush.bf16.msra.mxu0 %v2664
    %2708 = vmatpush.bf16.msra.mxu0 %v2661
    %2709 = vmatpush.bf16.msra.mxu0 %v2658
    %2710 = vmatpush.bf16.msra.mxu0 %v2655
    %2711 = vmatpush.bf16.msra.mxu0 %v2652
    %2712 = vmatpush.bf16.msra.mxu0 %v2649
    %2713 = vmatpush.bf16.msra.mxu0 %v2646
    %2714 = vmatmul.bf16.gmra.mxu0 %v2532
    %v2715 = vpop.f32.mrf.mxu0
    %v2716 = vadd.f32 0.0, %v2715
    %v2717 = vpop.f32.mrf.mxu0
    %2718 = vdwg.mxu0
    %2719 = vmatpush.bf16.msra.mxu0 %v2668
    %2720 = vmatpush.bf16.msra.mxu0 %v2665
    %2721 = vmatpush.bf16.msra.mxu0 %v2662
    %2722 = vmatpush.bf16.msra.mxu0 %v2659
    %2723 = vmatpush.bf16.msra.mxu0 %v2656
    %2724 = vmatpush.bf16.msra.mxu0 %v2653
    %2725 = vmatpush.bf16.msra.mxu0 %v2650
    %2726 = vmatpush.bf16.msra.mxu0 %v2647
    %2727 = vmatmul.bf16.gmra.mxu0 %v2532
    %v2728 = vpop.f32.mrf.mxu0
    %v2729 = vadd.f32 0.0, %v2728
    %v2730 = vpop.f32.mrf.mxu0
    %2731 = vdwg.mxu0
    %v2732 = vadd.f32 %v2529, %v2703
    %v2733 = vxor.u32 %v2732, 2147483648
    %v2734 = vmul.f32 %v2733, 1.442695
    %v2735 = vpow.pop %v2734
    %v2736 = vadd.f32 %v2735, 1.0
    %v2737 = vrcp.pop %v2736
    %v2738 = vmul.f32 %v2736, %v2737
    %v2739 = vsub.f32 1.0, %v2738
    %v2740 = vmul.f32 %v2737, %v2739
    %v2741 = vadd.f32 %v2737, %v2740
    %vm2742 = vweird.f32 %v2736
    %vm2743 = vweird.f32 %v2737
    %vm2744 = vmor %vm2742, %vm2743
    %v2745 = vsel %vm2744, %v2737, %v2741
    %v2746 = vand.u32 2147483647, %v2736
    %vm2747 = vcmp.eq.f32.partialorder %v2746, 8.507059e+37
    %v2748 = vand.u32 %v2736, 2147483648
    %v2749 = vor.u32 1.1754944e-38, %v2748
    %v2750 = vsel %vm2747, %v2749, %v2745
    %v2751 = vmul.f32 1.0, %v2750
    %v2752 = vadd.f32 %v2530, %v2716
    %v2753 = vxor.u32 %v2752, 2147483648
    %v2754 = vmul.f32 %v2753, 1.442695
    %v2755 = vpow.pop %v2754
    %v2756 = vadd.f32 %v2755, 1.0
    %v2757 = vrcp.pop %v2756
    %v2758 = vmul.f32 %v2756, %v2757
    %v2759 = vsub.f32 1.0, %v2758
    %v2760 = vmul.f32 %v2757, %v2759
    %v2761 = vadd.f32 %v2757, %v2760
    %vm2762 = vweird.f32 %v2756
    %vm2763 = vweird.f32 %v2757
    %vm2764 = vmor %vm2762, %vm2763
    %v2765 = vsel %vm2764, %v2757, %v2761
    %v2766 = vand.u32 2147483647, %v2756
    %vm2767 = vcmp.eq.f32.partialorder %v2766, 8.507059e+37
    %v2768 = vand.u32 %v2756, 2147483648
    %v2769 = vor.u32 1.1754944e-38, %v2768
    %v2770 = vsel %vm2767, %v2769, %v2765
    %v2771 = vmul.f32 1.0, %v2770
    %v2772 = vld [vmem:[%s4] sm:$0x1]
    %v2774 = vperm.slane %v2772, 0
    %v2776 = vadd.f32 %v2729, %v2774
    %v2777 = vmul.f32 %v2751, %v2776
    %v2778 = vadd.f32 %v2531, %v2777
    %v2779 = vtanh.pop %v2778
    %v2780 = vsub.f32 %v2523, %v2779
    %v2781 = vmul.f32 %v2771, %v2780
    %v2782 = vadd.f32 %v2779, %v2781
    %s2783 = scalar_lea.vmem %s13, 64
    %2784 = vst [vmem:[%s2783] sm:$0xff] %v2782
    %s2785 = smul.u32 9, 3
    %s2786 = smul.addr %s2785, 8
    %s2787 = scalar_lea.vmem [#allocation2], %s2786
    %v2788 = vld [vmem:[%s2787] sm:$0xff]
    %v2789 = vld [vmem:[%s2787 + $0x8] sm:$0xff]
    %v2790 = vld [vmem:[%s2787 + $0x10] sm:$0xff]
    %v2791 = vpack.c.bf16 %v2782, %v2782
    %v2792 = vld [vmem:[#allocation5] sm:$0xff]
    %v2793 = vld [vmem:[#allocation5 + $0x8] sm:$0xf]
    %v2794 = vld [vmem:[#allocation5 + $0xc] sm:$0xff]
    %v2795 = vld [vmem:[#allocation5 + $0x14] sm:$0xf]
    %v2796 = vld [vmem:[#allocation5 + $0x18] sm:$0xff]
    %v2797 = vld [vmem:[#allocation5 + $0x20] sm:$0xf]
    %v2798 = vld [vmem:[#allocation5 + $0x24] sm:$0xff]
    %v2799 = vld [vmem:[#allocation5 + $0x2c] sm:$0xf]
    %v2800 = vld [vmem:[#allocation5 + $0x30] sm:$0xff]
    %v2801 = vld [vmem:[#allocation5 + $0x38] sm:$0xf]
    %v2802 = vld [vmem:[#allocation5 + $0x3c] sm:$0xff]
    %v2803 = vld [vmem:[#allocation5 + $0x44] sm:$0xf]
    %v2804 = vld [vmem:[#allocation5 + $0x48] sm:$0xff]
    %v2805 = vld [vmem:[#allocation5 + $0x50] sm:$0xf]
    %v2806 = vld [vmem:[#allocation5 + $0x54] sm:$0xff]
    %v2807 = vld [vmem:[#allocation5 + $0x5c] sm:$0xf]
    %v2808 = vld [vmem:[#allocation5 + $0x60] sm:$0xff]
    %v2809 = vld [vmem:[#allocation5 + $0x68] sm:$0xf]
    %v2810 = vld [vmem:[#allocation5 + $0x6c] sm:$0xff]
    %v2811 = vld [vmem:[#allocation5 + $0x74] sm:$0xf]
    %v2812 = vld [vmem:[#allocation5 + $0x78] sm:$0xff]
    %v2813 = vld [vmem:[#allocation5 + $0x80] sm:$0xf]
    %v2814 = vld [vmem:[#allocation5 + $0x84] sm:$0xff]
    %v2815 = vld [vmem:[#allocation5 + $0x8c] sm:$0xf]
    %v2816 = vld [vmem:[#allocation5 + $0x90] sm:$0xff]
    %v2817 = vld [vmem:[#allocation5 + $0x98] sm:$0xf]
    %v2818 = vld [vmem:[#allocation5 + $0x9c] sm:$0xff]
    %v2819 = vld [vmem:[#allocation5 + $0xa4] sm:$0xf]
    %v2820 = vld [vmem:[#allocation5 + $0xa8] sm:$0xff]
    %v2821 = vld [vmem:[#allocation5 + $0xb0] sm:$0xf]
    %v2822 = vld [vmem:[#allocation5 + $0xb4] sm:$0xff]
    %v2823 = vld [vmem:[#allocation5 + $0xbc] sm:$0xf]
    %v2856 = vunpack.c.l.b16 %v2792
    %v2857 = vunpack.c.h.b16 %v2792
    %v2858 = vunpack.c.l.b16 %v2793
    %v2859 = vunpack.c.l.b16 %v2794
    %v2860 = vunpack.c.h.b16 %v2794
    %v2861 = vunpack.c.l.b16 %v2795
    %v2862 = vunpack.c.l.b16 %v2796
    %v2863 = vunpack.c.h.b16 %v2796
    %v2864 = vunpack.c.l.b16 %v2797
    %v2865 = vunpack.c.l.b16 %v2798
    %v2866 = vunpack.c.h.b16 %v2798
    %v2867 = vunpack.c.l.b16 %v2799
    %v2868 = vunpack.c.l.b16 %v2800
    %v2869 = vunpack.c.h.b16 %v2800
    %v2870 = vunpack.c.l.b16 %v2801
    %v2871 = vunpack.c.l.b16 %v2802
    %v2872 = vunpack.c.h.b16 %v2802
    %v2873 = vunpack.c.l.b16 %v2803
    %v2874 = vunpack.c.l.b16 %v2804
    %v2875 = vunpack.c.h.b16 %v2804
    %v2876 = vunpack.c.l.b16 %v2805
    %v2877 = vunpack.c.l.b16 %v2806
    %v2878 = vunpack.c.h.b16 %v2806
    %v2879 = vunpack.c.l.b16 %v2807
    %v2880 = vunpack.c.l.b16 %v2808
    %v2881 = vunpack.c.h.b16 %v2808
    %v2882 = vunpack.c.l.b16 %v2809
    %v2883 = vunpack.c.l.b16 %v2810
    %v2884 = vunpack.c.h.b16 %v2810
    %v2885 = vunpack.c.l.b16 %v2811
    %v2886 = vunpack.c.l.b16 %v2812
    %v2887 = vunpack.c.h.b16 %v2812
    %v2888 = vunpack.c.l.b16 %v2813
    %v2889 = vunpack.c.l.b16 %v2814
    %v2890 = vunpack.c.h.b16 %v2814
    %v2891 = vunpack.c.l.b16 %v2815
    %v2892 = vunpack.c.l.b16 %v2816
    %v2893 = vunpack.c.h.b16 %v2816
    %v2894 = vunpack.c.l.b16 %v2817
    %v2895 = vunpack.c.l.b16 %v2818
    %v2896 = vunpack.c.h.b16 %v2818
    %v2897 = vunpack.c.l.b16 %v2819
    %v2898 = vunpack.c.l.b16 %v2820
    %v2899 = vunpack.c.h.b16 %v2820
    %v2900 = vunpack.c.l.b16 %v2821
    %v2901 = vunpack.c.l.b16 %v2822
    %v2902 = vunpack.c.h.b16 %v2822
    %v2903 = vunpack.c.l.b16 %v2823
    %v2904 = vpack.c.b16 %v2859, %v2856
    %v2905 = vpack.c.b16 %v2860, %v2857
    %v2906 = vpack.c.b16 %v2861, %v2858
    %v2907 = vpack.c.b16 %v2865, %v2862
    %v2908 = vpack.c.b16 %v2866, %v2863
    %v2909 = vpack.c.b16 %v2867, %v2864
    %v2910 = vpack.c.b16 %v2871, %v2868
    %v2911 = vpack.c.b16 %v2872, %v2869
    %v2912 = vpack.c.b16 %v2873, %v2870
    %v2913 = vpack.c.b16 %v2877, %v2874
    %v2914 = vpack.c.b16 %v2878, %v2875
    %v2915 = vpack.c.b16 %v2879, %v2876
    %v2916 = vpack.c.b16 %v2883, %v2880
    %v2917 = vpack.c.b16 %v2884, %v2881
    %v2918 = vpack.c.b16 %v2885, %v2882
    %v2919 = vpack.c.b16 %v2889, %v2886
    %v2920 = vpack.c.b16 %v2890, %v2887
    %v2921 = vpack.c.b16 %v2891, %v2888
    %v2922 = vpack.c.b16 %v2895, %v2892
    %v2923 = vpack.c.b16 %v2896, %v2893
    %v2924 = vpack.c.b16 %v2897, %v2894
    %v2925 = vpack.c.b16 %v2901, %v2898
    %v2926 = vpack.c.b16 %v2902, %v2899
    %v2927 = vpack.c.b16 %v2903, %v2900
    %2952 = vmatpush.bf16.msra.mxu0 %v2925
    %2953 = vmatpush.bf16.msra.mxu0 %v2922
    %2954 = vmatpush.bf16.msra.mxu0 %v2919
    %2955 = vmatpush.bf16.msra.mxu0 %v2916
    %2956 = vmatpush.bf16.msra.mxu0 %v2913
    %2957 = vmatpush.bf16.msra.mxu0 %v2910
    %2958 = vmatpush.bf16.msra.mxu0 %v2907
    %2959 = vmatpush.bf16.msra.mxu0 %v2904
    %2960 = vmatmul.bf16.gmra.mxu0 %v2791
    %v2961 = vpop.f32.mrf.mxu0
    %v2962 = vadd.f32 0.0, %v2961
    %v2963 = vpop.f32.mrf.mxu0
    %2964 = vdwg.mxu0
    %2965 = vmatpush.bf16.msra.mxu0 %v2926
    %2966 = vmatpush.bf16.msra.mxu0 %v2923
    %2967 = vmatpush.bf16.msra.mxu0 %v2920
    %2968 = vmatpush.bf16.msra.mxu0 %v2917
    %2969 = vmatpush.bf16.msra.mxu0 %v2914
    %2970 = vmatpush.bf16.msra.mxu0 %v2911
    %2971 = vmatpush.bf16.msra.mxu0 %v2908
    %2972 = vmatpush.bf16.msra.mxu0 %v2905
    %2973 = vmatmul.bf16.gmra.mxu0 %v2791
    %v2974 = vpop.f32.mrf.mxu0
    %v2975 = vadd.f32 0.0, %v2974
    %v2976 = vpop.f32.mrf.mxu0
    %2977 = vdwg.mxu0
    %2978 = vmatpush.bf16.msra.mxu0 %v2927
    %2979 = vmatpush.bf16.msra.mxu0 %v2924
    %2980 = vmatpush.bf16.msra.mxu0 %v2921
    %2981 = vmatpush.bf16.msra.mxu0 %v2918
    %2982 = vmatpush.bf16.msra.mxu0 %v2915
    %2983 = vmatpush.bf16.msra.mxu0 %v2912
    %2984 = vmatpush.bf16.msra.mxu0 %v2909
    %2985 = vmatpush.bf16.msra.mxu0 %v2906
    %2986 = vmatmul.bf16.gmra.mxu0 %v2791
    %v2987 = vpop.f32.mrf.mxu0
    %v2988 = vadd.f32 0.0, %v2987
    %v2989 = vpop.f32.mrf.mxu0
    %2990 = vdwg.mxu0
    %v2991 = vadd.f32 %v2788, %v2962
    %v2992 = vxor.u32 %v2991, 2147483648
    %v2993 = vmul.f32 %v2992, 1.442695
    %v2994 = vpow.pop %v2993
    %v2995 = vadd.f32 %v2994, 1.0
    %v2996 = vrcp.pop %v2995
    %v2997 = vmul.f32 %v2995, %v2996
    %v2998 = vsub.f32 1.0, %v2997
    %v2999 = vmul.f32 %v2996, %v2998
    %v3000 = vadd.f32 %v2996, %v2999
    %vm3001 = vweird.f32 %v2995
    %vm3002 = vweird.f32 %v2996
    %vm3003 = vmor %vm3001, %vm3002
    %v3004 = vsel %vm3003, %v2996, %v3000
    %v3005 = vand.u32 2147483647, %v2995
    %vm3006 = vcmp.eq.f32.partialorder %v3005, 8.507059e+37
    %v3007 = vand.u32 %v2995, 2147483648
    %v3008 = vor.u32 1.1754944e-38, %v3007
    %v3009 = vsel %vm3006, %v3008, %v3004
    %v3010 = vmul.f32 1.0, %v3009
    %v3011 = vadd.f32 %v2789, %v2975
    %v3012 = vxor.u32 %v3011, 2147483648
    %v3013 = vmul.f32 %v3012, 1.442695
    %v3014 = vpow.pop %v3013
    %v3015 = vadd.f32 %v3014, 1.0
    %v3016 = vrcp.pop %v3015
    %v3017 = vmul.f32 %v3015, %v3016
    %v3018 = vsub.f32 1.0, %v3017
    %v3019 = vmul.f32 %v3016, %v3018
    %v3020 = vadd.f32 %v3016, %v3019
    %vm3021 = vweird.f32 %v3015
    %vm3022 = vweird.f32 %v3016
    %vm3023 = vmor %vm3021, %vm3022
    %v3024 = vsel %vm3023, %v3016, %v3020
    %v3025 = vand.u32 2147483647, %v3015
    %vm3026 = vcmp.eq.f32.partialorder %v3025, 8.507059e+37
    %v3027 = vand.u32 %v3015, 2147483648
    %v3028 = vor.u32 1.1754944e-38, %v3027
    %v3029 = vsel %vm3026, %v3028, %v3024
    %v3030 = vmul.f32 1.0, %v3029
    %v3031 = vld [vmem:[%s4] sm:$0x1]
    %v3033 = vperm.slane %v3031, 0
    %v3035 = vadd.f32 %v2988, %v3033
    %v3036 = vmul.f32 %v3010, %v3035
    %v3037 = vadd.f32 %v2790, %v3036
    %v3038 = vtanh.pop %v3037
    %v3039 = vsub.f32 %v2782, %v3038
    %v3040 = vmul.f32 %v3030, %v3039
    %v3041 = vadd.f32 %v3038, %v3040
    %s3042 = scalar_lea.vmem %s13, 72
    %3043 = vst [vmem:[%s3042] sm:$0xff] %v3041
    %v3044 = vld [vmem:[%s13 + $0x48] sm:$0xff]
    %3045 = vst [vmem:[%s14] sm:$0xff] %v3044
    %v3046 = vld [vmem:[%s13] sm:$0xff]
    %v3047 = vld [vmem:[%s13 + $0x8] sm:$0xff]
    %v3048 = vld [vmem:[%s13 + $0x10] sm:$0xff]
    %v3049 = vld [vmem:[%s13 + $0x18] sm:$0xff]
    %v3050 = vld [vmem:[%s13 + $0x20] sm:$0xff]
    %v3051 = vld [vmem:[%s13 + $0x28] sm:$0xff]
    %v3052 = vld [vmem:[%s13 + $0x30] sm:$0xff]
    %v3053 = vld [vmem:[%s13 + $0x38] sm:$0xff]
    %v3054 = vld [vmem:[%s13 + $0x40] sm:$0xff]
    %v3055 = vld [vmem:[%s13 + $0x48] sm:$0xff]
    %v3056 = vpack.c.bf16 %v3047, %v3046
    %v3057 = vpack.c.bf16 %v3049, %v3048
    %v3058 = vpack.c.bf16 %v3051, %v3050
    %v3059 = vpack.c.bf16 %v3053, %v3052
    %v3060 = vpack.c.bf16 %v3055, %v3054
    %v3061 = vld [vmem:[#allocation7] sm:$0xff]
    %v3062 = vld [vmem:[#allocation7 + $0x8] sm:$0xf]
    %v3063 = vld [vmem:[#allocation7 + $0xc] sm:$0xff]
    %v3064 = vld [vmem:[#allocation7 + $0x14] sm:$0xf]
    %v3065 = vld [vmem:[#allocation7 + $0x18] sm:$0xff]
    %v3066 = vld [vmem:[#allocation7 + $0x20] sm:$0xf]
    %v3067 = vld [vmem:[#allocation7 + $0x24] sm:$0xff]
    %v3068 = vld [vmem:[#allocation7 + $0x2c] sm:$0xf]
    %v3069 = vld [vmem:[#allocation7 + $0x30] sm:$0xff]
    %v3070 = vld [vmem:[#allocation7 + $0x38] sm:$0xf]
    %v3071 = vld [vmem:[#allocation7 + $0x3c] sm:$0xff]
    %v3072 = vld [vmem:[#allocation7 + $0x44] sm:$0xf]
    %v3073 = vld [vmem:[#allocation7 + $0x48] sm:$0xff]
    %v3074 = vld [vmem:[#allocation7 + $0x50] sm:$0xf]
    %v3075 = vld [vmem:[#allocation7 + $0x54] sm:$0xff]
    %v3076 = vld [vmem:[#allocation7 + $0x5c] sm:$0xf]
    %v3077 = vld [vmem:[#allocation7 + $0x60] sm:$0xff]
    %v3078 = vld [vmem:[#allocation7 + $0x68] sm:$0xf]
    %v3079 = vld [vmem:[#allocation7 + $0x6c] sm:$0xff]
    %v3080 = vld [vmem:[#allocation7 + $0x74] sm:$0xf]
    %v3081 = vld [vmem:[#allocation7 + $0x78] sm:$0xff]
    %v3082 = vld [vmem:[#allocation7 + $0x80] sm:$0xf]
    %v3083 = vld [vmem:[#allocation7 + $0x84] sm:$0xff]
    %v3084 = vld [vmem:[#allocation7 + $0x8c] sm:$0xf]
    %v3085 = vld [vmem:[#allocation7 + $0x90] sm:$0xff]
    %v3086 = vld [vmem:[#allocation7 + $0x98] sm:$0xf]
    %v3087 = vld [vmem:[#allocation7 + $0x9c] sm:$0xff]
    %v3088 = vld [vmem:[#allocation7 + $0xa4] sm:$0xf]
    %v3089 = vld [vmem:[#allocation7 + $0xa8] sm:$0xff]
    %v3090 = vld [vmem:[#allocation7 + $0xb0] sm:$0xf]
    %v3091 = vld [vmem:[#allocation7 + $0xb4] sm:$0xff]
    %v3092 = vld [vmem:[#allocation7 + $0xbc] sm:$0xf]
    %v3093 = vld [vmem:[%s7] sm:$0x7]
    %v3095 = vperm.slane %v3093, 0
    %v3096 = vperm.slane %v3093, 1
    %v3097 = vperm.slane %v3093, 2
    %v3133 = vunpack.c.l.b16 %v3061
    %v3134 = vunpack.c.h.b16 %v3061
    %v3135 = vunpack.c.l.b16 %v3062
    %v3136 = vunpack.c.l.b16 %v3063
    %v3137 = vunpack.c.h.b16 %v3063
    %v3138 = vunpack.c.l.b16 %v3064
    %v3139 = vunpack.c.l.b16 %v3065
    %v3140 = vunpack.c.h.b16 %v3065
    %v3141 = vunpack.c.l.b16 %v3066
    %v3142 = vunpack.c.l.b16 %v3067
    %v3143 = vunpack.c.h.b16 %v3067
    %v3144 = vunpack.c.l.b16 %v3068
    %v3145 = vunpack.c.l.b16 %v3069
    %v3146 = vunpack.c.h.b16 %v3069
    %v3147 = vunpack.c.l.b16 %v3070
    %v3148 = vunpack.c.l.b16 %v3071
    %v3149 = vunpack.c.h.b16 %v3071
    %v3150 = vunpack.c.l.b16 %v3072
    %v3151 = vunpack.c.l.b16 %v3073
    %v3152 = vunpack.c.h.b16 %v3073
    %v3153 = vunpack.c.l.b16 %v3074
    %v3154 = vunpack.c.l.b16 %v3075
    %v3155 = vunpack.c.h.b16 %v3075
    %v3156 = vunpack.c.l.b16 %v3076
    %v3157 = vunpack.c.l.b16 %v3077
    %v3158 = vunpack.c.h.b16 %v3077
    %v3159 = vunpack.c.l.b16 %v3078
    %v3160 = vunpack.c.l.b16 %v3079
    %v3161 = vunpack.c.h.b16 %v3079
    %v3162 = vunpack.c.l.b16 %v3080
    %v3163 = vunpack.c.l.b16 %v3081
    %v3164 = vunpack.c.h.b16 %v3081
    %v3165 = vunpack.c.l.b16 %v3082
    %v3166 = vunpack.c.l.b16 %v3083
    %v3167 = vunpack.c.h.b16 %v3083
    %v3168 = vunpack.c.l.b16 %v3084
    %v3169 = vunpack.c.l.b16 %v3085
    %v3170 = vunpack.c.h.b16 %v3085
    %v3171 = vunpack.c.l.b16 %v3086
    %v3172 = vunpack.c.l.b16 %v3087
    %v3173 = vunpack.c.h.b16 %v3087
    %v3174 = vunpack.c.l.b16 %v3088
    %v3175 = vunpack.c.l.b16 %v3089
    %v3176 = vunpack.c.h.b16 %v3089
    %v3177 = vunpack.c.l.b16 %v3090
    %v3178 = vunpack.c.l.b16 %v3091
    %v3179 = vunpack.c.h.b16 %v3091
    %v3180 = vunpack.c.l.b16 %v3092
    %v3181 = vpack.c.b16 %v3136, %v3133
    %v3182 = vpack.c.b16 %v3137, %v3134
    %v3183 = vpack.c.b16 %v3138, %v3135
    %v3184 = vpack.c.b16 %v3142, %v3139
    %v3185 = vpack.c.b16 %v3143, %v3140
    %v3186 = vpack.c.b16 %v3144, %v3141
    %v3187 = vpack.c.b16 %v3148, %v3145
    %v3188 = vpack.c.b16 %v3149, %v3146
    %v3189 = vpack.c.b16 %v3150, %v3147
    %v3190 = vpack.c.b16 %v3154, %v3151
    %v3191 = vpack.c.b16 %v3155, %v3152
    %v3192 = vpack.c.b16 %v3156, %v3153
    %v3193 = vpack.c.b16 %v3160, %v3157
    %v3194 = vpack.c.b16 %v3161, %v3158
    %v3195 = vpack.c.b16 %v3162, %v3159
    %v3196 = vpack.c.b16 %v3166, %v3163
    %v3197 = vpack.c.b16 %v3167, %v3164
    %v3198 = vpack.c.b16 %v3168, %v3165
    %v3199 = vpack.c.b16 %v3172, %v3169
    %v3200 = vpack.c.b16 %v3173, %v3170
    %v3201 = vpack.c.b16 %v3174, %v3171
    %v3202 = vpack.c.b16 %v3178, %v3175
    %v3203 = vpack.c.b16 %v3179, %v3176
    %v3204 = vpack.c.b16 %v3180, %v3177
    %3229 = vmatpush.bf16.msra.mxu0 %v3202
    %3230 = vmatpush.bf16.msra.mxu0 %v3199
    %3231 = vmatpush.bf16.msra.mxu0 %v3196
    %3232 = vmatpush.bf16.msra.mxu0 %v3193
    %3233 = vmatpush.bf16.msra.mxu0 %v3190
    %3234 = vmatpush.bf16.msra.mxu0 %v3187
    %3235 = vmatpush.bf16.msra.mxu0 %v3184
    %3236 = vmatpush.bf16.msra.mxu0 %v3181
    %3237 = vmatmul.bf16.gmra.mxu0 %v3056
    %v3238 = vpop.f32.mrf.mxu0
    %v3239 = vadd.f32 %v3095, %v3238
    %v3240 = vpop.f32.mrf.mxu0
    %v3241 = vadd.f32 %v3095, %v3240
    %3242 = vmatmul.bf16.gmra.mxu0 %v3057
    %v3243 = vpop.f32.mrf.mxu0
    %v3244 = vadd.f32 %v3095, %v3243
    %v3245 = vpop.f32.mrf.mxu0
    %v3246 = vadd.f32 %v3095, %v3245
    %3247 = vmatmul.bf16.gmra.mxu0 %v3058
    %v3248 = vpop.f32.mrf.mxu0
    %v3249 = vadd.f32 %v3095, %v3248
    %v3250 = vpop.f32.mrf.mxu0
    %v3251 = vadd.f32 %v3095, %v3250
    %3252 = vmatmul.bf16.gmra.mxu0 %v3059
    %v3253 = vpop.f32.mrf.mxu0
    %v3254 = vadd.f32 %v3095, %v3253
    %v3255 = vpop.f32.mrf.mxu0
    %v3256 = vadd.f32 %v3095, %v3255
    %3257 = vmatmul.bf16.gmra.mxu0 %v3060
    %v3258 = vpop.f32.mrf.mxu0
    %v3259 = vadd.f32 %v3095, %v3258
    %v3260 = vpop.f32.mrf.mxu0
    %v3261 = vadd.f32 %v3095, %v3260
    %3262 = vdwg.mxu0
    %3263 = vmatpush.bf16.msra.mxu0 %v3203
    %3264 = vmatpush.bf16.msra.mxu0 %v3200
    %3265 = vmatpush.bf16.msra.mxu0 %v3197
    %3266 = vmatpush.bf16.msra.mxu0 %v3194
    %3267 = vmatpush.bf16.msra.mxu0 %v3191
    %3268 = vmatpush.bf16.msra.mxu0 %v3188
    %3269 = vmatpush.bf16.msra.mxu0 %v3185
    %3270 = vmatpush.bf16.msra.mxu0 %v3182
    %3271 = vmatmul.bf16.gmra.mxu0 %v3056
    %v3272 = vpop.f32.mrf.mxu0
    %v3273 = vadd.f32 %v3096, %v3272
    %v3274 = vpop.f32.mrf.mxu0
    %v3275 = vadd.f32 %v3096, %v3274
    %3276 = vmatmul.bf16.gmra.mxu0 %v3057
    %v3277 = vpop.f32.mrf.mxu0
    %v3278 = vadd.f32 %v3096, %v3277
    %v3279 = vpop.f32.mrf.mxu0
    %v3280 = vadd.f32 %v3096, %v3279
    %3281 = vmatmul.bf16.gmra.mxu0 %v3058
    %v3282 = vpop.f32.mrf.mxu0
    %v3283 = vadd.f32 %v3096, %v3282
    %v3284 = vpop.f32.mrf.mxu0
    %v3285 = vadd.f32 %v3096, %v3284
    %3286 = vmatmul.bf16.gmra.mxu0 %v3059
    %v3287 = vpop.f32.mrf.mxu0
    %v3288 = vadd.f32 %v3096, %v3287
    %v3289 = vpop.f32.mrf.mxu0
    %v3290 = vadd.f32 %v3096, %v3289
    %3291 = vmatmul.bf16.gmra.mxu0 %v3060
    %v3292 = vpop.f32.mrf.mxu0
    %v3293 = vadd.f32 %v3096, %v3292
    %v3294 = vpop.f32.mrf.mxu0
    %v3295 = vadd.f32 %v3096, %v3294
    %3296 = vdwg.mxu0
    %3297 = vmatpush.bf16.msra.mxu0 %v3204
    %3298 = vmatpush.bf16.msra.mxu0 %v3201
    %3299 = vmatpush.bf16.msra.mxu0 %v3198
    %3300 = vmatpush.bf16.msra.mxu0 %v3195
    %3301 = vmatpush.bf16.msra.mxu0 %v3192
    %3302 = vmatpush.bf16.msra.mxu0 %v3189
    %3303 = vmatpush.bf16.msra.mxu0 %v3186
    %3304 = vmatpush.bf16.msra.mxu0 %v3183
    %3305 = vmatmul.bf16.gmra.mxu0 %v3056
    %v3306 = vpop.f32.mrf.mxu0
    %v3307 = vadd.f32 %v3097, %v3306
    %v3308 = vpop.f32.mrf.mxu0
    %v3309 = vadd.f32 %v3097, %v3308
    %3310 = vmatmul.bf16.gmra.mxu0 %v3057
    %v3311 = vpop.f32.mrf.mxu0
    %v3312 = vadd.f32 %v3097, %v3311
    %v3313 = vpop.f32.mrf.mxu0
    %v3314 = vadd.f32 %v3097, %v3313
    %3315 = vmatmul.bf16.gmra.mxu0 %v3058
    %v3316 = vpop.f32.mrf.mxu0
    %v3317 = vadd.f32 %v3097, %v3316
    %v3318 = vpop.f32.mrf.mxu0
    %v3319 = vadd.f32 %v3097, %v3318
    %3320 = vmatmul.bf16.gmra.mxu0 %v3059
    %v3321 = vpop.f32.mrf.mxu0
    %v3322 = vadd.f32 %v3097, %v3321
    %v3323 = vpop.f32.mrf.mxu0
    %v3324 = vadd.f32 %v3097, %v3323
    %3325 = vmatmul.bf16.gmra.mxu0 %v3060
    %v3326 = vpop.f32.mrf.mxu0
    %v3327 = vadd.f32 %v3097, %v3326
    %v3328 = vpop.f32.mrf.mxu0
    %v3329 = vadd.f32 %v3097, %v3328
    %3330 = vdwg.mxu0
    %3331 = vst [vmem:[#allocation2] sm:$0xff] %v3239
    %3332 = vst [vmem:[#allocation2 + $0x8] sm:$0xff] %v3273
    %3333 = vst [vmem:[#allocation2 + $0x10] sm:$0xff] %v3307
    %3334 = vst [vmem:[#allocation2 + $0x18] sm:$0xff] %v3241
    %3335 = vst [vmem:[#allocation2 + $0x20] sm:$0xff] %v3275
    %3336 = vst [vmem:[#allocation2 + $0x28] sm:$0xff] %v3309
    %3337 = vst [vmem:[#allocation2 + $0x30] sm:$0xff] %v3244
    %3338 = vst [vmem:[#allocation2 + $0x38] sm:$0xff] %v3278
    %3339 = vst [vmem:[#allocation2 + $0x40] sm:$0xff] %v3312
    %3340 = vst [vmem:[#allocation2 + $0x48] sm:$0xff] %v3246
    %3341 = vst [vmem:[#allocation2 + $0x50] sm:$0xff] %v3280
    %3342 = vst [vmem:[#allocation2 + $0x58] sm:$0xff] %v3314
    %3343 = vst [vmem:[#allocation2 + $0x60] sm:$0xff] %v3249
    %3344 = vst [vmem:[#allocation2 + $0x68] sm:$0xff] %v3283
    %3345 = vst [vmem:[#allocation2 + $0x70] sm:$0xff] %v3317
    %3346 = vst [vmem:[#allocation2 + $0x78] sm:$0xff] %v3251
    %3347 = vst [vmem:[#allocation2 + $0x80] sm:$0xff] %v3285
    %3348 = vst [vmem:[#allocation2 + $0x88] sm:$0xff] %v3319
    %3349 = vst [vmem:[#allocation2 + $0x90] sm:$0xff] %v3254
    %3350 = vst [vmem:[#allocation2 + $0x98] sm:$0xff] %v3288
    %3351 = vst [vmem:[#allocation2 + $0xa0] sm:$0xff] %v3322
    %3352 = vst [vmem:[#allocation2 + $0xa8] sm:$0xff] %v3256
    %3353 = vst [vmem:[#allocation2 + $0xb0] sm:$0xff] %v3290
    %3354 = vst [vmem:[#allocation2 + $0xb8] sm:$0xff] %v3324
    %3355 = vst [vmem:[#allocation2 + $0xc0] sm:$0xff] %v3259
    %3356 = vst [vmem:[#allocation2 + $0xc8] sm:$0xff] %v3293
    %3357 = vst [vmem:[#allocation2 + $0xd0] sm:$0xff] %v3327
    %3358 = vst [vmem:[#allocation2 + $0xd8] sm:$0xff] %v3261
    %3359 = vst [vmem:[#allocation2 + $0xe0] sm:$0xff] %v3295
    %3360 = vst [vmem:[#allocation2 + $0xe8] sm:$0xff] %v3329
    %s3361 = smul.u32 0, 3
    %s3362 = smul.addr %s3361, 8
    %s3363 = scalar_lea.vmem [#allocation2], %s3362
    %v3364 = vld [vmem:[%s3363] sm:$0xff]
    %v3365 = vld [vmem:[%s3363 + $0x8] sm:$0xff]
    %v3366 = vld [vmem:[%s3363 + $0x10] sm:$0xff]
    %v3367 = vld [vmem:[%s3363 + $0x18] sm:$0xff]
    %v3368 = vld [vmem:[%s3363 + $0x20] sm:$0xff]
    %v3369 = vld [vmem:[%s3363 + $0x28] sm:$0xff]
    %v3370 = vld [vmem:[#allocation8] sm:$0xff]
    %v3371 = vld [vmem:[#allocation8 + $0x8] sm:$0xf]
    %v3372 = vld [vmem:[#allocation8 + $0xc] sm:$0xff]
    %v3373 = vld [vmem:[#allocation8 + $0x14] sm:$0xf]
    %v3374 = vld [vmem:[#allocation8 + $0x18] sm:$0xff]
    %v3375 = vld [vmem:[#allocation8 + $0x20] sm:$0xf]
    %v3376 = vld [vmem:[#allocation8 + $0x24] sm:$0xff]
    %v3377 = vld [vmem:[#allocation8 + $0x2c] sm:$0xf]
    %v3378 = vld [vmem:[#allocation8 + $0x30] sm:$0xff]
    %v3379 = vld [vmem:[#allocation8 + $0x38] sm:$0xf]
    %v3380 = vld [vmem:[#allocation8 + $0x3c] sm:$0xff]
    %v3381 = vld [vmem:[#allocation8 + $0x44] sm:$0xf]
    %v3382 = vld [vmem:[#allocation8 + $0x48] sm:$0xff]
    %v3383 = vld [vmem:[#allocation8 + $0x50] sm:$0xf]
    %v3384 = vld [vmem:[#allocation8 + $0x54] sm:$0xff]
    %v3385 = vld [vmem:[#allocation8 + $0x5c] sm:$0xf]
    %v3386 = vld [vmem:[#allocation8 + $0x60] sm:$0xff]
    %v3387 = vld [vmem:[#allocation8 + $0x68] sm:$0xf]
    %v3388 = vld [vmem:[#allocation8 + $0x6c] sm:$0xff]
    %v3389 = vld [vmem:[#allocation8 + $0x74] sm:$0xf]
    %v3390 = vld [vmem:[#allocation8 + $0x78] sm:$0xff]
    %v3391 = vld [vmem:[#allocation8 + $0x80] sm:$0xf]
    %v3392 = vld [vmem:[#allocation8 + $0x84] sm:$0xff]
    %v3393 = vld [vmem:[#allocation8 + $0x8c] sm:$0xf]
    %v3394 = vld [vmem:[#allocation8 + $0x90] sm:$0xff]
    %v3395 = vld [vmem:[#allocation8 + $0x98] sm:$0xf]
    %v3396 = vld [vmem:[#allocation8 + $0x9c] sm:$0xff]
    %v3397 = vld [vmem:[#allocation8 + $0xa4] sm:$0xf]
    %v3398 = vld [vmem:[#allocation8 + $0xa8] sm:$0xff]
    %v3399 = vld [vmem:[#allocation8 + $0xb0] sm:$0xf]
    %v3400 = vld [vmem:[#allocation8 + $0xb4] sm:$0xff]
    %v3401 = vld [vmem:[#allocation8 + $0xbc] sm:$0xf]
    %v3434 = vunpack.c.l.b16 %v3370
    %v3435 = vunpack.c.h.b16 %v3370
    %v3436 = vunpack.c.l.b16 %v3371
    %v3437 = vunpack.c.l.b16 %v3372
    %v3438 = vunpack.c.h.b16 %v3372
    %v3439 = vunpack.c.l.b16 %v3373
    %v3440 = vunpack.c.l.b16 %v3374
    %v3441 = vunpack.c.h.b16 %v3374
    %v3442 = vunpack.c.l.b16 %v3375
    %v3443 = vunpack.c.l.b16 %v3376
    %v3444 = vunpack.c.h.b16 %v3376
    %v3445 = vunpack.c.l.b16 %v3377
    %v3446 = vunpack.c.l.b16 %v3378
    %v3447 = vunpack.c.h.b16 %v3378
    %v3448 = vunpack.c.l.b16 %v3379
    %v3449 = vunpack.c.l.b16 %v3380
    %v3450 = vunpack.c.h.b16 %v3380
    %v3451 = vunpack.c.l.b16 %v3381
    %v3452 = vunpack.c.l.b16 %v3382
    %v3453 = vunpack.c.h.b16 %v3382
    %v3454 = vunpack.c.l.b16 %v3383
    %v3455 = vunpack.c.l.b16 %v3384
    %v3456 = vunpack.c.h.b16 %v3384
    %v3457 = vunpack.c.l.b16 %v3385
    %v3458 = vunpack.c.l.b16 %v3386
    %v3459 = vunpack.c.h.b16 %v3386
    %v3460 = vunpack.c.l.b16 %v3387
    %v3461 = vunpack.c.l.b16 %v3388
    %v3462 = vunpack.c.h.b16 %v3388
    %v3463 = vunpack.c.l.b16 %v3389
    %v3464 = vunpack.c.l.b16 %v3390
    %v3465 = vunpack.c.h.b16 %v3390
    %v3466 = vunpack.c.l.b16 %v3391
    %v3467 = vunpack.c.l.b16 %v3392
    %v3468 = vunpack.c.h.b16 %v3392
    %v3469 = vunpack.c.l.b16 %v3393
    %v3470 = vunpack.c.l.b16 %v3394
    %v3471 = vunpack.c.h.b16 %v3394
    %v3472 = vunpack.c.l.b16 %v3395
    %v3473 = vunpack.c.l.b16 %v3396
    %v3474 = vunpack.c.h.b16 %v3396
    %v3475 = vunpack.c.l.b16 %v3397
    %v3476 = vunpack.c.l.b16 %v3398
    %v3477 = vunpack.c.h.b16 %v3398
    %v3478 = vunpack.c.l.b16 %v3399
    %v3479 = vunpack.c.l.b16 %v3400
    %v3480 = vunpack.c.h.b16 %v3400
    %v3481 = vunpack.c.l.b16 %v3401
    %v3482 = vpack.c.b16 %v3437, %v3434
    %v3483 = vpack.c.b16 %v3438, %v3435
    %v3484 = vpack.c.b16 %v3439, %v3436
    %v3485 = vpack.c.b16 %v3443, %v3440
    %v3486 = vpack.c.b16 %v3444, %v3441
    %v3487 = vpack.c.b16 %v3445, %v3442
    %v3488 = vpack.c.b16 %v3449, %v3446
    %v3489 = vpack.c.b16 %v3450, %v3447
    %v3490 = vpack.c.b16 %v3451, %v3448
    %v3491 = vpack.c.b16 %v3455, %v3452
    %v3492 = vpack.c.b16 %v3456, %v3453
    %v3493 = vpack.c.b16 %v3457, %v3454
    %v3494 = vpack.c.b16 %v3461, %v3458
    %v3495 = vpack.c.b16 %v3462, %v3459
    %v3496 = vpack.c.b16 %v3463, %v3460
    %v3497 = vpack.c.b16 %v3467, %v3464
    %v3498 = vpack.c.b16 %v3468, %v3465
    %v3499 = vpack.c.b16 %v3469, %v3466
    %v3500 = vpack.c.b16 %v3473, %v3470
    %v3501 = vpack.c.b16 %v3474, %v3471
    %v3502 = vpack.c.b16 %v3475, %v3472
    %v3503 = vpack.c.b16 %v3479, %v3476
    %v3504 = vpack.c.b16 %v3480, %v3477
    %v3505 = vpack.c.b16 %v3481, %v3478
    %3530 = vmatpush.bf16.msra.mxu0 %v3503
    %3531 = vmatpush.bf16.msra.mxu0 %v3500
    %3532 = vmatpush.bf16.msra.mxu0 %v3497
    %3533 = vmatpush.bf16.msra.mxu0 %v3494
    %3534 = vmatpush.bf16.msra.mxu0 %v3491
    %3535 = vmatpush.bf16.msra.mxu0 %v3488
    %3536 = vmatpush.bf16.msra.mxu0 %v3485
    %3537 = vmatpush.bf16.msra.mxu0 %v3482
    %3538 = vmatmul.bf16.gmra.mxu0 0
    %v3539 = vpop.f32.mrf.mxu0
    %v3540 = vadd.f32 0.0, %v3539
    %v3541 = vpop.f32.mrf.mxu0
    %v3542 = vadd.f32 0.0, %v3541
    %3543 = vdwg.mxu0
    %3544 = vmatpush.bf16.msra.mxu0 %v3504
    %3545 = vmatpush.bf16.msra.mxu0 %v3501
    %3546 = vmatpush.bf16.msra.mxu0 %v3498
    %3547 = vmatpush.bf16.msra.mxu0 %v3495
    %3548 = vmatpush.bf16.msra.mxu0 %v3492
    %3549 = vmatpush.bf16.msra.mxu0 %v3489
    %3550 = vmatpush.bf16.msra.mxu0 %v3486
    %3551 = vmatpush.bf16.msra.mxu0 %v3483
    %3552 = vmatmul.bf16.gmra.mxu0 0
    %v3553 = vpop.f32.mrf.mxu0
    %v3554 = vadd.f32 0.0, %v3553
    %v3555 = vpop.f32.mrf.mxu0
    %v3556 = vadd.f32 0.0, %v3555
    %3557 = vdwg.mxu0
    %3558 = vmatpush.bf16.msra.mxu0 %v3505
    %3559 = vmatpush.bf16.msra.mxu0 %v3502
    %3560 = vmatpush.bf16.msra.mxu0 %v3499
    %3561 = vmatpush.bf16.msra.mxu0 %v3496
    %3562 = vmatpush.bf16.msra.mxu0 %v3493
    %3563 = vmatpush.bf16.msra.mxu0 %v3490
    %3564 = vmatpush.bf16.msra.mxu0 %v3487
    %3565 = vmatpush.bf16.msra.mxu0 %v3484
    %3566 = vmatmul.bf16.gmra.mxu0 0
    %v3567 = vpop.f32.mrf.mxu0
    %v3568 = vadd.f32 0.0, %v3567
    %v3569 = vpop.f32.mrf.mxu0
    %v3570 = vadd.f32 0.0, %v3569
    %3571 = vdwg.mxu0
    %v3572 = vadd.f32 %v3364, %v3540
    %v3573 = vadd.f32 %v3367, %v3542
    %v3574 = vxor.u32 %v3572, 2147483648
    %v3575 = vxor.u32 %v3573, 2147483648
    %v3576 = vmul.f32 %v3574, 1.442695
    %v3577 = vpow.pop %v3576
    %v3578 = vmul.f32 %v3575, 1.442695
    %v3579 = vpow.pop %v3578
    %v3580 = vadd.f32 %v3577, 1.0
    %v3581 = vadd.f32 %v3579, 1.0
    %v3582 = vrcp.pop %v3580
    %v3583 = vmul.f32 %v3580, %v3582
    %v3584 = vsub.f32 1.0, %v3583
    %v3585 = vmul.f32 %v3582, %v3584
    %v3586 = vadd.f32 %v3582, %v3585
    %vm3587 = vweird.f32 %v3580
    %vm3588 = vweird.f32 %v3582
    %vm3589 = vmor %vm3587, %vm3588
    %v3590 = vsel %vm3589, %v3582, %v3586
    %v3591 = vand.u32 2147483647, %v3580
    %vm3592 = vcmp.eq.f32.partialorder %v3591, 8.507059e+37
    %v3593 = vand.u32 %v3580, 2147483648
    %v3594 = vor.u32 1.1754944e-38, %v3593
    %v3595 = vsel %vm3592, %v3594, %v3590
    %v3596 = vmul.f32 1.0, %v3595
    %v3597 = vrcp.pop %v3581
    %v3598 = vmul.f32 %v3581, %v3597
    %v3599 = vsub.f32 1.0, %v3598
    %v3600 = vmul.f32 %v3597, %v3599
    %v3601 = vadd.f32 %v3597, %v3600
    %vm3602 = vweird.f32 %v3581
    %vm3603 = vweird.f32 %v3597
    %vm3604 = vmor %vm3602, %vm3603
    %v3605 = vsel %vm3604, %v3597, %v3601
    %v3606 = vand.u32 2147483647, %v3581
    %vm3607 = vcmp.eq.f32.partialorder %v3606, 8.507059e+37
    %v3608 = vand.u32 %v3581, 2147483648
    %v3609 = vor.u32 1.1754944e-38, %v3608
    %v3610 = vsel %vm3607, %v3609, %v3605
    %v3611 = vmul.f32 1.0, %v3610
    %v3612 = vadd.f32 %v3365, %v3554
    %v3613 = vadd.f32 %v3368, %v3556
    %v3614 = vxor.u32 %v3612, 2147483648
    %v3615 = vxor.u32 %v3613, 2147483648
    %v3616 = vmul.f32 %v3614, 1.442695
    %v3617 = vpow.pop %v3616
    %v3618 = vmul.f32 %v3615, 1.442695
    %v3619 = vpow.pop %v3618
    %v3620 = vadd.f32 %v3617, 1.0
    %v3621 = vadd.f32 %v3619, 1.0
    %v3622 = vrcp.pop %v3620
    %v3623 = vmul.f32 %v3620, %v3622
    %v3624 = vsub.f32 1.0, %v3623
    %v3625 = vmul.f32 %v3622, %v3624
    %v3626 = vadd.f32 %v3622, %v3625
    %vm3627 = vweird.f32 %v3620
    %vm3628 = vweird.f32 %v3622
    %vm3629 = vmor %vm3627, %vm3628
    %v3630 = vsel %vm3629, %v3622, %v3626
    %v3631 = vand.u32 2147483647, %v3620
    %vm3632 = vcmp.eq.f32.partialorder %v3631, 8.507059e+37
    %v3633 = vand.u32 %v3620, 2147483648
    %v3634 = vor.u32 1.1754944e-38, %v3633
    %v3635 = vsel %vm3632, %v3634, %v3630
    %v3636 = vmul.f32 1.0, %v3635
    %v3637 = vrcp.pop %v3621
    %v3638 = vmul.f32 %v3621, %v3637
    %v3639 = vsub.f32 1.0, %v3638
    %v3640 = vmul.f32 %v3637, %v3639
    %v3641 = vadd.f32 %v3637, %v3640
    %vm3642 = vweird.f32 %v3621
    %vm3643 = vweird.f32 %v3637
    %vm3644 = vmor %vm3642, %vm3643
    %v3645 = vsel %vm3644, %v3637, %v3641
    %v3646 = vand.u32 2147483647, %v3621
    %vm3647 = vcmp.eq.f32.partialorder %v3646, 8.507059e+37
    %v3648 = vand.u32 %v3621, 2147483648
    %v3649 = vor.u32 1.1754944e-38, %v3648
    %v3650 = vsel %vm3647, %v3649, %v3645
    %v3651 = vmul.f32 1.0, %v3650
    %v3652 = vld [vmem:[%s8] sm:$0x1]
    %v3654 = vperm.slane %v3652, 0
    %v3656 = vadd.f32 %v3568, %v3654
    %v3657 = vadd.f32 %v3570, %v3654
    %v3658 = vmul.f32 %v3596, %v3656
    %v3659 = vmul.f32 %v3611, %v3657
    %v3660 = vadd.f32 %v3366, %v3658
    %v3661 = vadd.f32 %v3369, %v3659
    %v3662 = vtanh.pop %v3660
    %v3663 = vtanh.pop %v3661
    %v3664 = vsub.f32 0.0, %v3662
    %v3665 = vsub.f32 0.0, %v3663
    %v3666 = vmul.f32 %v3636, %v3664
    %v3667 = vmul.f32 %v3651, %v3665
    %v3668 = vadd.f32 %v3662, %v3666
    %v3669 = vadd.f32 %v3663, %v3667
    %3670 = vst [vmem:[%s13] sm:$0xff] %v3668
    %3671 = vst [vmem:[%s13 + $0x8] sm:$0xff] %v3669
    %s3672 = smul.u32 2, 3
    %s3673 = smul.addr %s3672, 8
    %s3674 = scalar_lea.vmem [#allocation2], %s3673
    %v3675 = vld [vmem:[%s3674] sm:$0xff]
    %v3676 = vld [vmem:[%s3674 + $0x8] sm:$0xff]
    %v3677 = vld [vmem:[%s3674 + $0x10] sm:$0xff]
    %v3678 = vld [vmem:[%s3674 + $0x18] sm:$0xff]
    %v3679 = vld [vmem:[%s3674 + $0x20] sm:$0xff]
    %v3680 = vld [vmem:[%s3674 + $0x28] sm:$0xff]
    %v3681 = vpack.c.bf16 %v3669, %v3668
    %v3682 = vld [vmem:[#allocation8] sm:$0xff]
    %v3683 = vld [vmem:[#allocation8 + $0x8] sm:$0xf]
    %v3684 = vld [vmem:[#allocation8 + $0xc] sm:$0xff]
    %v3685 = vld [vmem:[#allocation8 + $0x14] sm:$0xf]
    %v3686 = vld [vmem:[#allocation8 + $0x18] sm:$0xff]
    %v3687 = vld [vmem:[#allocation8 + $0x20] sm:$0xf]
    %v3688 = vld [vmem:[#allocation8 + $0x24] sm:$0xff]
    %v3689 = vld [vmem:[#allocation8 + $0x2c] sm:$0xf]
    %v3690 = vld [vmem:[#allocation8 + $0x30] sm:$0xff]
    %v3691 = vld [vmem:[#allocation8 + $0x38] sm:$0xf]
    %v3692 = vld [vmem:[#allocation8 + $0x3c] sm:$0xff]
    %v3693 = vld [vmem:[#allocation8 + $0x44] sm:$0xf]
    %v3694 = vld [vmem:[#allocation8 + $0x48] sm:$0xff]
    %v3695 = vld [vmem:[#allocation8 + $0x50] sm:$0xf]
    %v3696 = vld [vmem:[#allocation8 + $0x54] sm:$0xff]
    %v3697 = vld [vmem:[#allocation8 + $0x5c] sm:$0xf]
    %v3698 = vld [vmem:[#allocation8 + $0x60] sm:$0xff]
    %v3699 = vld [vmem:[#allocation8 + $0x68] sm:$0xf]
    %v3700 = vld [vmem:[#allocation8 + $0x6c] sm:$0xff]
    %v3701 = vld [vmem:[#allocation8 + $0x74] sm:$0xf]
    %v3702 = vld [vmem:[#allocation8 + $0x78] sm:$0xff]
    %v3703 = vld [vmem:[#allocation8 + $0x80] sm:$0xf]
    %v3704 = vld [vmem:[#allocation8 + $0x84] sm:$0xff]
    %v3705 = vld [vmem:[#allocation8 + $0x8c] sm:$0xf]
    %v3706 = vld [vmem:[#allocation8 + $0x90] sm:$0xff]
    %v3707 = vld [vmem:[#allocation8 + $0x98] sm:$0xf]
    %v3708 = vld [vmem:[#allocation8 + $0x9c] sm:$0xff]
    %v3709 = vld [vmem:[#allocation8 + $0xa4] sm:$0xf]
    %v3710 = vld [vmem:[#allocation8 + $0xa8] sm:$0xff]
    %v3711 = vld [vmem:[#allocation8 + $0xb0] sm:$0xf]
    %v3712 = vld [vmem:[#allocation8 + $0xb4] sm:$0xff]
    %v3713 = vld [vmem:[#allocation8 + $0xbc] sm:$0xf]
    %v3746 = vunpack.c.l.b16 %v3682
    %v3747 = vunpack.c.h.b16 %v3682
    %v3748 = vunpack.c.l.b16 %v3683
    %v3749 = vunpack.c.l.b16 %v3684
    %v3750 = vunpack.c.h.b16 %v3684
    %v3751 = vunpack.c.l.b16 %v3685
    %v3752 = vunpack.c.l.b16 %v3686
    %v3753 = vunpack.c.h.b16 %v3686
    %v3754 = vunpack.c.l.b16 %v3687
    %v3755 = vunpack.c.l.b16 %v3688
    %v3756 = vunpack.c.h.b16 %v3688
    %v3757 = vunpack.c.l.b16 %v3689
    %v3758 = vunpack.c.l.b16 %v3690
    %v3759 = vunpack.c.h.b16 %v3690
    %v3760 = vunpack.c.l.b16 %v3691
    %v3761 = vunpack.c.l.b16 %v3692
    %v3762 = vunpack.c.h.b16 %v3692
    %v3763 = vunpack.c.l.b16 %v3693
    %v3764 = vunpack.c.l.b16 %v3694
    %v3765 = vunpack.c.h.b16 %v3694
    %v3766 = vunpack.c.l.b16 %v3695
    %v3767 = vunpack.c.l.b16 %v3696
    %v3768 = vunpack.c.h.b16 %v3696
    %v3769 = vunpack.c.l.b16 %v3697
    %v3770 = vunpack.c.l.b16 %v3698
    %v3771 = vunpack.c.h.b16 %v3698
    %v3772 = vunpack.c.l.b16 %v3699
    %v3773 = vunpack.c.l.b16 %v3700
    %v3774 = vunpack.c.h.b16 %v3700
    %v3775 = vunpack.c.l.b16 %v3701
    %v3776 = vunpack.c.l.b16 %v3702
    %v3777 = vunpack.c.h.b16 %v3702
    %v3778 = vunpack.c.l.b16 %v3703
    %v3779 = vunpack.c.l.b16 %v3704
    %v3780 = vunpack.c.h.b16 %v3704
    %v3781 = vunpack.c.l.b16 %v3705
    %v3782 = vunpack.c.l.b16 %v3706
    %v3783 = vunpack.c.h.b16 %v3706
    %v3784 = vunpack.c.l.b16 %v3707
    %v3785 = vunpack.c.l.b16 %v3708
    %v3786 = vunpack.c.h.b16 %v3708
    %v3787 = vunpack.c.l.b16 %v3709
    %v3788 = vunpack.c.l.b16 %v3710
    %v3789 = vunpack.c.h.b16 %v3710
    %v3790 = vunpack.c.l.b16 %v3711
    %v3791 = vunpack.c.l.b16 %v3712
    %v3792 = vunpack.c.h.b16 %v3712
    %v3793 = vunpack.c.l.b16 %v3713
    %v3794 = vpack.c.b16 %v3749, %v3746
    %v3795 = vpack.c.b16 %v3750, %v3747
    %v3796 = vpack.c.b16 %v3751, %v3748
    %v3797 = vpack.c.b16 %v3755, %v3752
    %v3798 = vpack.c.b16 %v3756, %v3753
    %v3799 = vpack.c.b16 %v3757, %v3754
    %v3800 = vpack.c.b16 %v3761, %v3758
    %v3801 = vpack.c.b16 %v3762, %v3759
    %v3802 = vpack.c.b16 %v3763, %v3760
    %v3803 = vpack.c.b16 %v3767, %v3764
    %v3804 = vpack.c.b16 %v3768, %v3765
    %v3805 = vpack.c.b16 %v3769, %v3766
    %v3806 = vpack.c.b16 %v3773, %v3770
    %v3807 = vpack.c.b16 %v3774, %v3771
    %v3808 = vpack.c.b16 %v3775, %v3772
    %v3809 = vpack.c.b16 %v3779, %v3776
    %v3810 = vpack.c.b16 %v3780, %v3777
    %v3811 = vpack.c.b16 %v3781, %v3778
    %v3812 = vpack.c.b16 %v3785, %v3782
    %v3813 = vpack.c.b16 %v3786, %v3783
    %v3814 = vpack.c.b16 %v3787, %v3784
    %v3815 = vpack.c.b16 %v3791, %v3788
    %v3816 = vpack.c.b16 %v3792, %v3789
    %v3817 = vpack.c.b16 %v3793, %v3790
    %3842 = vmatpush.bf16.msra.mxu0 %v3815
    %3843 = vmatpush.bf16.msra.mxu0 %v3812
    %3844 = vmatpush.bf16.msra.mxu0 %v3809
    %3845 = vmatpush.bf16.msra.mxu0 %v3806
    %3846 = vmatpush.bf16.msra.mxu0 %v3803
    %3847 = vmatpush.bf16.msra.mxu0 %v3800
    %3848 = vmatpush.bf16.msra.mxu0 %v3797
    %3849 = vmatpush.bf16.msra.mxu0 %v3794
    %3850 = vmatmul.bf16.gmra.mxu0 %v3681
    %v3851 = vpop.f32.mrf.mxu0
    %v3852 = vadd.f32 0.0, %v3851
    %v3853 = vpop.f32.mrf.mxu0
    %v3854 = vadd.f32 0.0, %v3853
    %3855 = vdwg.mxu0
    %3856 = vmatpush.bf16.msra.mxu0 %v3816
    %3857 = vmatpush.bf16.msra.mxu0 %v3813
    %3858 = vmatpush.bf16.msra.mxu0 %v3810
    %3859 = vmatpush.bf16.msra.mxu0 %v3807
    %3860 = vmatpush.bf16.msra.mxu0 %v3804
    %3861 = vmatpush.bf16.msra.mxu0 %v3801
    %3862 = vmatpush.bf16.msra.mxu0 %v3798
    %3863 = vmatpush.bf16.msra.mxu0 %v3795
    %3864 = vmatmul.bf16.gmra.mxu0 %v3681
    %v3865 = vpop.f32.mrf.mxu0
    %v3866 = vadd.f32 0.0, %v3865
    %v3867 = vpop.f32.mrf.mxu0
    %v3868 = vadd.f32 0.0, %v3867
    %3869 = vdwg.mxu0
    %3870 = vmatpush.bf16.msra.mxu0 %v3817
    %3871 = vmatpush.bf16.msra.mxu0 %v3814
    %3872 = vmatpush.bf16.msra.mxu0 %v3811
    %3873 = vmatpush.bf16.msra.mxu0 %v3808
    %3874 = vmatpush.bf16.msra.mxu0 %v3805
    %3875 = vmatpush.bf16.msra.mxu0 %v3802
    %3876 = vmatpush.bf16.msra.mxu0 %v3799
    %3877 = vmatpush.bf16.msra.mxu0 %v3796
    %3878 = vmatmul.bf16.gmra.mxu0 %v3681
    %v3879 = vpop.f32.mrf.mxu0
    %v3880 = vadd.f32 0.0, %v3879
    %v3881 = vpop.f32.mrf.mxu0
    %v3882 = vadd.f32 0.0, %v3881
    %3883 = vdwg.mxu0
    %v3884 = vadd.f32 %v3675, %v3852
    %v3885 = vadd.f32 %v3678, %v3854
    %v3886 = vxor.u32 %v3884, 2147483648
    %v3887 = vxor.u32 %v3885, 2147483648
    %v3888 = vmul.f32 %v3886, 1.442695
    %v3889 = vpow.pop %v3888
    %v3890 = vmul.f32 %v3887, 1.442695
    %v3891 = vpow.pop %v3890
    %v3892 = vadd.f32 %v3889, 1.0
    %v3893 = vadd.f32 %v3891, 1.0
    %v3894 = vrcp.pop %v3892
    %v3895 = vmul.f32 %v3892, %v3894
    %v3896 = vsub.f32 1.0, %v3895
    %v3897 = vmul.f32 %v3894, %v3896
    %v3898 = vadd.f32 %v3894, %v3897
    %vm3899 = vweird.f32 %v3892
    %vm3900 = vweird.f32 %v3894
    %vm3901 = vmor %vm3899, %vm3900
    %v3902 = vsel %vm3901, %v3894, %v3898
    %v3903 = vand.u32 2147483647, %v3892
    %vm3904 = vcmp.eq.f32.partialorder %v3903, 8.507059e+37
    %v3905 = vand.u32 %v3892, 2147483648
    %v3906 = vor.u32 1.1754944e-38, %v3905
    %v3907 = vsel %vm3904, %v3906, %v3902
    %v3908 = vmul.f32 1.0, %v3907
    %v3909 = vrcp.pop %v3893
    %v3910 = vmul.f32 %v3893, %v3909
    %v3911 = vsub.f32 1.0, %v3910
    %v3912 = vmul.f32 %v3909, %v3911
    %v3913 = vadd.f32 %v3909, %v3912
    %vm3914 = vweird.f32 %v3893
    %vm3915 = vweird.f32 %v3909
    %vm3916 = vmor %vm3914, %vm3915
    %v3917 = vsel %vm3916, %v3909, %v3913
    %v3918 = vand.u32 2147483647, %v3893
    %vm3919 = vcmp.eq.f32.partialorder %v3918, 8.507059e+37
    %v3920 = vand.u32 %v3893, 2147483648
    %v3921 = vor.u32 1.1754944e-38, %v3920
    %v3922 = vsel %vm3919, %v3921, %v3917
    %v3923 = vmul.f32 1.0, %v3922
    %v3924 = vadd.f32 %v3676, %v3866
    %v3925 = vadd.f32 %v3679, %v3868
    %v3926 = vxor.u32 %v3924, 2147483648
    %v3927 = vxor.u32 %v3925, 2147483648
    %v3928 = vmul.f32 %v3926, 1.442695
    %v3929 = vpow.pop %v3928
    %v3930 = vmul.f32 %v3927, 1.442695
    %v3931 = vpow.pop %v3930
    %v3932 = vadd.f32 %v3929, 1.0
    %v3933 = vadd.f32 %v3931, 1.0
    %v3934 = vrcp.pop %v3932
    %v3935 = vmul.f32 %v3932, %v3934
    %v3936 = vsub.f32 1.0, %v3935
    %v3937 = vmul.f32 %v3934, %v3936
    %v3938 = vadd.f32 %v3934, %v3937
    %vm3939 = vweird.f32 %v3932
    %vm3940 = vweird.f32 %v3934
    %vm3941 = vmor %vm3939, %vm3940
    %v3942 = vsel %vm3941, %v3934, %v3938
    %v3943 = vand.u32 2147483647, %v3932
    %vm3944 = vcmp.eq.f32.partialorder %v3943, 8.507059e+37
    %v3945 = vand.u32 %v3932, 2147483648
    %v3946 = vor.u32 1.1754944e-38, %v3945
    %v3947 = vsel %vm3944, %v3946, %v3942
    %v3948 = vmul.f32 1.0, %v3947
    %v3949 = vrcp.pop %v3933
    %v3950 = vmul.f32 %v3933, %v3949
    %v3951 = vsub.f32 1.0, %v3950
    %v3952 = vmul.f32 %v3949, %v3951
    %v3953 = vadd.f32 %v3949, %v3952
    %vm3954 = vweird.f32 %v3933
    %vm3955 = vweird.f32 %v3949
    %vm3956 = vmor %vm3954, %vm3955
    %v3957 = vsel %vm3956, %v3949, %v3953
    %v3958 = vand.u32 2147483647, %v3933
    %vm3959 = vcmp.eq.f32.partialorder %v3958, 8.507059e+37
    %v3960 = vand.u32 %v3933, 2147483648
    %v3961 = vor.u32 1.1754944e-38, %v3960
    %v3962 = vsel %vm3959, %v3961, %v3957
    %v3963 = vmul.f32 1.0, %v3962
    %v3964 = vld [vmem:[%s8] sm:$0x1]
    %v3966 = vperm.slane %v3964, 0
    %v3968 = vadd.f32 %v3880, %v3966
    %v3969 = vadd.f32 %v3882, %v3966
    %v3970 = vmul.f32 %v3908, %v3968
    %v3971 = vmul.f32 %v3923, %v3969
    %v3972 = vadd.f32 %v3677, %v3970
    %v3973 = vadd.f32 %v3680, %v3971
    %v3974 = vtanh.pop %v3972
    %v3975 = vtanh.pop %v3973
    %v3976 = vsub.f32 %v3668, %v3974
    %v3977 = vsub.f32 %v3669, %v3975
    %v3978 = vmul.f32 %v3948, %v3976
    %v3979 = vmul.f32 %v3963, %v3977
    %v3980 = vadd.f32 %v3974, %v3978
    %v3981 = vadd.f32 %v3975, %v3979
    %s3982 = scalar_lea.vmem %s13, 16
    %3983 = vst [vmem:[%s3982] sm:$0xff] %v3980
    %3984 = vst [vmem:[%s3982 + $0x8] sm:$0xff] %v3981
    %s3985 = smul.u32 4, 3
    %s3986 = smul.addr %s3985, 8
    %s3987 = scalar_lea.vmem [#allocation2], %s3986
    %v3988 = vld [vmem:[%s3987] sm:$0xff]
    %v3989 = vld [vmem:[%s3987 + $0x8] sm:$0xff]
    %v3990 = vld [vmem:[%s3987 + $0x10] sm:$0xff]
    %v3991 = vld [vmem:[%s3987 + $0x18] sm:$0xff]
    %v3992 = vld [vmem:[%s3987 + $0x20] sm:$0xff]
    %v3993 = vld [vmem:[%s3987 + $0x28] sm:$0xff]
    %v3994 = vpack.c.bf16 %v3981, %v3980
    %v3995 = vld [vmem:[#allocation8] sm:$0xff]
    %v3996 = vld [vmem:[#allocation8 + $0x8] sm:$0xf]
    %v3997 = vld [vmem:[#allocation8 + $0xc] sm:$0xff]
    %v3998 = vld [vmem:[#allocation8 + $0x14] sm:$0xf]
    %v3999 = vld [vmem:[#allocation8 + $0x18] sm:$0xff]
    %v4000 = vld [vmem:[#allocation8 + $0x20] sm:$0xf]
    %v4001 = vld [vmem:[#allocation8 + $0x24] sm:$0xff]
    %v4002 = vld [vmem:[#allocation8 + $0x2c] sm:$0xf]
    %v4003 = vld [vmem:[#allocation8 + $0x30] sm:$0xff]
    %v4004 = vld [vmem:[#allocation8 + $0x38] sm:$0xf]
    %v4005 = vld [vmem:[#allocation8 + $0x3c] sm:$0xff]
    %v4006 = vld [vmem:[#allocation8 + $0x44] sm:$0xf]
    %v4007 = vld [vmem:[#allocation8 + $0x48] sm:$0xff]
    %v4008 = vld [vmem:[#allocation8 + $0x50] sm:$0xf]
    %v4009 = vld [vmem:[#allocation8 + $0x54] sm:$0xff]
    %v4010 = vld [vmem:[#allocation8 + $0x5c] sm:$0xf]
    %v4011 = vld [vmem:[#allocation8 + $0x60] sm:$0xff]
    %v4012 = vld [vmem:[#allocation8 + $0x68] sm:$0xf]
    %v4013 = vld [vmem:[#allocation8 + $0x6c] sm:$0xff]
    %v4014 = vld [vmem:[#allocation8 + $0x74] sm:$0xf]
    %v4015 = vld [vmem:[#allocation8 + $0x78] sm:$0xff]
    %v4016 = vld [vmem:[#allocation8 + $0x80] sm:$0xf]
    %v4017 = vld [vmem:[#allocation8 + $0x84] sm:$0xff]
    %v4018 = vld [vmem:[#allocation8 + $0x8c] sm:$0xf]
    %v4019 = vld [vmem:[#allocation8 + $0x90] sm:$0xff]
    %v4020 = vld [vmem:[#allocation8 + $0x98] sm:$0xf]
    %v4021 = vld [vmem:[#allocation8 + $0x9c] sm:$0xff]
    %v4022 = vld [vmem:[#allocation8 + $0xa4] sm:$0xf]
    %v4023 = vld [vmem:[#allocation8 + $0xa8] sm:$0xff]
    %v4024 = vld [vmem:[#allocation8 + $0xb0] sm:$0xf]
    %v4025 = vld [vmem:[#allocation8 + $0xb4] sm:$0xff]
    %v4026 = vld [vmem:[#allocation8 + $0xbc] sm:$0xf]
    %v4059 = vunpack.c.l.b16 %v3995
    %v4060 = vunpack.c.h.b16 %v3995
    %v4061 = vunpack.c.l.b16 %v3996
    %v4062 = vunpack.c.l.b16 %v3997
    %v4063 = vunpack.c.h.b16 %v3997
    %v4064 = vunpack.c.l.b16 %v3998
    %v4065 = vunpack.c.l.b16 %v3999
    %v4066 = vunpack.c.h.b16 %v3999
    %v4067 = vunpack.c.l.b16 %v4000
    %v4068 = vunpack.c.l.b16 %v4001
    %v4069 = vunpack.c.h.b16 %v4001
    %v4070 = vunpack.c.l.b16 %v4002
    %v4071 = vunpack.c.l.b16 %v4003
    %v4072 = vunpack.c.h.b16 %v4003
    %v4073 = vunpack.c.l.b16 %v4004
    %v4074 = vunpack.c.l.b16 %v4005
    %v4075 = vunpack.c.h.b16 %v4005
    %v4076 = vunpack.c.l.b16 %v4006
    %v4077 = vunpack.c.l.b16 %v4007
    %v4078 = vunpack.c.h.b16 %v4007
    %v4079 = vunpack.c.l.b16 %v4008
    %v4080 = vunpack.c.l.b16 %v4009
    %v4081 = vunpack.c.h.b16 %v4009
    %v4082 = vunpack.c.l.b16 %v4010
    %v4083 = vunpack.c.l.b16 %v4011
    %v4084 = vunpack.c.h.b16 %v4011
    %v4085 = vunpack.c.l.b16 %v4012
    %v4086 = vunpack.c.l.b16 %v4013
    %v4087 = vunpack.c.h.b16 %v4013
    %v4088 = vunpack.c.l.b16 %v4014
    %v4089 = vunpack.c.l.b16 %v4015
    %v4090 = vunpack.c.h.b16 %v4015
    %v4091 = vunpack.c.l.b16 %v4016
    %v4092 = vunpack.c.l.b16 %v4017
    %v4093 = vunpack.c.h.b16 %v4017
    %v4094 = vunpack.c.l.b16 %v4018
    %v4095 = vunpack.c.l.b16 %v4019
    %v4096 = vunpack.c.h.b16 %v4019
    %v4097 = vunpack.c.l.b16 %v4020
    %v4098 = vunpack.c.l.b16 %v4021
    %v4099 = vunpack.c.h.b16 %v4021
    %v4100 = vunpack.c.l.b16 %v4022
    %v4101 = vunpack.c.l.b16 %v4023
    %v4102 = vunpack.c.h.b16 %v4023
    %v4103 = vunpack.c.l.b16 %v4024
    %v4104 = vunpack.c.l.b16 %v4025
    %v4105 = vunpack.c.h.b16 %v4025
    %v4106 = vunpack.c.l.b16 %v4026
    %v4107 = vpack.c.b16 %v4062, %v4059
    %v4108 = vpack.c.b16 %v4063, %v4060
    %v4109 = vpack.c.b16 %v4064, %v4061
    %v4110 = vpack.c.b16 %v4068, %v4065
    %v4111 = vpack.c.b16 %v4069, %v4066
    %v4112 = vpack.c.b16 %v4070, %v4067
    %v4113 = vpack.c.b16 %v4074, %v4071
    %v4114 = vpack.c.b16 %v4075, %v4072
    %v4115 = vpack.c.b16 %v4076, %v4073
    %v4116 = vpack.c.b16 %v4080, %v4077
    %v4117 = vpack.c.b16 %v4081, %v4078
    %v4118 = vpack.c.b16 %v4082, %v4079
    %v4119 = vpack.c.b16 %v4086, %v4083
    %v4120 = vpack.c.b16 %v4087, %v4084
    %v4121 = vpack.c.b16 %v4088, %v4085
    %v4122 = vpack.c.b16 %v4092, %v4089
    %v4123 = vpack.c.b16 %v4093, %v4090
    %v4124 = vpack.c.b16 %v4094, %v4091
    %v4125 = vpack.c.b16 %v4098, %v4095
    %v4126 = vpack.c.b16 %v4099, %v4096
    %v4127 = vpack.c.b16 %v4100, %v4097
    %v4128 = vpack.c.b16 %v4104, %v4101
    %v4129 = vpack.c.b16 %v4105, %v4102
    %v4130 = vpack.c.b16 %v4106, %v4103
    %4155 = vmatpush.bf16.msra.mxu0 %v4128
    %4156 = vmatpush.bf16.msra.mxu0 %v4125
    %4157 = vmatpush.bf16.msra.mxu0 %v4122
    %4158 = vmatpush.bf16.msra.mxu0 %v4119
    %4159 = vmatpush.bf16.msra.mxu0 %v4116
    %4160 = vmatpush.bf16.msra.mxu0 %v4113
    %4161 = vmatpush.bf16.msra.mxu0 %v4110
    %4162 = vmatpush.bf16.msra.mxu0 %v4107
    %4163 = vmatmul.bf16.gmra.mxu0 %v3994
    %v4164 = vpop.f32.mrf.mxu0
    %v4165 = vadd.f32 0.0, %v4164
    %v4166 = vpop.f32.mrf.mxu0
    %v4167 = vadd.f32 0.0, %v4166
    %4168 = vdwg.mxu0
    %4169 = vmatpush.bf16.msra.mxu0 %v4129
    %4170 = vmatpush.bf16.msra.mxu0 %v4126
    %4171 = vmatpush.bf16.msra.mxu0 %v4123
    %4172 = vmatpush.bf16.msra.mxu0 %v4120
    %4173 = vmatpush.bf16.msra.mxu0 %v4117
    %4174 = vmatpush.bf16.msra.mxu0 %v4114
    %4175 = vmatpush.bf16.msra.mxu0 %v4111
    %4176 = vmatpush.bf16.msra.mxu0 %v4108
    %4177 = vmatmul.bf16.gmra.mxu0 %v3994
    %v4178 = vpop.f32.mrf.mxu0
    %v4179 = vadd.f32 0.0, %v4178
    %v4180 = vpop.f32.mrf.mxu0
    %v4181 = vadd.f32 0.0, %v4180
    %4182 = vdwg.mxu0
    %4183 = vmatpush.bf16.msra.mxu0 %v4130
    %4184 = vmatpush.bf16.msra.mxu0 %v4127
    %4185 = vmatpush.bf16.msra.mxu0 %v4124
    %4186 = vmatpush.bf16.msra.mxu0 %v4121
    %4187 = vmatpush.bf16.msra.mxu0 %v4118
    %4188 = vmatpush.bf16.msra.mxu0 %v4115
    %4189 = vmatpush.bf16.msra.mxu0 %v4112
    %4190 = vmatpush.bf16.msra.mxu0 %v4109
    %4191 = vmatmul.bf16.gmra.mxu0 %v3994
    %v4192 = vpop.f32.mrf.mxu0
    %v4193 = vadd.f32 0.0, %v4192
    %v4194 = vpop.f32.mrf.mxu0
    %v4195 = vadd.f32 0.0, %v4194
    %4196 = vdwg.mxu0
    %v4197 = vadd.f32 %v3988, %v4165
    %v4198 = vadd.f32 %v3991, %v4167
    %v4199 = vxor.u32 %v4197, 2147483648
    %v4200 = vxor.u32 %v4198, 2147483648
    %v4201 = vmul.f32 %v4199, 1.442695
    %v4202 = vpow.pop %v4201
    %v4203 = vmul.f32 %v4200, 1.442695
    %v4204 = vpow.pop %v4203
    %v4205 = vadd.f32 %v4202, 1.0
    %v4206 = vadd.f32 %v4204, 1.0
    %v4207 = vrcp.pop %v4205
    %v4208 = vmul.f32 %v4205, %v4207
    %v4209 = vsub.f32 1.0, %v4208
    %v4210 = vmul.f32 %v4207, %v4209
    %v4211 = vadd.f32 %v4207, %v4210
    %vm4212 = vweird.f32 %v4205
    %vm4213 = vweird.f32 %v4207
    %vm4214 = vmor %vm4212, %vm4213
    %v4215 = vsel %vm4214, %v4207, %v4211
    %v4216 = vand.u32 2147483647, %v4205
    %vm4217 = vcmp.eq.f32.partialorder %v4216, 8.507059e+37
    %v4218 = vand.u32 %v4205, 2147483648
    %v4219 = vor.u32 1.1754944e-38, %v4218
    %v4220 = vsel %vm4217, %v4219, %v4215
    %v4221 = vmul.f32 1.0, %v4220
    %v4222 = vrcp.pop %v4206
    %v4223 = vmul.f32 %v4206, %v4222
    %v4224 = vsub.f32 1.0, %v4223
    %v4225 = vmul.f32 %v4222, %v4224
    %v4226 = vadd.f32 %v4222, %v4225
    %vm4227 = vweird.f32 %v4206
    %vm4228 = vweird.f32 %v4222
    %vm4229 = vmor %vm4227, %vm4228
    %v4230 = vsel %vm4229, %v4222, %v4226
    %v4231 = vand.u32 2147483647, %v4206
    %vm4232 = vcmp.eq.f32.partialorder %v4231, 8.507059e+37
    %v4233 = vand.u32 %v4206, 2147483648
    %v4234 = vor.u32 1.1754944e-38, %v4233
    %v4235 = vsel %vm4232, %v4234, %v4230
    %v4236 = vmul.f32 1.0, %v4235
    %v4237 = vadd.f32 %v3989, %v4179
    %v4238 = vadd.f32 %v3992, %v4181
    %v4239 = vxor.u32 %v4237, 2147483648
    %v4240 = vxor.u32 %v4238, 2147483648
    %v4241 = vmul.f32 %v4239, 1.442695
    %v4242 = vpow.pop %v4241
    %v4243 = vmul.f32 %v4240, 1.442695
    %v4244 = vpow.pop %v4243
    %v4245 = vadd.f32 %v4242, 1.0
    %v4246 = vadd.f32 %v4244, 1.0
    %v4247 = vrcp.pop %v4245
    %v4248 = vmul.f32 %v4245, %v4247
    %v4249 = vsub.f32 1.0, %v4248
    %v4250 = vmul.f32 %v4247, %v4249
    %v4251 = vadd.f32 %v4247, %v4250
    %vm4252 = vweird.f32 %v4245
    %vm4253 = vweird.f32 %v4247
    %vm4254 = vmor %vm4252, %vm4253
    %v4255 = vsel %vm4254, %v4247, %v4251
    %v4256 = vand.u32 2147483647, %v4245
    %vm4257 = vcmp.eq.f32.partialorder %v4256, 8.507059e+37
    %v4258 = vand.u32 %v4245, 2147483648
    %v4259 = vor.u32 1.1754944e-38, %v4258
    %v4260 = vsel %vm4257, %v4259, %v4255
    %v4261 = vmul.f32 1.0, %v4260
    %v4262 = vrcp.pop %v4246
    %v4263 = vmul.f32 %v4246, %v4262
    %v4264 = vsub.f32 1.0, %v4263
    %v4265 = vmul.f32 %v4262, %v4264
    %v4266 = vadd.f32 %v4262, %v4265
    %vm4267 = vweird.f32 %v4246
    %vm4268 = vweird.f32 %v4262
    %vm4269 = vmor %vm4267, %vm4268
    %v4270 = vsel %vm4269, %v4262, %v4266
    %v4271 = vand.u32 2147483647, %v4246
    %vm4272 = vcmp.eq.f32.partialorder %v4271, 8.507059e+37
    %v4273 = vand.u32 %v4246, 2147483648
    %v4274 = vor.u32 1.1754944e-38, %v4273
    %v4275 = vsel %vm4272, %v4274, %v4270
    %v4276 = vmul.f32 1.0, %v4275
    %v4277 = vld [vmem:[%s8] sm:$0x1]
    %v4279 = vperm.slane %v4277, 0
    %v4281 = vadd.f32 %v4193, %v4279
    %v4282 = vadd.f32 %v4195, %v4279
    %v4283 = vmul.f32 %v4221, %v4281
    %v4284 = vmul.f32 %v4236, %v4282
    %v4285 = vadd.f32 %v3990, %v4283
    %v4286 = vadd.f32 %v3993, %v4284
    %v4287 = vtanh.pop %v4285
    %v4288 = vtanh.pop %v4286
    %v4289 = vsub.f32 %v3980, %v4287
    %v4290 = vsub.f32 %v3981, %v4288
    %v4291 = vmul.f32 %v4261, %v4289
    %v4292 = vmul.f32 %v4276, %v4290
    %v4293 = vadd.f32 %v4287, %v4291
    %v4294 = vadd.f32 %v4288, %v4292
    %s4295 = scalar_lea.vmem %s13, 32
    %4296 = vst [vmem:[%s4295] sm:$0xff] %v4293
    %4297 = vst [vmem:[%s4295 + $0x8] sm:$0xff] %v4294
    %s4298 = smul.u32 6, 3
    %s4299 = smul.addr %s4298, 8
    %s4300 = scalar_lea.vmem [#allocation2], %s4299
    %v4301 = vld [vmem:[%s4300] sm:$0xff]
    %v4302 = vld [vmem:[%s4300 + $0x8] sm:$0xff]
    %v4303 = vld [vmem:[%s4300 + $0x10] sm:$0xff]
    %v4304 = vld [vmem:[%s4300 + $0x18] sm:$0xff]
    %v4305 = vld [vmem:[%s4300 + $0x20] sm:$0xff]
    %v4306 = vld [vmem:[%s4300 + $0x28] sm:$0xff]
    %v4307 = vpack.c.bf16 %v4294, %v4293
    %v4308 = vld [vmem:[#allocation8] sm:$0xff]
    %v4309 = vld [vmem:[#allocation8 + $0x8] sm:$0xf]
    %v4310 = vld [vmem:[#allocation8 + $0xc] sm:$0xff]
    %v4311 = vld [vmem:[#allocation8 + $0x14] sm:$0xf]
    %v4312 = vld [vmem:[#allocation8 + $0x18] sm:$0xff]
    %v4313 = vld [vmem:[#allocation8 + $0x20] sm:$0xf]
    %v4314 = vld [vmem:[#allocation8 + $0x24] sm:$0xff]
    %v4315 = vld [vmem:[#allocation8 + $0x2c] sm:$0xf]
    %v4316 = vld [vmem:[#allocation8 + $0x30] sm:$0xff]
    %v4317 = vld [vmem:[#allocation8 + $0x38] sm:$0xf]
    %v4318 = vld [vmem:[#allocation8 + $0x3c] sm:$0xff]
    %v4319 = vld [vmem:[#allocation8 + $0x44] sm:$0xf]
    %v4320 = vld [vmem:[#allocation8 + $0x48] sm:$0xff]
    %v4321 = vld [vmem:[#allocation8 + $0x50] sm:$0xf]
    %v4322 = vld [vmem:[#allocation8 + $0x54] sm:$0xff]
    %v4323 = vld [vmem:[#allocation8 + $0x5c] sm:$0xf]
    %v4324 = vld [vmem:[#allocation8 + $0x60] sm:$0xff]
    %v4325 = vld [vmem:[#allocation8 + $0x68] sm:$0xf]
    %v4326 = vld [vmem:[#allocation8 + $0x6c] sm:$0xff]
    %v4327 = vld [vmem:[#allocation8 + $0x74] sm:$0xf]
    %v4328 = vld [vmem:[#allocation8 + $0x78] sm:$0xff]
    %v4329 = vld [vmem:[#allocation8 + $0x80] sm:$0xf]
    %v4330 = vld [vmem:[#allocation8 + $0x84] sm:$0xff]
    %v4331 = vld [vmem:[#allocation8 + $0x8c] sm:$0xf]
    %v4332 = vld [vmem:[#allocation8 + $0x90] sm:$0xff]
    %v4333 = vld [vmem:[#allocation8 + $0x98] sm:$0xf]
    %v4334 = vld [vmem:[#allocation8 + $0x9c] sm:$0xff]
    %v4335 = vld [vmem:[#allocation8 + $0xa4] sm:$0xf]
    %v4336 = vld [vmem:[#allocation8 + $0xa8] sm:$0xff]
    %v4337 = vld [vmem:[#allocation8 + $0xb0] sm:$0xf]
    %v4338 = vld [vmem:[#allocation8 + $0xb4] sm:$0xff]
    %v4339 = vld [vmem:[#allocation8 + $0xbc] sm:$0xf]
    %v4372 = vunpack.c.l.b16 %v4308
    %v4373 = vunpack.c.h.b16 %v4308
    %v4374 = vunpack.c.l.b16 %v4309
    %v4375 = vunpack.c.l.b16 %v4310
    %v4376 = vunpack.c.h.b16 %v4310
    %v4377 = vunpack.c.l.b16 %v4311
    %v4378 = vunpack.c.l.b16 %v4312
    %v4379 = vunpack.c.h.b16 %v4312
    %v4380 = vunpack.c.l.b16 %v4313
    %v4381 = vunpack.c.l.b16 %v4314
    %v4382 = vunpack.c.h.b16 %v4314
    %v4383 = vunpack.c.l.b16 %v4315
    %v4384 = vunpack.c.l.b16 %v4316
    %v4385 = vunpack.c.h.b16 %v4316
    %v4386 = vunpack.c.l.b16 %v4317
    %v4387 = vunpack.c.l.b16 %v4318
    %v4388 = vunpack.c.h.b16 %v4318
    %v4389 = vunpack.c.l.b16 %v4319
    %v4390 = vunpack.c.l.b16 %v4320
    %v4391 = vunpack.c.h.b16 %v4320
    %v4392 = vunpack.c.l.b16 %v4321
    %v4393 = vunpack.c.l.b16 %v4322
    %v4394 = vunpack.c.h.b16 %v4322
    %v4395 = vunpack.c.l.b16 %v4323
    %v4396 = vunpack.c.l.b16 %v4324
    %v4397 = vunpack.c.h.b16 %v4324
    %v4398 = vunpack.c.l.b16 %v4325
    %v4399 = vunpack.c.l.b16 %v4326
    %v4400 = vunpack.c.h.b16 %v4326
    %v4401 = vunpack.c.l.b16 %v4327
    %v4402 = vunpack.c.l.b16 %v4328
    %v4403 = vunpack.c.h.b16 %v4328
    %v4404 = vunpack.c.l.b16 %v4329
    %v4405 = vunpack.c.l.b16 %v4330
    %v4406 = vunpack.c.h.b16 %v4330
    %v4407 = vunpack.c.l.b16 %v4331
    %v4408 = vunpack.c.l.b16 %v4332
    %v4409 = vunpack.c.h.b16 %v4332
    %v4410 = vunpack.c.l.b16 %v4333
    %v4411 = vunpack.c.l.b16 %v4334
    %v4412 = vunpack.c.h.b16 %v4334
    %v4413 = vunpack.c.l.b16 %v4335
    %v4414 = vunpack.c.l.b16 %v4336
    %v4415 = vunpack.c.h.b16 %v4336
    %v4416 = vunpack.c.l.b16 %v4337
    %v4417 = vunpack.c.l.b16 %v4338
    %v4418 = vunpack.c.h.b16 %v4338
    %v4419 = vunpack.c.l.b16 %v4339
    %v4420 = vpack.c.b16 %v4375, %v4372
    %v4421 = vpack.c.b16 %v4376, %v4373
    %v4422 = vpack.c.b16 %v4377, %v4374
    %v4423 = vpack.c.b16 %v4381, %v4378
    %v4424 = vpack.c.b16 %v4382, %v4379
    %v4425 = vpack.c.b16 %v4383, %v4380
    %v4426 = vpack.c.b16 %v4387, %v4384
    %v4427 = vpack.c.b16 %v4388, %v4385
    %v4428 = vpack.c.b16 %v4389, %v4386
    %v4429 = vpack.c.b16 %v4393, %v4390
    %v4430 = vpack.c.b16 %v4394, %v4391
    %v4431 = vpack.c.b16 %v4395, %v4392
    %v4432 = vpack.c.b16 %v4399, %v4396
    %v4433 = vpack.c.b16 %v4400, %v4397
    %v4434 = vpack.c.b16 %v4401, %v4398
    %v4435 = vpack.c.b16 %v4405, %v4402
    %v4436 = vpack.c.b16 %v4406, %v4403
    %v4437 = vpack.c.b16 %v4407, %v4404
    %v4438 = vpack.c.b16 %v4411, %v4408
    %v4439 = vpack.c.b16 %v4412, %v4409
    %v4440 = vpack.c.b16 %v4413, %v4410
    %v4441 = vpack.c.b16 %v4417, %v4414
    %v4442 = vpack.c.b16 %v4418, %v4415
    %v4443 = vpack.c.b16 %v4419, %v4416
    %4468 = vmatpush.bf16.msra.mxu0 %v4441
    %4469 = vmatpush.bf16.msra.mxu0 %v4438
    %4470 = vmatpush.bf16.msra.mxu0 %v4435
    %4471 = vmatpush.bf16.msra.mxu0 %v4432
    %4472 = vmatpush.bf16.msra.mxu0 %v4429
    %4473 = vmatpush.bf16.msra.mxu0 %v4426
    %4474 = vmatpush.bf16.msra.mxu0 %v4423
    %4475 = vmatpush.bf16.msra.mxu0 %v4420
    %4476 = vmatmul.bf16.gmra.mxu0 %v4307
    %v4477 = vpop.f32.mrf.mxu0
    %v4478 = vadd.f32 0.0, %v4477
    %v4479 = vpop.f32.mrf.mxu0
    %v4480 = vadd.f32 0.0, %v4479
    %4481 = vdwg.mxu0
    %4482 = vmatpush.bf16.msra.mxu0 %v4442
    %4483 = vmatpush.bf16.msra.mxu0 %v4439
    %4484 = vmatpush.bf16.msra.mxu0 %v4436
    %4485 = vmatpush.bf16.msra.mxu0 %v4433
    %4486 = vmatpush.bf16.msra.mxu0 %v4430
    %4487 = vmatpush.bf16.msra.mxu0 %v4427
    %4488 = vmatpush.bf16.msra.mxu0 %v4424
    %4489 = vmatpush.bf16.msra.mxu0 %v4421
    %4490 = vmatmul.bf16.gmra.mxu0 %v4307
    %v4491 = vpop.f32.mrf.mxu0
    %v4492 = vadd.f32 0.0, %v4491
    %v4493 = vpop.f32.mrf.mxu0
    %v4494 = vadd.f32 0.0, %v4493
    %4495 = vdwg.mxu0
    %4496 = vmatpush.bf16.msra.mxu0 %v4443
    %4497 = vmatpush.bf16.msra.mxu0 %v4440
    %4498 = vmatpush.bf16.msra.mxu0 %v4437
    %4499 = vmatpush.bf16.msra.mxu0 %v4434
    %4500 = vmatpush.bf16.msra.mxu0 %v4431
    %4501 = vmatpush.bf16.msra.mxu0 %v4428
    %4502 = vmatpush.bf16.msra.mxu0 %v4425
    %4503 = vmatpush.bf16.msra.mxu0 %v4422
    %4504 = vmatmul.bf16.gmra.mxu0 %v4307
    %v4505 = vpop.f32.mrf.mxu0
    %v4506 = vadd.f32 0.0, %v4505
    %v4507 = vpop.f32.mrf.mxu0
    %v4508 = vadd.f32 0.0, %v4507
    %4509 = vdwg.mxu0
    %v4510 = vadd.f32 %v4301, %v4478
    %v4511 = vadd.f32 %v4304, %v4480
    %v4512 = vxor.u32 %v4510, 2147483648
    %v4513 = vxor.u32 %v4511, 2147483648
    %v4514 = vmul.f32 %v4512, 1.442695
    %v4515 = vpow.pop %v4514
    %v4516 = vmul.f32 %v4513, 1.442695
    %v4517 = vpow.pop %v4516
    %v4518 = vadd.f32 %v4515, 1.0
    %v4519 = vadd.f32 %v4517, 1.0
    %v4520 = vrcp.pop %v4518
    %v4521 = vmul.f32 %v4518, %v4520
    %v4522 = vsub.f32 1.0, %v4521
    %v4523 = vmul.f32 %v4520, %v4522
    %v4524 = vadd.f32 %v4520, %v4523
    %vm4525 = vweird.f32 %v4518
    %vm4526 = vweird.f32 %v4520
    %vm4527 = vmor %vm4525, %vm4526
    %v4528 = vsel %vm4527, %v4520, %v4524
    %v4529 = vand.u32 2147483647, %v4518
    %vm4530 = vcmp.eq.f32.partialorder %v4529, 8.507059e+37
    %v4531 = vand.u32 %v4518, 2147483648
    %v4532 = vor.u32 1.1754944e-38, %v4531
    %v4533 = vsel %vm4530, %v4532, %v4528
    %v4534 = vmul.f32 1.0, %v4533
    %v4535 = vrcp.pop %v4519
    %v4536 = vmul.f32 %v4519, %v4535
    %v4537 = vsub.f32 1.0, %v4536
    %v4538 = vmul.f32 %v4535, %v4537
    %v4539 = vadd.f32 %v4535, %v4538
    %vm4540 = vweird.f32 %v4519
    %vm4541 = vweird.f32 %v4535
    %vm4542 = vmor %vm4540, %vm4541
    %v4543 = vsel %vm4542, %v4535, %v4539
    %v4544 = vand.u32 2147483647, %v4519
    %vm4545 = vcmp.eq.f32.partialorder %v4544, 8.507059e+37
    %v4546 = vand.u32 %v4519, 2147483648
    %v4547 = vor.u32 1.1754944e-38, %v4546
    %v4548 = vsel %vm4545, %v4547, %v4543
    %v4549 = vmul.f32 1.0, %v4548
    %v4550 = vadd.f32 %v4302, %v4492
    %v4551 = vadd.f32 %v4305, %v4494
    %v4552 = vxor.u32 %v4550, 2147483648
    %v4553 = vxor.u32 %v4551, 2147483648
    %v4554 = vmul.f32 %v4552, 1.442695
    %v4555 = vpow.pop %v4554
    %v4556 = vmul.f32 %v4553, 1.442695
    %v4557 = vpow.pop %v4556
    %v4558 = vadd.f32 %v4555, 1.0
    %v4559 = vadd.f32 %v4557, 1.0
    %v4560 = vrcp.pop %v4558
    %v4561 = vmul.f32 %v4558, %v4560
    %v4562 = vsub.f32 1.0, %v4561
    %v4563 = vmul.f32 %v4560, %v4562
    %v4564 = vadd.f32 %v4560, %v4563
    %vm4565 = vweird.f32 %v4558
    %vm4566 = vweird.f32 %v4560
    %vm4567 = vmor %vm4565, %vm4566
    %v4568 = vsel %vm4567, %v4560, %v4564
    %v4569 = vand.u32 2147483647, %v4558
    %vm4570 = vcmp.eq.f32.partialorder %v4569, 8.507059e+37
    %v4571 = vand.u32 %v4558, 2147483648
    %v4572 = vor.u32 1.1754944e-38, %v4571
    %v4573 = vsel %vm4570, %v4572, %v4568
    %v4574 = vmul.f32 1.0, %v4573
    %v4575 = vrcp.pop %v4559
    %v4576 = vmul.f32 %v4559, %v4575
    %v4577 = vsub.f32 1.0, %v4576
    %v4578 = vmul.f32 %v4575, %v4577
    %v4579 = vadd.f32 %v4575, %v4578
    %vm4580 = vweird.f32 %v4559
    %vm4581 = vweird.f32 %v4575
    %vm4582 = vmor %vm4580, %vm4581
    %v4583 = vsel %vm4582, %v4575, %v4579
    %v4584 = vand.u32 2147483647, %v4559
    %vm4585 = vcmp.eq.f32.partialorder %v4584, 8.507059e+37
    %v4586 = vand.u32 %v4559, 2147483648
    %v4587 = vor.u32 1.1754944e-38, %v4586
    %v4588 = vsel %vm4585, %v4587, %v4583
    %v4589 = vmul.f32 1.0, %v4588
    %v4590 = vld [vmem:[%s8] sm:$0x1]
    %v4592 = vperm.slane %v4590, 0
    %v4594 = vadd.f32 %v4506, %v4592
    %v4595 = vadd.f32 %v4508, %v4592
    %v4596 = vmul.f32 %v4534, %v4594
    %v4597 = vmul.f32 %v4549, %v4595
    %v4598 = vadd.f32 %v4303, %v4596
    %v4599 = vadd.f32 %v4306, %v4597
    %v4600 = vtanh.pop %v4598
    %v4601 = vtanh.pop %v4599
    %v4602 = vsub.f32 %v4293, %v4600
    %v4603 = vsub.f32 %v4294, %v4601
    %v4604 = vmul.f32 %v4574, %v4602
    %v4605 = vmul.f32 %v4589, %v4603
    %v4606 = vadd.f32 %v4600, %v4604
    %v4607 = vadd.f32 %v4601, %v4605
    %s4608 = scalar_lea.vmem %s13, 48
    %4609 = vst [vmem:[%s4608] sm:$0xff] %v4606
    %4610 = vst [vmem:[%s4608 + $0x8] sm:$0xff] %v4607
    %s4611 = smul.u32 8, 3
    %s4612 = smul.addr %s4611, 8
    %s4613 = scalar_lea.vmem [#allocation2], %s4612
    %v4614 = vld [vmem:[%s4613] sm:$0xff]
    %v4615 = vld [vmem:[%s4613 + $0x8] sm:$0xff]
    %v4616 = vld [vmem:[%s4613 + $0x10] sm:$0xff]
    %v4617 = vld [vmem:[%s4613 + $0x18] sm:$0xff]
    %v4618 = vld [vmem:[%s4613 + $0x20] sm:$0xff]
    %v4619 = vld [vmem:[%s4613 + $0x28] sm:$0xff]
    %v4620 = vpack.c.bf16 %v4607, %v4606
    %v4621 = vld [vmem:[#allocation8] sm:$0xff]
    %v4622 = vld [vmem:[#allocation8 + $0x8] sm:$0xf]
    %v4623 = vld [vmem:[#allocation8 + $0xc] sm:$0xff]
    %v4624 = vld [vmem:[#allocation8 + $0x14] sm:$0xf]
    %v4625 = vld [vmem:[#allocation8 + $0x18] sm:$0xff]
    %v4626 = vld [vmem:[#allocation8 + $0x20] sm:$0xf]
    %v4627 = vld [vmem:[#allocation8 + $0x24] sm:$0xff]
    %v4628 = vld [vmem:[#allocation8 + $0x2c] sm:$0xf]
    %v4629 = vld [vmem:[#allocation8 + $0x30] sm:$0xff]
    %v4630 = vld [vmem:[#allocation8 + $0x38] sm:$0xf]
    %v4631 = vld [vmem:[#allocation8 + $0x3c] sm:$0xff]
    %v4632 = vld [vmem:[#allocation8 + $0x44] sm:$0xf]
    %v4633 = vld [vmem:[#allocation8 + $0x48] sm:$0xff]
    %v4634 = vld [vmem:[#allocation8 + $0x50] sm:$0xf]
    %v4635 = vld [vmem:[#allocation8 + $0x54] sm:$0xff]
    %v4636 = vld [vmem:[#allocation8 + $0x5c] sm:$0xf]
    %v4637 = vld [vmem:[#allocation8 + $0x60] sm:$0xff]
    %v4638 = vld [vmem:[#allocation8 + $0x68] sm:$0xf]
    %v4639 = vld [vmem:[#allocation8 + $0x6c] sm:$0xff]
    %v4640 = vld [vmem:[#allocation8 + $0x74] sm:$0xf]
    %v4641 = vld [vmem:[#allocation8 + $0x78] sm:$0xff]
    %v4642 = vld [vmem:[#allocation8 + $0x80] sm:$0xf]
    %v4643 = vld [vmem:[#allocation8 + $0x84] sm:$0xff]
    %v4644 = vld [vmem:[#allocation8 + $0x8c] sm:$0xf]
    %v4645 = vld [vmem:[#allocation8 + $0x90] sm:$0xff]
    %v4646 = vld [vmem:[#allocation8 + $0x98] sm:$0xf]
    %v4647 = vld [vmem:[#allocation8 + $0x9c] sm:$0xff]
    %v4648 = vld [vmem:[#allocation8 + $0xa4] sm:$0xf]
    %v4649 = vld [vmem:[#allocation8 + $0xa8] sm:$0xff]
    %v4650 = vld [vmem:[#allocation8 + $0xb0] sm:$0xf]
    %v4651 = vld [vmem:[#allocation8 + $0xb4] sm:$0xff]
    %v4652 = vld [vmem:[#allocation8 + $0xbc] sm:$0xf]
    %v4685 = vunpack.c.l.b16 %v4621
    %v4686 = vunpack.c.h.b16 %v4621
    %v4687 = vunpack.c.l.b16 %v4622
    %v4688 = vunpack.c.l.b16 %v4623
    %v4689 = vunpack.c.h.b16 %v4623
    %v4690 = vunpack.c.l.b16 %v4624
    %v4691 = vunpack.c.l.b16 %v4625
    %v4692 = vunpack.c.h.b16 %v4625
    %v4693 = vunpack.c.l.b16 %v4626
    %v4694 = vunpack.c.l.b16 %v4627
    %v4695 = vunpack.c.h.b16 %v4627
    %v4696 = vunpack.c.l.b16 %v4628
    %v4697 = vunpack.c.l.b16 %v4629
    %v4698 = vunpack.c.h.b16 %v4629
    %v4699 = vunpack.c.l.b16 %v4630
    %v4700 = vunpack.c.l.b16 %v4631
    %v4701 = vunpack.c.h.b16 %v4631
    %v4702 = vunpack.c.l.b16 %v4632
    %v4703 = vunpack.c.l.b16 %v4633
    %v4704 = vunpack.c.h.b16 %v4633
    %v4705 = vunpack.c.l.b16 %v4634
    %v4706 = vunpack.c.l.b16 %v4635
    %v4707 = vunpack.c.h.b16 %v4635
    %v4708 = vunpack.c.l.b16 %v4636
    %v4709 = vunpack.c.l.b16 %v4637
    %v4710 = vunpack.c.h.b16 %v4637
    %v4711 = vunpack.c.l.b16 %v4638
    %v4712 = vunpack.c.l.b16 %v4639
    %v4713 = vunpack.c.h.b16 %v4639
    %v4714 = vunpack.c.l.b16 %v4640
    %v4715 = vunpack.c.l.b16 %v4641
    %v4716 = vunpack.c.h.b16 %v4641
    %v4717 = vunpack.c.l.b16 %v4642
    %v4718 = vunpack.c.l.b16 %v4643
    %v4719 = vunpack.c.h.b16 %v4643
    %v4720 = vunpack.c.l.b16 %v4644
    %v4721 = vunpack.c.l.b16 %v4645
    %v4722 = vunpack.c.h.b16 %v4645
    %v4723 = vunpack.c.l.b16 %v4646
    %v4724 = vunpack.c.l.b16 %v4647
    %v4725 = vunpack.c.h.b16 %v4647
    %v4726 = vunpack.c.l.b16 %v4648
    %v4727 = vunpack.c.l.b16 %v4649
    %v4728 = vunpack.c.h.b16 %v4649
    %v4729 = vunpack.c.l.b16 %v4650
    %v4730 = vunpack.c.l.b16 %v4651
    %v4731 = vunpack.c.h.b16 %v4651
    %v4732 = vunpack.c.l.b16 %v4652
    %v4733 = vpack.c.b16 %v4688, %v4685
    %v4734 = vpack.c.b16 %v4689, %v4686
    %v4735 = vpack.c.b16 %v4690, %v4687
    %v4736 = vpack.c.b16 %v4694, %v4691
    %v4737 = vpack.c.b16 %v4695, %v4692
    %v4738 = vpack.c.b16 %v4696, %v4693
    %v4739 = vpack.c.b16 %v4700, %v4697
    %v4740 = vpack.c.b16 %v4701, %v4698
    %v4741 = vpack.c.b16 %v4702, %v4699
    %v4742 = vpack.c.b16 %v4706, %v4703
    %v4743 = vpack.c.b16 %v4707, %v4704
    %v4744 = vpack.c.b16 %v4708, %v4705
    %v4745 = vpack.c.b16 %v4712, %v4709
    %v4746 = vpack.c.b16 %v4713, %v4710
    %v4747 = vpack.c.b16 %v4714, %v4711
    %v4748 = vpack.c.b16 %v4718, %v4715
    %v4749 = vpack.c.b16 %v4719, %v4716
    %v4750 = vpack.c.b16 %v4720, %v4717
    %v4751 = vpack.c.b16 %v4724, %v4721
    %v4752 = vpack.c.b16 %v4725, %v4722
    %v4753 = vpack.c.b16 %v4726, %v4723
    %v4754 = vpack.c.b16 %v4730, %v4727
    %v4755 = vpack.c.b16 %v4731, %v4728
    %v4756 = vpack.c.b16 %v4732, %v4729
    %4781 = vmatpush.bf16.msra.mxu0 %v4754
    %4782 = vmatpush.bf16.msra.mxu0 %v4751
    %4783 = vmatpush.bf16.msra.mxu0 %v4748
    %4784 = vmatpush.bf16.msra.mxu0 %v4745
    %4785 = vmatpush.bf16.msra.mxu0 %v4742
    %4786 = vmatpush.bf16.msra.mxu0 %v4739
    %4787 = vmatpush.bf16.msra.mxu0 %v4736
    %4788 = vmatpush.bf16.msra.mxu0 %v4733
    %4789 = vmatmul.bf16.gmra.mxu0 %v4620
    %v4790 = vpop.f32.mrf.mxu0
    %v4791 = vadd.f32 0.0, %v4790
    %v4792 = vpop.f32.mrf.mxu0
    %v4793 = vadd.f32 0.0, %v4792
    %4794 = vdwg.mxu0
    %4795 = vmatpush.bf16.msra.mxu0 %v4755
    %4796 = vmatpush.bf16.msra.mxu0 %v4752
    %4797 = vmatpush.bf16.msra.mxu0 %v4749
    %4798 = vmatpush.bf16.msra.mxu0 %v4746
    %4799 = vmatpush.bf16.msra.mxu0 %v4743
    %4800 = vmatpush.bf16.msra.mxu0 %v4740
    %4801 = vmatpush.bf16.msra.mxu0 %v4737
    %4802 = vmatpush.bf16.msra.mxu0 %v4734
    %4803 = vmatmul.bf16.gmra.mxu0 %v4620
    %v4804 = vpop.f32.mrf.mxu0
    %v4805 = vadd.f32 0.0, %v4804
    %v4806 = vpop.f32.mrf.mxu0
    %v4807 = vadd.f32 0.0, %v4806
    %4808 = vdwg.mxu0
    %4809 = vmatpush.bf16.msra.mxu0 %v4756
    %4810 = vmatpush.bf16.msra.mxu0 %v4753
    %4811 = vmatpush.bf16.msra.mxu0 %v4750
    %4812 = vmatpush.bf16.msra.mxu0 %v4747
    %4813 = vmatpush.bf16.msra.mxu0 %v4744
    %4814 = vmatpush.bf16.msra.mxu0 %v4741
    %4815 = vmatpush.bf16.msra.mxu0 %v4738
    %4816 = vmatpush.bf16.msra.mxu0 %v4735
    %4817 = vmatmul.bf16.gmra.mxu0 %v4620
    %v4818 = vpop.f32.mrf.mxu0
    %v4819 = vadd.f32 0.0, %v4818
    %v4820 = vpop.f32.mrf.mxu0
    %v4821 = vadd.f32 0.0, %v4820
    %4822 = vdwg.mxu0
    %v4823 = vadd.f32 %v4614, %v4791
    %v4824 = vadd.f32 %v4617, %v4793
    %v4825 = vxor.u32 %v4823, 2147483648
    %v4826 = vxor.u32 %v4824, 2147483648
    %v4827 = vmul.f32 %v4825, 1.442695
    %v4828 = vpow.pop %v4827
    %v4829 = vmul.f32 %v4826, 1.442695
    %v4830 = vpow.pop %v4829
    %v4831 = vadd.f32 %v4828, 1.0
    %v4832 = vadd.f32 %v4830, 1.0
    %v4833 = vrcp.pop %v4831
    %v4834 = vmul.f32 %v4831, %v4833
    %v4835 = vsub.f32 1.0, %v4834
    %v4836 = vmul.f32 %v4833, %v4835
    %v4837 = vadd.f32 %v4833, %v4836
    %vm4838 = vweird.f32 %v4831
    %vm4839 = vweird.f32 %v4833
    %vm4840 = vmor %vm4838, %vm4839
    %v4841 = vsel %vm4840, %v4833, %v4837
    %v4842 = vand.u32 2147483647, %v4831
    %vm4843 = vcmp.eq.f32.partialorder %v4842, 8.507059e+37
    %v4844 = vand.u32 %v4831, 2147483648
    %v4845 = vor.u32 1.1754944e-38, %v4844
    %v4846 = vsel %vm4843, %v4845, %v4841
    %v4847 = vmul.f32 1.0, %v4846
    %v4848 = vrcp.pop %v4832
    %v4849 = vmul.f32 %v4832, %v4848
    %v4850 = vsub.f32 1.0, %v4849
    %v4851 = vmul.f32 %v4848, %v4850
    %v4852 = vadd.f32 %v4848, %v4851
    %vm4853 = vweird.f32 %v4832
    %vm4854 = vweird.f32 %v4848
    %vm4855 = vmor %vm4853, %vm4854
    %v4856 = vsel %vm4855, %v4848, %v4852
    %v4857 = vand.u32 2147483647, %v4832
    %vm4858 = vcmp.eq.f32.partialorder %v4857, 8.507059e+37
    %v4859 = vand.u32 %v4832, 2147483648
    %v4860 = vor.u32 1.1754944e-38, %v4859
    %v4861 = vsel %vm4858, %v4860, %v4856
    %v4862 = vmul.f32 1.0, %v4861
    %v4863 = vadd.f32 %v4615, %v4805
    %v4864 = vadd.f32 %v4618, %v4807
    %v4865 = vxor.u32 %v4863, 2147483648
    %v4866 = vxor.u32 %v4864, 2147483648
    %v4867 = vmul.f32 %v4865, 1.442695
    %v4868 = vpow.pop %v4867
    %v4869 = vmul.f32 %v4866, 1.442695
    %v4870 = vpow.pop %v4869
    %v4871 = vadd.f32 %v4868, 1.0
    %v4872 = vadd.f32 %v4870, 1.0
    %v4873 = vrcp.pop %v4871
    %v4874 = vmul.f32 %v4871, %v4873
    %v4875 = vsub.f32 1.0, %v4874
    %v4876 = vmul.f32 %v4873, %v4875
    %v4877 = vadd.f32 %v4873, %v4876
    %vm4878 = vweird.f32 %v4871
    %vm4879 = vweird.f32 %v4873
    %vm4880 = vmor %vm4878, %vm4879
    %v4881 = vsel %vm4880, %v4873, %v4877
    %v4882 = vand.u32 2147483647, %v4871
    %vm4883 = vcmp.eq.f32.partialorder %v4882, 8.507059e+37
    %v4884 = vand.u32 %v4871, 2147483648
    %v4885 = vor.u32 1.1754944e-38, %v4884
    %v4886 = vsel %vm4883, %v4885, %v4881
    %v4887 = vmul.f32 1.0, %v4886
    %v4888 = vrcp.pop %v4872
    %v4889 = vmul.f32 %v4872, %v4888
    %v4890 = vsub.f32 1.0, %v4889
    %v4891 = vmul.f32 %v4888, %v4890
    %v4892 = vadd.f32 %v4888, %v4891
    %vm4893 = vweird.f32 %v4872
    %vm4894 = vweird.f32 %v4888
    %vm4895 = vmor %vm4893, %vm4894
    %v4896 = vsel %vm4895, %v4888, %v4892
    %v4897 = vand.u32 2147483647, %v4872
    %vm4898 = vcmp.eq.f32.partialorder %v4897, 8.507059e+37
    %v4899 = vand.u32 %v4872, 2147483648
    %v4900 = vor.u32 1.1754944e-38, %v4899
    %v4901 = vsel %vm4898, %v4900, %v4896
    %v4902 = vmul.f32 1.0, %v4901
    %v4903 = vld [vmem:[%s8] sm:$0x1]
    %v4905 = vperm.slane %v4903, 0
    %v4907 = vadd.f32 %v4819, %v4905
    %v4908 = vadd.f32 %v4821, %v4905
    %v4909 = vmul.f32 %v4847, %v4907
    %v4910 = vmul.f32 %v4862, %v4908
    %v4911 = vadd.f32 %v4616, %v4909
    %v4912 = vadd.f32 %v4619, %v4910
    %v4913 = vtanh.pop %v4911
    %v4914 = vtanh.pop %v4912
    %v4915 = vsub.f32 %v4606, %v4913
    %v4916 = vsub.f32 %v4607, %v4914
    %v4917 = vmul.f32 %v4887, %v4915
    %v4918 = vmul.f32 %v4902, %v4916
    %v4919 = vadd.f32 %v4913, %v4917
    %v4920 = vadd.f32 %v4914, %v4918
    %s4921 = scalar_lea.vmem %s13, 64
    %4922 = vst [vmem:[%s4921] sm:$0xff] %v4919
    %4923 = vst [vmem:[%s4921 + $0x8] sm:$0xff] %v4920
    %v4924 = vld [vmem:[%s13 + $0x48] sm:$0xff]
    %4925 = vst [vmem:[%s14 + $0x8] sm:$0xff] %v4924
    %4926 = vst [vmem:[%s13 + $0x50] sm:$0xff] 0.0
    %4927 = vst [vmem:[%s13 + $0x58] sm:$0xff] 0.0
    %v4928 = vld [vmem:[%s13] sm:$0xff]
    %v4929 = vld [vmem:[%s13 + $0x8] sm:$0xff]
    %v4930 = vld [vmem:[%s13 + $0x10] sm:$0xff]
    %v4931 = vld [vmem:[%s13 + $0x18] sm:$0xff]
    %v4932 = vld [vmem:[%s13 + $0x20] sm:$0xff]
    %v4933 = vld [vmem:[%s13 + $0x28] sm:$0xff]
    %v4934 = vld [vmem:[%s13 + $0x30] sm:$0xff]
    %v4935 = vld [vmem:[%s13 + $0x38] sm:$0xff]
    %v4936 = vld [vmem:[%s13 + $0x40] sm:$0xff]
    %v4937 = vld [vmem:[%s13 + $0x48] sm:$0xff]
    %v4938 = vld [vmem:[%s13 + $0x50] sm:$0xff]
    %v4939 = vld [vmem:[%s13 + $0x58] sm:$0xff]
    %v4940 = vpack.c.bf16 %v4929, %v4928
    %v4941 = vpack.c.bf16 %v4931, %v4930
    %v4942 = vpack.c.bf16 %v4933, %v4932
    %v4943 = vpack.c.bf16 %v4935, %v4934
    %v4944 = vpack.c.bf16 %v4937, %v4936
    %v4945 = vpack.c.bf16 %v4939, %v4938
    %v4946 = vld [vmem:[#allocation10] sm:$0xff]
    %v4947 = vld [vmem:[#allocation10 + $0x8] sm:$0xf]
    %v4948 = vld [vmem:[#allocation10 + $0xc] sm:$0xff]
    %v4949 = vld [vmem:[#allocation10 + $0x14] sm:$0xf]
    %v4950 = vld [vmem:[#allocation10 + $0x18] sm:$0xff]
    %v4951 = vld [vmem:[#allocation10 + $0x20] sm:$0xf]
    %v4952 = vld [vmem:[#allocation10 + $0x24] sm:$0xff]
    %v4953 = vld [vmem:[#allocation10 + $0x2c] sm:$0xf]
    %v4954 = vld [vmem:[#allocation10 + $0x30] sm:$0xff]
    %v4955 = vld [vmem:[#allocation10 + $0x38] sm:$0xf]
    %v4956 = vld [vmem:[#allocation10 + $0x3c] sm:$0xff]
    %v4957 = vld [vmem:[#allocation10 + $0x44] sm:$0xf]
    %v4958 = vld [vmem:[#allocation10 + $0x48] sm:$0xff]
    %v4959 = vld [vmem:[#allocation10 + $0x50] sm:$0xf]
    %v4960 = vld [vmem:[#allocation10 + $0x54] sm:$0xff]
    %v4961 = vld [vmem:[#allocation10 + $0x5c] sm:$0xf]
    %v4962 = vld [vmem:[#allocation10 + $0x60] sm:$0xff]
    %v4963 = vld [vmem:[#allocation10 + $0x68] sm:$0xf]
    %v4964 = vld [vmem:[#allocation10 + $0x6c] sm:$0xff]
    %v4965 = vld [vmem:[#allocation10 + $0x74] sm:$0xf]
    %v4966 = vld [vmem:[#allocation10 + $0x78] sm:$0xff]
    %v4967 = vld [vmem:[#allocation10 + $0x80] sm:$0xf]
    %v4968 = vld [vmem:[#allocation10 + $0x84] sm:$0xff]
    %v4969 = vld [vmem:[#allocation10 + $0x8c] sm:$0xf]
    %v4970 = vld [vmem:[#allocation10 + $0x90] sm:$0xff]
    %v4971 = vld [vmem:[#allocation10 + $0x98] sm:$0xf]
    %v4972 = vld [vmem:[#allocation10 + $0x9c] sm:$0xff]
    %v4973 = vld [vmem:[#allocation10 + $0xa4] sm:$0xf]
    %v4974 = vld [vmem:[#allocation10 + $0xa8] sm:$0xff]
    %v4975 = vld [vmem:[#allocation10 + $0xb0] sm:$0xf]
    %v4976 = vld [vmem:[#allocation10 + $0xb4] sm:$0xff]
    %v4977 = vld [vmem:[#allocation10 + $0xbc] sm:$0xf]
    %v4978 = vld [vmem:[%s11] sm:$0x7]
    %v4980 = vperm.slane %v4978, 0
    %v4981 = vperm.slane %v4978, 1
    %v4982 = vperm.slane %v4978, 2
    %v5018 = vunpack.c.l.b16 %v4946
    %v5019 = vunpack.c.h.b16 %v4946
    %v5020 = vunpack.c.l.b16 %v4947
    %v5021 = vunpack.c.l.b16 %v4948
    %v5022 = vunpack.c.h.b16 %v4948
    %v5023 = vunpack.c.l.b16 %v4949
    %v5024 = vunpack.c.l.b16 %v4950
    %v5025 = vunpack.c.h.b16 %v4950
    %v5026 = vunpack.c.l.b16 %v4951
    %v5027 = vunpack.c.l.b16 %v4952
    %v5028 = vunpack.c.h.b16 %v4952
    %v5029 = vunpack.c.l.b16 %v4953
    %v5030 = vunpack.c.l.b16 %v4954
    %v5031 = vunpack.c.h.b16 %v4954
    %v5032 = vunpack.c.l.b16 %v4955
    %v5033 = vunpack.c.l.b16 %v4956
    %v5034 = vunpack.c.h.b16 %v4956
    %v5035 = vunpack.c.l.b16 %v4957
    %v5036 = vunpack.c.l.b16 %v4958
    %v5037 = vunpack.c.h.b16 %v4958
    %v5038 = vunpack.c.l.b16 %v4959
    %v5039 = vunpack.c.l.b16 %v4960
    %v5040 = vunpack.c.h.b16 %v4960
    %v5041 = vunpack.c.l.b16 %v4961
    %v5042 = vunpack.c.l.b16 %v4962
    %v5043 = vunpack.c.h.b16 %v4962
    %v5044 = vunpack.c.l.b16 %v4963
    %v5045 = vunpack.c.l.b16 %v4964
    %v5046 = vunpack.c.h.b16 %v4964
    %v5047 = vunpack.c.l.b16 %v4965
    %v5048 = vunpack.c.l.b16 %v4966
    %v5049 = vunpack.c.h.b16 %v4966
    %v5050 = vunpack.c.l.b16 %v4967
    %v5051 = vunpack.c.l.b16 %v4968
    %v5052 = vunpack.c.h.b16 %v4968
    %v5053 = vunpack.c.l.b16 %v4969
    %v5054 = vunpack.c.l.b16 %v4970
    %v5055 = vunpack.c.h.b16 %v4970
    %v5056 = vunpack.c.l.b16 %v4971
    %v5057 = vunpack.c.l.b16 %v4972
    %v5058 = vunpack.c.h.b16 %v4972
    %v5059 = vunpack.c.l.b16 %v4973
    %v5060 = vunpack.c.l.b16 %v4974
    %v5061 = vunpack.c.h.b16 %v4974
    %v5062 = vunpack.c.l.b16 %v4975
    %v5063 = vunpack.c.l.b16 %v4976
    %v5064 = vunpack.c.h.b16 %v4976
    %v5065 = vunpack.c.l.b16 %v4977
    %v5066 = vpack.c.b16 %v5021, %v5018
    %v5067 = vpack.c.b16 %v5022, %v5019
    %v5068 = vpack.c.b16 %v5023, %v5020
    %v5069 = vpack.c.b16 %v5027, %v5024
    %v5070 = vpack.c.b16 %v5028, %v5025
    %v5071 = vpack.c.b16 %v5029, %v5026
    %v5072 = vpack.c.b16 %v5033, %v5030
    %v5073 = vpack.c.b16 %v5034, %v5031
    %v5074 = vpack.c.b16 %v5035, %v5032
    %v5075 = vpack.c.b16 %v5039, %v5036
    %v5076 = vpack.c.b16 %v5040, %v5037
    %v5077 = vpack.c.b16 %v5041, %v5038
    %v5078 = vpack.c.b16 %v5045, %v5042
    %v5079 = vpack.c.b16 %v5046, %v5043
    %v5080 = vpack.c.b16 %v5047, %v5044
    %v5081 = vpack.c.b16 %v5051, %v5048
    %v5082 = vpack.c.b16 %v5052, %v5049
    %v5083 = vpack.c.b16 %v5053, %v5050
    %v5084 = vpack.c.b16 %v5057, %v5054
    %v5085 = vpack.c.b16 %v5058, %v5055
    %v5086 = vpack.c.b16 %v5059, %v5056
    %v5087 = vpack.c.b16 %v5063, %v5060
    %v5088 = vpack.c.b16 %v5064, %v5061
    %v5089 = vpack.c.b16 %v5065, %v5062
    %5114 = vmatpush.bf16.msra.mxu0 %v5087
    %5115 = vmatpush.bf16.msra.mxu0 %v5084
    %5116 = vmatpush.bf16.msra.mxu0 %v5081
    %5117 = vmatpush.bf16.msra.mxu0 %v5078
    %5118 = vmatpush.bf16.msra.mxu0 %v5075
    %5119 = vmatpush.bf16.msra.mxu0 %v5072
    %5120 = vmatpush.bf16.msra.mxu0 %v5069
    %5121 = vmatpush.bf16.msra.mxu0 %v5066
    %5122 = vmatmul.bf16.gmra.mxu0 %v4940
    %v5123 = vpop.f32.mrf.mxu0
    %v5124 = vadd.f32 %v4980, %v5123
    %v5125 = vpop.f32.mrf.mxu0
    %v5126 = vadd.f32 %v4980, %v5125
    %5127 = vmatmul.bf16.gmra.mxu0 %v4941
    %v5128 = vpop.f32.mrf.mxu0
    %v5129 = vadd.f32 %v4980, %v5128
    %v5130 = vpop.f32.mrf.mxu0
    %v5131 = vadd.f32 %v4980, %v5130
    %5132 = vmatmul.bf16.gmra.mxu0 %v4942
    %v5133 = vpop.f32.mrf.mxu0
    %v5134 = vadd.f32 %v4980, %v5133
    %v5135 = vpop.f32.mrf.mxu0
    %v5136 = vadd.f32 %v4980, %v5135
    %5137 = vmatmul.bf16.gmra.mxu0 %v4943
    %v5138 = vpop.f32.mrf.mxu0
    %v5139 = vadd.f32 %v4980, %v5138
    %v5140 = vpop.f32.mrf.mxu0
    %v5141 = vadd.f32 %v4980, %v5140
    %5142 = vmatmul.bf16.gmra.mxu0 %v4944
    %v5143 = vpop.f32.mrf.mxu0
    %v5144 = vadd.f32 %v4980, %v5143
    %v5145 = vpop.f32.mrf.mxu0
    %v5146 = vadd.f32 %v4980, %v5145
    %5147 = vmatmul.bf16.gmra.mxu0 %v4945
    %v5148 = vpop.f32.mrf.mxu0
    %v5149 = vadd.f32 %v4980, %v5148
    %v5150 = vpop.f32.mrf.mxu0
    %v5151 = vadd.f32 %v4980, %v5150
    %5152 = vdwg.mxu0
    %5153 = vmatpush.bf16.msra.mxu0 %v5088
    %5154 = vmatpush.bf16.msra.mxu0 %v5085
    %5155 = vmatpush.bf16.msra.mxu0 %v5082
    %5156 = vmatpush.bf16.msra.mxu0 %v5079
    %5157 = vmatpush.bf16.msra.mxu0 %v5076
    %5158 = vmatpush.bf16.msra.mxu0 %v5073
    %5159 = vmatpush.bf16.msra.mxu0 %v5070
    %5160 = vmatpush.bf16.msra.mxu0 %v5067
    %5161 = vmatmul.bf16.gmra.mxu0 %v4940
    %v5162 = vpop.f32.mrf.mxu0
    %v5163 = vadd.f32 %v4981, %v5162
    %v5164 = vpop.f32.mrf.mxu0
    %v5165 = vadd.f32 %v4981, %v5164
    %5166 = vmatmul.bf16.gmra.mxu0 %v4941
    %v5167 = vpop.f32.mrf.mxu0
    %v5168 = vadd.f32 %v4981, %v5167
    %v5169 = vpop.f32.mrf.mxu0
    %v5170 = vadd.f32 %v4981, %v5169
    %5171 = vmatmul.bf16.gmra.mxu0 %v4942
    %v5172 = vpop.f32.mrf.mxu0
    %v5173 = vadd.f32 %v4981, %v5172
    %v5174 = vpop.f32.mrf.mxu0
    %v5175 = vadd.f32 %v4981, %v5174
    %5176 = vmatmul.bf16.gmra.mxu0 %v4943
    %v5177 = vpop.f32.mrf.mxu0
    %v5178 = vadd.f32 %v4981, %v5177
    %v5179 = vpop.f32.mrf.mxu0
    %v5180 = vadd.f32 %v4981, %v5179
    %5181 = vmatmul.bf16.gmra.mxu0 %v4944
    %v5182 = vpop.f32.mrf.mxu0
    %v5183 = vadd.f32 %v4981, %v5182
    %v5184 = vpop.f32.mrf.mxu0
    %v5185 = vadd.f32 %v4981, %v5184
    %5186 = vmatmul.bf16.gmra.mxu0 %v4945
    %v5187 = vpop.f32.mrf.mxu0
    %v5188 = vadd.f32 %v4981, %v5187
    %v5189 = vpop.f32.mrf.mxu0
    %v5190 = vadd.f32 %v4981, %v5189
    %5191 = vdwg.mxu0
    %5192 = vmatpush.bf16.msra.mxu0 %v5089
    %5193 = vmatpush.bf16.msra.mxu0 %v5086
    %5194 = vmatpush.bf16.msra.mxu0 %v5083
    %5195 = vmatpush.bf16.msra.mxu0 %v5080
    %5196 = vmatpush.bf16.msra.mxu0 %v5077
    %5197 = vmatpush.bf16.msra.mxu0 %v5074
    %5198 = vmatpush.bf16.msra.mxu0 %v5071
    %5199 = vmatpush.bf16.msra.mxu0 %v5068
    %5200 = vmatmul.bf16.gmra.mxu0 %v4940
    %v5201 = vpop.f32.mrf.mxu0
    %v5202 = vadd.f32 %v4982, %v5201
    %v5203 = vpop.f32.mrf.mxu0
    %v5204 = vadd.f32 %v4982, %v5203
    %5205 = vmatmul.bf16.gmra.mxu0 %v4941
    %v5206 = vpop.f32.mrf.mxu0
    %v5207 = vadd.f32 %v4982, %v5206
    %v5208 = vpop.f32.mrf.mxu0
    %v5209 = vadd.f32 %v4982, %v5208
    %5210 = vmatmul.bf16.gmra.mxu0 %v4942
    %v5211 = vpop.f32.mrf.mxu0
    %v5212 = vadd.f32 %v4982, %v5211
    %v5213 = vpop.f32.mrf.mxu0
    %v5214 = vadd.f32 %v4982, %v5213
    %5215 = vmatmul.bf16.gmra.mxu0 %v4943
    %v5216 = vpop.f32.mrf.mxu0
    %v5217 = vadd.f32 %v4982, %v5216
    %v5218 = vpop.f32.mrf.mxu0
    %v5219 = vadd.f32 %v4982, %v5218
    %5220 = vmatmul.bf16.gmra.mxu0 %v4944
    %v5221 = vpop.f32.mrf.mxu0
    %v5222 = vadd.f32 %v4982, %v5221
    %v5223 = vpop.f32.mrf.mxu0
    %v5224 = vadd.f32 %v4982, %v5223
    %5225 = vmatmul.bf16.gmra.mxu0 %v4945
    %v5226 = vpop.f32.mrf.mxu0
    %v5227 = vadd.f32 %v4982, %v5226
    %v5228 = vpop.f32.mrf.mxu0
    %v5229 = vadd.f32 %v4982, %v5228
    %5230 = vdwg.mxu0
    %5231 = vst [vmem:[#allocation2] sm:$0xff] %v5124
    %5232 = vst [vmem:[#allocation2 + $0x8] sm:$0xff] %v5163
    %5233 = vst [vmem:[#allocation2 + $0x10] sm:$0xff] %v5202
    %5234 = vst [vmem:[#allocation2 + $0x18] sm:$0xff] %v5126
    %5235 = vst [vmem:[#allocation2 + $0x20] sm:$0xff] %v5165
    %5236 = vst [vmem:[#allocation2 + $0x28] sm:$0xff] %v5204
    %5237 = vst [vmem:[#allocation2 + $0x30] sm:$0xff] %v5129
    %5238 = vst [vmem:[#allocation2 + $0x38] sm:$0xff] %v5168
    %5239 = vst [vmem:[#allocation2 + $0x40] sm:$0xff] %v5207
    %5240 = vst [vmem:[#allocation2 + $0x48] sm:$0xff] %v5131
    %5241 = vst [vmem:[#allocation2 + $0x50] sm:$0xff] %v5170
    %5242 = vst [vmem:[#allocation2 + $0x58] sm:$0xff] %v5209
    %5243 = vst [vmem:[#allocation2 + $0x60] sm:$0xff] %v5134
    %5244 = vst [vmem:[#allocation2 + $0x68] sm:$0xff] %v5173
    %5245 = vst [vmem:[#allocation2 + $0x70] sm:$0xff] %v5212
    %5246 = vst [vmem:[#allocation2 + $0x78] sm:$0xff] %v5136
    %5247 = vst [vmem:[#allocation2 + $0x80] sm:$0xff] %v5175
    %5248 = vst [vmem:[#allocation2 + $0x88] sm:$0xff] %v5214
    %5249 = vst [vmem:[#allocation2 + $0x90] sm:$0xff] %v5139
    %5250 = vst [vmem:[#allocation2 + $0x98] sm:$0xff] %v5178
    %5251 = vst [vmem:[#allocation2 + $0xa0] sm:$0xff] %v5217
    %5252 = vst [vmem:[#allocation2 + $0xa8] sm:$0xff] %v5141
    %5253 = vst [vmem:[#allocation2 + $0xb0] sm:$0xff] %v5180
    %5254 = vst [vmem:[#allocation2 + $0xb8] sm:$0xff] %v5219
    %5255 = vst [vmem:[#allocation2 + $0xc0] sm:$0xff] %v5144
    %5256 = vst [vmem:[#allocation2 + $0xc8] sm:$0xff] %v5183
    %5257 = vst [vmem:[#allocation2 + $0xd0] sm:$0xff] %v5222
    %5258 = vst [vmem:[#allocation2 + $0xd8] sm:$0xff] %v5146
    %5259 = vst [vmem:[#allocation2 + $0xe0] sm:$0xff] %v5185
    %5260 = vst [vmem:[#allocation2 + $0xe8] sm:$0xff] %v5224
    %5261 = vst [vmem:[#allocation2 + $0xf0] sm:$0xff] %v5149
    %5262 = vst [vmem:[#allocation2 + $0xf8] sm:$0xff] %v5188
    %5263 = vst [vmem:[#allocation2 + $0x100] sm:$0xff] %v5227
    %5264 = vst [vmem:[#allocation2 + $0x108] sm:$0xff] %v5151
    %5265 = vst [vmem:[#allocation2 + $0x110] sm:$0xff] %v5190
    %5266 = vst [vmem:[#allocation2 + $0x118] sm:$0xff] %v5229
    %s5267 = smul.u32 0, 3
    %s5268 = smul.addr %s5267, 8
    %s5269 = scalar_lea.vmem [#allocation2], %s5268
    %v5270 = vld [vmem:[%s5269] sm:$0xff]
    %v5271 = vld [vmem:[%s5269 + $0x8] sm:$0xff]
    %v5272 = vld [vmem:[%s5269 + $0x10] sm:$0xff]
    %v5273 = vld [vmem:[%s5269 + $0x18] sm:$0xff]
    %v5274 = vld [vmem:[%s5269 + $0x20] sm:$0xff]
    %v5275 = vld [vmem:[%s5269 + $0x28] sm:$0xff]
    %v5276 = vld [vmem:[%s5269 + $0x30] sm:$0xff]
    %v5277 = vld [vmem:[%s5269 + $0x38] sm:$0xff]
    %v5278 = vld [vmem:[%s5269 + $0x40] sm:$0xff]
    %v5279 = vld [vmem:[%s5269 + $0x48] sm:$0xff]
    %v5280 = vld [vmem:[%s5269 + $0x50] sm:$0xff]
    %v5281 = vld [vmem:[%s5269 + $0x58] sm:$0xff]
    %v5282 = vld [vmem:[#allocation11] sm:$0xff]
    %v5283 = vld [vmem:[#allocation11 + $0x8] sm:$0xf]
    %v5284 = vld [vmem:[#allocation11 + $0xc] sm:$0xff]
    %v5285 = vld [vmem:[#allocation11 + $0x14] sm:$0xf]
    %v5286 = vld [vmem:[#allocation11 + $0x18] sm:$0xff]
    %v5287 = vld [vmem:[#allocation11 + $0x20] sm:$0xf]
    %v5288 = vld [vmem:[#allocation11 + $0x24] sm:$0xff]
    %v5289 = vld [vmem:[#allocation11 + $0x2c] sm:$0xf]
    %v5290 = vld [vmem:[#allocation11 + $0x30] sm:$0xff]
    %v5291 = vld [vmem:[#allocation11 + $0x38] sm:$0xf]
    %v5292 = vld [vmem:[#allocation11 + $0x3c] sm:$0xff]
    %v5293 = vld [vmem:[#allocation11 + $0x44] sm:$0xf]
    %v5294 = vld [vmem:[#allocation11 + $0x48] sm:$0xff]
    %v5295 = vld [vmem:[#allocation11 + $0x50] sm:$0xf]
    %v5296 = vld [vmem:[#allocation11 + $0x54] sm:$0xff]
    %v5297 = vld [vmem:[#allocation11 + $0x5c] sm:$0xf]
    %v5298 = vld [vmem:[#allocation11 + $0x60] sm:$0xff]
    %v5299 = vld [vmem:[#allocation11 + $0x68] sm:$0xf]
    %v5300 = vld [vmem:[#allocation11 + $0x6c] sm:$0xff]
    %v5301 = vld [vmem:[#allocation11 + $0x74] sm:$0xf]
    %v5302 = vld [vmem:[#allocation11 + $0x78] sm:$0xff]
    %v5303 = vld [vmem:[#allocation11 + $0x80] sm:$0xf]
    %v5304 = vld [vmem:[#allocation11 + $0x84] sm:$0xff]
    %v5305 = vld [vmem:[#allocation11 + $0x8c] sm:$0xf]
    %v5306 = vld [vmem:[#allocation11 + $0x90] sm:$0xff]
    %v5307 = vld [vmem:[#allocation11 + $0x98] sm:$0xf]
    %v5308 = vld [vmem:[#allocation11 + $0x9c] sm:$0xff]
    %v5309 = vld [vmem:[#allocation11 + $0xa4] sm:$0xf]
    %v5310 = vld [vmem:[#allocation11 + $0xa8] sm:$0xff]
    %v5311 = vld [vmem:[#allocation11 + $0xb0] sm:$0xf]
    %v5312 = vld [vmem:[#allocation11 + $0xb4] sm:$0xff]
    %v5313 = vld [vmem:[#allocation11 + $0xbc] sm:$0xf]
    %v5346 = vunpack.c.l.b16 %v5282
    %v5347 = vunpack.c.h.b16 %v5282
    %v5348 = vunpack.c.l.b16 %v5283
    %v5349 = vunpack.c.l.b16 %v5284
    %v5350 = vunpack.c.h.b16 %v5284
    %v5351 = vunpack.c.l.b16 %v5285
    %v5352 = vunpack.c.l.b16 %v5286
    %v5353 = vunpack.c.h.b16 %v5286
    %v5354 = vunpack.c.l.b16 %v5287
    %v5355 = vunpack.c.l.b16 %v5288
    %v5356 = vunpack.c.h.b16 %v5288
    %v5357 = vunpack.c.l.b16 %v5289
    %v5358 = vunpack.c.l.b16 %v5290
    %v5359 = vunpack.c.h.b16 %v5290
    %v5360 = vunpack.c.l.b16 %v5291
    %v5361 = vunpack.c.l.b16 %v5292
    %v5362 = vunpack.c.h.b16 %v5292
    %v5363 = vunpack.c.l.b16 %v5293
    %v5364 = vunpack.c.l.b16 %v5294
    %v5365 = vunpack.c.h.b16 %v5294
    %v5366 = vunpack.c.l.b16 %v5295
    %v5367 = vunpack.c.l.b16 %v5296
    %v5368 = vunpack.c.h.b16 %v5296
    %v5369 = vunpack.c.l.b16 %v5297
    %v5370 = vunpack.c.l.b16 %v5298
    %v5371 = vunpack.c.h.b16 %v5298
    %v5372 = vunpack.c.l.b16 %v5299
    %v5373 = vunpack.c.l.b16 %v5300
    %v5374 = vunpack.c.h.b16 %v5300
    %v5375 = vunpack.c.l.b16 %v5301
    %v5376 = vunpack.c.l.b16 %v5302
    %v5377 = vunpack.c.h.b16 %v5302
    %v5378 = vunpack.c.l.b16 %v5303
    %v5379 = vunpack.c.l.b16 %v5304
    %v5380 = vunpack.c.h.b16 %v5304
    %v5381 = vunpack.c.l.b16 %v5305
    %v5382 = vunpack.c.l.b16 %v5306
    %v5383 = vunpack.c.h.b16 %v5306
    %v5384 = vunpack.c.l.b16 %v5307
    %v5385 = vunpack.c.l.b16 %v5308
    %v5386 = vunpack.c.h.b16 %v5308
    %v5387 = vunpack.c.l.b16 %v5309
    %v5388 = vunpack.c.l.b16 %v5310
    %v5389 = vunpack.c.h.b16 %v5310
    %v5390 = vunpack.c.l.b16 %v5311
    %v5391 = vunpack.c.l.b16 %v5312
    %v5392 = vunpack.c.h.b16 %v5312
    %v5393 = vunpack.c.l.b16 %v5313
    %v5394 = vpack.c.b16 %v5349, %v5346
    %v5395 = vpack.c.b16 %v5350, %v5347
    %v5396 = vpack.c.b16 %v5351, %v5348
    %v5397 = vpack.c.b16 %v5355, %v5352
    %v5398 = vpack.c.b16 %v5356, %v5353
    %v5399 = vpack.c.b16 %v5357, %v5354
    %v5400 = vpack.c.b16 %v5361, %v5358
    %v5401 = vpack.c.b16 %v5362, %v5359
    %v5402 = vpack.c.b16 %v5363, %v5360
    %v5403 = vpack.c.b16 %v5367, %v5364
    %v5404 = vpack.c.b16 %v5368, %v5365
    %v5405 = vpack.c.b16 %v5369, %v5366
    %v5406 = vpack.c.b16 %v5373, %v5370
    %v5407 = vpack.c.b16 %v5374, %v5371
    %v5408 = vpack.c.b16 %v5375, %v5372
    %v5409 = vpack.c.b16 %v5379, %v5376
    %v5410 = vpack.c.b16 %v5380, %v5377
    %v5411 = vpack.c.b16 %v5381, %v5378
    %v5412 = vpack.c.b16 %v5385, %v5382
    %v5413 = vpack.c.b16 %v5386, %v5383
    %v5414 = vpack.c.b16 %v5387, %v5384
    %v5415 = vpack.c.b16 %v5391, %v5388
    %v5416 = vpack.c.b16 %v5392, %v5389
    %v5417 = vpack.c.b16 %v5393, %v5390
    %5442 = vmatpush.bf16.msra.mxu0 %v5415
    %5443 = vmatpush.bf16.msra.mxu0 %v5412
    %5444 = vmatpush.bf16.msra.mxu0 %v5409
    %5445 = vmatpush.bf16.msra.mxu0 %v5406
    %5446 = vmatpush.bf16.msra.mxu0 %v5403
    %5447 = vmatpush.bf16.msra.mxu0 %v5400
    %5448 = vmatpush.bf16.msra.mxu0 %v5397
    %5449 = vmatpush.bf16.msra.mxu0 %v5394
    %5450 = vmatmul.bf16.gmra.mxu0 0
    %v5451 = vpop.f32.mrf.mxu0
    %v5452 = vadd.f32 0.0, %v5451
    %v5453 = vpop.f32.mrf.mxu0
    %v5454 = vadd.f32 0.0, %v5453
    %5455 = vmatmul.bf16.gmra.mxu0 0
    %v5456 = vpop.f32.mrf.mxu0
    %v5457 = vadd.f32 0.0, %v5456
    %v5458 = vpop.f32.mrf.mxu0
    %v5459 = vadd.f32 0.0, %v5458
    %5460 = vdwg.mxu0
    %5461 = vmatpush.bf16.msra.mxu0 %v5416
    %5462 = vmatpush.bf16.msra.mxu0 %v5413
    %5463 = vmatpush.bf16.msra.mxu0 %v5410
    %5464 = vmatpush.bf16.msra.mxu0 %v5407
    %5465 = vmatpush.bf16.msra.mxu0 %v5404
    %5466 = vmatpush.bf16.msra.mxu0 %v5401
    %5467 = vmatpush.bf16.msra.mxu0 %v5398
    %5468 = vmatpush.bf16.msra.mxu0 %v5395
    %5469 = vmatmul.bf16.gmra.mxu0 0
    %v5470 = vpop.f32.mrf.mxu0
    %v5471 = vadd.f32 0.0, %v5470
    %v5472 = vpop.f32.mrf.mxu0
    %v5473 = vadd.f32 0.0, %v5472
    %5474 = vmatmul.bf16.gmra.mxu0 0
    %v5475 = vpop.f32.mrf.mxu0
    %v5476 = vadd.f32 0.0, %v5475
    %v5477 = vpop.f32.mrf.mxu0
    %v5478 = vadd.f32 0.0, %v5477
    %5479 = vdwg.mxu0
    %5480 = vmatpush.bf16.msra.mxu0 %v5417
    %5481 = vmatpush.bf16.msra.mxu0 %v5414
    %5482 = vmatpush.bf16.msra.mxu0 %v5411
    %5483 = vmatpush.bf16.msra.mxu0 %v5408
    %5484 = vmatpush.bf16.msra.mxu0 %v5405
    %5485 = vmatpush.bf16.msra.mxu0 %v5402
    %5486 = vmatpush.bf16.msra.mxu0 %v5399
    %5487 = vmatpush.bf16.msra.mxu0 %v5396
    %5488 = vmatmul.bf16.gmra.mxu0 0
    %v5489 = vpop.f32.mrf.mxu0
    %v5490 = vadd.f32 0.0, %v5489
    %v5491 = vpop.f32.mrf.mxu0
    %v5492 = vadd.f32 0.0, %v5491
    %5493 = vmatmul.bf16.gmra.mxu0 0
    %v5494 = vpop.f32.mrf.mxu0
    %v5495 = vadd.f32 0.0, %v5494
    %v5496 = vpop.f32.mrf.mxu0
    %v5497 = vadd.f32 0.0, %v5496
    %5498 = vdwg.mxu0
    %v5499 = vadd.f32 %v5270, %v5452
    %v5500 = vadd.f32 %v5273, %v5454
    %v5501 = vadd.f32 %v5276, %v5457
    %v5502 = vadd.f32 %v5279, %v5459
    %v5503 = vxor.u32 %v5499, 2147483648
    %v5504 = vxor.u32 %v5500, 2147483648
    %v5505 = vxor.u32 %v5501, 2147483648
    %v5506 = vxor.u32 %v5502, 2147483648
    %v5507 = vmul.f32 %v5503, 1.442695
    %v5508 = vpow.pop %v5507
    %v5509 = vmul.f32 %v5504, 1.442695
    %v5510 = vpow.pop %v5509
    %v5511 = vmul.f32 %v5505, 1.442695
    %v5512 = vpow.pop %v5511
    %v5513 = vmul.f32 %v5506, 1.442695
    %v5514 = vpow.pop %v5513
    %v5515 = vadd.f32 %v5508, 1.0
    %v5516 = vadd.f32 %v5510, 1.0
    %v5517 = vadd.f32 %v5512, 1.0
    %v5518 = vadd.f32 %v5514, 1.0
    %v5519 = vrcp.pop %v5515
    %v5520 = vmul.f32 %v5515, %v5519
    %v5521 = vsub.f32 1.0, %v5520
    %v5522 = vmul.f32 %v5519, %v5521
    %v5523 = vadd.f32 %v5519, %v5522
    %vm5524 = vweird.f32 %v5515
    %vm5525 = vweird.f32 %v5519
    %vm5526 = vmor %vm5524, %vm5525
    %v5527 = vsel %vm5526, %v5519, %v5523
    %v5528 = vand.u32 2147483647, %v5515
    %vm5529 = vcmp.eq.f32.partialorder %v5528, 8.507059e+37
    %v5530 = vand.u32 %v5515, 2147483648
    %v5531 = vor.u32 1.1754944e-38, %v5530
    %v5532 = vsel %vm5529, %v5531, %v5527
    %v5533 = vmul.f32 1.0, %v5532
    %v5534 = vrcp.pop %v5516
    %v5535 = vmul.f32 %v5516, %v5534
    %v5536 = vsub.f32 1.0, %v5535
    %v5537 = vmul.f32 %v5534, %v5536
    %v5538 = vadd.f32 %v5534, %v5537
    %vm5539 = vweird.f32 %v5516
    %vm5540 = vweird.f32 %v5534
    %vm5541 = vmor %vm5539, %vm5540
    %v5542 = vsel %vm5541, %v5534, %v5538
    %v5543 = vand.u32 2147483647, %v5516
    %vm5544 = vcmp.eq.f32.partialorder %v5543, 8.507059e+37
    %v5545 = vand.u32 %v5516, 2147483648
    %v5546 = vor.u32 1.1754944e-38, %v5545
    %v5547 = vsel %vm5544, %v5546, %v5542
    %v5548 = vmul.f32 1.0, %v5547
    %v5549 = vrcp.pop %v5517
    %v5550 = vmul.f32 %v5517, %v5549
    %v5551 = vsub.f32 1.0, %v5550
    %v5552 = vmul.f32 %v5549, %v5551
    %v5553 = vadd.f32 %v5549, %v5552
    %vm5554 = vweird.f32 %v5517
    %vm5555 = vweird.f32 %v5549
    %vm5556 = vmor %vm5554, %vm5555
    %v5557 = vsel %vm5556, %v5549, %v5553
    %v5558 = vand.u32 2147483647, %v5517
    %vm5559 = vcmp.eq.f32.partialorder %v5558, 8.507059e+37
    %v5560 = vand.u32 %v5517, 2147483648
    %v5561 = vor.u32 1.1754944e-38, %v5560
    %v5562 = vsel %vm5559, %v5561, %v5557
    %v5563 = vmul.f32 1.0, %v5562
    %v5564 = vrcp.pop %v5518
    %v5565 = vmul.f32 %v5518, %v5564
    %v5566 = vsub.f32 1.0, %v5565
    %v5567 = vmul.f32 %v5564, %v5566
    %v5568 = vadd.f32 %v5564, %v5567
    %vm5569 = vweird.f32 %v5518
    %vm5570 = vweird.f32 %v5564
    %vm5571 = vmor %vm5569, %vm5570
    %v5572 = vsel %vm5571, %v5564, %v5568
    %v5573 = vand.u32 2147483647, %v5518
    %vm5574 = vcmp.eq.f32.partialorder %v5573, 8.507059e+37
    %v5575 = vand.u32 %v5518, 2147483648
    %v5576 = vor.u32 1.1754944e-38, %v5575
    %v5577 = vsel %vm5574, %v5576, %v5572
    %v5578 = vmul.f32 1.0, %v5577
    %v5579 = vadd.f32 %v5271, %v5471
    %v5580 = vadd.f32 %v5274, %v5473
    %v5581 = vadd.f32 %v5277, %v5476
    %v5582 = vadd.f32 %v5280, %v5478
    %v5583 = vxor.u32 %v5579, 2147483648
    %v5584 = vxor.u32 %v5580, 2147483648
    %v5585 = vxor.u32 %v5581, 2147483648
    %v5586 = vxor.u32 %v5582, 2147483648
    %v5587 = vmul.f32 %v5583, 1.442695
    %v5588 = vpow.pop %v5587
    %v5589 = vmul.f32 %v5584, 1.442695
    %v5590 = vpow.pop %v5589
    %v5591 = vmul.f32 %v5585, 1.442695
    %v5592 = vpow.pop %v5591
    %v5593 = vmul.f32 %v5586, 1.442695
    %v5594 = vpow.pop %v5593
    %v5595 = vadd.f32 %v5588, 1.0
    %v5596 = vadd.f32 %v5590, 1.0
    %v5597 = vadd.f32 %v5592, 1.0
    %v5598 = vadd.f32 %v5594, 1.0
    %v5599 = vrcp.pop %v5595
    %v5600 = vmul.f32 %v5595, %v5599
    %v5601 = vsub.f32 1.0, %v5600
    %v5602 = vmul.f32 %v5599, %v5601
    %v5603 = vadd.f32 %v5599, %v5602
    %vm5604 = vweird.f32 %v5595
    %vm5605 = vweird.f32 %v5599
    %vm5606 = vmor %vm5604, %vm5605
    %v5607 = vsel %vm5606, %v5599, %v5603
    %v5608 = vand.u32 2147483647, %v5595
    %vm5609 = vcmp.eq.f32.partialorder %v5608, 8.507059e+37
    %v5610 = vand.u32 %v5595, 2147483648
    %v5611 = vor.u32 1.1754944e-38, %v5610
    %v5612 = vsel %vm5609, %v5611, %v5607
    %v5613 = vmul.f32 1.0, %v5612
    %v5614 = vrcp.pop %v5596
    %v5615 = vmul.f32 %v5596, %v5614
    %v5616 = vsub.f32 1.0, %v5615
    %v5617 = vmul.f32 %v5614, %v5616
    %v5618 = vadd.f32 %v5614, %v5617
    %vm5619 = vweird.f32 %v5596
    %vm5620 = vweird.f32 %v5614
    %vm5621 = vmor %vm5619, %vm5620
    %v5622 = vsel %vm5621, %v5614, %v5618
    %v5623 = vand.u32 2147483647, %v5596
    %vm5624 = vcmp.eq.f32.partialorder %v5623, 8.507059e+37
    %v5625 = vand.u32 %v5596, 2147483648
    %v5626 = vor.u32 1.1754944e-38, %v5625
    %v5627 = vsel %vm5624, %v5626, %v5622
    %v5628 = vmul.f32 1.0, %v5627
    %v5629 = vrcp.pop %v5597
    %v5630 = vmul.f32 %v5597, %v5629
    %v5631 = vsub.f32 1.0, %v5630
    %v5632 = vmul.f32 %v5629, %v5631
    %v5633 = vadd.f32 %v5629, %v5632
    %vm5634 = vweird.f32 %v5597
    %vm5635 = vweird.f32 %v5629
    %vm5636 = vmor %vm5634, %vm5635
    %v5637 = vsel %vm5636, %v5629, %v5633
    %v5638 = vand.u32 2147483647, %v5597
    %vm5639 = vcmp.eq.f32.partialorder %v5638, 8.507059e+37
    %v5640 = vand.u32 %v5597, 2147483648
    %v5641 = vor.u32 1.1754944e-38, %v5640
    %v5642 = vsel %vm5639, %v5641, %v5637
    %v5643 = vmul.f32 1.0, %v5642
    %v5644 = vrcp.pop %v5598
    %v5645 = vmul.f32 %v5598, %v5644
    %v5646 = vsub.f32 1.0, %v5645
    %v5647 = vmul.f32 %v5644, %v5646
    %v5648 = vadd.f32 %v5644, %v5647
    %vm5649 = vweird.f32 %v5598
    %vm5650 = vweird.f32 %v5644
    %vm5651 = vmor %vm5649, %vm5650
    %v5652 = vsel %vm5651, %v5644, %v5648
    %v5653 = vand.u32 2147483647, %v5598
    %vm5654 = vcmp.eq.f32.partialorder %v5653, 8.507059e+37
    %v5655 = vand.u32 %v5598, 2147483648
    %v5656 = vor.u32 1.1754944e-38, %v5655
    %v5657 = vsel %vm5654, %v5656, %v5652
    %v5658 = vmul.f32 1.0, %v5657
    %v5659 = vld [vmem:[%s12] sm:$0x1]
    %v5661 = vperm.slane %v5659, 0
    %v5663 = vadd.f32 %v5490, %v5661
    %v5664 = vadd.f32 %v5492, %v5661
    %v5665 = vadd.f32 %v5495, %v5661
    %v5666 = vadd.f32 %v5497, %v5661
    %v5667 = vmul.f32 %v5533, %v5663
    %v5668 = vmul.f32 %v5548, %v5664
    %v5669 = vmul.f32 %v5563, %v5665
    %v5670 = vmul.f32 %v5578, %v5666
    %v5671 = vadd.f32 %v5272, %v5667
    %v5672 = vadd.f32 %v5275, %v5668
    %v5673 = vadd.f32 %v5278, %v5669
    %v5674 = vadd.f32 %v5281, %v5670
    %v5675 = vtanh.pop %v5671
    %v5676 = vtanh.pop %v5672
    %v5677 = vtanh.pop %v5673
    %v5678 = vtanh.pop %v5674
    %v5679 = vsub.f32 0.0, %v5675
    %v5680 = vsub.f32 0.0, %v5676
    %v5681 = vsub.f32 0.0, %v5677
    %v5682 = vsub.f32 0.0, %v5678
    %v5683 = vmul.f32 %v5613, %v5679
    %v5684 = vmul.f32 %v5628, %v5680
    %v5685 = vmul.f32 %v5643, %v5681
    %v5686 = vmul.f32 %v5658, %v5682
    %v5687 = vadd.f32 %v5675, %v5683
    %v5688 = vadd.f32 %v5676, %v5684
    %v5689 = vadd.f32 %v5677, %v5685
    %v5690 = vadd.f32 %v5678, %v5686
    %5691 = vst [vmem:[%s13] sm:$0xff] %v5687
    %5692 = vst [vmem:[%s13 + $0x8] sm:$0xff] %v5688
    %5693 = vst [vmem:[%s13 + $0x10] sm:$0xff] %v5689
    %5694 = vst [vmem:[%s13 + $0x18] sm:$0xff] %v5690
    %s5695 = smul.u32 4, 3
    %s5696 = smul.addr %s5695, 8
    %s5697 = scalar_lea.vmem [#allocation2], %s5696
    %v5698 = vld [vmem:[%s5697] sm:$0xff]
    %v5699 = vld [vmem:[%s5697 + $0x8] sm:$0xff]
    %v5700 = vld [vmem:[%s5697 + $0x10] sm:$0xff]
    %v5701 = vld [vmem:[%s5697 + $0x18] sm:$0xff]
    %v5702 = vld [vmem:[%s5697 + $0x20] sm:$0xff]
    %v5703 = vld [vmem:[%s5697 + $0x28] sm:$0xff]
    %v5704 = vld [vmem:[%s5697 + $0x30] sm:$0xff]
    %v5705 = vld [vmem:[%s5697 + $0x38] sm:$0xff]
    %v5706 = vld [vmem:[%s5697 + $0x40] sm:$0xff]
    %v5707 = vld [vmem:[%s5697 + $0x48] sm:$0xff]
    %v5708 = vld [vmem:[%s5697 + $0x50] sm:$0xff]
    %v5709 = vld [vmem:[%s5697 + $0x58] sm:$0xff]
    %v5710 = vpack.c.bf16 %v5688, %v5687
    %v5711 = vpack.c.bf16 %v5690, %v5689
    %v5712 = vld [vmem:[#allocation11] sm:$0xff]
    %v5713 = vld [vmem:[#allocation11 + $0x8] sm:$0xf]
    %v5714 = vld [vmem:[#allocation11 + $0xc] sm:$0xff]
    %v5715 = vld [vmem:[#allocation11 + $0x14] sm:$0xf]
    %v5716 = vld [vmem:[#allocation11 + $0x18] sm:$0xff]
    %v5717 = vld [vmem:[#allocation11 + $0x20] sm:$0xf]
    %v5718 = vld [vmem:[#allocation11 + $0x24] sm:$0xff]
    %v5719 = vld [vmem:[#allocation11 + $0x2c] sm:$0xf]
    %v5720 = vld [vmem:[#allocation11 + $0x30] sm:$0xff]
    %v5721 = vld [vmem:[#allocation11 + $0x38] sm:$0xf]
    %v5722 = vld [vmem:[#allocation11 + $0x3c] sm:$0xff]
    %v5723 = vld [vmem:[#allocation11 + $0x44] sm:$0xf]
    %v5724 = vld [vmem:[#allocation11 + $0x48] sm:$0xff]
    %v5725 = vld [vmem:[#allocation11 + $0x50] sm:$0xf]
    %v5726 = vld [vmem:[#allocation11 + $0x54] sm:$0xff]
    %v5727 = vld [vmem:[#allocation11 + $0x5c] sm:$0xf]
    %v5728 = vld [vmem:[#allocation11 + $0x60] sm:$0xff]
    %v5729 = vld [vmem:[#allocation11 + $0x68] sm:$0xf]
    %v5730 = vld [vmem:[#allocation11 + $0x6c] sm:$0xff]
    %v5731 = vld [vmem:[#allocation11 + $0x74] sm:$0xf]
    %v5732 = vld [vmem:[#allocation11 + $0x78] sm:$0xff]
    %v5733 = vld [vmem:[#allocation11 + $0x80] sm:$0xf]
    %v5734 = vld [vmem:[#allocation11 + $0x84] sm:$0xff]
    %v5735 = vld [vmem:[#allocation11 + $0x8c] sm:$0xf]
    %v5736 = vld [vmem:[#allocation11 + $0x90] sm:$0xff]
    %v5737 = vld [vmem:[#allocation11 + $0x98] sm:$0xf]
    %v5738 = vld [vmem:[#allocation11 + $0x9c] sm:$0xff]
    %v5739 = vld [vmem:[#allocation11 + $0xa4] sm:$0xf]
    %v5740 = vld [vmem:[#allocation11 + $0xa8] sm:$0xff]
    %v5741 = vld [vmem:[#allocation11 + $0xb0] sm:$0xf]
    %v5742 = vld [vmem:[#allocation11 + $0xb4] sm:$0xff]
    %v5743 = vld [vmem:[#allocation11 + $0xbc] sm:$0xf]
    %v5776 = vunpack.c.l.b16 %v5712
    %v5777 = vunpack.c.h.b16 %v5712
    %v5778 = vunpack.c.l.b16 %v5713
    %v5779 = vunpack.c.l.b16 %v5714
    %v5780 = vunpack.c.h.b16 %v5714
    %v5781 = vunpack.c.l.b16 %v5715
    %v5782 = vunpack.c.l.b16 %v5716
    %v5783 = vunpack.c.h.b16 %v5716
    %v5784 = vunpack.c.l.b16 %v5717
    %v5785 = vunpack.c.l.b16 %v5718
    %v5786 = vunpack.c.h.b16 %v5718
    %v5787 = vunpack.c.l.b16 %v5719
    %v5788 = vunpack.c.l.b16 %v5720
    %v5789 = vunpack.c.h.b16 %v5720
    %v5790 = vunpack.c.l.b16 %v5721
    %v5791 = vunpack.c.l.b16 %v5722
    %v5792 = vunpack.c.h.b16 %v5722
    %v5793 = vunpack.c.l.b16 %v5723
    %v5794 = vunpack.c.l.b16 %v5724
    %v5795 = vunpack.c.h.b16 %v5724
    %v5796 = vunpack.c.l.b16 %v5725
    %v5797 = vunpack.c.l.b16 %v5726
    %v5798 = vunpack.c.h.b16 %v5726
    %v5799 = vunpack.c.l.b16 %v5727
    %v5800 = vunpack.c.l.b16 %v5728
    %v5801 = vunpack.c.h.b16 %v5728
    %v5802 = vunpack.c.l.b16 %v5729
    %v5803 = vunpack.c.l.b16 %v5730
    %v5804 = vunpack.c.h.b16 %v5730
    %v5805 = vunpack.c.l.b16 %v5731
    %v5806 = vunpack.c.l.b16 %v5732
    %v5807 = vunpack.c.h.b16 %v5732
    %v5808 = vunpack.c.l.b16 %v5733
    %v5809 = vunpack.c.l.b16 %v5734
    %v5810 = vunpack.c.h.b16 %v5734
    %v5811 = vunpack.c.l.b16 %v5735
    %v5812 = vunpack.c.l.b16 %v5736
    %v5813 = vunpack.c.h.b16 %v5736
    %v5814 = vunpack.c.l.b16 %v5737
    %v5815 = vunpack.c.l.b16 %v5738
    %v5816 = vunpack.c.h.b16 %v5738
    %v5817 = vunpack.c.l.b16 %v5739
    %v5818 = vunpack.c.l.b16 %v5740
    %v5819 = vunpack.c.h.b16 %v5740
    %v5820 = vunpack.c.l.b16 %v5741
    %v5821 = vunpack.c.l.b16 %v5742
    %v5822 = vunpack.c.h.b16 %v5742
    %v5823 = vunpack.c.l.b16 %v5743
    %v5824 = vpack.c.b16 %v5779, %v5776
    %v5825 = vpack.c.b16 %v5780, %v5777
    %v5826 = vpack.c.b16 %v5781, %v5778
    %v5827 = vpack.c.b16 %v5785, %v5782
    %v5828 = vpack.c.b16 %v5786, %v5783
    %v5829 = vpack.c.b16 %v5787, %v5784
    %v5830 = vpack.c.b16 %v5791, %v5788
    %v5831 = vpack.c.b16 %v5792, %v5789
    %v5832 = vpack.c.b16 %v5793, %v5790
    %v5833 = vpack.c.b16 %v5797, %v5794
    %v5834 = vpack.c.b16 %v5798, %v5795
    %v5835 = vpack.c.b16 %v5799, %v5796
    %v5836 = vpack.c.b16 %v5803, %v5800
    %v5837 = vpack.c.b16 %v5804, %v5801
    %v5838 = vpack.c.b16 %v5805, %v5802
    %v5839 = vpack.c.b16 %v5809, %v5806
    %v5840 = vpack.c.b16 %v5810, %v5807
    %v5841 = vpack.c.b16 %v5811, %v5808
    %v5842 = vpack.c.b16 %v5815, %v5812
    %v5843 = vpack.c.b16 %v5816, %v5813
    %v5844 = vpack.c.b16 %v5817, %v5814
    %v5845 = vpack.c.b16 %v5821, %v5818
    %v5846 = vpack.c.b16 %v5822, %v5819
    %v5847 = vpack.c.b16 %v5823, %v5820
    %5872 = vmatpush.bf16.msra.mxu0 %v5845
    %5873 = vmatpush.bf16.msra.mxu0 %v5842
    %5874 = vmatpush.bf16.msra.mxu0 %v5839
    %5875 = vmatpush.bf16.msra.mxu0 %v5836
    %5876 = vmatpush.bf16.msra.mxu0 %v5833
    %5877 = vmatpush.bf16.msra.mxu0 %v5830
    %5878 = vmatpush.bf16.msra.mxu0 %v5827
    %5879 = vmatpush.bf16.msra.mxu0 %v5824
    %5880 = vmatmul.bf16.gmra.mxu0 %v5710
    %v5881 = vpop.f32.mrf.mxu0
    %v5882 = vadd.f32 0.0, %v5881
    %v5883 = vpop.f32.mrf.mxu0
    %v5884 = vadd.f32 0.0, %v5883
    %5885 = vmatmul.bf16.gmra.mxu0 %v5711
    %v5886 = vpop.f32.mrf.mxu0
    %v5887 = vadd.f32 0.0, %v5886
    %v5888 = vpop.f32.mrf.mxu0
    %v5889 = vadd.f32 0.0, %v5888
    %5890 = vdwg.mxu0
    %5891 = vmatpush.bf16.msra.mxu0 %v5846
    %5892 = vmatpush.bf16.msra.mxu0 %v5843
    %5893 = vmatpush.bf16.msra.mxu0 %v5840
    %5894 = vmatpush.bf16.msra.mxu0 %v5837
    %5895 = vmatpush.bf16.msra.mxu0 %v5834
    %5896 = vmatpush.bf16.msra.mxu0 %v5831
    %5897 = vmatpush.bf16.msra.mxu0 %v5828
    %5898 = vmatpush.bf16.msra.mxu0 %v5825
    %5899 = vmatmul.bf16.gmra.mxu0 %v5710
    %v5900 = vpop.f32.mrf.mxu0
    %v5901 = vadd.f32 0.0, %v5900
    %v5902 = vpop.f32.mrf.mxu0
    %v5903 = vadd.f32 0.0, %v5902
    %5904 = vmatmul.bf16.gmra.mxu0 %v5711
    %v5905 = vpop.f32.mrf.mxu0
    %v5906 = vadd.f32 0.0, %v5905
    %v5907 = vpop.f32.mrf.mxu0
    %v5908 = vadd.f32 0.0, %v5907
    %5909 = vdwg.mxu0
    %5910 = vmatpush.bf16.msra.mxu0 %v5847
    %5911 = vmatpush.bf16.msra.mxu0 %v5844
    %5912 = vmatpush.bf16.msra.mxu0 %v5841
    %5913 = vmatpush.bf16.msra.mxu0 %v5838
    %5914 = vmatpush.bf16.msra.mxu0 %v5835
    %5915 = vmatpush.bf16.msra.mxu0 %v5832
    %5916 = vmatpush.bf16.msra.mxu0 %v5829
    %5917 = vmatpush.bf16.msra.mxu0 %v5826
    %5918 = vmatmul.bf16.gmra.mxu0 %v5710
    %v5919 = vpop.f32.mrf.mxu0
    %v5920 = vadd.f32 0.0, %v5919
    %v5921 = vpop.f32.mrf.mxu0
    %v5922 = vadd.f32 0.0, %v5921
    %5923 = vmatmul.bf16.gmra.mxu0 %v5711
    %v5924 = vpop.f32.mrf.mxu0
    %v5925 = vadd.f32 0.0, %v5924
    %v5926 = vpop.f32.mrf.mxu0
    %v5927 = vadd.f32 0.0, %v5926
    %5928 = vdwg.mxu0
    %v5929 = vadd.f32 %v5698, %v5882
    %v5930 = vadd.f32 %v5701, %v5884
    %v5931 = vadd.f32 %v5704, %v5887
    %v5932 = vadd.f32 %v5707, %v5889
    %v5933 = vxor.u32 %v5929, 2147483648
    %v5934 = vxor.u32 %v5930, 2147483648
    %v5935 = vxor.u32 %v5931, 2147483648
    %v5936 = vxor.u32 %v5932, 2147483648
    %v5937 = vmul.f32 %v5933, 1.442695
    %v5938 = vpow.pop %v5937
    %v5939 = vmul.f32 %v5934, 1.442695
    %v5940 = vpow.pop %v5939
    %v5941 = vmul.f32 %v5935, 1.442695
    %v5942 = vpow.pop %v5941
    %v5943 = vmul.f32 %v5936, 1.442695
    %v5944 = vpow.pop %v5943
    %v5945 = vadd.f32 %v5938, 1.0
    %v5946 = vadd.f32 %v5940, 1.0
    %v5947 = vadd.f32 %v5942, 1.0
    %v5948 = vadd.f32 %v5944, 1.0
    %v5949 = vrcp.pop %v5945
    %v5950 = vmul.f32 %v5945, %v5949
    %v5951 = vsub.f32 1.0, %v5950
    %v5952 = vmul.f32 %v5949, %v5951
    %v5953 = vadd.f32 %v5949, %v5952
    %vm5954 = vweird.f32 %v5945
    %vm5955 = vweird.f32 %v5949
    %vm5956 = vmor %vm5954, %vm5955
    %v5957 = vsel %vm5956, %v5949, %v5953
    %v5958 = vand.u32 2147483647, %v5945
    %vm5959 = vcmp.eq.f32.partialorder %v5958, 8.507059e+37
    %v5960 = vand.u32 %v5945, 2147483648
    %v5961 = vor.u32 1.1754944e-38, %v5960
    %v5962 = vsel %vm5959, %v5961, %v5957
    %v5963 = vmul.f32 1.0, %v5962
    %v5964 = vrcp.pop %v5946
    %v5965 = vmul.f32 %v5946, %v5964
    %v5966 = vsub.f32 1.0, %v5965
    %v5967 = vmul.f32 %v5964, %v5966
    %v5968 = vadd.f32 %v5964, %v5967
    %vm5969 = vweird.f32 %v5946
    %vm5970 = vweird.f32 %v5964
    %vm5971 = vmor %vm5969, %vm5970
    %v5972 = vsel %vm5971, %v5964, %v5968
    %v5973 = vand.u32 2147483647, %v5946
    %vm5974 = vcmp.eq.f32.partialorder %v5973, 8.507059e+37
    %v5975 = vand.u32 %v5946, 2147483648
    %v5976 = vor.u32 1.1754944e-38, %v5975
    %v5977 = vsel %vm5974, %v5976, %v5972
    %v5978 = vmul.f32 1.0, %v5977
    %v5979 = vrcp.pop %v5947
    %v5980 = vmul.f32 %v5947, %v5979
    %v5981 = vsub.f32 1.0, %v5980
    %v5982 = vmul.f32 %v5979, %v5981
    %v5983 = vadd.f32 %v5979, %v5982
    %vm5984 = vweird.f32 %v5947
    %vm5985 = vweird.f32 %v5979
    %vm5986 = vmor %vm5984, %vm5985
    %v5987 = vsel %vm5986, %v5979, %v5983
    %v5988 = vand.u32 2147483647, %v5947
    %vm5989 = vcmp.eq.f32.partialorder %v5988, 8.507059e+37
    %v5990 = vand.u32 %v5947, 2147483648
    %v5991 = vor.u32 1.1754944e-38, %v5990
    %v5992 = vsel %vm5989, %v5991, %v5987
    %v5993 = vmul.f32 1.0, %v5992
    %v5994 = vrcp.pop %v5948
    %v5995 = vmul.f32 %v5948, %v5994
    %v5996 = vsub.f32 1.0, %v5995
    %v5997 = vmul.f32 %v5994, %v5996
    %v5998 = vadd.f32 %v5994, %v5997
    %vm5999 = vweird.f32 %v5948
    %vm6000 = vweird.f32 %v5994
    %vm6001 = vmor %vm5999, %vm6000
    %v6002 = vsel %vm6001, %v5994, %v5998
    %v6003 = vand.u32 2147483647, %v5948
    %vm6004 = vcmp.eq.f32.partialorder %v6003, 8.507059e+37
    %v6005 = vand.u32 %v5948, 2147483648
    %v6006 = vor.u32 1.1754944e-38, %v6005
    %v6007 = vsel %vm6004, %v6006, %v6002
    %v6008 = vmul.f32 1.0, %v6007
    %v6009 = vadd.f32 %v5699, %v5901
    %v6010 = vadd.f32 %v5702, %v5903
    %v6011 = vadd.f32 %v5705, %v5906
    %v6012 = vadd.f32 %v5708, %v5908
    %v6013 = vxor.u32 %v6009, 2147483648
    %v6014 = vxor.u32 %v6010, 2147483648
    %v6015 = vxor.u32 %v6011, 2147483648
    %v6016 = vxor.u32 %v6012, 2147483648
    %v6017 = vmul.f32 %v6013, 1.442695
    %v6018 = vpow.pop %v6017
    %v6019 = vmul.f32 %v6014, 1.442695
    %v6020 = vpow.pop %v6019
    %v6021 = vmul.f32 %v6015, 1.442695
    %v6022 = vpow.pop %v6021
    %v6023 = vmul.f32 %v6016, 1.442695
    %v6024 = vpow.pop %v6023
    %v6025 = vadd.f32 %v6018, 1.0
    %v6026 = vadd.f32 %v6020, 1.0
    %v6027 = vadd.f32 %v6022, 1.0
    %v6028 = vadd.f32 %v6024, 1.0
    %v6029 = vrcp.pop %v6025
    %v6030 = vmul.f32 %v6025, %v6029
    %v6031 = vsub.f32 1.0, %v6030
    %v6032 = vmul.f32 %v6029, %v6031
    %v6033 = vadd.f32 %v6029, %v6032
    %vm6034 = vweird.f32 %v6025
    %vm6035 = vweird.f32 %v6029
    %vm6036 = vmor %vm6034, %vm6035
    %v6037 = vsel %vm6036, %v6029, %v6033
    %v6038 = vand.u32 2147483647, %v6025
    %vm6039 = vcmp.eq.f32.partialorder %v6038, 8.507059e+37
    %v6040 = vand.u32 %v6025, 2147483648
    %v6041 = vor.u32 1.1754944e-38, %v6040
    %v6042 = vsel %vm6039, %v6041, %v6037
    %v6043 = vmul.f32 1.0, %v6042
    %v6044 = vrcp.pop %v6026
    %v6045 = vmul.f32 %v6026, %v6044
    %v6046 = vsub.f32 1.0, %v6045
    %v6047 = vmul.f32 %v6044, %v6046
    %v6048 = vadd.f32 %v6044, %v6047
    %vm6049 = vweird.f32 %v6026
    %vm6050 = vweird.f32 %v6044
    %vm6051 = vmor %vm6049, %vm6050
    %v6052 = vsel %vm6051, %v6044, %v6048
    %v6053 = vand.u32 2147483647, %v6026
    %vm6054 = vcmp.eq.f32.partialorder %v6053, 8.507059e+37
    %v6055 = vand.u32 %v6026, 2147483648
    %v6056 = vor.u32 1.1754944e-38, %v6055
    %v6057 = vsel %vm6054, %v6056, %v6052
    %v6058 = vmul.f32 1.0, %v6057
    %v6059 = vrcp.pop %v6027
    %v6060 = vmul.f32 %v6027, %v6059
    %v6061 = vsub.f32 1.0, %v6060
    %v6062 = vmul.f32 %v6059, %v6061
    %v6063 = vadd.f32 %v6059, %v6062
    %vm6064 = vweird.f32 %v6027
    %vm6065 = vweird.f32 %v6059
    %vm6066 = vmor %vm6064, %vm6065
    %v6067 = vsel %vm6066, %v6059, %v6063
    %v6068 = vand.u32 2147483647, %v6027
    %vm6069 = vcmp.eq.f32.partialorder %v6068, 8.507059e+37
    %v6070 = vand.u32 %v6027, 2147483648
    %v6071 = vor.u32 1.1754944e-38, %v6070
    %v6072 = vsel %vm6069, %v6071, %v6067
    %v6073 = vmul.f32 1.0, %v6072
    %v6074 = vrcp.pop %v6028
    %v6075 = vmul.f32 %v6028, %v6074
    %v6076 = vsub.f32 1.0, %v6075
    %v6077 = vmul.f32 %v6074, %v6076
    %v6078 = vadd.f32 %v6074, %v6077
    %vm6079 = vweird.f32 %v6028
    %vm6080 = vweird.f32 %v6074
    %vm6081 = vmor %vm6079, %vm6080
    %v6082 = vsel %vm6081, %v6074, %v6078
    %v6083 = vand.u32 2147483647, %v6028
    %vm6084 = vcmp.eq.f32.partialorder %v6083, 8.507059e+37
    %v6085 = vand.u32 %v6028, 2147483648
    %v6086 = vor.u32 1.1754944e-38, %v6085
    %v6087 = vsel %vm6084, %v6086, %v6082
    %v6088 = vmul.f32 1.0, %v6087
    %v6089 = vld [vmem:[%s12] sm:$0x1]
    %v6091 = vperm.slane %v6089, 0
    %v6093 = vadd.f32 %v5920, %v6091
    %v6094 = vadd.f32 %v5922, %v6091
    %v6095 = vadd.f32 %v5925, %v6091
    %v6096 = vadd.f32 %v5927, %v6091
    %v6097 = vmul.f32 %v5963, %v6093
    %v6098 = vmul.f32 %v5978, %v6094
    %v6099 = vmul.f32 %v5993, %v6095
    %v6100 = vmul.f32 %v6008, %v6096
    %v6101 = vadd.f32 %v5700, %v6097
    %v6102 = vadd.f32 %v5703, %v6098
    %v6103 = vadd.f32 %v5706, %v6099
    %v6104 = vadd.f32 %v5709, %v6100
    %v6105 = vtanh.pop %v6101
    %v6106 = vtanh.pop %v6102
    %v6107 = vtanh.pop %v6103
    %v6108 = vtanh.pop %v6104
    %v6109 = vsub.f32 %v5687, %v6105
    %v6110 = vsub.f32 %v5688, %v6106
    %v6111 = vsub.f32 %v5689, %v6107
    %v6112 = vsub.f32 %v5690, %v6108
    %v6113 = vmul.f32 %v6043, %v6109
    %v6114 = vmul.f32 %v6058, %v6110
    %v6115 = vmul.f32 %v6073, %v6111
    %v6116 = vmul.f32 %v6088, %v6112
    %v6117 = vadd.f32 %v6105, %v6113
    %v6118 = vadd.f32 %v6106, %v6114
    %v6119 = vadd.f32 %v6107, %v6115
    %v6120 = vadd.f32 %v6108, %v6116
    %s6121 = scalar_lea.vmem %s13, 32
    %6122 = vst [vmem:[%s6121] sm:$0xff] %v6117
    %6123 = vst [vmem:[%s6121 + $0x8] sm:$0xff] %v6118
    %6124 = vst [vmem:[%s6121 + $0x10] sm:$0xff] %v6119
    %6125 = vst [vmem:[%s6121 + $0x18] sm:$0xff] %v6120
    %s6126 = smul.u32 8, 3
    %s6127 = smul.addr %s6126, 8
    %s6128 = scalar_lea.vmem [#allocation2], %s6127
    %v6129 = vld [vmem:[%s6128] sm:$0xff]
    %v6130 = vld [vmem:[%s6128 + $0x8] sm:$0xff]
    %v6131 = vld [vmem:[%s6128 + $0x10] sm:$0xff]
    %v6132 = vld [vmem:[%s6128 + $0x18] sm:$0xff]
    %v6133 = vld [vmem:[%s6128 + $0x20] sm:$0xff]
    %v6134 = vld [vmem:[%s6128 + $0x28] sm:$0xff]
    %v6135 = vld [vmem:[%s6128 + $0x30] sm:$0xff]
    %v6136 = vld [vmem:[%s6128 + $0x38] sm:$0xff]
    %v6137 = vld [vmem:[%s6128 + $0x40] sm:$0xff]
    %v6138 = vld [vmem:[%s6128 + $0x48] sm:$0xff]
    %v6139 = vld [vmem:[%s6128 + $0x50] sm:$0xff]
    %v6140 = vld [vmem:[%s6128 + $0x58] sm:$0xff]
    %v6141 = vpack.c.bf16 %v6118, %v6117
    %v6142 = vpack.c.bf16 %v6120, %v6119
    %v6143 = vld [vmem:[#allocation11] sm:$0xff]
    %v6144 = vld [vmem:[#allocation11 + $0x8] sm:$0xf]
    %v6145 = vld [vmem:[#allocation11 + $0xc] sm:$0xff]
    %v6146 = vld [vmem:[#allocation11 + $0x14] sm:$0xf]
    %v6147 = vld [vmem:[#allocation11 + $0x18] sm:$0xff]
    %v6148 = vld [vmem:[#allocation11 + $0x20] sm:$0xf]
    %v6149 = vld [vmem:[#allocation11 + $0x24] sm:$0xff]
    %v6150 = vld [vmem:[#allocation11 + $0x2c] sm:$0xf]
    %v6151 = vld [vmem:[#allocation11 + $0x30] sm:$0xff]
    %v6152 = vld [vmem:[#allocation11 + $0x38] sm:$0xf]
    %v6153 = vld [vmem:[#allocation11 + $0x3c] sm:$0xff]
    %v6154 = vld [vmem:[#allocation11 + $0x44] sm:$0xf]
    %v6155 = vld [vmem:[#allocation11 + $0x48] sm:$0xff]
    %v6156 = vld [vmem:[#allocation11 + $0x50] sm:$0xf]
    %v6157 = vld [vmem:[#allocation11 + $0x54] sm:$0xff]
    %v6158 = vld [vmem:[#allocation11 + $0x5c] sm:$0xf]
    %v6159 = vld [vmem:[#allocation11 + $0x60] sm:$0xff]
    %v6160 = vld [vmem:[#allocation11 + $0x68] sm:$0xf]
    %v6161 = vld [vmem:[#allocation11 + $0x6c] sm:$0xff]
    %v6162 = vld [vmem:[#allocation11 + $0x74] sm:$0xf]
    %v6163 = vld [vmem:[#allocation11 + $0x78] sm:$0xff]
    %v6164 = vld [vmem:[#allocation11 + $0x80] sm:$0xf]
    %v6165 = vld [vmem:[#allocation11 + $0x84] sm:$0xff]
    %v6166 = vld [vmem:[#allocation11 + $0x8c] sm:$0xf]
    %v6167 = vld [vmem:[#allocation11 + $0x90] sm:$0xff]
    %v6168 = vld [vmem:[#allocation11 + $0x98] sm:$0xf]
    %v6169 = vld [vmem:[#allocation11 + $0x9c] sm:$0xff]
    %v6170 = vld [vmem:[#allocation11 + $0xa4] sm:$0xf]
    %v6171 = vld [vmem:[#allocation11 + $0xa8] sm:$0xff]
    %v6172 = vld [vmem:[#allocation11 + $0xb0] sm:$0xf]
    %v6173 = vld [vmem:[#allocation11 + $0xb4] sm:$0xff]
    %v6174 = vld [vmem:[#allocation11 + $0xbc] sm:$0xf]
    %v6207 = vunpack.c.l.b16 %v6143
    %v6208 = vunpack.c.h.b16 %v6143
    %v6209 = vunpack.c.l.b16 %v6144
    %v6210 = vunpack.c.l.b16 %v6145
    %v6211 = vunpack.c.h.b16 %v6145
    %v6212 = vunpack.c.l.b16 %v6146
    %v6213 = vunpack.c.l.b16 %v6147
    %v6214 = vunpack.c.h.b16 %v6147
    %v6215 = vunpack.c.l.b16 %v6148
    %v6216 = vunpack.c.l.b16 %v6149
    %v6217 = vunpack.c.h.b16 %v6149
    %v6218 = vunpack.c.l.b16 %v6150
    %v6219 = vunpack.c.l.b16 %v6151
    %v6220 = vunpack.c.h.b16 %v6151
    %v6221 = vunpack.c.l.b16 %v6152
    %v6222 = vunpack.c.l.b16 %v6153
    %v6223 = vunpack.c.h.b16 %v6153
    %v6224 = vunpack.c.l.b16 %v6154
    %v6225 = vunpack.c.l.b16 %v6155
    %v6226 = vunpack.c.h.b16 %v6155
    %v6227 = vunpack.c.l.b16 %v6156
    %v6228 = vunpack.c.l.b16 %v6157
    %v6229 = vunpack.c.h.b16 %v6157
    %v6230 = vunpack.c.l.b16 %v6158
    %v6231 = vunpack.c.l.b16 %v6159
    %v6232 = vunpack.c.h.b16 %v6159
    %v6233 = vunpack.c.l.b16 %v6160
    %v6234 = vunpack.c.l.b16 %v6161
    %v6235 = vunpack.c.h.b16 %v6161
    %v6236 = vunpack.c.l.b16 %v6162
    %v6237 = vunpack.c.l.b16 %v6163
    %v6238 = vunpack.c.h.b16 %v6163
    %v6239 = vunpack.c.l.b16 %v6164
    %v6240 = vunpack.c.l.b16 %v6165
    %v6241 = vunpack.c.h.b16 %v6165
    %v6242 = vunpack.c.l.b16 %v6166
    %v6243 = vunpack.c.l.b16 %v6167
    %v6244 = vunpack.c.h.b16 %v6167
    %v6245 = vunpack.c.l.b16 %v6168
    %v6246 = vunpack.c.l.b16 %v6169
    %v6247 = vunpack.c.h.b16 %v6169
    %v6248 = vunpack.c.l.b16 %v6170
    %v6249 = vunpack.c.l.b16 %v6171
    %v6250 = vunpack.c.h.b16 %v6171
    %v6251 = vunpack.c.l.b16 %v6172
    %v6252 = vunpack.c.l.b16 %v6173
    %v6253 = vunpack.c.h.b16 %v6173
    %v6254 = vunpack.c.l.b16 %v6174
    %v6255 = vpack.c.b16 %v6210, %v6207
    %v6256 = vpack.c.b16 %v6211, %v6208
    %v6257 = vpack.c.b16 %v6212, %v6209
    %v6258 = vpack.c.b16 %v6216, %v6213
    %v6259 = vpack.c.b16 %v6217, %v6214
    %v6260 = vpack.c.b16 %v6218, %v6215
    %v6261 = vpack.c.b16 %v6222, %v6219
    %v6262 = vpack.c.b16 %v6223, %v6220
    %v6263 = vpack.c.b16 %v6224, %v6221
    %v6264 = vpack.c.b16 %v6228, %v6225
    %v6265 = vpack.c.b16 %v6229, %v6226
    %v6266 = vpack.c.b16 %v6230, %v6227
    %v6267 = vpack.c.b16 %v6234, %v6231
    %v6268 = vpack.c.b16 %v6235, %v6232
    %v6269 = vpack.c.b16 %v6236, %v6233
    %v6270 = vpack.c.b16 %v6240, %v6237
    %v6271 = vpack.c.b16 %v6241, %v6238
    %v6272 = vpack.c.b16 %v6242, %v6239
    %v6273 = vpack.c.b16 %v6246, %v6243
    %v6274 = vpack.c.b16 %v6247, %v6244
    %v6275 = vpack.c.b16 %v6248, %v6245
    %v6276 = vpack.c.b16 %v6252, %v6249
    %v6277 = vpack.c.b16 %v6253, %v6250
    %v6278 = vpack.c.b16 %v6254, %v6251
    %6303 = vmatpush.bf16.msra.mxu0 %v6276
    %6304 = vmatpush.bf16.msra.mxu0 %v6273
    %6305 = vmatpush.bf16.msra.mxu0 %v6270
    %6306 = vmatpush.bf16.msra.mxu0 %v6267
    %6307 = vmatpush.bf16.msra.mxu0 %v6264
    %6308 = vmatpush.bf16.msra.mxu0 %v6261
    %6309 = vmatpush.bf16.msra.mxu0 %v6258
    %6310 = vmatpush.bf16.msra.mxu0 %v6255
    %6311 = vmatmul.bf16.gmra.mxu0 %v6141
    %v6312 = vpop.f32.mrf.mxu0
    %v6313 = vadd.f32 0.0, %v6312
    %v6314 = vpop.f32.mrf.mxu0
    %v6315 = vadd.f32 0.0, %v6314
    %6316 = vmatmul.bf16.gmra.mxu0 %v6142
    %v6317 = vpop.f32.mrf.mxu0
    %v6318 = vadd.f32 0.0, %v6317
    %v6319 = vpop.f32.mrf.mxu0
    %v6320 = vadd.f32 0.0, %v6319
    %6321 = vdwg.mxu0
    %6322 = vmatpush.bf16.msra.mxu0 %v6277
    %6323 = vmatpush.bf16.msra.mxu0 %v6274
    %6324 = vmatpush.bf16.msra.mxu0 %v6271
    %6325 = vmatpush.bf16.msra.mxu0 %v6268
    %6326 = vmatpush.bf16.msra.mxu0 %v6265
    %6327 = vmatpush.bf16.msra.mxu0 %v6262
    %6328 = vmatpush.bf16.msra.mxu0 %v6259
    %6329 = vmatpush.bf16.msra.mxu0 %v6256
    %6330 = vmatmul.bf16.gmra.mxu0 %v6141
    %v6331 = vpop.f32.mrf.mxu0
    %v6332 = vadd.f32 0.0, %v6331
    %v6333 = vpop.f32.mrf.mxu0
    %v6334 = vadd.f32 0.0, %v6333
    %6335 = vmatmul.bf16.gmra.mxu0 %v6142
    %v6336 = vpop.f32.mrf.mxu0
    %v6337 = vadd.f32 0.0, %v6336
    %v6338 = vpop.f32.mrf.mxu0
    %v6339 = vadd.f32 0.0, %v6338
    %6340 = vdwg.mxu0
    %6341 = vmatpush.bf16.msra.mxu0 %v6278
    %6342 = vmatpush.bf16.msra.mxu0 %v6275
    %6343 = vmatpush.bf16.msra.mxu0 %v6272
    %6344 = vmatpush.bf16.msra.mxu0 %v6269
    %6345 = vmatpush.bf16.msra.mxu0 %v6266
    %6346 = vmatpush.bf16.msra.mxu0 %v6263
    %6347 = vmatpush.bf16.msra.mxu0 %v6260
    %6348 = vmatpush.bf16.msra.mxu0 %v6257
    %6349 = vmatmul.bf16.gmra.mxu0 %v6141
    %v6350 = vpop.f32.mrf.mxu0
    %v6351 = vadd.f32 0.0, %v6350
    %v6352 = vpop.f32.mrf.mxu0
    %v6353 = vadd.f32 0.0, %v6352
    %6354 = vmatmul.bf16.gmra.mxu0 %v6142
    %v6355 = vpop.f32.mrf.mxu0
    %v6356 = vadd.f32 0.0, %v6355
    %v6357 = vpop.f32.mrf.mxu0
    %v6358 = vadd.f32 0.0, %v6357
    %6359 = vdwg.mxu0
    %v6360 = vadd.f32 %v6129, %v6313
    %v6361 = vadd.f32 %v6132, %v6315
    %v6362 = vadd.f32 %v6135, %v6318
    %v6363 = vadd.f32 %v6138, %v6320
    %v6364 = vxor.u32 %v6360, 2147483648
    %v6365 = vxor.u32 %v6361, 2147483648
    %v6366 = vxor.u32 %v6362, 2147483648
    %v6367 = vxor.u32 %v6363, 2147483648
    %v6368 = vmul.f32 %v6364, 1.442695
    %v6369 = vpow.pop %v6368
    %v6370 = vmul.f32 %v6365, 1.442695
    %v6371 = vpow.pop %v6370
    %v6372 = vmul.f32 %v6366, 1.442695
    %v6373 = vpow.pop %v6372
    %v6374 = vmul.f32 %v6367, 1.442695
    %v6375 = vpow.pop %v6374
    %v6376 = vadd.f32 %v6369, 1.0
    %v6377 = vadd.f32 %v6371, 1.0
    %v6378 = vadd.f32 %v6373, 1.0
    %v6379 = vadd.f32 %v6375, 1.0
    %v6380 = vrcp.pop %v6376
    %v6381 = vmul.f32 %v6376, %v6380
    %v6382 = vsub.f32 1.0, %v6381
    %v6383 = vmul.f32 %v6380, %v6382
    %v6384 = vadd.f32 %v6380, %v6383
    %vm6385 = vweird.f32 %v6376
    %vm6386 = vweird.f32 %v6380
    %vm6387 = vmor %vm6385, %vm6386
    %v6388 = vsel %vm6387, %v6380, %v6384
    %v6389 = vand.u32 2147483647, %v6376
    %vm6390 = vcmp.eq.f32.partialorder %v6389, 8.507059e+37
    %v6391 = vand.u32 %v6376, 2147483648
    %v6392 = vor.u32 1.1754944e-38, %v6391
    %v6393 = vsel %vm6390, %v6392, %v6388
    %v6394 = vmul.f32 1.0, %v6393
    %v6395 = vrcp.pop %v6377
    %v6396 = vmul.f32 %v6377, %v6395
    %v6397 = vsub.f32 1.0, %v6396
    %v6398 = vmul.f32 %v6395, %v6397
    %v6399 = vadd.f32 %v6395, %v6398
    %vm6400 = vweird.f32 %v6377
    %vm6401 = vweird.f32 %v6395
    %vm6402 = vmor %vm6400, %vm6401
    %v6403 = vsel %vm6402, %v6395, %v6399
    %v6404 = vand.u32 2147483647, %v6377
    %vm6405 = vcmp.eq.f32.partialorder %v6404, 8.507059e+37
    %v6406 = vand.u32 %v6377, 2147483648
    %v6407 = vor.u32 1.1754944e-38, %v6406
    %v6408 = vsel %vm6405, %v6407, %v6403
    %v6409 = vmul.f32 1.0, %v6408
    %v6410 = vrcp.pop %v6378
    %v6411 = vmul.f32 %v6378, %v6410
    %v6412 = vsub.f32 1.0, %v6411
    %v6413 = vmul.f32 %v6410, %v6412
    %v6414 = vadd.f32 %v6410, %v6413
    %vm6415 = vweird.f32 %v6378
    %vm6416 = vweird.f32 %v6410
    %vm6417 = vmor %vm6415, %vm6416
    %v6418 = vsel %vm6417, %v6410, %v6414
    %v6419 = vand.u32 2147483647, %v6378
    %vm6420 = vcmp.eq.f32.partialorder %v6419, 8.507059e+37
    %v6421 = vand.u32 %v6378, 2147483648
    %v6422 = vor.u32 1.1754944e-38, %v6421
    %v6423 = vsel %vm6420, %v6422, %v6418
    %v6424 = vmul.f32 1.0, %v6423
    %v6425 = vrcp.pop %v6379
    %v6426 = vmul.f32 %v6379, %v6425
    %v6427 = vsub.f32 1.0, %v6426
    %v6428 = vmul.f32 %v6425, %v6427
    %v6429 = vadd.f32 %v6425, %v6428
    %vm6430 = vweird.f32 %v6379
    %vm6431 = vweird.f32 %v6425
    %vm6432 = vmor %vm6430, %vm6431
    %v6433 = vsel %vm6432, %v6425, %v6429
    %v6434 = vand.u32 2147483647, %v6379
    %vm6435 = vcmp.eq.f32.partialorder %v6434, 8.507059e+37
    %v6436 = vand.u32 %v6379, 2147483648
    %v6437 = vor.u32 1.1754944e-38, %v6436
    %v6438 = vsel %vm6435, %v6437, %v6433
    %v6439 = vmul.f32 1.0, %v6438
    %v6440 = vadd.f32 %v6130, %v6332
    %v6441 = vadd.f32 %v6133, %v6334
    %v6442 = vadd.f32 %v6136, %v6337
    %v6443 = vadd.f32 %v6139, %v6339
    %v6444 = vxor.u32 %v6440, 2147483648
    %v6445 = vxor.u32 %v6441, 2147483648
    %v6446 = vxor.u32 %v6442, 2147483648
    %v6447 = vxor.u32 %v6443, 2147483648
    %v6448 = vmul.f32 %v6444, 1.442695
    %v6449 = vpow.pop %v6448
    %v6450 = vmul.f32 %v6445, 1.442695
    %v6451 = vpow.pop %v6450
    %v6452 = vmul.f32 %v6446, 1.442695
    %v6453 = vpow.pop %v6452
    %v6454 = vmul.f32 %v6447, 1.442695
    %v6455 = vpow.pop %v6454
    %v6456 = vadd.f32 %v6449, 1.0
    %v6457 = vadd.f32 %v6451, 1.0
    %v6458 = vadd.f32 %v6453, 1.0
    %v6459 = vadd.f32 %v6455, 1.0
    %v6460 = vrcp.pop %v6456
    %v6461 = vmul.f32 %v6456, %v6460
    %v6462 = vsub.f32 1.0, %v6461
    %v6463 = vmul.f32 %v6460, %v6462
    %v6464 = vadd.f32 %v6460, %v6463
    %vm6465 = vweird.f32 %v6456
    %vm6466 = vweird.f32 %v6460
    %vm6467 = vmor %vm6465, %vm6466
    %v6468 = vsel %vm6467, %v6460, %v6464
    %v6469 = vand.u32 2147483647, %v6456
    %vm6470 = vcmp.eq.f32.partialorder %v6469, 8.507059e+37
    %v6471 = vand.u32 %v6456, 2147483648
    %v6472 = vor.u32 1.1754944e-38, %v6471
    %v6473 = vsel %vm6470, %v6472, %v6468
    %v6474 = vmul.f32 1.0, %v6473
    %v6475 = vrcp.pop %v6457
    %v6476 = vmul.f32 %v6457, %v6475
    %v6477 = vsub.f32 1.0, %v6476
    %v6478 = vmul.f32 %v6475, %v6477
    %v6479 = vadd.f32 %v6475, %v6478
    %vm6480 = vweird.f32 %v6457
    %vm6481 = vweird.f32 %v6475
    %vm6482 = vmor %vm6480, %vm6481
    %v6483 = vsel %vm6482, %v6475, %v6479
    %v6484 = vand.u32 2147483647, %v6457
    %vm6485 = vcmp.eq.f32.partialorder %v6484, 8.507059e+37
    %v6486 = vand.u32 %v6457, 2147483648
    %v6487 = vor.u32 1.1754944e-38, %v6486
    %v6488 = vsel %vm6485, %v6487, %v6483
    %v6489 = vmul.f32 1.0, %v6488
    %v6490 = vrcp.pop %v6458
    %v6491 = vmul.f32 %v6458, %v6490
    %v6492 = vsub.f32 1.0, %v6491
    %v6493 = vmul.f32 %v6490, %v6492
    %v6494 = vadd.f32 %v6490, %v6493
    %vm6495 = vweird.f32 %v6458
    %vm6496 = vweird.f32 %v6490
    %vm6497 = vmor %vm6495, %vm6496
    %v6498 = vsel %vm6497, %v6490, %v6494
    %v6499 = vand.u32 2147483647, %v6458
    %vm6500 = vcmp.eq.f32.partialorder %v6499, 8.507059e+37
    %v6501 = vand.u32 %v6458, 2147483648
    %v6502 = vor.u32 1.1754944e-38, %v6501
    %v6503 = vsel %vm6500, %v6502, %v6498
    %v6504 = vmul.f32 1.0, %v6503
    %v6505 = vrcp.pop %v6459
    %v6506 = vmul.f32 %v6459, %v6505
    %v6507 = vsub.f32 1.0, %v6506
    %v6508 = vmul.f32 %v6505, %v6507
    %v6509 = vadd.f32 %v6505, %v6508
    %vm6510 = vweird.f32 %v6459
    %vm6511 = vweird.f32 %v6505
    %vm6512 = vmor %vm6510, %vm6511
    %v6513 = vsel %vm6512, %v6505, %v6509
    %v6514 = vand.u32 2147483647, %v6459
    %vm6515 = vcmp.eq.f32.partialorder %v6514, 8.507059e+37
    %v6516 = vand.u32 %v6459, 2147483648
    %v6517 = vor.u32 1.1754944e-38, %v6516
    %v6518 = vsel %vm6515, %v6517, %v6513
    %v6519 = vmul.f32 1.0, %v6518
    %v6520 = vld [vmem:[%s12] sm:$0x1]
    %v6522 = vperm.slane %v6520, 0
    %v6524 = vadd.f32 %v6351, %v6522
    %v6525 = vadd.f32 %v6353, %v6522
    %v6526 = vadd.f32 %v6356, %v6522
    %v6527 = vadd.f32 %v6358, %v6522
    %v6528 = vmul.f32 %v6394, %v6524
    %v6529 = vmul.f32 %v6409, %v6525
    %v6530 = vmul.f32 %v6424, %v6526
    %v6531 = vmul.f32 %v6439, %v6527
    %v6532 = vadd.f32 %v6131, %v6528
    %v6533 = vadd.f32 %v6134, %v6529
    %v6534 = vadd.f32 %v6137, %v6530
    %v6535 = vadd.f32 %v6140, %v6531
    %v6536 = vtanh.pop %v6532
    %v6537 = vtanh.pop %v6533
    %v6538 = vtanh.pop %v6534
    %v6539 = vtanh.pop %v6535
    %v6540 = vsub.f32 %v6117, %v6536
    %v6541 = vsub.f32 %v6118, %v6537
    %v6542 = vsub.f32 %v6119, %v6538
    %v6543 = vsub.f32 %v6120, %v6539
    %v6544 = vmul.f32 %v6474, %v6540
    %v6545 = vmul.f32 %v6489, %v6541
    %v6546 = vmul.f32 %v6504, %v6542
    %v6547 = vmul.f32 %v6519, %v6543
    %v6548 = vadd.f32 %v6536, %v6544
    %v6549 = vadd.f32 %v6537, %v6545
    %v6550 = vadd.f32 %v6538, %v6546
    %v6551 = vadd.f32 %v6539, %v6547
    %s6552 = scalar_lea.vmem %s13, 64
    %6553 = vst [vmem:[%s6552] sm:$0xff] %v6548
    %6554 = vst [vmem:[%s6552 + $0x8] sm:$0xff] %v6549
    %6555 = vst [vmem:[%s6552 + $0x10] sm:$0xff] %v6550
    %6556 = vst [vmem:[%s6552 + $0x18] sm:$0xff] %v6551
    %v6557 = vld [vmem:[%s13 + $0x48] sm:$0xff]
    %6558 = vst [vmem:[%s14 + $0x10] sm:$0xff] %v6557
    // Predicated region
    $region78: #{drnn_forward.1} parent=1 // pred_check
      _
    $region79: #{drnn_forward.1} parent=1 // pred_check_branch
      %6560 = sbr.rel (0) target = $region81
    $region80: #{drnn_forward.1} parent=1 // pred_region
      _
    $region81: #{drnn_forward.1} parent=1 // pred_fallthru
      _
    // Predicated region
    $region82: #{drnn_forward.1} parent=1 // pred_check
      _
    $region83: #{drnn_forward.1} parent=1 // pred_check_branch
      %6562 = sbr.rel (0) target = $region85
    $region84: #{drnn_forward.1} parent=1 // pred_region
      _
    $region85: #{drnn_forward.1} parent=1 // pred_fallthru
      _
    // Predicated region
    $region86: #{drnn_forward.1} parent=1 // pred_check
      _
    $region87: #{drnn_forward.1} parent=1 // pred_check_branch
      %6564 = sbr.rel (0) target = $region89
    $region88: #{drnn_forward.1} parent=1 // pred_region
      _
    $region89: #{drnn_forward.1} parent=1 // pred_fallthru
      _
    // Predicated region
    $region90: #{drnn_forward.1} parent=1 // pred_check
      _
    $region91: #{drnn_forward.1} parent=1 // pred_check_branch
      %6566 = sbr.rel (0) target = $region93
    $region92: #{drnn_forward.1} parent=1 // pred_region
      _
    $region93: #{drnn_forward.1} parent=1 // pred_fallthru
      _
    %6567 = vsyncpa [#allocation4], 1
    %6568 = vsyncpa [#allocation6], 1
    %6569 = vsyncpa [#allocation9], 1
    %6570 = vsyncpa [#allocation12], 1

</llo_original>
